<compile_context>
chip_gen: v7x
topology: tpu7x:2x2x1
jax: 0.10.0
libtpu: 0.0.40
codegen_flags: <defaults>
</compile_context>

<pallas_src>
import functools

import jax
import jax.numpy as jnp
from jax.experimental import pallas as pl
from jax.experimental.pallas import tpu as pltpu

CP = 128  # padded channel width (lane-dense)


def _round_up(x, m):
    return (x + m - 1) // m * m


# ----------------------------------------------------------------------------
# Body stage kernel: (space-to-depth'ed feature) @ W + b, ReLU.
# ----------------------------------------------------------------------------
def _body_stage_kernel(x_ref, w_ref, b_ref, o_ref):
    # x_ref: (1, M, K) bf16, w_ref: (K, 128) bf16, b_ref: (1, 128) f32
    acc = jnp.dot(x_ref[0], w_ref[...], preferred_element_type=jnp.float32)
    acc = jnp.maximum(acc + b_ref[...], 0.0)
    o_ref[0] = acc.astype(o_ref.dtype)


def body_stage(x, w, b):
    """One stand-in body stage.  x: (N, M, K) bf16 -> (N, M, 128) bf16."""
    n, m, k = x.shape
    cp = w.shape[1]
    return pl.pallas_call(
        _body_stage_kernel,
        out_shape=jax.ShapeDtypeStruct((n, m, cp), jnp.bfloat16),
        grid=(n,),
        in_specs=[
            pl.BlockSpec((1, m, k), lambda i: (i, 0, 0)),
            pl.BlockSpec((k, cp), lambda i: (0, 0)),
            pl.BlockSpec((1, cp), lambda i: (0, 0)),
        ],
        out_specs=pl.BlockSpec((1, m, cp), lambda i: (i, 0, 0)),
        compiler_params=pltpu.CompilerParams(dimension_semantics=("parallel",)),
    )(x, w, b)


# ----------------------------------------------------------------------------
# Fused per-level FPN kernel:
#   inner = lateral_1x1(feat) [+ nearest_up2x(coarse_inner)]
#   out   = conv3x3(inner)                      (im2col fused in-kernel)
# ----------------------------------------------------------------------------
def _fpn_level_kernel(*refs, H, W, P, has_coarse):
    if has_coarse:
        (feat_ref, coarse_ref, u_ref, wl_ref, bl_ref, wo_ref, bo_ref,
         inner_ref, out_ref, pad_ref) = refs
    else:
        (feat_ref, wl_ref, bl_ref, wo_ref, bo_ref,
         inner_ref, out_ref, pad_ref) = refs
    hw = H * W
    cp = wl_ref.shape[-1]

    # lateral 1x1 conv: bf16 MXU operands, f32 accumulation, f32 bias.
    inner = jnp.dot(feat_ref[0], wl_ref[...],
                    preferred_element_type=jnp.float32) + bl_ref[...]
    if has_coarse:
        # fused top-down merge: nearest 2x upsample expressed as a 0/1 matmul
        # (U: fine-row -> coarse-row selector), added in the f32 epilogue.
        inner = inner + jnp.dot(u_ref[...], coarse_ref[0],
                                preferred_element_type=jnp.float32)

    # Emit the merged map (row-padded to 128 rows, zero filled) so the next
    # (finer) level can consume it with lane/sublane-aligned blocks.
    inner_ref[0] = jnp.zeros((inner_ref.shape[1], inner_ref.shape[2]),
                             inner_ref.dtype)
    inner_ref[0, :hw, :] = inner.astype(inner_ref.dtype)

    # Fused im2col for the 3x3 / stride-1 / pad-1 output conv on flat rows:
    # place the map between P zero guard rows; tap (dy,dx) is then just a
    # row-shift by dy*W+dx, with a column-validity mask for horizontal wrap.
    pad_ref[...] = jnp.zeros_like(pad_ref)
    pad_ref[P:P + hw, :] = inner

    row = jax.lax.broadcasted_iota(jnp.int32, (hw, 1), 0)
    if W & (W - 1) == 0:            # power-of-two fast path
        w_pos = jnp.bitwise_and(row, W - 1)
    else:
        w_pos = row % W

    acc = jnp.zeros((hw, cp), jnp.float32)
    for t in range(9):              # static unroll: 9 MXU taps into f32 acc
        dy, dx = t // 3 - 1, t % 3 - 1
        s = P + dy * W + dx
        tap = pad_ref[s:s + hw, :]
        if dx != 0:
            valid = (w_pos + dx >= 0) & (w_pos + dx < W)
            tap = jnp.where(valid, tap, jnp.zeros_like(tap))
        acc = acc + jnp.dot(tap.astype(jnp.bfloat16), wo_ref[t],
                            preferred_element_type=jnp.float32)
    out_ref[0] = acc + bo_ref[...]


def fpn_level(feat, w_lat, b_lat, w_out, b_out, H, W, coarse=None, U=None):
    """One FPN level.  feat: (N, H*W, 128) bf16.  Returns (inner, out)."""
    n, hw, cp = feat.shape
    assert hw == H * W
    P = _round_up(W + 1, 8)                 # aligned zero-guard size
    has_coarse = coarse is not None

    in_specs = [pl.BlockSpec((1, hw, cp), lambda i: (i, 0, 0))]
    args = [feat]
    if has_coarse:
        in_specs += [
            pl.BlockSpec((1, coarse.shape[1], cp), lambda i: (i, 0, 0)),
            pl.BlockSpec((hw, cp), lambda i: (0, 0)),
        ]
        args += [coarse, U]
    in_specs += [
        pl.BlockSpec((cp, cp), lambda i: (0, 0)),
        pl.BlockSpec((1, cp), lambda i: (0, 0)),
        pl.BlockSpec((9, cp, cp), lambda i: (0, 0, 0)),
        pl.BlockSpec((1, cp), lambda i: (0, 0)),
    ]
    args += [w_lat, b_lat, w_out, b_out]

    kernel = functools.partial(_fpn_level_kernel, H=H, W=W, P=P,
                               has_coarse=has_coarse)
    inner, out = pl.pallas_call(
        kernel,
        out_shape=(jax.ShapeDtypeStruct((n, CP, cp), jnp.bfloat16),
                   jax.ShapeDtypeStruct((n, hw, cp), jnp.float32)),
        grid=(n,),
        in_specs=in_specs,
        out_specs=(pl.BlockSpec((1, CP, cp), lambda i: (i, 0, 0)),
                   pl.BlockSpec((1, hw, cp), lambda i: (i, 0, 0))),
        scratch_shapes=[pltpu.VMEM((hw + 2 * P, cp), jnp.float32)],
        compiler_params=pltpu.CompilerParams(dimension_semantics=("parallel",)),
    )(*args)
    return inner, out


# ----------------------------------------------------------------------------
# Glue (pure data movement, stays in XLA)
# ----------------------------------------------------------------------------
def space_to_depth2(x_nhwc):
    n, h, w, c = x_nhwc.shape
    x = x_nhwc.reshape(n, h // 2, 2, w // 2, 2, c)
    x = x.transpose(0, 1, 3, 2, 4, 5)
    return x.reshape(n, h // 2, w // 2, 4 * c)


def upsample_matrix(H, W):
    """0/1 selector mapping coarse (H//2,W//2) rows to fine (H,W) rows (nearest)."""
    wc = W // 2
    rows = jnp.arange(H * W)
    idx = (rows // W // 2) * wc + (rows % W) // 2
    return jax.nn.one_hot(idx, CP, dtype=jnp.float32).astype(jnp.bfloat16)


# ----------------------------------------------------------------------------
# Parameters (deterministic, synthetic; zero-embedded into lane-dense layouts)
# ----------------------------------------------------------------------------
def init_params(key, in_c, in_channels_list, out_channel):
    n_lvl = len(in_channels_list)
    keys = jax.random.split(key, 3 * n_lvl)
    p = {"body": [], "lateral": [], "output": []}
    ki = 0
    prev = in_c
    # body: one stride-2 (space-to-depth + 1x1 conv + ReLU) stage per level.
    # TODO(synk): real DenseNet dense blocks are not reproduced here; only the
    # multi-scale feature-map contract of DenseNetLayerGetter is preserved.
    for c in in_channels_list:
        w_real = jax.random.normal(keys[ki], (4, prev, c), jnp.float32) * 0.1
        ki += 1
        w = jnp.zeros((4 * CP, CP), jnp.float32)
        for pos in range(4):
            w = w.at[pos * CP: pos * CP + prev, :c].set(w_real[pos])
        p["body"].append((w.astype(jnp.bfloat16),
                          jnp.zeros((1, CP), jnp.float32)))
        prev = c
    # FPN lateral 1x1 convs, zero-embedded into 128x128 (lane-dense) weights.
    for c in in_channels_list:
        w_real = jax.random.normal(keys[ki], (c, out_channel), jnp.float32) * 0.1
        ki += 1
        w = jnp.zeros((CP, CP), jnp.float32).at[:c, :out_channel].set(w_real)
        p["lateral"].append((w.astype(jnp.bfloat16),
                             jnp.zeros((1, CP), jnp.float32)))
    # FPN 3x3 output convs, stored per-tap: (9, 128, 128).
    for _ in in_channels_list:
        w_real = jax.random.normal(keys[ki], (9, out_channel, out_channel),
                                   jnp.float32) * 0.1
        ki += 1
        w = jnp.zeros((9, CP, CP), jnp.float32)
        w = w.at[:, :out_channel, :out_channel].set(w_real)
        p["output"].append((w.astype(jnp.bfloat16),
                            jnp.zeros((1, CP), jnp.float32)))
    return p


# ----------------------------------------------------------------------------
# Forward = body (multi-scale features) -> FPN (+ maxpool-on-P5 extra block)
# ----------------------------------------------------------------------------
def backbone_with_fpn_forward(params, x_nchw, out_channel):
    x = jnp.transpose(x_nchw, (0, 2, 3, 1))                  # NCHW -> NHWC
    n, _, _, c0 = x.shape
    x = jnp.pad(x, ((0, 0), (0, 0), (0, 0), (0, CP - c0))).astype(jnp.bfloat16)

    # ---- body: stride-2 stand-in stages, one per pyramid level -------------
    feats, dims = [], []
    h = x
    for (w, b) in params["body"]:
        nb, hb, wb, _ = h.shape
        ho, wo = hb // 2, wb // 2
        s2d = space_to_depth2(h).reshape(nb, ho * wo, 4 * CP)
        f = body_stage(s2d, w, b)                            # (n, ho*wo, 128)
        feats.append(f)
        dims.append((ho, wo))
        h = f.reshape(nb, ho, wo, CP)

    # ---- FPN: per-level fused (lateral + top-down merge + 3x3 output) ------
    n_lvl = len(feats)
    outs = [None] * n_lvl
    w_lat, b_lat = params["lateral"][-1]
    w_out, b_out = params["output"][-1]
    ht, wt = dims[-1]
    inner, outs[-1] = fpn_level(feats[-1], w_lat, b_lat, w_out, b_out, ht, wt)
    for idx in range(n_lvl - 2, -1, -1):
        hi, wi = dims[idx]
        w_lat, b_lat = params["lateral"][idx]
        w_out, b_out = params["output"][idx]
        inner, outs[idx] = fpn_level(feats[idx], w_lat, b_lat, w_out, b_out,
                                     hi, wi, coarse=inner,
                                     U=upsample_matrix(hi, wi))

    # ---- outputs: slice off channel padding, back to NCHW ------------------
    results = {}
    for i, (o, (hi, wi)) in enumerate(zip(outs, dims)):
        o = o.reshape(n, hi, wi, CP)[..., :out_channel]
        results[str(i)] = jnp.transpose(o, (0, 3, 1, 2))
    # extra block MaxpoolOnP5: max_pool2d(kernel=1, stride=2) == subsampling.
    ht, wt = dims[-1]
    last = outs[-1].reshape(n, ht, wt, CP)[..., :out_channel]
    results["pool"] = jnp.transpose(last[:, ::2, ::2, :], (0, 3, 1, 2))
    return results


# ----------------------------------------------------------------------------
if __name__ == "__main__":
    key = jax.random.PRNGKey(0)
    kx, kp = jax.random.split(key)

    batch, in_c, spatial = 2, 4, 16
    in_channels_list = [8, 16, 32]
    out_channel = 8

    x = jax.random.normal(kx, (batch, in_c, spatial, spatial), jnp.float32)
    params = init_params(kp, in_c, in_channels_list, out_channel)

    fwd = jax.jit(functools.partial(backbone_with_fpn_forward, params,
                                    out_channel=out_channel))
    out = fwd(x)
    jax.block_until_ready(out)

    expected = {
        "0": (batch, out_channel, 8, 8),
        "1": (batch, out_channel, 4, 4),
        "2": (batch, out_channel, 2, 2),
        "pool": (batch, out_channel, 1, 1),
    }
    got = {k: tuple(v.shape) for k, v in out.items()}
    assert got == expected, (got, expected)
    assert all(v.dtype == jnp.float32 for v in out.values())
    for v in out.values():
        assert bool(jnp.all(jnp.isfinite(v)))
    print("KERNEL_OK")
</pallas_src>

<mosaic_0001>
module attributes {stable_mosaic.version = 11 : i64} {
  func.func @_body_stage_kernel(%arg0: i32, %arg1: memref<1x64x512xbf16, #tpu.memory_space<vmem>>, %arg2: memref<512x128xbf16, #tpu.memory_space<vmem>>, %arg3: memref<1x128xf32, #tpu.memory_space<vmem>>, %arg4: memref<1x64x128xbf16, #tpu.memory_space<vmem>>) attributes {dimension_semantics = [#tpu.dimension_semantics<parallel>], iteration_bounds = array<i64: 2>, scalar_prefetch = 0 : i64, scratch_operands = 0 : i64, tpu.core_type = #tpu.core_type<tc>, window_params = [{transform_indices = @transform_0, window_bounds = array<i64: 1, 64, 512>}, {pipeline_mode = #tpu.pipeline_mode<synchronous>, transform_indices = @transform_1, window_bounds = array<i64: 512, 128>}, {pipeline_mode = #tpu.pipeline_mode<synchronous>, transform_indices = @transform_2, window_bounds = array<i64: 1, 128>}, {transform_indices = @transform_3, window_bounds = array<i64: 1, 64, 128>}]} {
    %c0 = arith.constant 0 : index
    %c0_0 = arith.constant 0 : index
    %c0_1 = arith.constant 0 : index
    %0 = vector.load %arg1[%c0, %c0_0, %c0_1] : memref<1x64x512xbf16, #tpu.memory_space<vmem>>, vector<1x64x512xbf16>
    %1 = vector.shape_cast %0 : vector<1x64x512xbf16> to vector<64x512xbf16>
    %c0_2 = arith.constant 0 : index
    %c0_3 = arith.constant 0 : index
    %2 = vector.load %arg2[%c0_2, %c0_3] : memref<512x128xbf16, #tpu.memory_space<vmem>>, vector<512x128xbf16>
    %cst = arith.constant dense<0.000000e+00> : vector<64x128xf32>
    %3 = tpu.matmul %1, %2, %cst {dimension_numbers = #tpu.dot_dimension_numbers<[1], [0], [0], [1], [0, 0, 1, 1], [], []>} : vector<64x512xbf16>, vector<512x128xbf16>, vector<64x128xf32> -> vector<64x128xf32>
    %c0_4 = arith.constant 0 : index
    %c0_5 = arith.constant 0 : index
    %4 = vector.load %arg3[%c0_4, %c0_5] : memref<1x128xf32, #tpu.memory_space<vmem>>, vector<1x128xf32>
    %5 = vector.broadcast %4 : vector<1x128xf32> to vector<64x128xf32>
    %6 = arith.addf %3, %5 : vector<64x128xf32>
    %cst_6 = arith.constant 0.000000e+00 : f32
    %7 = vector.broadcast %cst_6 : f32 to vector<64x128xf32>
    %8 = arith.maximumf %6, %7 : vector<64x128xf32>
    %9 = arith.truncf %8 : vector<64x128xf32> to vector<64x128xbf16>
    %c0_7 = arith.constant 0 : index
    %c0_8 = arith.constant 0 : index
    %c0_9 = arith.constant 0 : index
    %10 = vector.load %arg4[%c0_7, %c0_8, %c0_9] : memref<1x64x128xbf16, #tpu.memory_space<vmem>>, vector<1x64x128xbf16>
    %11 = vector.shape_cast %10 : vector<1x64x128xbf16> to vector<64x128xbf16>
    %12 = vector.shape_cast %9 : vector<64x128xbf16> to vector<1x64x128xbf16>
    tpu.vector_store %arg4[%c0_7, %c0_8, %c0_9], %12 {strides = array<i32>} : memref<1x64x128xbf16, #tpu.memory_space<vmem>>, vector<1x64x128xbf16>,
    return
  }
  func.func @transform_0(%arg0: i32) -> (i32, i32, i32) {
    %c0_i32 = arith.constant 0 : i32
    %c0_i32_0 = arith.constant 0 : i32
    %c0_i32_1 = arith.constant 0 : i32
    return %arg0, %c0_i32, %c0_i32_0 : i32, i32, i32
  }
  func.func @transform_1(%arg0: i32) -> (i32, i32) {
    %c0_i32 = arith.constant 0 : i32
    %c0_i32_0 = arith.constant 0 : i32
    %c0_i32_1 = arith.constant 0 : i32
    return %c0_i32, %c0_i32_0 : i32, i32
  }
  func.func @transform_2(%arg0: i32) -> (i32, i32) {
    %c0_i32 = arith.constant 0 : i32
    %c0_i32_0 = arith.constant 0 : i32
    %c0_i32_1 = arith.constant 0 : i32
    return %c0_i32, %c0_i32_0 : i32, i32
  }
  func.func @transform_3(%arg0: i32) -> (i32, i32, i32) {
    %c0_i32 = arith.constant 0 : i32
    %c0_i32_0 = arith.constant 0 : i32
    %c0_i32_1 = arith.constant 0 : i32
    return %arg0, %c0_i32, %c0_i32_0 : i32, i32, i32
  }
}

module attributes {stable_mosaic.version = 11 : i64} {
  func.func @_body_stage_kernel(%arg0: i32, %arg1: memref<1x16x512xbf16, #tpu.memory_space<vmem>>, %arg2: memref<512x128xbf16, #tpu.memory_space<vmem>>, %arg3: memref<1x128xf32, #tpu.memory_space<vmem>>, %arg4: memref<1x16x128xbf16, #tpu.memory_space<vmem>>) attributes {dimension_semantics = [#tpu.dimension_semantics<parallel>], iteration_bounds = array<i64: 2>, scalar_prefetch = 0 : i64, scratch_operands = 0 : i64, tpu.core_type = #tpu.core_type<tc>, window_params = [{transform_indices = @transform_0, window_bounds = array<i64: 1, 16, 512>}, {pipeline_mode = #tpu.pipeline_mode<synchronous>, transform_indices = @transform_1, window_bounds = array<i64: 512, 128>}, {pipeline_mode = #tpu.pipeline_mode<synchronous>, transform_indices = @transform_2, window_bounds = array<i64: 1, 128>}, {transform_indices = @transform_3, window_bounds = array<i64: 1, 16, 128>}]} {
    %c0 = arith.constant 0 : index
    %c0_0 = arith.constant 0 : index
    %c0_1 = arith.constant 0 : index
    %0 = vector.load %arg1[%c0, %c0_0, %c0_1] : memref<1x16x512xbf16, #tpu.memory_space<vmem>>, vector<1x16x512xbf16>
    %1 = vector.shape_cast %0 : vector<1x16x512xbf16> to vector<16x512xbf16>
    %c0_2 = arith.constant 0 : index
    %c0_3 = arith.constant 0 : index
    %2 = vector.load %arg2[%c0_2, %c0_3] : memref<512x128xbf16, #tpu.memory_space<vmem>>, vector<512x128xbf16>
    %cst = arith.constant dense<0.000000e+00> : vector<16x128xf32>
    %3 = tpu.matmul %1, %2, %cst {dimension_numbers = #tpu.dot_dimension_numbers<[1], [0], [0], [1], [0, 0, 1, 1], [], []>} : vector<16x512xbf16>, vector<512x128xbf16>, vector<16x128xf32> -> vector<16x128xf32>
    %c0_4 = arith.constant 0 : index
    %c0_5 = arith.constant 0 : index
    %4 = vector.load %arg3[%c0_4, %c0_5] : memref<1x128xf32, #tpu.memory_space<vmem>>, vector<1x128xf32>
    %5 = vector.broadcast %4 : vector<1x128xf32> to vector<16x128xf32>
    %6 = arith.addf %3, %5 : vector<16x128xf32>
    %cst_6 = arith.constant 0.000000e+00 : f32
    %7 = vector.broadcast %cst_6 : f32 to vector<16x128xf32>
    %8 = arith.maximumf %6, %7 : vector<16x128xf32>
    %9 = arith.truncf %8 : vector<16x128xf32> to vector<16x128xbf16>
    %c0_7 = arith.constant 0 : index
    %c0_8 = arith.constant 0 : index
    %c0_9 = arith.constant 0 : index
    %10 = vector.load %arg4[%c0_7, %c0_8, %c0_9] : memref<1x16x128xbf16, #tpu.memory_space<vmem>>, vector<1x16x128xbf16>
    %11 = vector.shape_cast %10 : vector<1x16x128xbf16> to vector<16x128xbf16>
    %12 = vector.shape_cast %9 : vector<16x128xbf16> to vector<1x16x128xbf16>
    tpu.vector_store %arg4[%c0_7, %c0_8, %c0_9], %12 {strides = array<i32>} : memref<1x16x128xbf16, #tpu.memory_space<vmem>>, vector<1x16x128xbf16>,
    return
  }
  func.func @transform_0(%arg0: i32) -> (i32, i32, i32) {
    %c0_i32 = arith.constant 0 : i32
    %c0_i32_0 = arith.constant 0 : i32
    %c0_i32_1 = arith.constant 0 : i32
    return %arg0, %c0_i32, %c0_i32_0 : i32, i32, i32
  }
  func.func @transform_1(%arg0: i32) -> (i32, i32) {
    %c0_i32 = arith.constant 0 : i32
    %c0_i32_0 = arith.constant 0 : i32
    %c0_i32_1 = arith.constant 0 : i32
    return %c0_i32, %c0_i32_0 : i32, i32
  }
  func.func @transform_2(%arg0: i32) -> (i32, i32) {
    %c0_i32 = arith.constant 0 : i32
    %c0_i32_0 = arith.constant 0 : i32
    %c0_i32_1 = arith.constant 0 : i32
    return %c0_i32, %c0_i32_0 : i32, i32
  }
  func.func @transform_3(%arg0: i32) -> (i32, i32, i32) {
    %c0_i32 = arith.constant 0 : i32
    %c0_i32_0 = arith.constant 0 : i32
    %c0_i32_1 = arith.constant 0 : i32
    return %arg0, %c0_i32, %c0_i32_0 : i32, i32, i32
  }
}

module attributes {stable_mosaic.version = 11 : i64} {
  func.func @_body_stage_kernel(%arg0: i32, %arg1: memref<1x4x512xbf16, #tpu.memory_space<vmem>>, %arg2: memref<512x128xbf16, #tpu.memory_space<vmem>>, %arg3: memref<1x128xf32, #tpu.memory_space<vmem>>, %arg4: memref<1x4x128xbf16, #tpu.memory_space<vmem>>) attributes {dimension_semantics = [#tpu.dimension_semantics<parallel>], iteration_bounds = array<i64: 2>, scalar_prefetch = 0 : i64, scratch_operands = 0 : i64, tpu.core_type = #tpu.core_type<tc>, window_params = [{transform_indices = @transform_0, window_bounds = array<i64: 1, 4, 512>}, {pipeline_mode = #tpu.pipeline_mode<synchronous>, transform_indices = @transform_1, window_bounds = array<i64: 512, 128>}, {pipeline_mode = #tpu.pipeline_mode<synchronous>, transform_indices = @transform_2, window_bounds = array<i64: 1, 128>}, {transform_indices = @transform_3, window_bounds = array<i64: 1, 4, 128>}]} {
    %c0 = arith.constant 0 : index
    %c0_0 = arith.constant 0 : index
    %c0_1 = arith.constant 0 : index
    %0 = vector.load %arg1[%c0, %c0_0, %c0_1] : memref<1x4x512xbf16, #tpu.memory_space<vmem>>, vector<1x4x512xbf16>
    %1 = vector.shape_cast %0 : vector<1x4x512xbf16> to vector<4x512xbf16>
    %c0_2 = arith.constant 0 : index
    %c0_3 = arith.constant 0 : index
    %2 = vector.load %arg2[%c0_2, %c0_3] : memref<512x128xbf16, #tpu.memory_space<vmem>>, vector<512x128xbf16>
    %cst = arith.constant dense<0.000000e+00> : vector<4x128xf32>
    %3 = tpu.matmul %1, %2, %cst {dimension_numbers = #tpu.dot_dimension_numbers<[1], [0], [0], [1], [0, 0, 1, 1], [], []>} : vector<4x512xbf16>, vector<512x128xbf16>, vector<4x128xf32> -> vector<4x128xf32>
    %c0_4 = arith.constant 0 : index
    %c0_5 = arith.constant 0 : index
    %4 = vector.load %arg3[%c0_4, %c0_5] : memref<1x128xf32, #tpu.memory_space<vmem>>, vector<1x128xf32>
    %5 = vector.broadcast %4 : vector<1x128xf32> to vector<4x128xf32>
    %6 = arith.addf %3, %5 : vector<4x128xf32>
    %cst_6 = arith.constant 0.000000e+00 : f32
    %7 = vector.broadcast %cst_6 : f32 to vector<4x128xf32>
    %8 = arith.maximumf %6, %7 : vector<4x128xf32>
    %9 = arith.truncf %8 : vector<4x128xf32> to vector<4x128xbf16>
    %c0_7 = arith.constant 0 : index
    %c0_8 = arith.constant 0 : index
    %c0_9 = arith.constant 0 : index
    %10 = vector.load %arg4[%c0_7, %c0_8, %c0_9] : memref<1x4x128xbf16, #tpu.memory_space<vmem>>, vector<1x4x128xbf16>
    %11 = vector.shape_cast %10 : vector<1x4x128xbf16> to vector<4x128xbf16>
    %12 = vector.shape_cast %9 : vector<4x128xbf16> to vector<1x4x128xbf16>
    tpu.vector_store %arg4[%c0_7, %c0_8, %c0_9], %12 {strides = array<i32>} : memref<1x4x128xbf16, #tpu.memory_space<vmem>>, vector<1x4x128xbf16>,
    return
  }
  func.func @transform_0(%arg0: i32) -> (i32, i32, i32) {
    %c0_i32 = arith.constant 0 : i32
    %c0_i32_0 = arith.constant 0 : i32
    %c0_i32_1 = arith.constant 0 : i32
    return %arg0, %c0_i32, %c0_i32_0 : i32, i32, i32
  }
  func.func @transform_1(%arg0: i32) -> (i32, i32) {
    %c0_i32 = arith.constant 0 : i32
    %c0_i32_0 = arith.constant 0 : i32
    %c0_i32_1 = arith.constant 0 : i32
    return %c0_i32, %c0_i32_0 : i32, i32
  }
  func.func @transform_2(%arg0: i32) -> (i32, i32) {
    %c0_i32 = arith.constant 0 : i32
    %c0_i32_0 = arith.constant 0 : i32
    %c0_i32_1 = arith.constant 0 : i32
    return %c0_i32, %c0_i32_0 : i32, i32
  }
  func.func @transform_3(%arg0: i32) -> (i32, i32, i32) {
    %c0_i32 = arith.constant 0 : i32
    %c0_i32_0 = arith.constant 0 : i32
    %c0_i32_1 = arith.constant 0 : i32
    return %arg0, %c0_i32, %c0_i32_0 : i32, i32, i32
  }
}

module attributes {stable_mosaic.version = 11 : i64} {
  func.func @_fpn_level_kernel(%arg0: i32, %arg1: memref<1x4x128xbf16, #tpu.memory_space<vmem>>, %arg2: memref<128x128xbf16, #tpu.memory_space<vmem>>, %arg3: memref<1x128xf32, #tpu.memory_space<vmem>>, %arg4: memref<9x128x128xbf16, #tpu.memory_space<vmem>>, %arg5: memref<1x128xf32, #tpu.memory_space<vmem>>, %arg6: memref<1x128x128xbf16, #tpu.memory_space<vmem>>, %arg7: memref<1x4x128xf32, #tpu.memory_space<vmem>>, %arg8: memref<20x128xf32, #tpu.memory_space<vmem>>) attributes {dimension_semantics = [#tpu.dimension_semantics<parallel>], iteration_bounds = array<i64: 2>, scalar_prefetch = 0 : i64, scratch_operands = 1 : i64, tpu.core_type = #tpu.core_type<tc>, window_params = [{transform_indices = @transform_0, window_bounds = array<i64: 1, 4, 128>}, {pipeline_mode = #tpu.pipeline_mode<synchronous>, transform_indices = @transform_1, window_bounds = array<i64: 128, 128>}, {pipeline_mode = #tpu.pipeline_mode<synchronous>, transform_indices = @transform_2, window_bounds = array<i64: 1, 128>}, {pipeline_mode = #tpu.pipeline_mode<synchronous>, transform_indices = @transform_3, window_bounds = array<i64: 9, 128, 128>}, {pipeline_mode = #tpu.pipeline_mode<synchronous>, transform_indices = @transform_4, window_bounds = array<i64: 1, 128>}, {transform_indices = @transform_5, window_bounds = array<i64: 1, 128, 128>}, {transform_indices = @transform_6, window_bounds = array<i64: 1, 4, 128>}]} {
    %c0 = arith.constant 0 : index
    %c0_0 = arith.constant 0 : index
    %c0_1 = arith.constant 0 : index
    %0 = vector.load %arg1[%c0, %c0_0, %c0_1] : memref<1x4x128xbf16, #tpu.memory_space<vmem>>, vector<1x4x128xbf16>
    %1 = vector.shape_cast %0 : vector<1x4x128xbf16> to vector<4x128xbf16>
    %c0_2 = arith.constant 0 : index
    %c0_3 = arith.constant 0 : index
    %2 = vector.load %arg2[%c0_2, %c0_3] : memref<128x128xbf16, #tpu.memory_space<vmem>>, vector<128x128xbf16>
    %cst = arith.constant dense<0.000000e+00> : vector<4x128xf32>
    %3 = tpu.matmul %1, %2, %cst {dimension_numbers = #tpu.dot_dimension_numbers<[1], [0], [0], [1], [0, 0, 1, 1], [], []>} : vector<4x128xbf16>, vector<128x128xbf16>, vector<4x128xf32> -> vector<4x128xf32>
    %c0_4 = arith.constant 0 : index
    %c0_5 = arith.constant 0 : index
    %4 = vector.load %arg3[%c0_4, %c0_5] : memref<1x128xf32, #tpu.memory_space<vmem>>, vector<1x128xf32>
    %5 = vector.broadcast %4 : vector<1x128xf32> to vector<4x128xf32>
    %6 = arith.addf %3, %5 : vector<4x128xf32>
    %cst_6 = arith.constant 0.000000e+00 : bf16
    %7 = vector.broadcast %cst_6 : bf16 to vector<128x128xbf16>
    %c0_7 = arith.constant 0 : index
    %c0_8 = arith.constant 0 : index
    %c0_9 = arith.constant 0 : index
    %8 = vector.load %arg6[%c0_7, %c0_8, %c0_9] : memref<1x128x128xbf16, #tpu.memory_space<vmem>>, vector<1x128x128xbf16>
    %9 = vector.shape_cast %8 : vector<1x128x128xbf16> to vector<128x128xbf16>
    %10 = vector.shape_cast %7 : vector<128x128xbf16> to vector<1x128x128xbf16>
    tpu.vector_store %arg6[%c0_7, %c0_8, %c0_9], %10 {strides = array<i32>} : memref<1x128x128xbf16, #tpu.memory_space<vmem>>, vector<1x128x128xbf16>,
    %11 = arith.truncf %6 : vector<4x128xf32> to vector<4x128xbf16>
    %c0_10 = arith.constant 0 : index
    %c0_11 = arith.constant 0 : index
    %c0_12 = arith.constant 0 : index
    %12 = vector.load %arg6[%c0_10, %c0_11, %c0_12] : memref<1x128x128xbf16, #tpu.memory_space<vmem>>, vector<1x4x128xbf16>
    %13 = vector.shape_cast %12 : vector<1x4x128xbf16> to vector<4x128xbf16>
    %14 = vector.shape_cast %11 : vector<4x128xbf16> to vector<1x4x128xbf16>
    tpu.vector_store %arg6[%c0_10, %c0_11, %c0_12], %14 {strides = array<i32>} : memref<1x128x128xbf16, #tpu.memory_space<vmem>>, vector<1x4x128xbf16>,
    %cst_13 = arith.constant 0.000000e+00 : f32
    %15 = vector.broadcast %cst_13 : f32 to vector<20x128xf32>
    %c0_14 = arith.constant 0 : index
    %c0_15 = arith.constant 0 : index
    %16 = vector.load %arg8[%c0_14, %c0_15] : memref<20x128xf32, #tpu.memory_space<vmem>>, vector<20x128xf32>
    tpu.vector_store %arg8[%c0_14, %c0_15], %15 {strides = array<i32>} : memref<20x128xf32, #tpu.memory_space<vmem>>, vector<20x128xf32>,
    %c8 = arith.constant 8 : index
    %c0_16 = arith.constant 0 : index
    %17 = vector.load %arg8[%c8, %c0_16] : memref<20x128xf32, #tpu.memory_space<vmem>>, vector<4x128xf32>
    tpu.vector_store %arg8[%c8, %c0_16], %6 {strides = array<i32>} : memref<20x128xf32, #tpu.memory_space<vmem>>, vector<4x128xf32>,
    %18 = tpu.iota {dimensions = array<i32: 0>} : vector<4x1xi32>
    %c1_i32 = arith.constant 1 : i32
    %19 = vector.broadcast %c1_i32 : i32 to vector<4x1xi32>
    %20 = arith.andi %18, %19 : vector<4x1xi32>
    %cst_17 = arith.constant 0.000000e+00 : f32
    %21 = vector.broadcast %cst_17 : f32 to vector<4x128xf32>
    %c5 = arith.constant 5 : index
    %c0_18 = arith.constant 0 : index
    %22 = vector.load %arg8[%c5, %c0_18] : memref<20x128xf32, #tpu.memory_space<vmem>>, vector<4x128xf32>
    %c-1_i32 = arith.constant -1 : i32
    %23 = vector.broadcast %c-1_i32 : i32 to vector<4x1xi32>
    %24 = arith.addi %20, %23 : vector<4x1xi32>
    %c0_i32 = arith.constant 0 : i32
    %25 = vector.broadcast %c0_i32 : i32 to vector<4x1xi32>
    %26 = arith.cmpi sge, %24, %25 : vector<4x1xi32>
    %c-1_i32_19 = arith.constant -1 : i32
    %27 = vector.broadcast %c-1_i32_19 : i32 to vector<4x1xi32>
    %28 = arith.addi %20, %27 : vector<4x1xi32>
    %c2_i32 = arith.constant 2 : i32
    %29 = vector.broadcast %c2_i32 : i32 to vector<4x1xi32>
    %30 = arith.cmpi slt, %28, %29 : vector<4x1xi32>
    %31 = arith.andi %26, %30 : vector<4x1xi1>
    %cst_20 = arith.constant 0.000000e+00 : f32
    %32 = vector.broadcast %cst_20 : f32 to vector<4x128xf32>
    %33 = vector.shape_cast %31 : vector<4x1xi1> to vector<4x1xi1>
    %34 = vector.broadcast %33 : vector<4x1xi1> to vector<4x128xi1>
    %35 = arith.select %34, %22, %32 : vector<4x128xi1>, vector<4x128xf32>
    %36 = arith.truncf %35 : vector<4x128xf32> to vector<4x128xbf16>
    %c0_21 = arith.constant 0 : index
    %c0_22 = arith.constant 0 : index
    %c0_23 = arith.constant 0 : index
    %37 = vector.load %arg4[%c0_21, %c0_22, %c0_23] : memref<9x128x128xbf16, #tpu.memory_space<vmem>>, vector<1x128x128xbf16>
    %38 = vector.shape_cast %37 : vector<1x128x128xbf16> to vector<128x128xbf16>
    %cst_24 = arith.constant dense<0.000000e+00> : vector<4x128xf32>
    %39 = tpu.matmul %36, %38, %cst_24 {dimension_numbers = #tpu.dot_dimension_numbers<[1], [0], [0], [1], [0, 0, 1, 1], [], []>} : vector<4x128xbf16>, vector<128x128xbf16>, vector<4x128xf32> -> vector<4x128xf32>
    %40 = arith.addf %21, %39 : vector<4x128xf32>
    %c6 = arith.constant 6 : index
    %c0_25 = arith.constant 0 : index
    %41 = vector.load %arg8[%c6, %c0_25] : memref<20x128xf32, #tpu.memory_space<vmem>>, vector<4x128xf32>
    %42 = arith.truncf %41 : vector<4x128xf32> to vector<4x128xbf16>
    %c1 = arith.constant 1 : index
    %c0_26 = arith.constant 0 : index
    %c0_27 = arith.constant 0 : index
    %43 = vector.load %arg4[%c1, %c0_26, %c0_27] : memref<9x128x128xbf16, #tpu.memory_space<vmem>>, vector<1x128x128xbf16>
    %44 = vector.shape_cast %43 : vector<1x128x128xbf16> to vector<128x128xbf16>
    %cst_28 = arith.constant dense<0.000000e+00> : vector<4x128xf32>
    %45 = tpu.matmul %42, %44, %cst_28 {dimension_numbers = #tpu.dot_dimension_numbers<[1], [0], [0], [1], [0, 0, 1, 1], [], []>} : vector<4x128xbf16>, vector<128x128xbf16>, vector<4x128xf32> -> vector<4x128xf32>
    %46 = arith.addf %40, %45 : vector<4x128xf32>
    %c7 = arith.constant 7 : index
    %c0_29 = arith.constant 0 : index
    %47 = vector.load %arg8[%c7, %c0_29] : memref<20x128xf32, #tpu.memory_space<vmem>>, vector<4x128xf32>
    %c1_i32_30 = arith.constant 1 : i32
    %48 = vector.broadcast %c1_i32_30 : i32 to vector<4x1xi32>
    %49 = arith.addi %20, %48 : vector<4x1xi32>
    %c0_i32_31 = arith.constant 0 : i32
    %50 = vector.broadcast %c0_i32_31 : i32 to vector<4x1xi32>
    %51 = arith.cmpi sge, %49, %50 : vector<4x1xi32>
    %c1_i32_32 = arith.constant 1 : i32
    %52 = vector.broadcast %c1_i32_32 : i32 to vector<4x1xi32>
    %53 = arith.addi %20, %52 : vector<4x1xi32>
    %c2_i32_33 = arith.constant 2 : i32
    %54 = vector.broadcast %c2_i32_33 : i32 to vector<4x1xi32>
    %55 = arith.cmpi slt, %53, %54 : vector<4x1xi32>
    %56 = arith.andi %51, %55 : vector<4x1xi1>
    %cst_34 = arith.constant 0.000000e+00 : f32
    %57 = vector.broadcast %cst_34 : f32 to vector<4x128xf32>
    %58 = vector.shape_cast %56 : vector<4x1xi1> to vector<4x1xi1>
    %59 = vector.broadcast %58 : vector<4x1xi1> to vector<4x128xi1>
    %60 = arith.select %59, %47, %57 : vector<4x128xi1>, vector<4x128xf32>
    %61 = arith.truncf %60 : vector<4x128xf32> to vector<4x128xbf16>
    %c2 = arith.constant 2 : index
    %c0_35 = arith.constant 0 : index
    %c0_36 = arith.constant 0 : index
    %62 = vector.load %arg4[%c2, %c0_35, %c0_36] : memref<9x128x128xbf16, #tpu.memory_space<vmem>>, vector<1x128x128xbf16>
    %63 = vector.shape_cast %62 : vector<1x128x128xbf16> to vector<128x128xbf16>
    %cst_37 = arith.constant dense<0.000000e+00> : vector<4x128xf32>
    %64 = tpu.matmul %61, %63, %cst_37 {dimension_numbers = #tpu.dot_dimension_numbers<[1], [0], [0], [1], [0, 0, 1, 1], [], []>} : vector<4x128xbf16>, vector<128x128xbf16>, vector<4x128xf32> -> vector<4x128xf32>
    %65 = arith.addf %46, %64 : vector<4x128xf32>
    %c7_38 = arith.constant 7 : index
    %c0_39 = arith.constant 0 : index
    %66 = vector.load %arg8[%c7_38, %c0_39] : memref<20x128xf32, #tpu.memory_space<vmem>>, vector<4x128xf32>
    %c-1_i32_40 = arith.constant -1 : i32
    %67 = vector.broadcast %c-1_i32_40 : i32 to vector<4x1xi32>
    %68 = arith.addi %20, %67 : vector<4x1xi32>
    %c0_i32_41 = arith.constant 0 : i32
    %69 = vector.broadcast %c0_i32_41 : i32 to vector<4x1xi32>
    %70 = arith.cmpi sge, %68, %69 : vector<4x1xi32>
    %c-1_i32_42 = arith.constant -1 : i32
    %71 = vector.broadcast %c-1_i32_42 : i32 to vector<4x1xi32>
    %72 = arith.addi %20, %71 : vector<4x1xi32>
    %c2_i32_43 = arith.constant 2 : i32
    %73 = vector.broadcast %c2_i32_43 : i32 to vector<4x1xi32>
    %74 = arith.cmpi slt, %72, %73 : vector<4x1xi32>
    %75 = arith.andi %70, %74 : vector<4x1xi1>
    %cst_44 = arith.constant 0.000000e+00 : f32
    %76 = vector.broadcast %cst_44 : f32 to vector<4x128xf32>
    %77 = vector.shape_cast %75 : vector<4x1xi1> to vector<4x1xi1>
    %78 = vector.broadcast %77 : vector<4x1xi1> to vector<4x128xi1>
    %79 = arith.select %78, %66, %76 : vector<4x128xi1>, vector<4x128xf32>
    %80 = arith.truncf %79 : vector<4x128xf32> to vector<4x128xbf16>
    %c3 = arith.constant 3 : index
    %c0_45 = arith.constant 0 : index
    %c0_46 = arith.constant 0 : index
    %81 = vector.load %arg4[%c3, %c0_45, %c0_46] : memref<9x128x128xbf16, #tpu.memory_space<vmem>>, vector<1x128x128xbf16>
    %82 = vector.shape_cast %81 : vector<1x128x128xbf16> to vector<128x128xbf16>
    %cst_47 = arith.constant dense<0.000000e+00> : vector<4x128xf32>
    %83 = tpu.matmul %80, %82, %cst_47 {dimension_numbers = #tpu.dot_dimension_numbers<[1], [0], [0], [1], [0, 0, 1, 1], [], []>} : vector<4x128xbf16>, vector<128x128xbf16>, vector<4x128xf32> -> vector<4x128xf32>
    %84 = arith.addf %65, %83 : vector<4x128xf32>
    %c8_48 = arith.constant 8 : index
    %c0_49 = arith.constant 0 : index
    %85 = vector.load %arg8[%c8_48, %c0_49] : memref<20x128xf32, #tpu.memory_space<vmem>>, vector<4x128xf32>
    %86 = arith.truncf %85 : vector<4x128xf32> to vector<4x128xbf16>
    %c4 = arith.constant 4 : index
    %c0_50 = arith.constant 0 : index
    %c0_51 = arith.constant 0 : index
    %87 = vector.load %arg4[%c4, %c0_50, %c0_51] : memref<9x128x128xbf16, #tpu.memory_space<vmem>>, vector<1x128x128xbf16>
    %88 = vector.shape_cast %87 : vector<1x128x128xbf16> to vector<128x128xbf16>
    %cst_52 = arith.constant dense<0.000000e+00> : vector<4x128xf32>
    %89 = tpu.matmul %86, %88, %cst_52 {dimension_numbers = #tpu.dot_dimension_numbers<[1], [0], [0], [1], [0, 0, 1, 1], [], []>} : vector<4x128xbf16>, vector<128x128xbf16>, vector<4x128xf32> -> vector<4x128xf32>
    %90 = arith.addf %84, %89 : vector<4x128xf32>
    %c9 = arith.constant 9 : index
    %c0_53 = arith.constant 0 : index
    %91 = vector.load %arg8[%c9, %c0_53] : memref<20x128xf32, #tpu.memory_space<vmem>>, vector<4x128xf32>
    %c1_i32_54 = arith.constant 1 : i32
    %92 = vector.broadcast %c1_i32_54 : i32 to vector<4x1xi32>
    %93 = arith.addi %20, %92 : vector<4x1xi32>
    %c0_i32_55 = arith.constant 0 : i32
    %94 = vector.broadcast %c0_i32_55 : i32 to vector<4x1xi32>
    %95 = arith.cmpi sge, %93, %94 : vector<4x1xi32>
    %c1_i32_56 = arith.constant 1 : i32
    %96 = vector.broadcast %c1_i32_56 : i32 to vector<4x1xi32>
    %97 = arith.addi %20, %96 : vector<4x1xi32>
    %c2_i32_57 = arith.constant 2 : i32
    %98 = vector.broadcast %c2_i32_57 : i32 to vector<4x1xi32>
    %99 = arith.cmpi slt, %97, %98 : vector<4x1xi32>
    %100 = arith.andi %95, %99 : vector<4x1xi1>
    %cst_58 = arith.constant 0.000000e+00 : f32
    %101 = vector.broadcast %cst_58 : f32 to vector<4x128xf32>
    %102 = vector.shape_cast %100 : vector<4x1xi1> to vector<4x1xi1>
    %103 = vector.broadcast %102 : vector<4x1xi1> to vector<4x128xi1>
    %104 = arith.select %103, %91, %101 : vector<4x128xi1>, vector<4x128xf32>
    %105 = arith.truncf %104 : vector<4x128xf32> to vector<4x128xbf16>
    %c5_59 = arith.constant 5 : index
    %c0_60 = arith.constant 0 : index
    %c0_61 = arith.constant 0 : index
    %106 = vector.load %arg4[%c5_59, %c0_60, %c0_61] : memref<9x128x128xbf16, #tpu.memory_space<vmem>>, vector<1x128x128xbf16>
    %107 = vector.shape_cast %106 : vector<1x128x128xbf16> to vector<128x128xbf16>
    %cst_62 = arith.constant dense<0.000000e+00> : vector<4x128xf32>
    %108 = tpu.matmul %105, %107, %cst_62 {dimension_numbers = #tpu.dot_dimension_numbers<[1], [0], [0], [1], [0, 0, 1, 1], [], []>} : vector<4x128xbf16>, vector<128x128xbf16>, vector<4x128xf32> -> vector<4x128xf32>
    %109 = arith.addf %90, %108 : vector<4x128xf32>
    %c9_63 = arith.constant 9 : index
    %c0_64 = arith.constant 0 : index
    %110 = vector.load %arg8[%c9_63, %c0_64] : memref<20x128xf32, #tpu.memory_space<vmem>>, vector<4x128xf32>
    %c-1_i32_65 = arith.constant -1 : i32
    %111 = vector.broadcast %c-1_i32_65 : i32 to vector<4x1xi32>
    %112 = arith.addi %20, %111 : vector<4x1xi32>
    %c0_i32_66 = arith.constant 0 : i32
    %113 = vector.broadcast %c0_i32_66 : i32 to vector<4x1xi32>
    %114 = arith.cmpi sge, %112, %113 : vector<4x1xi32>
    %c-1_i32_67 = arith.constant -1 : i32
    %115 = vector.broadcast %c-1_i32_67 : i32 to vector<4x1xi32>
    %116 = arith.addi %20, %115 : vector<4x1xi32>
    %c2_i32_68 = arith.constant 2 : i32
    %117 = vector.broadcast %c2_i32_68 : i32 to vector<4x1xi32>
    %118 = arith.cmpi slt, %116, %117 : vector<4x1xi32>
    %119 = arith.andi %114, %118 : vector<4x1xi1>
    %cst_69 = arith.constant 0.000000e+00 : f32
    %120 = vector.broadcast %cst_69 : f32 to vector<4x128xf32>
    %121 = vector.shape_cast %119 : vector<4x1xi1> to vector<4x1xi1>
    %122 = vector.broadcast %121 : vector<4x1xi1> to vector<4x128xi1>
    %123 = arith.select %122, %110, %120 : vector<4x128xi1>, vector<4x128xf32>
    %124 = arith.truncf %123 : vector<4x128xf32> to vector<4x128xbf16>
    %c6_70 = arith.constant 6 : index
    %c0_71 = arith.constant 0 : index
    %c0_72 = arith.constant 0 : index
    %125 = vector.load %arg4[%c6_70, %c0_71, %c0_72] : memref<9x128x128xbf16, #tpu.memory_space<vmem>>, vector<1x128x128xbf16>
    %126 = vector.shape_cast %125 : vector<1x128x128xbf16> to vector<128x128xbf16>
    %cst_73 = arith.constant dense<0.000000e+00> : vector<4x128xf32>
    %127 = tpu.matmul %124, %126, %cst_73 {dimension_numbers = #tpu.dot_dimension_numbers<[1], [0], [0], [1], [0, 0, 1, 1], [], []>} : vector<4x128xbf16>, vector<128x128xbf16>, vector<4x128xf32> -> vector<4x128xf32>
    %128 = arith.addf %109, %127 : vector<4x128xf32>
    %c10 = arith.constant 10 : index
    %c0_74 = arith.constant 0 : index
    %129 = vector.load %arg8[%c10, %c0_74] : memref<20x128xf32, #tpu.memory_space<vmem>>, vector<4x128xf32>
    %130 = arith.truncf %129 : vector<4x128xf32> to vector<4x128xbf16>
    %c7_75 = arith.constant 7 : index
    %c0_76 = arith.constant 0 : index
    %c0_77 = arith.constant 0 : index
    %131 = vector.load %arg4[%c7_75, %c0_76, %c0_77] : memref<9x128x128xbf16, #tpu.memory_space<vmem>>, vector<1x128x128xbf16>
    %132 = vector.shape_cast %131 : vector<1x128x128xbf16> to vector<128x128xbf16>
    %cst_78 = arith.constant dense<0.000000e+00> : vector<4x128xf32>
    %133 = tpu.matmul %130, %132, %cst_78 {dimension_numbers = #tpu.dot_dimension_numbers<[1], [0], [0], [1], [0, 0, 1, 1], [], []>} : vector<4x128xbf16>, vector<128x128xbf16>, vector<4x128xf32> -> vector<4x128xf32>
    %134 = arith.addf %128, %133 : vector<4x128xf32>
    %c11 = arith.constant 11 : index
    %c0_79 = arith.constant 0 : index
    %135 = vector.load %arg8[%c11, %c0_79] : memref<20x128xf32, #tpu.memory_space<vmem>>, vector<4x128xf32>
    %c1_i32_80 = arith.constant 1 : i32
    %136 = vector.broadcast %c1_i32_80 : i32 to vector<4x1xi32>
    %137 = arith.addi %20, %136 : vector<4x1xi32>
    %c0_i32_81 = arith.constant 0 : i32
    %138 = vector.broadcast %c0_i32_81 : i32 to vector<4x1xi32>
    %139 = arith.cmpi sge, %137, %138 : vector<4x1xi32>
    %c1_i32_82 = arith.constant 1 : i32
    %140 = vector.broadcast %c1_i32_82 : i32 to vector<4x1xi32>
    %141 = arith.addi %20, %140 : vector<4x1xi32>
    %c2_i32_83 = arith.constant 2 : i32
    %142 = vector.broadcast %c2_i32_83 : i32 to vector<4x1xi32>
    %143 = arith.cmpi slt, %141, %142 : vector<4x1xi32>
    %144 = arith.andi %139, %143 : vector<4x1xi1>
    %cst_84 = arith.constant 0.000000e+00 : f32
    %145 = vector.broadcast %cst_84 : f32 to vector<4x128xf32>
    %146 = vector.shape_cast %144 : vector<4x1xi1> to vector<4x1xi1>
    %147 = vector.broadcast %146 : vector<4x1xi1> to vector<4x128xi1>
    %148 = arith.select %147, %135, %145 : vector<4x128xi1>, vector<4x128xf32>
    %149 = arith.truncf %148 : vector<4x128xf32> to vector<4x128xbf16>
    %c8_85 = arith.constant 8 : index
    %c0_86 = arith.constant 0 : index
    %c0_87 = arith.constant 0 : index
    %150 = vector.load %arg4[%c8_85, %c0_86, %c0_87] : memref<9x128x128xbf16, #tpu.memory_space<vmem>>, vector<1x128x128xbf16>
    %151 = vector.shape_cast %150 : vector<1x128x128xbf16> to vector<128x128xbf16>
    %cst_88 = arith.constant dense<0.000000e+00> : vector<4x128xf32>
    %152 = tpu.matmul %149, %151, %cst_88 {dimension_numbers = #tpu.dot_dimension_numbers<[1], [0], [0], [1], [0, 0, 1, 1], [], []>} : vector<4x128xbf16>, vector<128x128xbf16>, vector<4x128xf32> -> vector<4x128xf32>
    %153 = arith.addf %134, %152 : vector<4x128xf32>
    %c0_89 = arith.constant 0 : index
    %c0_90 = arith.constant 0 : index
    %154 = vector.load %arg5[%c0_89, %c0_90] : memref<1x128xf32, #tpu.memory_space<vmem>>, vector<1x128xf32>
    %155 = vector.broadcast %154 : vector<1x128xf32> to vector<4x128xf32>
    %156 = arith.addf %153, %155 : vector<4x128xf32>
    %c0_91 = arith.constant 0 : index
    %c0_92 = arith.constant 0 : index
    %c0_93 = arith.constant 0 : index
    %157 = vector.load %arg7[%c0_91, %c0_92, %c0_93] : memref<1x4x128xf32, #tpu.memory_space<vmem>>, vector<1x4x128xf32>
    %158 = vector.shape_cast %157 : vector<1x4x128xf32> to vector<4x128xf32>
    %159 = vector.shape_cast %156 : vector<4x128xf32> to vector<1x4x128xf32>
    tpu.vector_store %arg7[%c0_91, %c0_92, %c0_93], %159 {strides = array<i32>} : memref<1x4x128xf32, #tpu.memory_space<vmem>>, vector<1x4x128xf32>,
    return
  }
  func.func @transform_0(%arg0: i32) -> (i32, i32, i32) {
    %c0_i32 = arith.constant 0 : i32
    %c0_i32_0 = arith.constant 0 : i32
    %c0_i32_1 = arith.constant 0 : i32
    return %arg0, %c0_i32, %c0_i32_0 : i32, i32, i32
  }
  func.func @transform_1(%arg0: i32) -> (i32, i32) {
    %c0_i32 = arith.constant 0 : i32
    %c0_i32_0 = arith.constant 0 : i32
    %c0_i32_1 = arith.constant 0 : i32
    return %c0_i32, %c0_i32_0 : i32, i32
  }
  func.func @transform_2(%arg0: i32) -> (i32, i32) {
    %c0_i32 = arith.constant 0 : i32
    %c0_i32_0 = arith.constant 0 : i32
    %c0_i32_1 = arith.constant 0 : i32
    return %c0_i32, %c0_i32_0 : i32, i32
  }
  func.func @transform_3(%arg0: i32) -> (i32, i32, i32) {
    %c0_i32 = arith.constant 0 : i32
    %c0_i32_0 = arith.constant 0 : i32
    %c0_i32_1 = arith.constant 0 : i32
    %c0_i32_2 = arith.constant 0 : i32
    return %c0_i32, %c0_i32_0, %c0_i32_1 : i32, i32, i32
  }
  func.func @transform_4(%arg0: i32) -> (i32, i32) {
    %c0_i32 = arith.constant 0 : i32
    %c0_i32_0 = arith.constant 0 : i32
    %c0_i32_1 = arith.constant 0 : i32
    return %c0_i32, %c0_i32_0 : i32, i32
  }
  func.func @transform_5(%arg0: i32) -> (i32, i32, i32) {
    %c0_i32 = arith.constant 0 : i32
    %c0_i32_0 = arith.constant 0 : i32
    %c0_i32_1 = arith.constant 0 : i32
    return %arg0, %c0_i32, %c0_i32_0 : i32, i32, i32
  }
  func.func @transform_6(%arg0: i32) -> (i32, i32, i32) {
    %c0_i32 = arith.constant 0 : i32
    %c0_i32_0 = arith.constant 0 : i32
    %c0_i32_1 = arith.constant 0 : i32
    return %arg0, %c0_i32, %c0_i32_0 : i32, i32, i32
  }
}

module attributes {stable_mosaic.version = 11 : i64} {
  func.func @_fpn_level_kernel(%arg0: i32, %arg1: memref<1x64x128xbf16, #tpu.memory_space<vmem>>, %arg2: memref<1x128x128xbf16, #tpu.memory_space<vmem>>, %arg3: memref<64x128xbf16, #tpu.memory_space<vmem>>, %arg4: memref<128x128xbf16, #tpu.memory_space<vmem>>, %arg5: memref<1x128xf32, #tpu.memory_space<vmem>>, %arg6: memref<9x128x128xbf16, #tpu.memory_space<vmem>>, %arg7: memref<1x128xf32, #tpu.memory_space<vmem>>, %arg8: memref<1x128x128xbf16, #tpu.memory_space<vmem>>, %arg9: memref<1x64x128xf32, #tpu.memory_space<vmem>>, %arg10: memref<96x128xf32, #tpu.memory_space<vmem>>) attributes {dimension_semantics = [#tpu.dimension_semantics<parallel>], iteration_bounds = array<i64: 2>, scalar_prefetch = 0 : i64, scratch_operands = 1 : i64, tpu.core_type = #tpu.core_type<tc>, window_params = [{transform_indices = @transform_0, window_bounds = array<i64: 1, 64, 128>}, {transform_indices = @transform_1, window_bounds = array<i64: 1, 128, 128>}, {pipeline_mode = #tpu.pipeline_mode<synchronous>, transform_indices = @transform_2, window_bounds = array<i64: 64, 128>}, {pipeline_mode = #tpu.pipeline_mode<synchronous>, transform_indices = @transform_3, window_bounds = array<i64: 128, 128>}, {pipeline_mode = #tpu.pipeline_mode<synchronous>, transform_indices = @transform_4, window_bounds = array<i64: 1, 128>}, {pipeline_mode = #tpu.pipeline_mode<synchronous>, transform_indices = @transform_5, window_bounds = array<i64: 9, 128, 128>}, {pipeline_mode = #tpu.pipeline_mode<synchronous>, transform_indices = @transform_6, window_bounds = array<i64: 1, 128>}, {transform_indices = @transform_7, window_bounds = array<i64: 1, 128, 128>}, {transform_indices = @transform_8, window_bounds = array<i64: 1, 64, 128>}]} {
    %c0 = arith.constant 0 : index
    %c0_0 = arith.constant 0 : index
    %c0_1 = arith.constant 0 : index
    %0 = vector.load %arg1[%c0, %c0_0, %c0_1] : memref<1x64x128xbf16, #tpu.memory_space<vmem>>, vector<1x64x128xbf16>
    %1 = vector.shape_cast %0 : vector<1x64x128xbf16> to vector<64x128xbf16>
    %c0_2 = arith.constant 0 : index
    %c0_3 = arith.constant 0 : index
    %2 = vector.load %arg4[%c0_2, %c0_3] : memref<128x128xbf16, #tpu.memory_space<vmem>>, vector<128x128xbf16>
    %cst = arith.constant dense<0.000000e+00> : vector<64x128xf32>
    %3 = tpu.matmul %1, %2, %cst {dimension_numbers = #tpu.dot_dimension_numbers<[1], [0], [0], [1], [0, 0, 1, 1], [], []>} : vector<64x128xbf16>, vector<128x128xbf16>, vector<64x128xf32> -> vector<64x128xf32>
    %c0_4 = arith.constant 0 : index
    %c0_5 = arith.constant 0 : index
    %4 = vector.load %arg5[%c0_4, %c0_5] : memref<1x128xf32, #tpu.memory_space<vmem>>, vector<1x128xf32>
    %5 = vector.broadcast %4 : vector<1x128xf32> to vector<64x128xf32>
    %6 = arith.addf %3, %5 : vector<64x128xf32>
    %c0_6 = arith.constant 0 : index
    %c0_7 = arith.constant 0 : index
    %7 = vector.load %arg3[%c0_6, %c0_7] : memref<64x128xbf16, #tpu.memory_space<vmem>>, vector<64x128xbf16>
    %c0_8 = arith.constant 0 : index
    %c0_9 = arith.constant 0 : index
    %c0_10 = arith.constant 0 : index
    %8 = vector.load %arg2[%c0_8, %c0_9, %c0_10] : memref<1x128x128xbf16, #tpu.memory_space<vmem>>, vector<1x128x128xbf16>
    %9 = vector.shape_cast %8 : vector<1x128x128xbf16> to vector<128x128xbf16>
    %cst_11 = arith.constant dense<0.000000e+00> : vector<64x128xf32>
    %10 = tpu.matmul %7, %9, %cst_11 {dimension_numbers = #tpu.dot_dimension_numbers<[1], [0], [0], [1], [0, 0, 1, 1], [], []>} : vector<64x128xbf16>, vector<128x128xbf16>, vector<64x128xf32> -> vector<64x128xf32>
    %11 = arith.addf %6, %10 : vector<64x128xf32>
    %cst_12 = arith.constant 0.000000e+00 : bf16
    %12 = vector.broadcast %cst_12 : bf16 to vector<128x128xbf16>
    %c0_13 = arith.constant 0 : index
    %c0_14 = arith.constant 0 : index
    %c0_15 = arith.constant 0 : index
    %13 = vector.load %arg8[%c0_13, %c0_14, %c0_15] : memref<1x128x128xbf16, #tpu.memory_space<vmem>>, vector<1x128x128xbf16>
    %14 = vector.shape_cast %13 : vector<1x128x128xbf16> to vector<128x128xbf16>
    %15 = vector.shape_cast %12 : vector<128x128xbf16> to vector<1x128x128xbf16>
    tpu.vector_store %arg8[%c0_13, %c0_14, %c0_15], %15 {strides = array<i32>} : memref<1x128x128xbf16, #tpu.memory_space<vmem>>, vector<1x128x128xbf16>,
    %16 = arith.truncf %11 : vector<64x128xf32> to vector<64x128xbf16>
    %c0_16 = arith.constant 0 : index
    %c0_17 = arith.constant 0 : index
    %c0_18 = arith.constant 0 : index
    %17 = vector.load %arg8[%c0_16, %c0_17, %c0_18] : memref<1x128x128xbf16, #tpu.memory_space<vmem>>, vector<1x64x128xbf16>
    %18 = vector.shape_cast %17 : vector<1x64x128xbf16> to vector<64x128xbf16>
    %19 = vector.shape_cast %16 : vector<64x128xbf16> to vector<1x64x128xbf16>
    tpu.vector_store %arg8[%c0_16, %c0_17, %c0_18], %19 {strides = array<i32>} : memref<1x128x128xbf16, #tpu.memory_space<vmem>>, vector<1x64x128xbf16>,
    %cst_19 = arith.constant 0.000000e+00 : f32
    %20 = vector.broadcast %cst_19 : f32 to vector<96x128xf32>
    %c0_20 = arith.constant 0 : index
    %c0_21 = arith.constant 0 : index
    %21 = vector.load %arg10[%c0_20, %c0_21] : memref<96x128xf32, #tpu.memory_space<vmem>>, vector<96x128xf32>
    tpu.vector_store %arg10[%c0_20, %c0_21], %20 {strides = array<i32>} : memref<96x128xf32, #tpu.memory_space<vmem>>, vector<96x128xf32>,
    %c16 = arith.constant 16 : index
    %c0_22 = arith.constant 0 : index
    %22 = vector.load %arg10[%c16, %c0_22] : memref<96x128xf32, #tpu.memory_space<vmem>>, vector<64x128xf32>
    tpu.vector_store %arg10[%c16, %c0_22], %11 {strides = array<i32>} : memref<96x128xf32, #tpu.memory_space<vmem>>, vector<64x128xf32>,
    %23 = tpu.iota {dimensions = array<i32: 0>} : vector<64x1xi32>
    %c7_i32 = arith.constant 7 : i32
    %24 = vector.broadcast %c7_i32 : i32 to vector<64x1xi32>
    %25 = arith.andi %23, %24 : vector<64x1xi32>
    %cst_23 = arith.constant 0.000000e+00 : f32
    %26 = vector.broadcast %cst_23 : f32 to vector<64x128xf32>
    %c7 = arith.constant 7 : index
    %c0_24 = arith.constant 0 : index
    %27 = vector.load %arg10[%c7, %c0_24] : memref<96x128xf32, #tpu.memory_space<vmem>>, vector<64x128xf32>
    %c-1_i32 = arith.constant -1 : i32
    %28 = vector.broadcast %c-1_i32 : i32 to vector<64x1xi32>
    %29 = arith.addi %25, %28 : vector<64x1xi32>
    %c0_i32 = arith.constant 0 : i32
    %30 = vector.broadcast %c0_i32 : i32 to vector<64x1xi32>
    %31 = arith.cmpi sge, %29, %30 : vector<64x1xi32>
    %c-1_i32_25 = arith.constant -1 : i32
    %32 = vector.broadcast %c-1_i32_25 : i32 to vector<64x1xi32>
    %33 = arith.addi %25, %32 : vector<64x1xi32>
    %c8_i32 = arith.constant 8 : i32
    %34 = vector.broadcast %c8_i32 : i32 to vector<64x1xi32>
    %35 = arith.cmpi slt, %33, %34 : vector<64x1xi32>
    %36 = arith.andi %31, %35 : vector<64x1xi1>
    %cst_26 = arith.constant 0.000000e+00 : f32
    %37 = vector.broadcast %cst_26 : f32 to vector<64x128xf32>
    %38 = vector.shape_cast %36 : vector<64x1xi1> to vector<64x1xi1>
    %39 = vector.broadcast %38 : vector<64x1xi1> to vector<64x128xi1>
    %40 = arith.select %39, %27, %37 : vector<64x128xi1>, vector<64x128xf32>
    %41 = arith.truncf %40 : vector<64x128xf32> to vector<64x128xbf16>
    %c0_27 = arith.constant 0 : index
    %c0_28 = arith.constant 0 : index
    %c0_29 = arith.constant 0 : index
    %42 = vector.load %arg6[%c0_27, %c0_28, %c0_29] : memref<9x128x128xbf16, #tpu.memory_space<vmem>>, vector<1x128x128xbf16>
    %43 = vector.shape_cast %42 : vector<1x128x128xbf16> to vector<128x128xbf16>
    %cst_30 = arith.constant dense<0.000000e+00> : vector<64x128xf32>
    %44 = tpu.matmul %41, %43, %cst_30 {dimension_numbers = #tpu.dot_dimension_numbers<[1], [0], [0], [1], [0, 0, 1, 1], [], []>} : vector<64x128xbf16>, vector<128x128xbf16>, vector<64x128xf32> -> vector<64x128xf32>
    %45 = arith.addf %26, %44 : vector<64x128xf32>
    %c8 = arith.constant 8 : index
    %c0_31 = arith.constant 0 : index
    %46 = vector.load %arg10[%c8, %c0_31] : memref<96x128xf32, #tpu.memory_space<vmem>>, vector<64x128xf32>
    %47 = arith.truncf %46 : vector<64x128xf32> to vector<64x128xbf16>
    %c1 = arith.constant 1 : index
    %c0_32 = arith.constant 0 : index
    %c0_33 = arith.constant 0 : index
    %48 = vector.load %arg6[%c1, %c0_32, %c0_33] : memref<9x128x128xbf16, #tpu.memory_space<vmem>>, vector<1x128x128xbf16>
    %49 = vector.shape_cast %48 : vector<1x128x128xbf16> to vector<128x128xbf16>
    %cst_34 = arith.constant dense<0.000000e+00> : vector<64x128xf32>
    %50 = tpu.matmul %47, %49, %cst_34 {dimension_numbers = #tpu.dot_dimension_numbers<[1], [0], [0], [1], [0, 0, 1, 1], [], []>} : vector<64x128xbf16>, vector<128x128xbf16>, vector<64x128xf32> -> vector<64x128xf32>
    %51 = arith.addf %45, %50 : vector<64x128xf32>
    %c9 = arith.constant 9 : index
    %c0_35 = arith.constant 0 : index
    %52 = vector.load %arg10[%c9, %c0_35] : memref<96x128xf32, #tpu.memory_space<vmem>>, vector<64x128xf32>
    %c1_i32 = arith.constant 1 : i32
    %53 = vector.broadcast %c1_i32 : i32 to vector<64x1xi32>
    %54 = arith.addi %25, %53 : vector<64x1xi32>
    %c0_i32_36 = arith.constant 0 : i32
    %55 = vector.broadcast %c0_i32_36 : i32 to vector<64x1xi32>
    %56 = arith.cmpi sge, %54, %55 : vector<64x1xi32>
    %c1_i32_37 = arith.constant 1 : i32
    %57 = vector.broadcast %c1_i32_37 : i32 to vector<64x1xi32>
    %58 = arith.addi %25, %57 : vector<64x1xi32>
    %c8_i32_38 = arith.constant 8 : i32
    %59 = vector.broadcast %c8_i32_38 : i32 to vector<64x1xi32>
    %60 = arith.cmpi slt, %58, %59 : vector<64x1xi32>
    %61 = arith.andi %56, %60 : vector<64x1xi1>
    %cst_39 = arith.constant 0.000000e+00 : f32
    %62 = vector.broadcast %cst_39 : f32 to vector<64x128xf32>
    %63 = vector.shape_cast %61 : vector<64x1xi1> to vector<64x1xi1>
    %64 = vector.broadcast %63 : vector<64x1xi1> to vector<64x128xi1>
    %65 = arith.select %64, %52, %62 : vector<64x128xi1>, vector<64x128xf32>
    %66 = arith.truncf %65 : vector<64x128xf32> to vector<64x128xbf16>
    %c2 = arith.constant 2 : index
    %c0_40 = arith.constant 0 : index
    %c0_41 = arith.constant 0 : index
    %67 = vector.load %arg6[%c2, %c0_40, %c0_41] : memref<9x128x128xbf16, #tpu.memory_space<vmem>>, vector<1x128x128xbf16>
    %68 = vector.shape_cast %67 : vector<1x128x128xbf16> to vector<128x128xbf16>
    %cst_42 = arith.constant dense<0.000000e+00> : vector<64x128xf32>
    %69 = tpu.matmul %66, %68, %cst_42 {dimension_numbers = #tpu.dot_dimension_numbers<[1], [0], [0], [1], [0, 0, 1, 1], [], []>} : vector<64x128xbf16>, vector<128x128xbf16>, vector<64x128xf32> -> vector<64x128xf32>
    %70 = arith.addf %51, %69 : vector<64x128xf32>
    %c15 = arith.constant 15 : index
    %c0_43 = arith.constant 0 : index
    %71 = vector.load %arg10[%c15, %c0_43] : memref<96x128xf32, #tpu.memory_space<vmem>>, vector<64x128xf32>
    %c-1_i32_44 = arith.constant -1 : i32
    %72 = vector.broadcast %c-1_i32_44 : i32 to vector<64x1xi32>
    %73 = arith.addi %25, %72 : vector<64x1xi32>
    %c0_i32_45 = arith.constant 0 : i32
    %74 = vector.broadcast %c0_i32_45 : i32 to vector<64x1xi32>
    %75 = arith.cmpi sge, %73, %74 : vector<64x1xi32>
    %c-1_i32_46 = arith.constant -1 : i32
    %76 = vector.broadcast %c-1_i32_46 : i32 to vector<64x1xi32>
    %77 = arith.addi %25, %76 : vector<64x1xi32>
    %c8_i32_47 = arith.constant 8 : i32
    %78 = vector.broadcast %c8_i32_47 : i32 to vector<64x1xi32>
    %79 = arith.cmpi slt, %77, %78 : vector<64x1xi32>
    %80 = arith.andi %75, %79 : vector<64x1xi1>
    %cst_48 = arith.constant 0.000000e+00 : f32
    %81 = vector.broadcast %cst_48 : f32 to vector<64x128xf32>
    %82 = vector.shape_cast %80 : vector<64x1xi1> to vector<64x1xi1>
    %83 = vector.broadcast %82 : vector<64x1xi1> to vector<64x128xi1>
    %84 = arith.select %83, %71, %81 : vector<64x128xi1>, vector<64x128xf32>
    %85 = arith.truncf %84 : vector<64x128xf32> to vector<64x128xbf16>
    %c3 = arith.constant 3 : index
    %c0_49 = arith.constant 0 : index
    %c0_50 = arith.constant 0 : index
    %86 = vector.load %arg6[%c3, %c0_49, %c0_50] : memref<9x128x128xbf16, #tpu.memory_space<vmem>>, vector<1x128x128xbf16>
    %87 = vector.shape_cast %86 : vector<1x128x128xbf16> to vector<128x128xbf16>
    %cst_51 = arith.constant dense<0.000000e+00> : vector<64x128xf32>
    %88 = tpu.matmul %85, %87, %cst_51 {dimension_numbers = #tpu.dot_dimension_numbers<[1], [0], [0], [1], [0, 0, 1, 1], [], []>} : vector<64x128xbf16>, vector<128x128xbf16>, vector<64x128xf32> -> vector<64x128xf32>
    %89 = arith.addf %70, %88 : vector<64x128xf32>
    %c16_52 = arith.constant 16 : index
    %c0_53 = arith.constant 0 : index
    %90 = vector.load %arg10[%c16_52, %c0_53] : memref<96x128xf32, #tpu.memory_space<vmem>>, vector<64x128xf32>
    %91 = arith.truncf %90 : vector<64x128xf32> to vector<64x128xbf16>
    %c4 = arith.constant 4 : index
    %c0_54 = arith.constant 0 : index
    %c0_55 = arith.constant 0 : index
    %92 = vector.load %arg6[%c4, %c0_54, %c0_55] : memref<9x128x128xbf16, #tpu.memory_space<vmem>>, vector<1x128x128xbf16>
    %93 = vector.shape_cast %92 : vector<1x128x128xbf16> to vector<128x128xbf16>
    %cst_56 = arith.constant dense<0.000000e+00> : vector<64x128xf32>
    %94 = tpu.matmul %91, %93, %cst_56 {dimension_numbers = #tpu.dot_dimension_numbers<[1], [0], [0], [1], [0, 0, 1, 1], [], []>} : vector<64x128xbf16>, vector<128x128xbf16>, vector<64x128xf32> -> vector<64x128xf32>
    %95 = arith.addf %89, %94 : vector<64x128xf32>
    %c17 = arith.constant 17 : index
    %c0_57 = arith.constant 0 : index
    %96 = vector.load %arg10[%c17, %c0_57] : memref<96x128xf32, #tpu.memory_space<vmem>>, vector<64x128xf32>
    %c1_i32_58 = arith.constant 1 : i32
    %97 = vector.broadcast %c1_i32_58 : i32 to vector<64x1xi32>
    %98 = arith.addi %25, %97 : vector<64x1xi32>
    %c0_i32_59 = arith.constant 0 : i32
    %99 = vector.broadcast %c0_i32_59 : i32 to vector<64x1xi32>
    %100 = arith.cmpi sge, %98, %99 : vector<64x1xi32>
    %c1_i32_60 = arith.constant 1 : i32
    %101 = vector.broadcast %c1_i32_60 : i32 to vector<64x1xi32>
    %102 = arith.addi %25, %101 : vector<64x1xi32>
    %c8_i32_61 = arith.constant 8 : i32
    %103 = vector.broadcast %c8_i32_61 : i32 to vector<64x1xi32>
    %104 = arith.cmpi slt, %102, %103 : vector<64x1xi32>
    %105 = arith.andi %100, %104 : vector<64x1xi1>
    %cst_62 = arith.constant 0.000000e+00 : f32
    %106 = vector.broadcast %cst_62 : f32 to vector<64x128xf32>
    %107 = vector.shape_cast %105 : vector<64x1xi1> to vector<64x1xi1>
    %108 = vector.broadcast %107 : vector<64x1xi1> to vector<64x128xi1>
    %109 = arith.select %108, %96, %106 : vector<64x128xi1>, vector<64x128xf32>
    %110 = arith.truncf %109 : vector<64x128xf32> to vector<64x128xbf16>
    %c5 = arith.constant 5 : index
    %c0_63 = arith.constant 0 : index
    %c0_64 = arith.constant 0 : index
    %111 = vector.load %arg6[%c5, %c0_63, %c0_64] : memref<9x128x128xbf16, #tpu.memory_space<vmem>>, vector<1x128x128xbf16>
    %112 = vector.shape_cast %111 : vector<1x128x128xbf16> to vector<128x128xbf16>
    %cst_65 = arith.constant dense<0.000000e+00> : vector<64x128xf32>
    %113 = tpu.matmul %110, %112, %cst_65 {dimension_numbers = #tpu.dot_dimension_numbers<[1], [0], [0], [1], [0, 0, 1, 1], [], []>} : vector<64x128xbf16>, vector<128x128xbf16>, vector<64x128xf32> -> vector<64x128xf32>
    %114 = arith.addf %95, %113 : vector<64x128xf32>
    %c23 = arith.constant 23 : index
    %c0_66 = arith.constant 0 : index
    %115 = vector.load %arg10[%c23, %c0_66] : memref<96x128xf32, #tpu.memory_space<vmem>>, vector<64x128xf32>
    %c-1_i32_67 = arith.constant -1 : i32
    %116 = vector.broadcast %c-1_i32_67 : i32 to vector<64x1xi32>
    %117 = arith.addi %25, %116 : vector<64x1xi32>
    %c0_i32_68 = arith.constant 0 : i32
    %118 = vector.broadcast %c0_i32_68 : i32 to vector<64x1xi32>
    %119 = arith.cmpi sge, %117, %118 : vector<64x1xi32>
    %c-1_i32_69 = arith.constant -1 : i32
    %120 = vector.broadcast %c-1_i32_69 : i32 to vector<64x1xi32>
    %121 = arith.addi %25, %120 : vector<64x1xi32>
    %c8_i32_70 = arith.constant 8 : i32
    %122 = vector.broadcast %c8_i32_70 : i32 to vector<64x1xi32>
    %123 = arith.cmpi slt, %121, %122 : vector<64x1xi32>
    %124 = arith.andi %119, %123 : vector<64x1xi1>
    %cst_71 = arith.constant 0.000000e+00 : f32
    %125 = vector.broadcast %cst_71 : f32 to vector<64x128xf32>
    %126 = vector.shape_cast %124 : vector<64x1xi1> to vector<64x1xi1>
    %127 = vector.broadcast %126 : vector<64x1xi1> to vector<64x128xi1>
    %128 = arith.select %127, %115, %125 : vector<64x128xi1>, vector<64x128xf32>
    %129 = arith.truncf %128 : vector<64x128xf32> to vector<64x128xbf16>
    %c6 = arith.constant 6 : index
    %c0_72 = arith.constant 0 : index
    %c0_73 = arith.constant 0 : index
    %130 = vector.load %arg6[%c6, %c0_72, %c0_73] : memref<9x128x128xbf16, #tpu.memory_space<vmem>>, vector<1x128x128xbf16>
    %131 = vector.shape_cast %130 : vector<1x128x128xbf16> to vector<128x128xbf16>
    %cst_74 = arith.constant dense<0.000000e+00> : vector<64x128xf32>
    %132 = tpu.matmul %129, %131, %cst_74 {dimension_numbers = #tpu.dot_dimension_numbers<[1], [0], [0], [1], [0, 0, 1, 1], [], []>} : vector<64x128xbf16>, vector<128x128xbf16>, vector<64x128xf32> -> vector<64x128xf32>
    %133 = arith.addf %114, %132 : vector<64x128xf32>
    %c24 = arith.constant 24 : index
    %c0_75 = arith.constant 0 : index
    %134 = vector.load %arg10[%c24, %c0_75] : memref<96x128xf32, #tpu.memory_space<vmem>>, vector<64x128xf32>
    %135 = arith.truncf %134 : vector<64x128xf32> to vector<64x128xbf16>
    %c7_76 = arith.constant 7 : index
    %c0_77 = arith.constant 0 : index
    %c0_78 = arith.constant 0 : index
    %136 = vector.load %arg6[%c7_76, %c0_77, %c0_78] : memref<9x128x128xbf16, #tpu.memory_space<vmem>>, vector<1x128x128xbf16>
    %137 = vector.shape_cast %136 : vector<1x128x128xbf16> to vector<128x128xbf16>
    %cst_79 = arith.constant dense<0.000000e+00> : vector<64x128xf32>
    %138 = tpu.matmul %135, %137, %cst_79 {dimension_numbers = #tpu.dot_dimension_numbers<[1], [0], [0], [1], [0, 0, 1, 1], [], []>} : vector<64x128xbf16>, vector<128x128xbf16>, vector<64x128xf32> -> vector<64x128xf32>
    %139 = arith.addf %133, %138 : vector<64x128xf32>
    %c25 = arith.constant 25 : index
    %c0_80 = arith.constant 0 : index
    %140 = vector.load %arg10[%c25, %c0_80] : memref<96x128xf32, #tpu.memory_space<vmem>>, vector<64x128xf32>
    %c1_i32_81 = arith.constant 1 : i32
    %141 = vector.broadcast %c1_i32_81 : i32 to vector<64x1xi32>
    %142 = arith.addi %25, %141 : vector<64x1xi32>
    %c0_i32_82 = arith.constant 0 : i32
    %143 = vector.broadcast %c0_i32_82 : i32 to vector<64x1xi32>
    %144 = arith.cmpi sge, %142, %143 : vector<64x1xi32>
    %c1_i32_83 = arith.constant 1 : i32
    %145 = vector.broadcast %c1_i32_83 : i32 to vector<64x1xi32>
    %146 = arith.addi %25, %145 : vector<64x1xi32>
    %c8_i32_84 = arith.constant 8 : i32
    %147 = vector.broadcast %c8_i32_84 : i32 to vector<64x1xi32>
    %148 = arith.cmpi slt, %146, %147 : vector<64x1xi32>
    %149 = arith.andi %144, %148 : vector<64x1xi1>
    %cst_85 = arith.constant 0.000000e+00 : f32
    %150 = vector.broadcast %cst_85 : f32 to vector<64x128xf32>
    %151 = vector.shape_cast %149 : vector<64x1xi1> to vector<64x1xi1>
    %152 = vector.broadcast %151 : vector<64x1xi1> to vector<64x128xi1>
    %153 = arith.select %152, %140, %150 : vector<64x128xi1>, vector<64x128xf32>
    %154 = arith.truncf %153 : vector<64x128xf32> to vector<64x128xbf16>
    %c8_86 = arith.constant 8 : index
    %c0_87 = arith.constant 0 : index
    %c0_88 = arith.constant 0 : index
    %155 = vector.load %arg6[%c8_86, %c0_87, %c0_88] : memref<9x128x128xbf16, #tpu.memory_space<vmem>>, vector<1x128x128xbf16>
    %156 = vector.shape_cast %155 : vector<1x128x128xbf16> to vector<128x128xbf16>
    %cst_89 = arith.constant dense<0.000000e+00> : vector<64x128xf32>
    %157 = tpu.matmul %154, %156, %cst_89 {dimension_numbers = #tpu.dot_dimension_numbers<[1], [0], [0], [1], [0, 0, 1, 1], [], []>} : vector<64x128xbf16>, vector<128x128xbf16>, vector<64x128xf32> -> vector<64x128xf32>
    %158 = arith.addf %139, %157 : vector<64x128xf32>
    %c0_90 = arith.constant 0 : index
    %c0_91 = arith.constant 0 : index
    %159 = vector.load %arg7[%c0_90, %c0_91] : memref<1x128xf32, #tpu.memory_space<vmem>>, vector<1x128xf32>
    %160 = vector.broadcast %159 : vector<1x128xf32> to vector<64x128xf32>
    %161 = arith.addf %158, %160 : vector<64x128xf32>
    %c0_92 = arith.constant 0 : index
    %c0_93 = arith.constant 0 : index
    %c0_94 = arith.constant 0 : index
    %162 = vector.load %arg9[%c0_92, %c0_93, %c0_94] : memref<1x64x128xf32, #tpu.memory_space<vmem>>, vector<1x64x128xf32>
    %163 = vector.shape_cast %162 : vector<1x64x128xf32> to vector<64x128xf32>
    %164 = vector.shape_cast %161 : vector<64x128xf32> to vector<1x64x128xf32>
    tpu.vector_store %arg9[%c0_92, %c0_93, %c0_94], %164 {strides = array<i32>} : memref<1x64x128xf32, #tpu.memory_space<vmem>>, vector<1x64x128xf32>,
    return
  }
  func.func @transform_0(%arg0: i32) -> (i32, i32, i32) {
    %c0_i32 = arith.constant 0 : i32
    %c0_i32_0 = arith.constant 0 : i32
    %c0_i32_1 = arith.constant 0 : i32
    return %arg0, %c0_i32, %c0_i32_0 : i32, i32, i32
  }
  func.func @transform_1(%arg0: i32) -> (i32, i32, i32) {
    %c0_i32 = arith.constant 0 : i32
    %c0_i32_0 = arith.constant 0 : i32
    %c0_i32_1 = arith.constant 0 : i32
    return %arg0, %c0_i32, %c0_i32_0 : i32, i32, i32
  }
  func.func @transform_2(%arg0: i32) -> (i32, i32) {
    %c0_i32 = arith.constant 0 : i32
    %c0_i32_0 = arith.constant 0 : i32
    %c0_i32_1 = arith.constant 0 : i32
    return %c0_i32, %c0_i32_0 : i32, i32
  }
  func.func @transform_3(%arg0: i32) -> (i32, i32) {
    %c0_i32 = arith.constant 0 : i32
    %c0_i32_0 = arith.constant 0 : i32
    %c0_i32_1 = arith.constant 0 : i32
    return %c0_i32, %c0_i32_0 : i32, i32
  }
  func.func @transform_4(%arg0: i32) -> (i32, i32) {
    %c0_i32 = arith.constant 0 : i32
    %c0_i32_0 = arith.constant 0 : i32
    %c0_i32_1 = arith.constant 0 : i32
    return %c0_i32, %c0_i32_0 : i32, i32
  }
  func.func @transform_5(%arg0: i32) -> (i32, i32, i32) {
    %c0_i32 = arith.constant 0 : i32
    %c0_i32_0 = arith.constant 0 : i32
    %c0_i32_1 = arith.constant 0 : i32
    %c0_i32_2 = arith.constant 0 : i32
    return %c0_i32, %c0_i32_0, %c0_i32_1 : i32, i32, i32
  }
  func.func @transform_6(%arg0: i32) -> (i32, i32) {
    %c0_i32 = arith.constant 0 : i32
    %c0_i32_0 = arith.constant 0 : i32
    %c0_i32_1 = arith.constant 0 : i32
    return %c0_i32, %c0_i32_0 : i32, i32
  }
  func.func @transform_7(%arg0: i32) -> (i32, i32, i32) {
    %c0_i32 = arith.constant 0 : i32
    %c0_i32_0 = arith.constant 0 : i32
    %c0_i32_1 = arith.constant 0 : i32
    return %arg0, %c0_i32, %c0_i32_0 : i32, i32, i32
  }
  func.func @transform_8(%arg0: i32) -> (i32, i32, i32) {
    %c0_i32 = arith.constant 0 : i32
    %c0_i32_0 = arith.constant 0 : i32
    %c0_i32_1 = arith.constant 0 : i32
    return %arg0, %c0_i32, %c0_i32_0 : i32, i32, i32
  }
}

module attributes {stable_mosaic.version = 11 : i64} {
  func.func @_fpn_level_kernel(%arg0: i32, %arg1: memref<1x16x128xbf16, #tpu.memory_space<vmem>>, %arg2: memref<1x128x128xbf16, #tpu.memory_space<vmem>>, %arg3: memref<16x128xbf16, #tpu.memory_space<vmem>>, %arg4: memref<128x128xbf16, #tpu.memory_space<vmem>>, %arg5: memref<1x128xf32, #tpu.memory_space<vmem>>, %arg6: memref<9x128x128xbf16, #tpu.memory_space<vmem>>, %arg7: memref<1x128xf32, #tpu.memory_space<vmem>>, %arg8: memref<1x128x128xbf16, #tpu.memory_space<vmem>>, %arg9: memref<1x16x128xf32, #tpu.memory_space<vmem>>, %arg10: memref<32x128xf32, #tpu.memory_space<vmem>>) attributes {dimension_semantics = [#tpu.dimension_semantics<parallel>], iteration_bounds = array<i64: 2>, scalar_prefetch = 0 : i64, scratch_operands = 1 : i64, tpu.core_type = #tpu.core_type<tc>, window_params = [{transform_indices = @transform_0, window_bounds = array<i64: 1, 16, 128>}, {transform_indices = @transform_1, window_bounds = array<i64: 1, 128, 128>}, {pipeline_mode = #tpu.pipeline_mode<synchronous>, transform_indices = @transform_2, window_bounds = array<i64: 16, 128>}, {pipeline_mode = #tpu.pipeline_mode<synchronous>, transform_indices = @transform_3, window_bounds = array<i64: 128, 128>}, {pipeline_mode = #tpu.pipeline_mode<synchronous>, transform_indices = @transform_4, window_bounds = array<i64: 1, 128>}, {pipeline_mode = #tpu.pipeline_mode<synchronous>, transform_indices = @transform_5, window_bounds = array<i64: 9, 128, 128>}, {pipeline_mode = #tpu.pipeline_mode<synchronous>, transform_indices = @transform_6, window_bounds = array<i64: 1, 128>}, {transform_indices = @transform_7, window_bounds = array<i64: 1, 128, 128>}, {transform_indices = @transform_8, window_bounds = array<i64: 1, 16, 128>}]} {
    %c0 = arith.constant 0 : index
    %c0_0 = arith.constant 0 : index
    %c0_1 = arith.constant 0 : index
    %0 = vector.load %arg1[%c0, %c0_0, %c0_1] : memref<1x16x128xbf16, #tpu.memory_space<vmem>>, vector<1x16x128xbf16>
    %1 = vector.shape_cast %0 : vector<1x16x128xbf16> to vector<16x128xbf16>
    %c0_2 = arith.constant 0 : index
    %c0_3 = arith.constant 0 : index
    %2 = vector.load %arg4[%c0_2, %c0_3] : memref<128x128xbf16, #tpu.memory_space<vmem>>, vector<128x128xbf16>
    %cst = arith.constant dense<0.000000e+00> : vector<16x128xf32>
    %3 = tpu.matmul %1, %2, %cst {dimension_numbers = #tpu.dot_dimension_numbers<[1], [0], [0], [1], [0, 0, 1, 1], [], []>} : vector<16x128xbf16>, vector<128x128xbf16>, vector<16x128xf32> -> vector<16x128xf32>
    %c0_4 = arith.constant 0 : index
    %c0_5 = arith.constant 0 : index
    %4 = vector.load %arg5[%c0_4, %c0_5] : memref<1x128xf32, #tpu.memory_space<vmem>>, vector<1x128xf32>
    %5 = vector.broadcast %4 : vector<1x128xf32> to vector<16x128xf32>
    %6 = arith.addf %3, %5 : vector<16x128xf32>
    %c0_6 = arith.constant 0 : index
    %c0_7 = arith.constant 0 : index
    %7 = vector.load %arg3[%c0_6, %c0_7] : memref<16x128xbf16, #tpu.memory_space<vmem>>, vector<16x128xbf16>
    %c0_8 = arith.constant 0 : index
    %c0_9 = arith.constant 0 : index
    %c0_10 = arith.constant 0 : index
    %8 = vector.load %arg2[%c0_8, %c0_9, %c0_10] : memref<1x128x128xbf16, #tpu.memory_space<vmem>>, vector<1x128x128xbf16>
    %9 = vector.shape_cast %8 : vector<1x128x128xbf16> to vector<128x128xbf16>
    %cst_11 = arith.constant dense<0.000000e+00> : vector<16x128xf32>
    %10 = tpu.matmul %7, %9, %cst_11 {dimension_numbers = #tpu.dot_dimension_numbers<[1], [0], [0], [1], [0, 0, 1, 1], [], []>} : vector<16x128xbf16>, vector<128x128xbf16>, vector<16x128xf32> -> vector<16x128xf32>
    %11 = arith.addf %6, %10 : vector<16x128xf32>
    %cst_12 = arith.constant 0.000000e+00 : bf16
    %12 = vector.broadcast %cst_12 : bf16 to vector<128x128xbf16>
    %c0_13 = arith.constant 0 : index
    %c0_14 = arith.constant 0 : index
    %c0_15 = arith.constant 0 : index
    %13 = vector.load %arg8[%c0_13, %c0_14, %c0_15] : memref<1x128x128xbf16, #tpu.memory_space<vmem>>, vector<1x128x128xbf16>
    %14 = vector.shape_cast %13 : vector<1x128x128xbf16> to vector<128x128xbf16>
    %15 = vector.shape_cast %12 : vector<128x128xbf16> to vector<1x128x128xbf16>
    tpu.vector_store %arg8[%c0_13, %c0_14, %c0_15], %15 {strides = array<i32>} : memref<1x128x128xbf16, #tpu.memory_space<vmem>>, vector<1x128x128xbf16>,
    %16 = arith.truncf %11 : vector<16x128xf32> to vector<16x128xbf16>
    %c0_16 = arith.constant 0 : index
    %c0_17 = arith.constant 0 : index
    %c0_18 = arith.constant 0 : index
    %17 = vector.load %arg8[%c0_16, %c0_17, %c0_18] : memref<1x128x128xbf16, #tpu.memory_space<vmem>>, vector<1x16x128xbf16>
    %18 = vector.shape_cast %17 : vector<1x16x128xbf16> to vector<16x128xbf16>
    %19 = vector.shape_cast %16 : vector<16x128xbf16> to vector<1x16x128xbf16>
    tpu.vector_store %arg8[%c0_16, %c0_17, %c0_18], %19 {strides = array<i32>} : memref<1x128x128xbf16, #tpu.memory_space<vmem>>, vector<1x16x128xbf16>,
    %cst_19 = arith.constant 0.000000e+00 : f32
    %20 = vector.broadcast %cst_19 : f32 to vector<32x128xf32>
    %c0_20 = arith.constant 0 : index
    %c0_21 = arith.constant 0 : index
    %21 = vector.load %arg10[%c0_20, %c0_21] : memref<32x128xf32, #tpu.memory_space<vmem>>, vector<32x128xf32>
    tpu.vector_store %arg10[%c0_20, %c0_21], %20 {strides = array<i32>} : memref<32x128xf32, #tpu.memory_space<vmem>>, vector<32x128xf32>,
    %c8 = arith.constant 8 : index
    %c0_22 = arith.constant 0 : index
    %22 = vector.load %arg10[%c8, %c0_22] : memref<32x128xf32, #tpu.memory_space<vmem>>, vector<16x128xf32>
    tpu.vector_store %arg10[%c8, %c0_22], %11 {strides = array<i32>} : memref<32x128xf32, #tpu.memory_space<vmem>>, vector<16x128xf32>,
    %23 = tpu.iota {dimensions = array<i32: 0>} : vector<16x1xi32>
    %c3_i32 = arith.constant 3 : i32
    %24 = vector.broadcast %c3_i32 : i32 to vector<16x1xi32>
    %25 = arith.andi %23, %24 : vector<16x1xi32>
    %cst_23 = arith.constant 0.000000e+00 : f32
    %26 = vector.broadcast %cst_23 : f32 to vector<16x128xf32>
    %c3 = arith.constant 3 : index
    %c0_24 = arith.constant 0 : index
    %27 = vector.load %arg10[%c3, %c0_24] : memref<32x128xf32, #tpu.memory_space<vmem>>, vector<16x128xf32>
    %c-1_i32 = arith.constant -1 : i32
    %28 = vector.broadcast %c-1_i32 : i32 to vector<16x1xi32>
    %29 = arith.addi %25, %28 : vector<16x1xi32>
    %c0_i32 = arith.constant 0 : i32
    %30 = vector.broadcast %c0_i32 : i32 to vector<16x1xi32>
    %31 = arith.cmpi sge, %29, %30 : vector<16x1xi32>
    %c-1_i32_25 = arith.constant -1 : i32
    %32 = vector.broadcast %c-1_i32_25 : i32 to vector<16x1xi32>
    %33 = arith.addi %25, %32 : vector<16x1xi32>
    %c4_i32 = arith.constant 4 : i32
    %34 = vector.broadcast %c4_i32 : i32 to vector<16x1xi32>
    %35 = arith.cmpi slt, %33, %34 : vector<16x1xi32>
    %36 = arith.andi %31, %35 : vector<16x1xi1>
    %cst_26 = arith.constant 0.000000e+00 : f32
    %37 = vector.broadcast %cst_26 : f32 to vector<16x128xf32>
    %38 = vector.shape_cast %36 : vector<16x1xi1> to vector<16x1xi1>
    %39 = vector.broadcast %38 : vector<16x1xi1> to vector<16x128xi1>
    %40 = arith.select %39, %27, %37 : vector<16x128xi1>, vector<16x128xf32>
    %41 = arith.truncf %40 : vector<16x128xf32> to vector<16x128xbf16>
    %c0_27 = arith.constant 0 : index
    %c0_28 = arith.constant 0 : index
    %c0_29 = arith.constant 0 : index
    %42 = vector.load %arg6[%c0_27, %c0_28, %c0_29] : memref<9x128x128xbf16, #tpu.memory_space<vmem>>, vector<1x128x128xbf16>
    %43 = vector.shape_cast %42 : vector<1x128x128xbf16> to vector<128x128xbf16>
    %cst_30 = arith.constant dense<0.000000e+00> : vector<16x128xf32>
    %44 = tpu.matmul %41, %43, %cst_30 {dimension_numbers = #tpu.dot_dimension_numbers<[1], [0], [0], [1], [0, 0, 1, 1], [], []>} : vector<16x128xbf16>, vector<128x128xbf16>, vector<16x128xf32> -> vector<16x128xf32>
    %45 = arith.addf %26, %44 : vector<16x128xf32>
    %c4 = arith.constant 4 : index
    %c0_31 = arith.constant 0 : index
    %46 = vector.load %arg10[%c4, %c0_31] : memref<32x128xf32, #tpu.memory_space<vmem>>, vector<16x128xf32>
    %47 = arith.truncf %46 : vector<16x128xf32> to vector<16x128xbf16>
    %c1 = arith.constant 1 : index
    %c0_32 = arith.constant 0 : index
    %c0_33 = arith.constant 0 : index
    %48 = vector.load %arg6[%c1, %c0_32, %c0_33] : memref<9x128x128xbf16, #tpu.memory_space<vmem>>, vector<1x128x128xbf16>
    %49 = vector.shape_cast %48 : vector<1x128x128xbf16> to vector<128x128xbf16>
    %cst_34 = arith.constant dense<0.000000e+00> : vector<16x128xf32>
    %50 = tpu.matmul %47, %49, %cst_34 {dimension_numbers = #tpu.dot_dimension_numbers<[1], [0], [0], [1], [0, 0, 1, 1], [], []>} : vector<16x128xbf16>, vector<128x128xbf16>, vector<16x128xf32> -> vector<16x128xf32>
    %51 = arith.addf %45, %50 : vector<16x128xf32>
    %c5 = arith.constant 5 : index
    %c0_35 = arith.constant 0 : index
    %52 = vector.load %arg10[%c5, %c0_35] : memref<32x128xf32, #tpu.memory_space<vmem>>, vector<16x128xf32>
    %c1_i32 = arith.constant 1 : i32
    %53 = vector.broadcast %c1_i32 : i32 to vector<16x1xi32>
    %54 = arith.addi %25, %53 : vector<16x1xi32>
    %c0_i32_36 = arith.constant 0 : i32
    %55 = vector.broadcast %c0_i32_36 : i32 to vector<16x1xi32>
    %56 = arith.cmpi sge, %54, %55 : vector<16x1xi32>
    %c1_i32_37 = arith.constant 1 : i32
    %57 = vector.broadcast %c1_i32_37 : i32 to vector<16x1xi32>
    %58 = arith.addi %25, %57 : vector<16x1xi32>
    %c4_i32_38 = arith.constant 4 : i32
    %59 = vector.broadcast %c4_i32_38 : i32 to vector<16x1xi32>
    %60 = arith.cmpi slt, %58, %59 : vector<16x1xi32>
    %61 = arith.andi %56, %60 : vector<16x1xi1>
    %cst_39 = arith.constant 0.000000e+00 : f32
    %62 = vector.broadcast %cst_39 : f32 to vector<16x128xf32>
    %63 = vector.shape_cast %61 : vector<16x1xi1> to vector<16x1xi1>
    %64 = vector.broadcast %63 : vector<16x1xi1> to vector<16x128xi1>
    %65 = arith.select %64, %52, %62 : vector<16x128xi1>, vector<16x128xf32>
    %66 = arith.truncf %65 : vector<16x128xf32> to vector<16x128xbf16>
    %c2 = arith.constant 2 : index
    %c0_40 = arith.constant 0 : index
    %c0_41 = arith.constant 0 : index
    %67 = vector.load %arg6[%c2, %c0_40, %c0_41] : memref<9x128x128xbf16, #tpu.memory_space<vmem>>, vector<1x128x128xbf16>
    %68 = vector.shape_cast %67 : vector<1x128x128xbf16> to vector<128x128xbf16>
    %cst_42 = arith.constant dense<0.000000e+00> : vector<16x128xf32>
    %69 = tpu.matmul %66, %68, %cst_42 {dimension_numbers = #tpu.dot_dimension_numbers<[1], [0], [0], [1], [0, 0, 1, 1], [], []>} : vector<16x128xbf16>, vector<128x128xbf16>, vector<16x128xf32> -> vector<16x128xf32>
    %70 = arith.addf %51, %69 : vector<16x128xf32>
    %c7 = arith.constant 7 : index
    %c0_43 = arith.constant 0 : index
    %71 = vector.load %arg10[%c7, %c0_43] : memref<32x128xf32, #tpu.memory_space<vmem>>, vector<16x128xf32>
    %c-1_i32_44 = arith.constant -1 : i32
    %72 = vector.broadcast %c-1_i32_44 : i32 to vector<16x1xi32>
    %73 = arith.addi %25, %72 : vector<16x1xi32>
    %c0_i32_45 = arith.constant 0 : i32
    %74 = vector.broadcast %c0_i32_45 : i32 to vector<16x1xi32>
    %75 = arith.cmpi sge, %73, %74 : vector<16x1xi32>
    %c-1_i32_46 = arith.constant -1 : i32
    %76 = vector.broadcast %c-1_i32_46 : i32 to vector<16x1xi32>
    %77 = arith.addi %25, %76 : vector<16x1xi32>
    %c4_i32_47 = arith.constant 4 : i32
    %78 = vector.broadcast %c4_i32_47 : i32 to vector<16x1xi32>
    %79 = arith.cmpi slt, %77, %78 : vector<16x1xi32>
    %80 = arith.andi %75, %79 : vector<16x1xi1>
    %cst_48 = arith.constant 0.000000e+00 : f32
    %81 = vector.broadcast %cst_48 : f32 to vector<16x128xf32>
    %82 = vector.shape_cast %80 : vector<16x1xi1> to vector<16x1xi1>
    %83 = vector.broadcast %82 : vector<16x1xi1> to vector<16x128xi1>
    %84 = arith.select %83, %71, %81 : vector<16x128xi1>, vector<16x128xf32>
    %85 = arith.truncf %84 : vector<16x128xf32> to vector<16x128xbf16>
    %c3_49 = arith.constant 3 : index
    %c0_50 = arith.constant 0 : index
    %c0_51 = arith.constant 0 : index
    %86 = vector.load %arg6[%c3_49, %c0_50, %c0_51] : memref<9x128x128xbf16, #tpu.memory_space<vmem>>, vector<1x128x128xbf16>
    %87 = vector.shape_cast %86 : vector<1x128x128xbf16> to vector<128x128xbf16>
    %cst_52 = arith.constant dense<0.000000e+00> : vector<16x128xf32>
    %88 = tpu.matmul %85, %87, %cst_52 {dimension_numbers = #tpu.dot_dimension_numbers<[1], [0], [0], [1], [0, 0, 1, 1], [], []>} : vector<16x128xbf16>, vector<128x128xbf16>, vector<16x128xf32> -> vector<16x128xf32>
    %89 = arith.addf %70, %88 : vector<16x128xf32>
    %c8_53 = arith.constant 8 : index
    %c0_54 = arith.constant 0 : index
    %90 = vector.load %arg10[%c8_53, %c0_54] : memref<32x128xf32, #tpu.memory_space<vmem>>, vector<16x128xf32>
    %91 = arith.truncf %90 : vector<16x128xf32> to vector<16x128xbf16>
    %c4_55 = arith.constant 4 : index
    %c0_56 = arith.constant 0 : index
    %c0_57 = arith.constant 0 : index
    %92 = vector.load %arg6[%c4_55, %c0_56, %c0_57] : memref<9x128x128xbf16, #tpu.memory_space<vmem>>, vector<1x128x128xbf16>
    %93 = vector.shape_cast %92 : vector<1x128x128xbf16> to vector<128x128xbf16>
    %cst_58 = arith.constant dense<0.000000e+00> : vector<16x128xf32>
    %94 = tpu.matmul %91, %93, %cst_58 {dimension_numbers = #tpu.dot_dimension_numbers<[1], [0], [0], [1], [0, 0, 1, 1], [], []>} : vector<16x128xbf16>, vector<128x128xbf16>, vector<16x128xf32> -> vector<16x128xf32>
    %95 = arith.addf %89, %94 : vector<16x128xf32>
    %c9 = arith.constant 9 : index
    %c0_59 = arith.constant 0 : index
    %96 = vector.load %arg10[%c9, %c0_59] : memref<32x128xf32, #tpu.memory_space<vmem>>, vector<16x128xf32>
    %c1_i32_60 = arith.constant 1 : i32
    %97 = vector.broadcast %c1_i32_60 : i32 to vector<16x1xi32>
    %98 = arith.addi %25, %97 : vector<16x1xi32>
    %c0_i32_61 = arith.constant 0 : i32
    %99 = vector.broadcast %c0_i32_61 : i32 to vector<16x1xi32>
    %100 = arith.cmpi sge, %98, %99 : vector<16x1xi32>
    %c1_i32_62 = arith.constant 1 : i32
    %101 = vector.broadcast %c1_i32_62 : i32 to vector<16x1xi32>
    %102 = arith.addi %25, %101 : vector<16x1xi32>
    %c4_i32_63 = arith.constant 4 : i32
    %103 = vector.broadcast %c4_i32_63 : i32 to vector<16x1xi32>
    %104 = arith.cmpi slt, %102, %103 : vector<16x1xi32>
    %105 = arith.andi %100, %104 : vector<16x1xi1>
    %cst_64 = arith.constant 0.000000e+00 : f32
    %106 = vector.broadcast %cst_64 : f32 to vector<16x128xf32>
    %107 = vector.shape_cast %105 : vector<16x1xi1> to vector<16x1xi1>
    %108 = vector.broadcast %107 : vector<16x1xi1> to vector<16x128xi1>
    %109 = arith.select %108, %96, %106 : vector<16x128xi1>, vector<16x128xf32>
    %110 = arith.truncf %109 : vector<16x128xf32> to vector<16x128xbf16>
    %c5_65 = arith.constant 5 : index
    %c0_66 = arith.constant 0 : index
    %c0_67 = arith.constant 0 : index
    %111 = vector.load %arg6[%c5_65, %c0_66, %c0_67] : memref<9x128x128xbf16, #tpu.memory_space<vmem>>, vector<1x128x128xbf16>
    %112 = vector.shape_cast %111 : vector<1x128x128xbf16> to vector<128x128xbf16>
    %cst_68 = arith.constant dense<0.000000e+00> : vector<16x128xf32>
    %113 = tpu.matmul %110, %112, %cst_68 {dimension_numbers = #tpu.dot_dimension_numbers<[1], [0], [0], [1], [0, 0, 1, 1], [], []>} : vector<16x128xbf16>, vector<128x128xbf16>, vector<16x128xf32> -> vector<16x128xf32>
    %114 = arith.addf %95, %113 : vector<16x128xf32>
    %c11 = arith.constant 11 : index
    %c0_69 = arith.constant 0 : index
    %115 = vector.load %arg10[%c11, %c0_69] : memref<32x128xf32, #tpu.memory_space<vmem>>, vector<16x128xf32>
    %c-1_i32_70 = arith.constant -1 : i32
    %116 = vector.broadcast %c-1_i32_70 : i32 to vector<16x1xi32>
    %117 = arith.addi %25, %116 : vector<16x1xi32>
    %c0_i32_71 = arith.constant 0 : i32
    %118 = vector.broadcast %c0_i32_71 : i32 to vector<16x1xi32>
    %119 = arith.cmpi sge, %117, %118 : vector<16x1xi32>
    %c-1_i32_72 = arith.constant -1 : i32
    %120 = vector.broadcast %c-1_i32_72 : i32 to vector<16x1xi32>
    %121 = arith.addi %25, %120 : vector<16x1xi32>
    %c4_i32_73 = arith.constant 4 : i32
    %122 = vector.broadcast %c4_i32_73 : i32 to vector<16x1xi32>
    %123 = arith.cmpi slt, %121, %122 : vector<16x1xi32>
    %124 = arith.andi %119, %123 : vector<16x1xi1>
    %cst_74 = arith.constant 0.000000e+00 : f32
    %125 = vector.broadcast %cst_74 : f32 to vector<16x128xf32>
    %126 = vector.shape_cast %124 : vector<16x1xi1> to vector<16x1xi1>
    %127 = vector.broadcast %126 : vector<16x1xi1> to vector<16x128xi1>
    %128 = arith.select %127, %115, %125 : vector<16x128xi1>, vector<16x128xf32>
    %129 = arith.truncf %128 : vector<16x128xf32> to vector<16x128xbf16>
    %c6 = arith.constant 6 : index
    %c0_75 = arith.constant 0 : index
    %c0_76 = arith.constant 0 : index
    %130 = vector.load %arg6[%c6, %c0_75, %c0_76] : memref<9x128x128xbf16, #tpu.memory_space<vmem>>, vector<1x128x128xbf16>
    %131 = vector.shape_cast %130 : vector<1x128x128xbf16> to vector<128x128xbf16>
    %cst_77 = arith.constant dense<0.000000e+00> : vector<16x128xf32>
    %132 = tpu.matmul %129, %131, %cst_77 {dimension_numbers = #tpu.dot_dimension_numbers<[1], [0], [0], [1], [0, 0, 1, 1], [], []>} : vector<16x128xbf16>, vector<128x128xbf16>, vector<16x128xf32> -> vector<16x128xf32>
    %133 = arith.addf %114, %132 : vector<16x128xf32>
    %c12 = arith.constant 12 : index
    %c0_78 = arith.constant 0 : index
    %134 = vector.load %arg10[%c12, %c0_78] : memref<32x128xf32, #tpu.memory_space<vmem>>, vector<16x128xf32>
    %135 = arith.truncf %134 : vector<16x128xf32> to vector<16x128xbf16>
    %c7_79 = arith.constant 7 : index
    %c0_80 = arith.constant 0 : index
    %c0_81 = arith.constant 0 : index
    %136 = vector.load %arg6[%c7_79, %c0_80, %c0_81] : memref<9x128x128xbf16, #tpu.memory_space<vmem>>, vector<1x128x128xbf16>
    %137 = vector.shape_cast %136 : vector<1x128x128xbf16> to vector<128x128xbf16>
    %cst_82 = arith.constant dense<0.000000e+00> : vector<16x128xf32>
    %138 = tpu.matmul %135, %137, %cst_82 {dimension_numbers = #tpu.dot_dimension_numbers<[1], [0], [0], [1], [0, 0, 1, 1], [], []>} : vector<16x128xbf16>, vector<128x128xbf16>, vector<16x128xf32> -> vector<16x128xf32>
    %139 = arith.addf %133, %138 : vector<16x128xf32>
    %c13 = arith.constant 13 : index
    %c0_83 = arith.constant 0 : index
    %140 = vector.load %arg10[%c13, %c0_83] : memref<32x128xf32, #tpu.memory_space<vmem>>, vector<16x128xf32>
    %c1_i32_84 = arith.constant 1 : i32
    %141 = vector.broadcast %c1_i32_84 : i32 to vector<16x1xi32>
    %142 = arith.addi %25, %141 : vector<16x1xi32>
    %c0_i32_85 = arith.constant 0 : i32
    %143 = vector.broadcast %c0_i32_85 : i32 to vector<16x1xi32>
    %144 = arith.cmpi sge, %142, %143 : vector<16x1xi32>
    %c1_i32_86 = arith.constant 1 : i32
    %145 = vector.broadcast %c1_i32_86 : i32 to vector<16x1xi32>
    %146 = arith.addi %25, %145 : vector<16x1xi32>
    %c4_i32_87 = arith.constant 4 : i32
    %147 = vector.broadcast %c4_i32_87 : i32 to vector<16x1xi32>
    %148 = arith.cmpi slt, %146, %147 : vector<16x1xi32>
    %149 = arith.andi %144, %148 : vector<16x1xi1>
    %cst_88 = arith.constant 0.000000e+00 : f32
    %150 = vector.broadcast %cst_88 : f32 to vector<16x128xf32>
    %151 = vector.shape_cast %149 : vector<16x1xi1> to vector<16x1xi1>
    %152 = vector.broadcast %151 : vector<16x1xi1> to vector<16x128xi1>
    %153 = arith.select %152, %140, %150 : vector<16x128xi1>, vector<16x128xf32>
    %154 = arith.truncf %153 : vector<16x128xf32> to vector<16x128xbf16>
    %c8_89 = arith.constant 8 : index
    %c0_90 = arith.constant 0 : index
    %c0_91 = arith.constant 0 : index
    %155 = vector.load %arg6[%c8_89, %c0_90, %c0_91] : memref<9x128x128xbf16, #tpu.memory_space<vmem>>, vector<1x128x128xbf16>
    %156 = vector.shape_cast %155 : vector<1x128x128xbf16> to vector<128x128xbf16>
    %cst_92 = arith.constant dense<0.000000e+00> : vector<16x128xf32>
    %157 = tpu.matmul %154, %156, %cst_92 {dimension_numbers = #tpu.dot_dimension_numbers<[1], [0], [0], [1], [0, 0, 1, 1], [], []>} : vector<16x128xbf16>, vector<128x128xbf16>, vector<16x128xf32> -> vector<16x128xf32>
    %158 = arith.addf %139, %157 : vector<16x128xf32>
    %c0_93 = arith.constant 0 : index
    %c0_94 = arith.constant 0 : index
    %159 = vector.load %arg7[%c0_93, %c0_94] : memref<1x128xf32, #tpu.memory_space<vmem>>, vector<1x128xf32>
    %160 = vector.broadcast %159 : vector<1x128xf32> to vector<16x128xf32>
    %161 = arith.addf %158, %160 : vector<16x128xf32>
    %c0_95 = arith.constant 0 : index
    %c0_96 = arith.constant 0 : index
    %c0_97 = arith.constant 0 : index
    %162 = vector.load %arg9[%c0_95, %c0_96, %c0_97] : memref<1x16x128xf32, #tpu.memory_space<vmem>>, vector<1x16x128xf32>
    %163 = vector.shape_cast %162 : vector<1x16x128xf32> to vector<16x128xf32>
    %164 = vector.shape_cast %161 : vector<16x128xf32> to vector<1x16x128xf32>
    tpu.vector_store %arg9[%c0_95, %c0_96, %c0_97], %164 {strides = array<i32>} : memref<1x16x128xf32, #tpu.memory_space<vmem>>, vector<1x16x128xf32>,
    return
  }
  func.func @transform_0(%arg0: i32) -> (i32, i32, i32) {
    %c0_i32 = arith.constant 0 : i32
    %c0_i32_0 = arith.constant 0 : i32
    %c0_i32_1 = arith.constant 0 : i32
    return %arg0, %c0_i32, %c0_i32_0 : i32, i32, i32
  }
  func.func @transform_1(%arg0: i32) -> (i32, i32, i32) {
    %c0_i32 = arith.constant 0 : i32
    %c0_i32_0 = arith.constant 0 : i32
    %c0_i32_1 = arith.constant 0 : i32
    return %arg0, %c0_i32, %c0_i32_0 : i32, i32, i32
  }
  func.func @transform_2(%arg0: i32) -> (i32, i32) {
    %c0_i32 = arith.constant 0 : i32
    %c0_i32_0 = arith.constant 0 : i32
    %c0_i32_1 = arith.constant 0 : i32
    return %c0_i32, %c0_i32_0 : i32, i32
  }
  func.func @transform_3(%arg0: i32) -> (i32, i32) {
    %c0_i32 = arith.constant 0 : i32
    %c0_i32_0 = arith.constant 0 : i32
    %c0_i32_1 = arith.constant 0 : i32
    return %c0_i32, %c0_i32_0 : i32, i32
  }
  func.func @transform_4(%arg0: i32) -> (i32, i32) {
    %c0_i32 = arith.constant 0 : i32
    %c0_i32_0 = arith.constant 0 : i32
    %c0_i32_1 = arith.constant 0 : i32
    return %c0_i32, %c0_i32_0 : i32, i32
  }
  func.func @transform_5(%arg0: i32) -> (i32, i32, i32) {
    %c0_i32 = arith.constant 0 : i32
    %c0_i32_0 = arith.constant 0 : i32
    %c0_i32_1 = arith.constant 0 : i32
    %c0_i32_2 = arith.constant 0 : i32
    return %c0_i32, %c0_i32_0, %c0_i32_1 : i32, i32, i32
  }
  func.func @transform_6(%arg0: i32) -> (i32, i32) {
    %c0_i32 = arith.constant 0 : i32
    %c0_i32_0 = arith.constant 0 : i32
    %c0_i32_1 = arith.constant 0 : i32
    return %c0_i32, %c0_i32_0 : i32, i32
  }
  func.func @transform_7(%arg0: i32) -> (i32, i32, i32) {
    %c0_i32 = arith.constant 0 : i32
    %c0_i32_0 = arith.constant 0 : i32
    %c0_i32_1 = arith.constant 0 : i32
    return %arg0, %c0_i32, %c0_i32_0 : i32, i32, i32
  }
  func.func @transform_8(%arg0: i32) -> (i32, i32, i32) {
    %c0_i32 = arith.constant 0 : i32
    %c0_i32_0 = arith.constant 0 : i32
    %c0_i32_1 = arith.constant 0 : i32
    return %arg0, %c0_i32, %c0_i32_0 : i32, i32, i32
  }
}

</mosaic_0001>

<llo_original>
// kernel: backbone_with_fpn_forward.6
$region0: #{backbone_with_fpn_forward.6}
  #allocation0 [shape = 'u32[]', space=smem, size = 0x4, offset = 0x4, fixed_abs, tag = 'smem constant byte address 0x4 - core index']
  #allocation1 [shape = 'u32[144,128]{1,0:T(1,128)}', space=vmem, size = 0x12000, scoped, tag = 'internal scratch']
  %s0 = inlined_call_operand.vmem [shape: bf16[2,64,512], index: 0, kind: input, shape index: {}]
  %s1 = inlined_call_operand.vmem [shape: bf16[512,128], index: 1, kind: input, shape index: {}]
  %s2 = inlined_call_operand.vmem [shape: f32[1,128], index: 2, kind: input, shape index: {}]
  %s3 = inlined_call_operand.vmem [shape: bf16[2,64,128], index: 3, kind: output, shape index: {}]
  %s4 = sld [smem:[#allocation0]]
  $region45: #{backbone_with_fpn_forward.6} parent=0
    _
  %s6 = ssub.s32 1, %s4
  %s7 = scalar_select 0, %s6, %s4
  loop: start=0, step=1, limit=4
  $region2: #{backbone_with_fpn_forward.6} parent=0 // loop_pre_header
    _
  $region3: #{backbone_with_fpn_forward.6} parent=0 // loop_header
    %s9 = sphi 0, %s13
    %p10 = scmp.ge.s32.totalorder %s9, 4
    %s19 = sphi 0, %s21
    %s22 = sphi 0, %s19
    %s23 = sphi 0, %s22
    %s39 = sphi 0, %s23
    %s43 = sphi 0, %s43
    %s45 = sphi 0, %s43
    %s46 = sphi 0, %s45
    %s60 = sphi 0, %s46
    %s64 = sphi 0, %s64
    %s66 = sphi 0, %s64
    %s67 = sphi 0, %s66
    %s81 = sphi 0, %s67
    %s87 = sphi 0, %s89
    %s90 = sphi 0, %s87
    %s91 = sphi 0, %s90
    %s107 = sphi 0, %s91
  $region4: #{backbone_with_fpn_forward.6} parent=0 // loop_header_branch
    %12 = sbr.rel (%p10) target = $region8
  $region5: #{backbone_with_fpn_forward.6} parent=0 // loop_body
    %s14 = ssub.s32 %s9, 1
    %s15 = ssub.s32 %s9, 2
    %s16 = sadd.s32 %s9, 1
    %s17 = ssub.s32 %s9, %s16
    %p18 = scmp.eq.s32.totalorder %s17, 0
    %s20 = sadd.s32 %s19, 1
    %s21 = scalar_select %p18, %s19, %s20
    %p24 = pneg %p18
    %p25 = scmp.eq.s32.totalorder %s9, 1
    %p26 = por %p24, %p25
    %p27 = scmp.ne.s32.totalorder %s19, %s22
    %p28 = scmp.eq.s32.totalorder %s9, 0
    %p29 = por %p27, %p28
    %p30 = scmp.ne.s32.totalorder %s19, %s22
    %p31 = scmp.eq.s32.totalorder %s14, 1
    %p32 = por %p30, %p31
    %p33 = scmp.ne.s32.totalorder %s22, %s23
    %p34 = scmp.eq.s32.totalorder %s14, 0
    %p35 = por %p33, %p34
    %p36 = scmp.ne.s32.totalorder %s22, %s23
    %p37 = scmp.eq.s32.totalorder %s15, 1
    %p38 = por %p36, %p37
    %p40 = scmp.ne.s32.totalorder %s23, %s39
    %p41 = scmp.eq.s32.totalorder %s15, 0
    %p42 = por %p40, %p41
    %s44 = sadd.s32 %s43, 1
    %p47 = scmp.eq.s32.totalorder %s9, 1
    %p48 = scmp.ne.s32.totalorder %s43, %s45
    %p49 = scmp.eq.s32.totalorder %s9, 0
    %p50 = por %p48, %p49
    %p51 = scmp.ne.s32.totalorder %s43, %s45
    %p52 = scmp.eq.s32.totalorder %s14, 1
    %p53 = por %p51, %p52
    %p54 = scmp.ne.s32.totalorder %s45, %s46
    %p55 = scmp.eq.s32.totalorder %s14, 0
    %p56 = por %p54, %p55
    %p57 = scmp.ne.s32.totalorder %s45, %s46
    %p58 = scmp.eq.s32.totalorder %s15, 1
    %p59 = por %p57, %p58
    %p61 = scmp.ne.s32.totalorder %s46, %s60
    %p62 = scmp.eq.s32.totalorder %s15, 0
    %p63 = por %p61, %p62
    %s65 = sadd.s32 %s64, 1
    %p68 = scmp.eq.s32.totalorder %s9, 1
    %p69 = scmp.ne.s32.totalorder %s64, %s66
    %p70 = scmp.eq.s32.totalorder %s9, 0
    %p71 = por %p69, %p70
    %p72 = scmp.ne.s32.totalorder %s64, %s66
    %p73 = scmp.eq.s32.totalorder %s14, 1
    %p74 = por %p72, %p73
    %p75 = scmp.ne.s32.totalorder %s66, %s67
    %p76 = scmp.eq.s32.totalorder %s14, 0
    %p77 = por %p75, %p76
    %p78 = scmp.ne.s32.totalorder %s66, %s67
    %p79 = scmp.eq.s32.totalorder %s15, 1
    %p80 = por %p78, %p79
    %p82 = scmp.ne.s32.totalorder %s67, %s81
    %p83 = scmp.eq.s32.totalorder %s15, 0
    %p84 = por %p82, %p83
    %s85 = ssub.s32 %s9, %s16
    %p86 = scmp.eq.s32.totalorder %s85, 0
    %s88 = sadd.s32 %s87, 1
    %s89 = scalar_select %p86, %s87, %s88
    %p92 = pneg %p86
    %p93 = scmp.eq.s32.totalorder %s9, 1
    %p94 = por %p92, %p93
    %p95 = scmp.ne.s32.totalorder %s87, %s90
    %p96 = scmp.eq.s32.totalorder %s9, 0
    %p97 = por %p95, %p96
    %p98 = scmp.ne.s32.totalorder %s87, %s90
    %p99 = scmp.eq.s32.totalorder %s14, 1
    %p100 = por %p98, %p99
    %p101 = scmp.ne.s32.totalorder %s90, %s91
    %p102 = scmp.eq.s32.totalorder %s14, 0
    %p103 = por %p101, %p102
    %p104 = scmp.ne.s32.totalorder %s90, %s91
    %p105 = scmp.eq.s32.totalorder %s15, 1
    %p106 = por %p104, %p105
    %p108 = scmp.ne.s32.totalorder %s91, %s107
    %p109 = scmp.eq.s32.totalorder %s15, 0
    %p110 = por %p108, %p109
    %p111 = scmp.le.s32.totalorder 1, %s9
    %p112 = scmp.lt.s32.totalorder %s9, 3
    %p113 = pnand %p111, %p112
    %p114 = pneg %p113
    // Predicated region
    $region9: #{backbone_with_fpn_forward.6} parent=5 // pred_check
      _
    $region10: #{backbone_with_fpn_forward.6} parent=5 // pred_check_branch
      %116 = sbr.rel (%p113) target = $region12
    $region11: #{backbone_with_fpn_forward.6} parent=5 // pred_region
      %s117 = ssub.s32 %s9, 1
      // Predicated region
      $region13: #{backbone_with_fpn_forward.6} parent=11 // pred_check
        %p118 = pneg %p56
      $region14: #{backbone_with_fpn_forward.6} parent=11 // pred_check_branch
        %120 = sbr.rel (%p118) target = $region16
      $region15: #{backbone_with_fpn_forward.6} parent=11 // pred_region
        _
      $region16: #{backbone_with_fpn_forward.6} parent=11 // pred_fallthru
        _
      // Predicated region
      $region17: #{backbone_with_fpn_forward.6} parent=11 // pred_check
        %p121 = pneg %p77
      $region18: #{backbone_with_fpn_forward.6} parent=11 // pred_check_branch
        %123 = sbr.rel (%p121) target = $region20
      $region19: #{backbone_with_fpn_forward.6} parent=11 // pred_region
        _
      $region20: #{backbone_with_fpn_forward.6} parent=11 // pred_fallthru
        _
    $region12: #{backbone_with_fpn_forward.6} parent=5 // pred_fallthru
      _
    %p124 = scmp.lt.s32.totalorder %s9, 2
    // Predicated region
    $region21: #{backbone_with_fpn_forward.6} parent=5 // pred_check
      %p125 = pneg %p124
    $region22: #{backbone_with_fpn_forward.6} parent=5 // pred_check_branch
      %127 = sbr.rel (%p125) target = $region24
    $region23: #{backbone_with_fpn_forward.6} parent=5 // pred_region
      // Predicated region
      $region25: #{backbone_with_fpn_forward.6} parent=23 // pred_check
        %p128 = pneg %p29
      $region26: #{backbone_with_fpn_forward.6} parent=23 // pred_check_branch
        %130 = sbr.rel (%p128) target = $region28
      $region27: #{backbone_with_fpn_forward.6} parent=23 // pred_region
        %p131 = scmp.lt.s32.totalorder %s9, 1
        %s132 = scalar_select %p131, %s9, 1
        %s133 = smul.addr %s132, 32
        %s134 = smul.addr %s133, 4
        %s135 = scalar_lea.vmem %s0, %s134
      $region28: #{backbone_with_fpn_forward.6} parent=23 // pred_fallthru
        _
    $region24: #{backbone_with_fpn_forward.6} parent=5 // pred_fallthru
      _
    %p136 = scmp.le.s32.totalorder 1, %s9
    %p137 = scmp.lt.s32.totalorder %s9, 3
    %p138 = pnand %p136, %p137
    %p139 = pneg %p138
    // Predicated region
    $region29: #{backbone_with_fpn_forward.6} parent=5 // pred_check
      _
    $region30: #{backbone_with_fpn_forward.6} parent=5 // pred_check_branch
      %141 = sbr.rel (%p138) target = $region32
    $region31: #{backbone_with_fpn_forward.6} parent=5 // pred_region
      %s142 = ssub.s32 %s9, 1
      %p143 = scmp.lt.s32.totalorder %s14, 1
      %s144 = scalar_select %p143, %s14, 1
      %s145 = smul.addr %s144, 32
      %s146 = smul.addr %s145, 4
      %s147 = scalar_lea.vmem %s0, %s146
      %p148 = pneg %p35
      %p149 = pneg %p32
      %p150 = pneg %p56
      %p151 = pneg %p53
      %p152 = pneg %p77
      %p153 = pneg %p74
      %p154 = pneg %p103
      %p155 = pneg %p100
      %p156 = scmp.lt.s32.totalorder %s14, 1
      %s157 = scalar_select %p156, %s14, 1
      %s158 = smul.addr %s157, 8
      %s159 = smul.addr %s158, 4
      %s160 = scalar_lea.vmem %s3, %s159
      %p161 = scmp.lt.s32.totalorder %s14, 1
      %s162 = scalar_select %p161, %s14, 1
      %s163 = smul.addr %s162, 32
      %s164 = smul.addr %s163, 4
      %s165 = scalar_lea.vmem %s0, %s164
      %p166 = scmp.lt.s32.totalorder %s14, 1
      %s167 = scalar_select %p166, %s14, 1
      %s168 = smul.addr %s167, 8
      %s169 = smul.addr %s168, 4
      %s170 = scalar_lea.vmem %s3, %s169
      %v172 = vld [vmem:[%s165] sm:$0xff]
      %v173 = vld [vmem:[%s165 + $0x8] sm:$0xff]
      %v174 = vld [vmem:[%s165 + $0x10] sm:$0xff]
      %v175 = vld [vmem:[%s165 + $0x18] sm:$0xff]
      %v176 = vld [vmem:[%s165 + $0x20] sm:$0xff]
      %v177 = vld [vmem:[%s165 + $0x28] sm:$0xff]
      %v178 = vld [vmem:[%s165 + $0x30] sm:$0xff]
      %v179 = vld [vmem:[%s165 + $0x38] sm:$0xff]
      %v180 = vld [vmem:[%s165 + $0x40] sm:$0xff]
      %v181 = vld [vmem:[%s165 + $0x48] sm:$0xff]
      %v182 = vld [vmem:[%s165 + $0x50] sm:$0xff]
      %v183 = vld [vmem:[%s165 + $0x58] sm:$0xff]
      %v184 = vld [vmem:[%s165 + $0x60] sm:$0xff]
      %v185 = vld [vmem:[%s165 + $0x68] sm:$0xff]
      %v186 = vld [vmem:[%s165 + $0x70] sm:$0xff]
      %v187 = vld [vmem:[%s165 + $0x78] sm:$0xff]
      %v188 = vld [vmem:[%s1] sm:$0xf]
      %v189 = vld [vmem:[%s1 + $0x4] sm:$0xf]
      %v190 = vld [vmem:[%s1 + $0x8] sm:$0xf]
      %v191 = vld [vmem:[%s1 + $0xc] sm:$0xf]
      %v192 = vld [vmem:[%s1 + $0x10] sm:$0xf]
      %v193 = vld [vmem:[%s1 + $0x14] sm:$0xf]
      %v194 = vld [vmem:[%s1 + $0x18] sm:$0xf]
      %v195 = vld [vmem:[%s1 + $0x1c] sm:$0xf]
      %v196 = vld [vmem:[%s1 + $0x20] sm:$0xf]
      %v197 = vld [vmem:[%s1 + $0x24] sm:$0xf]
      %v198 = vld [vmem:[%s1 + $0x28] sm:$0xf]
      %v199 = vld [vmem:[%s1 + $0x2c] sm:$0xf]
      %v200 = vld [vmem:[%s1 + $0x30] sm:$0xf]
      %v201 = vld [vmem:[%s1 + $0x34] sm:$0xf]
      %v202 = vld [vmem:[%s1 + $0x38] sm:$0xf]
      %v203 = vld [vmem:[%s1 + $0x3c] sm:$0xf]
      %v204 = vld [vmem:[%s1 + $0x40] sm:$0xf]
      %v205 = vld [vmem:[%s1 + $0x44] sm:$0xf]
      %v206 = vld [vmem:[%s1 + $0x48] sm:$0xf]
      %v207 = vld [vmem:[%s1 + $0x4c] sm:$0xf]
      %v208 = vld [vmem:[%s1 + $0x50] sm:$0xf]
      %v209 = vld [vmem:[%s1 + $0x54] sm:$0xf]
      %v210 = vld [vmem:[%s1 + $0x58] sm:$0xf]
      %v211 = vld [vmem:[%s1 + $0x5c] sm:$0xf]
      %v212 = vld [vmem:[%s1 + $0x60] sm:$0xf]
      %v213 = vld [vmem:[%s1 + $0x64] sm:$0xf]
      %v214 = vld [vmem:[%s1 + $0x68] sm:$0xf]
      %v215 = vld [vmem:[%s1 + $0x6c] sm:$0xf]
      %v216 = vld [vmem:[%s1 + $0x70] sm:$0xf]
      %v217 = vld [vmem:[%s1 + $0x74] sm:$0xf]
      %v218 = vld [vmem:[%s1 + $0x78] sm:$0xf]
      %v219 = vld [vmem:[%s1 + $0x7c] sm:$0xf]
      %v220 = vld [vmem:[%s1 + $0x80] sm:$0xf]
      %v221 = vld [vmem:[%s1 + $0x84] sm:$0xf]
      %v222 = vld [vmem:[%s1 + $0x88] sm:$0xf]
      %v223 = vld [vmem:[%s1 + $0x8c] sm:$0xf]
      %v224 = vld [vmem:[%s1 + $0x90] sm:$0xf]
      %v225 = vld [vmem:[%s1 + $0x94] sm:$0xf]
      %v226 = vld [vmem:[%s1 + $0x98] sm:$0xf]
      %v227 = vld [vmem:[%s1 + $0x9c] sm:$0xf]
      %v228 = vld [vmem:[%s1 + $0xa0] sm:$0xf]
      %v229 = vld [vmem:[%s1 + $0xa4] sm:$0xf]
      %v230 = vld [vmem:[%s1 + $0xa8] sm:$0xf]
      %v231 = vld [vmem:[%s1 + $0xac] sm:$0xf]
      %v232 = vld [vmem:[%s1 + $0xb0] sm:$0xf]
      %v233 = vld [vmem:[%s1 + $0xb4] sm:$0xf]
      %v234 = vld [vmem:[%s1 + $0xb8] sm:$0xf]
      %v235 = vld [vmem:[%s1 + $0xbc] sm:$0xf]
      %v236 = vld [vmem:[%s1 + $0xc0] sm:$0xf]
      %v237 = vld [vmem:[%s1 + $0xc4] sm:$0xf]
      %v238 = vld [vmem:[%s1 + $0xc8] sm:$0xf]
      %v239 = vld [vmem:[%s1 + $0xcc] sm:$0xf]
      %v240 = vld [vmem:[%s1 + $0xd0] sm:$0xf]
      %v241 = vld [vmem:[%s1 + $0xd4] sm:$0xf]
      %v242 = vld [vmem:[%s1 + $0xd8] sm:$0xf]
      %v243 = vld [vmem:[%s1 + $0xdc] sm:$0xf]
      %v244 = vld [vmem:[%s1 + $0xe0] sm:$0xf]
      %v245 = vld [vmem:[%s1 + $0xe4] sm:$0xf]
      %v246 = vld [vmem:[%s1 + $0xe8] sm:$0xf]
      %v247 = vld [vmem:[%s1 + $0xec] sm:$0xf]
      %v248 = vld [vmem:[%s1 + $0xf0] sm:$0xf]
      %v249 = vld [vmem:[%s1 + $0xf4] sm:$0xf]
      %v250 = vld [vmem:[%s1 + $0xf8] sm:$0xf]
      %v251 = vld [vmem:[%s1 + $0xfc] sm:$0xf]
      %v252 = vld [vmem:[%s2] sm:$0x1]
      %v254 = vlaneseq
      %v255 = vshrl.u32 %v254, 7
      %v256 = vsub.s32 0, %v255
      %v257 = vrot.slane %v252, %v256
      %v275 = vunpack.c.l.b16 %v172
      %v276 = vunpack.c.h.b16 %v172
      %v277 = vunpack.c.l.b16 %v173
      %v278 = vunpack.c.h.b16 %v173
      %v279 = vunpack.c.l.b16 %v174
      %v280 = vunpack.c.h.b16 %v174
      %v281 = vunpack.c.l.b16 %v175
      %v282 = vunpack.c.h.b16 %v175
      %v283 = vunpack.c.l.b16 %v176
      %v284 = vunpack.c.h.b16 %v176
      %v285 = vunpack.c.l.b16 %v177
      %v286 = vunpack.c.h.b16 %v177
      %v287 = vunpack.c.l.b16 %v178
      %v288 = vunpack.c.h.b16 %v178
      %v289 = vunpack.c.l.b16 %v179
      %v290 = vunpack.c.h.b16 %v179
      %v291 = vunpack.c.l.b16 %v180
      %v292 = vunpack.c.h.b16 %v180
      %v293 = vunpack.c.l.b16 %v181
      %v294 = vunpack.c.h.b16 %v181
      %v295 = vunpack.c.l.b16 %v182
      %v296 = vunpack.c.h.b16 %v182
      %v297 = vunpack.c.l.b16 %v183
      %v298 = vunpack.c.h.b16 %v183
      %v299 = vunpack.c.l.b16 %v184
      %v300 = vunpack.c.h.b16 %v184
      %v301 = vunpack.c.l.b16 %v185
      %v302 = vunpack.c.h.b16 %v185
      %v303 = vunpack.c.l.b16 %v186
      %v304 = vunpack.c.h.b16 %v186
      %v305 = vunpack.c.l.b16 %v187
      %v306 = vunpack.c.h.b16 %v187
      %v307 = vpack.c.b16 %v279, %v275
      %v308 = vpack.c.b16 %v280, %v276
      %v309 = vpack.c.b16 %v281, %v277
      %v310 = vpack.c.b16 %v282, %v278
      %v311 = vpack.c.b16 %v287, %v283
      %v312 = vpack.c.b16 %v288, %v284
      %v313 = vpack.c.b16 %v289, %v285
      %v314 = vpack.c.b16 %v290, %v286
      %v315 = vpack.c.b16 %v295, %v291
      %v316 = vpack.c.b16 %v296, %v292
      %v317 = vpack.c.b16 %v297, %v293
      %v318 = vpack.c.b16 %v298, %v294
      %v319 = vpack.c.b16 %v303, %v299
      %v320 = vpack.c.b16 %v304, %v300
      %v321 = vpack.c.b16 %v305, %v301
      %v322 = vpack.c.b16 %v306, %v302
      %v403 = vunpack.c.l.b16 %v188
      %v404 = vunpack.c.l.b16 %v189
      %v405 = vunpack.c.l.b16 %v190
      %v406 = vunpack.c.l.b16 %v191
      %v407 = vunpack.c.l.b16 %v192
      %v408 = vunpack.c.l.b16 %v193
      %v409 = vunpack.c.l.b16 %v194
      %v410 = vunpack.c.l.b16 %v195
      %v411 = vunpack.c.l.b16 %v196
      %v412 = vunpack.c.l.b16 %v197
      %v413 = vunpack.c.l.b16 %v198
      %v414 = vunpack.c.l.b16 %v199
      %v415 = vunpack.c.l.b16 %v200
      %v416 = vunpack.c.l.b16 %v201
      %v417 = vunpack.c.l.b16 %v202
      %v418 = vunpack.c.l.b16 %v203
      %v419 = vunpack.c.l.b16 %v204
      %v420 = vunpack.c.l.b16 %v205
      %v421 = vunpack.c.l.b16 %v206
      %v422 = vunpack.c.l.b16 %v207
      %v423 = vunpack.c.l.b16 %v208
      %v424 = vunpack.c.l.b16 %v209
      %v425 = vunpack.c.l.b16 %v210
      %v426 = vunpack.c.l.b16 %v211
      %v427 = vunpack.c.l.b16 %v212
      %v428 = vunpack.c.l.b16 %v213
      %v429 = vunpack.c.l.b16 %v214
      %v430 = vunpack.c.l.b16 %v215
      %v431 = vunpack.c.l.b16 %v216
      %v432 = vunpack.c.l.b16 %v217
      %v433 = vunpack.c.l.b16 %v218
      %v434 = vunpack.c.l.b16 %v219
      %v435 = vunpack.c.l.b16 %v220
      %v436 = vunpack.c.l.b16 %v221
      %v437 = vunpack.c.l.b16 %v222
      %v438 = vunpack.c.l.b16 %v223
      %v439 = vunpack.c.l.b16 %v224
      %v440 = vunpack.c.l.b16 %v225
      %v441 = vunpack.c.l.b16 %v226
      %v442 = vunpack.c.l.b16 %v227
      %v443 = vunpack.c.l.b16 %v228
      %v444 = vunpack.c.l.b16 %v229
      %v445 = vunpack.c.l.b16 %v230
      %v446 = vunpack.c.l.b16 %v231
      %v447 = vunpack.c.l.b16 %v232
      %v448 = vunpack.c.l.b16 %v233
      %v449 = vunpack.c.l.b16 %v234
      %v450 = vunpack.c.l.b16 %v235
      %v451 = vunpack.c.l.b16 %v236
      %v452 = vunpack.c.l.b16 %v237
      %v453 = vunpack.c.l.b16 %v238
      %v454 = vunpack.c.l.b16 %v239
      %v455 = vunpack.c.l.b16 %v240
      %v456 = vunpack.c.l.b16 %v241
      %v457 = vunpack.c.l.b16 %v242
      %v458 = vunpack.c.l.b16 %v243
      %v459 = vunpack.c.l.b16 %v244
      %v460 = vunpack.c.l.b16 %v245
      %v461 = vunpack.c.l.b16 %v246
      %v462 = vunpack.c.l.b16 %v247
      %v463 = vunpack.c.l.b16 %v248
      %v464 = vunpack.c.l.b16 %v249
      %v465 = vunpack.c.l.b16 %v250
      %v466 = vunpack.c.l.b16 %v251
      %v467 = vpack.c.b16 %v404, %v403
      %v468 = vpack.c.b16 %v406, %v405
      %v469 = vpack.c.b16 %v408, %v407
      %v470 = vpack.c.b16 %v410, %v409
      %v471 = vpack.c.b16 %v412, %v411
      %v472 = vpack.c.b16 %v414, %v413
      %v473 = vpack.c.b16 %v416, %v415
      %v474 = vpack.c.b16 %v418, %v417
      %v475 = vpack.c.b16 %v420, %v419
      %v476 = vpack.c.b16 %v422, %v421
      %v477 = vpack.c.b16 %v424, %v423
      %v478 = vpack.c.b16 %v426, %v425
      %v479 = vpack.c.b16 %v428, %v427
      %v480 = vpack.c.b16 %v430, %v429
      %v481 = vpack.c.b16 %v432, %v431
      %v482 = vpack.c.b16 %v434, %v433
      %v483 = vpack.c.b16 %v436, %v435
      %v484 = vpack.c.b16 %v438, %v437
      %v485 = vpack.c.b16 %v440, %v439
      %v486 = vpack.c.b16 %v442, %v441
      %v487 = vpack.c.b16 %v444, %v443
      %v488 = vpack.c.b16 %v446, %v445
      %v489 = vpack.c.b16 %v448, %v447
      %v490 = vpack.c.b16 %v450, %v449
      %v491 = vpack.c.b16 %v452, %v451
      %v492 = vpack.c.b16 %v454, %v453
      %v493 = vpack.c.b16 %v456, %v455
      %v494 = vpack.c.b16 %v458, %v457
      %v495 = vpack.c.b16 %v460, %v459
      %v496 = vpack.c.b16 %v462, %v461
      %v497 = vpack.c.b16 %v464, %v463
      %v498 = vpack.c.b16 %v466, %v465
      %531 = vmatprep.subr.bf16.mxu0 0
      %532 = vmatpush1.bf16.msra.mxu0 %v467
      %533 = vmatprep.subr.bf16.mxu0 0
      %534 = vmatpush1.bf16.msra.mxu0 %v468
      %535 = vmatprep.subr.bf16.mxu0 0
      %536 = vmatpush1.bf16.msra.mxu0 %v469
      %537 = vmatprep.subr.bf16.mxu0 0
      %538 = vmatpush1.bf16.msra.mxu0 %v470
      %539 = vmatprep.subr.bf16.mxu0 0
      %540 = vmatpush1.bf16.msra.mxu0 %v471
      %541 = vmatprep.subr.bf16.mxu0 0
      %542 = vmatpush1.bf16.msra.mxu0 %v472
      %543 = vmatprep.subr.bf16.mxu0 0
      %544 = vmatpush1.bf16.msra.mxu0 %v473
      %545 = vmatprep.subr.bf16.mxu0 0
      %546 = vmatpush1.bf16.msra.mxu0 %v474
      %547 = vmatprep.subr.bf16.mxu0 0
      %548 = vmatpush1.bf16.msra.mxu0 %v475
      %549 = vmatprep.subr.bf16.mxu0 0
      %550 = vmatpush1.bf16.msra.mxu0 %v476
      %551 = vmatprep.subr.bf16.mxu0 0
      %552 = vmatpush1.bf16.msra.mxu0 %v477
      %553 = vmatprep.subr.bf16.mxu0 0
      %554 = vmatpush1.bf16.msra.mxu0 %v478
      %555 = vmatprep.subr.bf16.mxu0 0
      %556 = vmatpush1.bf16.msra.mxu0 %v479
      %557 = vmatprep.subr.bf16.mxu0 0
      %558 = vmatpush1.bf16.msra.mxu0 %v480
      %559 = vmatprep.subr.bf16.mxu0 0
      %560 = vmatpush1.bf16.msra.mxu0 %v481
      %561 = vmatprep.subr.bf16.mxu0 0
      %562 = vmatpush1.bf16.msra.mxu0 %v482
      %563 = vmatprep.mubr.bf16.mxu0 %v308
      %564 = vmatmul.mubr.bf16.gmra.mrb[0].mxu0 %v307
      %v565 = vpop.f32.mrb[0].mxu0
      %v566 = vadd.f32 %v257, %v565
      %v567 = vpop.f32.mrb[0].mxu0
      %v568 = vpop.f32.mrb[0].mxu0
      %v569 = vadd.f32 %v257, %v568
      %v570 = vpop.f32.mrb[0].mxu0
      %571 = vmatprep.mubr.bf16.mxu0 %v312
      %572 = vmatmul.mubr.bf16.gmra.mrb[0].mxu0 %v311
      %v573 = vpop.f32.mrb[0].mxu0
      %v574 = vadd.f32 %v257, %v573
      %v575 = vpop.f32.mrb[0].mxu0
      %v576 = vpop.f32.mrb[0].mxu0
      %v577 = vadd.f32 %v257, %v576
      %v578 = vpop.f32.mrb[0].mxu0
      %579 = vmatprep.mubr.bf16.mxu0 %v316
      %580 = vmatmul.mubr.bf16.gmra.mrb[0].mxu0 %v315
      %v581 = vpop.f32.mrb[0].mxu0
      %v582 = vadd.f32 %v257, %v581
      %v583 = vpop.f32.mrb[0].mxu0
      %v584 = vpop.f32.mrb[0].mxu0
      %v585 = vadd.f32 %v257, %v584
      %v586 = vpop.f32.mrb[0].mxu0
      %587 = vmatprep.mubr.bf16.mxu0 %v320
      %588 = vmatmul.mubr.bf16.gmra.mrb[0].mxu0 %v319
      %v589 = vpop.f32.mrb[0].mxu0
      %v590 = vadd.f32 %v257, %v589
      %v591 = vpop.f32.mrb[0].mxu0
      %v592 = vpop.f32.mrb[0].mxu0
      %v593 = vadd.f32 %v257, %v592
      %v594 = vpop.f32.mrb[0].mxu0
      %595 = vdwg.mxu0
      %596 = vmatprep.subr.bf16.mxu0 0
      %597 = vmatpush1.bf16.msra.mxu0 %v483
      %598 = vmatprep.subr.bf16.mxu0 0
      %599 = vmatpush1.bf16.msra.mxu0 %v484
      %600 = vmatprep.subr.bf16.mxu0 0
      %601 = vmatpush1.bf16.msra.mxu0 %v485
      %602 = vmatprep.subr.bf16.mxu0 0
      %603 = vmatpush1.bf16.msra.mxu0 %v486
      %604 = vmatprep.subr.bf16.mxu0 0
      %605 = vmatpush1.bf16.msra.mxu0 %v487
      %606 = vmatprep.subr.bf16.mxu0 0
      %607 = vmatpush1.bf16.msra.mxu0 %v488
      %608 = vmatprep.subr.bf16.mxu0 0
      %609 = vmatpush1.bf16.msra.mxu0 %v489
      %610 = vmatprep.subr.bf16.mxu0 0
      %611 = vmatpush1.bf16.msra.mxu0 %v490
      %612 = vmatprep.subr.bf16.mxu0 0
      %613 = vmatpush1.bf16.msra.mxu0 %v491
      %614 = vmatprep.subr.bf16.mxu0 0
      %615 = vmatpush1.bf16.msra.mxu0 %v492
      %616 = vmatprep.subr.bf16.mxu0 0
      %617 = vmatpush1.bf16.msra.mxu0 %v493
      %618 = vmatprep.subr.bf16.mxu0 0
      %619 = vmatpush1.bf16.msra.mxu0 %v494
      %620 = vmatprep.subr.bf16.mxu0 0
      %621 = vmatpush1.bf16.msra.mxu0 %v495
      %622 = vmatprep.subr.bf16.mxu0 0
      %623 = vmatpush1.bf16.msra.mxu0 %v496
      %624 = vmatprep.subr.bf16.mxu0 0
      %625 = vmatpush1.bf16.msra.mxu0 %v497
      %626 = vmatprep.subr.bf16.mxu0 0
      %627 = vmatpush1.bf16.msra.mxu0 %v498
      %628 = vmatprep.mubr.bf16.mxu0 %v310
      %629 = vmatmul.mubr.bf16.gmra.mrb[0].mxu0 %v309
      %v630 = vpop.f32.mrb[0].mxu0
      %v631 = vadd.f32 %v566, %v630
      %v632 = vpop.f32.mrb[0].mxu0
      %v633 = vpop.f32.mrb[0].mxu0
      %v634 = vadd.f32 %v569, %v633
      %v635 = vpop.f32.mrb[0].mxu0
      %636 = vmatprep.mubr.bf16.mxu0 %v314
      %637 = vmatmul.mubr.bf16.gmra.mrb[0].mxu0 %v313
      %v638 = vpop.f32.mrb[0].mxu0
      %v639 = vadd.f32 %v574, %v638
      %v640 = vpop.f32.mrb[0].mxu0
      %v641 = vpop.f32.mrb[0].mxu0
      %v642 = vadd.f32 %v577, %v641
      %v643 = vpop.f32.mrb[0].mxu0
      %644 = vmatprep.mubr.bf16.mxu0 %v318
      %645 = vmatmul.mubr.bf16.gmra.mrb[0].mxu0 %v317
      %v646 = vpop.f32.mrb[0].mxu0
      %v647 = vadd.f32 %v582, %v646
      %v648 = vpop.f32.mrb[0].mxu0
      %v649 = vpop.f32.mrb[0].mxu0
      %v650 = vadd.f32 %v585, %v649
      %v651 = vpop.f32.mrb[0].mxu0
      %652 = vmatprep.mubr.bf16.mxu0 %v322
      %653 = vmatmul.mubr.bf16.gmra.mrb[0].mxu0 %v321
      %v654 = vpop.f32.mrb[0].mxu0
      %v655 = vadd.f32 %v590, %v654
      %v656 = vpop.f32.mrb[0].mxu0
      %v657 = vpop.f32.mrb[0].mxu0
      %v658 = vadd.f32 %v593, %v657
      %v659 = vpop.f32.mrb[0].mxu0
      %660 = vdwg.mxu0
      %v661 = vmax.f32 %v631, 0.0
      %v662 = vmax.f32 %v634, 0.0
      %v663 = vmax.f32 %v639, 0.0
      %v664 = vmax.f32 %v642, 0.0
      %v665 = vmax.f32 %v647, 0.0
      %v666 = vmax.f32 %v650, 0.0
      %v667 = vmax.f32 %v655, 0.0
      %v668 = vmax.f32 %v658, 0.0
      %v669 = vpack.c.bf16 %v662, %v661
      %v670 = vpack.c.bf16 %v664, %v663
      %v671 = vpack.c.bf16 %v666, %v665
      %v672 = vpack.c.bf16 %v668, %v667
      %v677 = vunpack.c.l.b16 %v669
      %v678 = vunpack.c.h.b16 %v669
      %v679 = vunpack.c.l.b16 %v670
      %v680 = vunpack.c.h.b16 %v670
      %v681 = vunpack.c.l.b16 %v671
      %v682 = vunpack.c.h.b16 %v671
      %v683 = vunpack.c.l.b16 %v672
      %v684 = vunpack.c.h.b16 %v672
      %v685 = vpack.c.b16 %v677, %v677
      %v686 = vpack.c.b16 %v678, %v678
      %v687 = vpack.c.b16 %v679, %v679
      %v688 = vpack.c.b16 %v680, %v680
      %v689 = vpack.c.b16 %v681, %v681
      %v690 = vpack.c.b16 %v682, %v682
      %v691 = vpack.c.b16 %v683, %v683
      %v692 = vpack.c.b16 %v684, %v684
      %701 = vst [vmem:[%s170] sm:$0xf] %v685
      %702 = vst [vmem:[%s170 + $0x4] sm:$0xf] %v686
      %703 = vst [vmem:[%s170 + $0x8] sm:$0xf] %v687
      %704 = vst [vmem:[%s170 + $0xc] sm:$0xf] %v688
      %705 = vst [vmem:[%s170 + $0x10] sm:$0xf] %v689
      %706 = vst [vmem:[%s170 + $0x14] sm:$0xf] %v690
      %707 = vst [vmem:[%s170 + $0x18] sm:$0xf] %v691
      %708 = vst [vmem:[%s170 + $0x1c] sm:$0xf] %v692
      %p709 = scmp.lt.s32.totalorder %s14, 1
      %s710 = scalar_select %p709, %s14, 1
      %s711 = smul.addr %s710, 8
      %s712 = smul.addr %s711, 4
      %s713 = scalar_lea.vmem %s3, %s712
      // Predicated region
      $region33: #{backbone_with_fpn_forward.6} parent=31 // pred_check
        %p714 = pneg %p100
      $region34: #{backbone_with_fpn_forward.6} parent=31 // pred_check_branch
        %716 = sbr.rel (%p714) target = $region36
      $region35: #{backbone_with_fpn_forward.6} parent=31 // pred_region
        _
      $region36: #{backbone_with_fpn_forward.6} parent=31 // pred_fallthru
        _
    $region32: #{backbone_with_fpn_forward.6} parent=5 // pred_fallthru
      _
    %p717 = scmp.le.s32.totalorder 2, %s9
    // Predicated region
    $region37: #{backbone_with_fpn_forward.6} parent=5 // pred_check
      %p718 = pneg %p717
    $region38: #{backbone_with_fpn_forward.6} parent=5 // pred_check_branch
      %720 = sbr.rel (%p718) target = $region40
    $region39: #{backbone_with_fpn_forward.6} parent=5 // pred_region
      %s721 = ssub.s32 %s9, 2
      // Predicated region
      $region41: #{backbone_with_fpn_forward.6} parent=39 // pred_check
        %p722 = pneg %p106
      $region42: #{backbone_with_fpn_forward.6} parent=39 // pred_check_branch
        %724 = sbr.rel (%p722) target = $region44
      $region43: #{backbone_with_fpn_forward.6} parent=39 // pred_region
        %p725 = scmp.lt.s32.totalorder %s15, 1
        %s726 = scalar_select %p725, %s15, 1
        %s727 = smul.addr %s726, 8
        %s728 = smul.addr %s727, 4
        %s729 = scalar_lea.vmem %s3, %s728
      $region44: #{backbone_with_fpn_forward.6} parent=39 // pred_fallthru
        _
    $region40: #{backbone_with_fpn_forward.6} parent=5 // pred_fallthru
      _
  $region6: #{backbone_with_fpn_forward.6} parent=0 // loop_footer
    %s13 = sadd.s32 1, %s9
  $region7: #{backbone_with_fpn_forward.6} parent=0 // loop_footer_branch
    %8 = sbr.rel target = $region3
  $region8: #{backbone_with_fpn_forward.6} parent=0 // loop_exit
    _

// kernel: backbone_with_fpn_forward.8
$region0: #{backbone_with_fpn_forward.8}
  #allocation0 [shape = 'u32[]', space=smem, size = 0x4, offset = 0x4, fixed_abs, tag = 'smem constant byte address 0x4 - core index']
  #allocation1 [shape = 'u32[144,128]{1,0:T(1,128)}', space=vmem, size = 0x12000, scoped, tag = 'internal scratch']
  %s0 = inlined_call_operand.vmem [shape: bf16[2,4,512], index: 0, kind: input, shape index: {}]
  %s1 = inlined_call_operand.vmem [shape: bf16[512,128], index: 1, kind: input, shape index: {}]
  %s2 = inlined_call_operand.vmem [shape: f32[1,128], index: 2, kind: input, shape index: {}]
  %s3 = inlined_call_operand.vmem [shape: bf16[2,4,128], index: 3, kind: output, shape index: {}]
  %s4 = sld [smem:[#allocation0]]
  $region45: #{backbone_with_fpn_forward.8} parent=0
    _
  %s6 = ssub.s32 1, %s4
  %s7 = scalar_select 0, %s6, %s4
  loop: start=0, step=1, limit=4
  $region2: #{backbone_with_fpn_forward.8} parent=0 // loop_pre_header
    _
  $region3: #{backbone_with_fpn_forward.8} parent=0 // loop_header
    %s9 = sphi 0, %s13
    %p10 = scmp.ge.s32.totalorder %s9, 4
    %s19 = sphi 0, %s21
    %s22 = sphi 0, %s19
    %s23 = sphi 0, %s22
    %s39 = sphi 0, %s23
    %s43 = sphi 0, %s43
    %s45 = sphi 0, %s43
    %s46 = sphi 0, %s45
    %s60 = sphi 0, %s46
    %s64 = sphi 0, %s64
    %s66 = sphi 0, %s64
    %s67 = sphi 0, %s66
    %s81 = sphi 0, %s67
    %s87 = sphi 0, %s89
    %s90 = sphi 0, %s87
    %s91 = sphi 0, %s90
    %s107 = sphi 0, %s91
  $region4: #{backbone_with_fpn_forward.8} parent=0 // loop_header_branch
    %12 = sbr.rel (%p10) target = $region8
  $region5: #{backbone_with_fpn_forward.8} parent=0 // loop_body
    %s14 = ssub.s32 %s9, 1
    %s15 = ssub.s32 %s9, 2
    %s16 = sadd.s32 %s9, 1
    %s17 = ssub.s32 %s9, %s16
    %p18 = scmp.eq.s32.totalorder %s17, 0
    %s20 = sadd.s32 %s19, 1
    %s21 = scalar_select %p18, %s19, %s20
    %p24 = pneg %p18
    %p25 = scmp.eq.s32.totalorder %s9, 1
    %p26 = por %p24, %p25
    %p27 = scmp.ne.s32.totalorder %s19, %s22
    %p28 = scmp.eq.s32.totalorder %s9, 0
    %p29 = por %p27, %p28
    %p30 = scmp.ne.s32.totalorder %s19, %s22
    %p31 = scmp.eq.s32.totalorder %s14, 1
    %p32 = por %p30, %p31
    %p33 = scmp.ne.s32.totalorder %s22, %s23
    %p34 = scmp.eq.s32.totalorder %s14, 0
    %p35 = por %p33, %p34
    %p36 = scmp.ne.s32.totalorder %s22, %s23
    %p37 = scmp.eq.s32.totalorder %s15, 1
    %p38 = por %p36, %p37
    %p40 = scmp.ne.s32.totalorder %s23, %s39
    %p41 = scmp.eq.s32.totalorder %s15, 0
    %p42 = por %p40, %p41
    %s44 = sadd.s32 %s43, 1
    %p47 = scmp.eq.s32.totalorder %s9, 1
    %p48 = scmp.ne.s32.totalorder %s43, %s45
    %p49 = scmp.eq.s32.totalorder %s9, 0
    %p50 = por %p48, %p49
    %p51 = scmp.ne.s32.totalorder %s43, %s45
    %p52 = scmp.eq.s32.totalorder %s14, 1
    %p53 = por %p51, %p52
    %p54 = scmp.ne.s32.totalorder %s45, %s46
    %p55 = scmp.eq.s32.totalorder %s14, 0
    %p56 = por %p54, %p55
    %p57 = scmp.ne.s32.totalorder %s45, %s46
    %p58 = scmp.eq.s32.totalorder %s15, 1
    %p59 = por %p57, %p58
    %p61 = scmp.ne.s32.totalorder %s46, %s60
    %p62 = scmp.eq.s32.totalorder %s15, 0
    %p63 = por %p61, %p62
    %s65 = sadd.s32 %s64, 1
    %p68 = scmp.eq.s32.totalorder %s9, 1
    %p69 = scmp.ne.s32.totalorder %s64, %s66
    %p70 = scmp.eq.s32.totalorder %s9, 0
    %p71 = por %p69, %p70
    %p72 = scmp.ne.s32.totalorder %s64, %s66
    %p73 = scmp.eq.s32.totalorder %s14, 1
    %p74 = por %p72, %p73
    %p75 = scmp.ne.s32.totalorder %s66, %s67
    %p76 = scmp.eq.s32.totalorder %s14, 0
    %p77 = por %p75, %p76
    %p78 = scmp.ne.s32.totalorder %s66, %s67
    %p79 = scmp.eq.s32.totalorder %s15, 1
    %p80 = por %p78, %p79
    %p82 = scmp.ne.s32.totalorder %s67, %s81
    %p83 = scmp.eq.s32.totalorder %s15, 0
    %p84 = por %p82, %p83
    %s85 = ssub.s32 %s9, %s16
    %p86 = scmp.eq.s32.totalorder %s85, 0
    %s88 = sadd.s32 %s87, 1
    %s89 = scalar_select %p86, %s87, %s88
    %p92 = pneg %p86
    %p93 = scmp.eq.s32.totalorder %s9, 1
    %p94 = por %p92, %p93
    %p95 = scmp.ne.s32.totalorder %s87, %s90
    %p96 = scmp.eq.s32.totalorder %s9, 0
    %p97 = por %p95, %p96
    %p98 = scmp.ne.s32.totalorder %s87, %s90
    %p99 = scmp.eq.s32.totalorder %s14, 1
    %p100 = por %p98, %p99
    %p101 = scmp.ne.s32.totalorder %s90, %s91
    %p102 = scmp.eq.s32.totalorder %s14, 0
    %p103 = por %p101, %p102
    %p104 = scmp.ne.s32.totalorder %s90, %s91
    %p105 = scmp.eq.s32.totalorder %s15, 1
    %p106 = por %p104, %p105
    %p108 = scmp.ne.s32.totalorder %s91, %s107
    %p109 = scmp.eq.s32.totalorder %s15, 0
    %p110 = por %p108, %p109
    %p111 = scmp.le.s32.totalorder 1, %s9
    %p112 = scmp.lt.s32.totalorder %s9, 3
    %p113 = pnand %p111, %p112
    %p114 = pneg %p113
    // Predicated region
    $region9: #{backbone_with_fpn_forward.8} parent=5 // pred_check
      _
    $region10: #{backbone_with_fpn_forward.8} parent=5 // pred_check_branch
      %116 = sbr.rel (%p113) target = $region12
    $region11: #{backbone_with_fpn_forward.8} parent=5 // pred_region
      %s117 = ssub.s32 %s9, 1
      // Predicated region
      $region13: #{backbone_with_fpn_forward.8} parent=11 // pred_check
        %p118 = pneg %p56
      $region14: #{backbone_with_fpn_forward.8} parent=11 // pred_check_branch
        %120 = sbr.rel (%p118) target = $region16
      $region15: #{backbone_with_fpn_forward.8} parent=11 // pred_region
        _
      $region16: #{backbone_with_fpn_forward.8} parent=11 // pred_fallthru
        _
      // Predicated region
      $region17: #{backbone_with_fpn_forward.8} parent=11 // pred_check
        %p121 = pneg %p77
      $region18: #{backbone_with_fpn_forward.8} parent=11 // pred_check_branch
        %123 = sbr.rel (%p121) target = $region20
      $region19: #{backbone_with_fpn_forward.8} parent=11 // pred_region
        _
      $region20: #{backbone_with_fpn_forward.8} parent=11 // pred_fallthru
        _
    $region12: #{backbone_with_fpn_forward.8} parent=5 // pred_fallthru
      _
    %p124 = scmp.lt.s32.totalorder %s9, 2
    // Predicated region
    $region21: #{backbone_with_fpn_forward.8} parent=5 // pred_check
      %p125 = pneg %p124
    $region22: #{backbone_with_fpn_forward.8} parent=5 // pred_check_branch
      %127 = sbr.rel (%p125) target = $region24
    $region23: #{backbone_with_fpn_forward.8} parent=5 // pred_region
      // Predicated region
      $region25: #{backbone_with_fpn_forward.8} parent=23 // pred_check
        %p128 = pneg %p29
      $region26: #{backbone_with_fpn_forward.8} parent=23 // pred_check_branch
        %130 = sbr.rel (%p128) target = $region28
      $region27: #{backbone_with_fpn_forward.8} parent=23 // pred_region
        %p131 = scmp.lt.s32.totalorder %s9, 1
        %s132 = scalar_select %p131, %s9, 1
        %s133 = smul.addr %s132, 4
        %s134 = smul.addr %s133, 2
        %s135 = scalar_lea.vmem %s0, %s134
      $region28: #{backbone_with_fpn_forward.8} parent=23 // pred_fallthru
        _
    $region24: #{backbone_with_fpn_forward.8} parent=5 // pred_fallthru
      _
    %p136 = scmp.le.s32.totalorder 1, %s9
    %p137 = scmp.lt.s32.totalorder %s9, 3
    %p138 = pnand %p136, %p137
    %p139 = pneg %p138
    // Predicated region
    $region29: #{backbone_with_fpn_forward.8} parent=5 // pred_check
      _
    $region30: #{backbone_with_fpn_forward.8} parent=5 // pred_check_branch
      %141 = sbr.rel (%p138) target = $region32
    $region31: #{backbone_with_fpn_forward.8} parent=5 // pred_region
      %s142 = ssub.s32 %s9, 1
      %p143 = scmp.lt.s32.totalorder %s14, 1
      %s144 = scalar_select %p143, %s14, 1
      %s145 = smul.addr %s144, 4
      %s146 = smul.addr %s145, 2
      %s147 = scalar_lea.vmem %s0, %s146
      %p148 = pneg %p35
      %p149 = pneg %p32
      %p150 = pneg %p56
      %p151 = pneg %p53
      %p152 = pneg %p77
      %p153 = pneg %p74
      %p154 = pneg %p103
      %p155 = pneg %p100
      %p156 = scmp.lt.s32.totalorder %s14, 1
      %s157 = scalar_select %p156, %s14, 1
      %s158 = smul.addr %s157, 2
      %s159 = scalar_lea.vmem %s3, %s158
      %p160 = scmp.lt.s32.totalorder %s14, 1
      %s161 = scalar_select %p160, %s14, 1
      %s162 = smul.addr %s161, 4
      %s163 = smul.addr %s162, 2
      %s164 = scalar_lea.vmem %s0, %s163
      %p165 = scmp.lt.s32.totalorder %s14, 1
      %s166 = scalar_select %p165, %s14, 1
      %s167 = smul.addr %s166, 2
      %s168 = scalar_lea.vmem %s3, %s167
      %v170 = vld [vmem:[%s164] sm:$0xff]
      %v171 = vld [vmem:[%s1] sm:$0xf]
      %v172 = vld [vmem:[%s1 + $0x4] sm:$0xf]
      %v173 = vld [vmem:[%s1 + $0x8] sm:$0xf]
      %v174 = vld [vmem:[%s1 + $0xc] sm:$0xf]
      %v175 = vld [vmem:[%s1 + $0x10] sm:$0xf]
      %v176 = vld [vmem:[%s1 + $0x14] sm:$0xf]
      %v177 = vld [vmem:[%s1 + $0x18] sm:$0xf]
      %v178 = vld [vmem:[%s1 + $0x1c] sm:$0xf]
      %v179 = vld [vmem:[%s1 + $0x20] sm:$0xf]
      %v180 = vld [vmem:[%s1 + $0x24] sm:$0xf]
      %v181 = vld [vmem:[%s1 + $0x28] sm:$0xf]
      %v182 = vld [vmem:[%s1 + $0x2c] sm:$0xf]
      %v183 = vld [vmem:[%s1 + $0x30] sm:$0xf]
      %v184 = vld [vmem:[%s1 + $0x34] sm:$0xf]
      %v185 = vld [vmem:[%s1 + $0x38] sm:$0xf]
      %v186 = vld [vmem:[%s1 + $0x3c] sm:$0xf]
      %v187 = vld [vmem:[%s1 + $0x40] sm:$0xf]
      %v188 = vld [vmem:[%s1 + $0x44] sm:$0xf]
      %v189 = vld [vmem:[%s1 + $0x48] sm:$0xf]
      %v190 = vld [vmem:[%s1 + $0x4c] sm:$0xf]
      %v191 = vld [vmem:[%s1 + $0x50] sm:$0xf]
      %v192 = vld [vmem:[%s1 + $0x54] sm:$0xf]
      %v193 = vld [vmem:[%s1 + $0x58] sm:$0xf]
      %v194 = vld [vmem:[%s1 + $0x5c] sm:$0xf]
      %v195 = vld [vmem:[%s1 + $0x60] sm:$0xf]
      %v196 = vld [vmem:[%s1 + $0x64] sm:$0xf]
      %v197 = vld [vmem:[%s1 + $0x68] sm:$0xf]
      %v198 = vld [vmem:[%s1 + $0x6c] sm:$0xf]
      %v199 = vld [vmem:[%s1 + $0x70] sm:$0xf]
      %v200 = vld [vmem:[%s1 + $0x74] sm:$0xf]
      %v201 = vld [vmem:[%s1 + $0x78] sm:$0xf]
      %v202 = vld [vmem:[%s1 + $0x7c] sm:$0xf]
      %v203 = vld [vmem:[%s1 + $0x80] sm:$0xf]
      %v204 = vld [vmem:[%s1 + $0x84] sm:$0xf]
      %v205 = vld [vmem:[%s1 + $0x88] sm:$0xf]
      %v206 = vld [vmem:[%s1 + $0x8c] sm:$0xf]
      %v207 = vld [vmem:[%s1 + $0x90] sm:$0xf]
      %v208 = vld [vmem:[%s1 + $0x94] sm:$0xf]
      %v209 = vld [vmem:[%s1 + $0x98] sm:$0xf]
      %v210 = vld [vmem:[%s1 + $0x9c] sm:$0xf]
      %v211 = vld [vmem:[%s1 + $0xa0] sm:$0xf]
      %v212 = vld [vmem:[%s1 + $0xa4] sm:$0xf]
      %v213 = vld [vmem:[%s1 + $0xa8] sm:$0xf]
      %v214 = vld [vmem:[%s1 + $0xac] sm:$0xf]
      %v215 = vld [vmem:[%s1 + $0xb0] sm:$0xf]
      %v216 = vld [vmem:[%s1 + $0xb4] sm:$0xf]
      %v217 = vld [vmem:[%s1 + $0xb8] sm:$0xf]
      %v218 = vld [vmem:[%s1 + $0xbc] sm:$0xf]
      %v219 = vld [vmem:[%s1 + $0xc0] sm:$0xf]
      %v220 = vld [vmem:[%s1 + $0xc4] sm:$0xf]
      %v221 = vld [vmem:[%s1 + $0xc8] sm:$0xf]
      %v222 = vld [vmem:[%s1 + $0xcc] sm:$0xf]
      %v223 = vld [vmem:[%s1 + $0xd0] sm:$0xf]
      %v224 = vld [vmem:[%s1 + $0xd4] sm:$0xf]
      %v225 = vld [vmem:[%s1 + $0xd8] sm:$0xf]
      %v226 = vld [vmem:[%s1 + $0xdc] sm:$0xf]
      %v227 = vld [vmem:[%s1 + $0xe0] sm:$0xf]
      %v228 = vld [vmem:[%s1 + $0xe4] sm:$0xf]
      %v229 = vld [vmem:[%s1 + $0xe8] sm:$0xf]
      %v230 = vld [vmem:[%s1 + $0xec] sm:$0xf]
      %v231 = vld [vmem:[%s1 + $0xf0] sm:$0xf]
      %v232 = vld [vmem:[%s1 + $0xf4] sm:$0xf]
      %v233 = vld [vmem:[%s1 + $0xf8] sm:$0xf]
      %v234 = vld [vmem:[%s1 + $0xfc] sm:$0xf]
      %v235 = vld [vmem:[%s2] sm:$0x1]
      %v237 = vlaneseq
      %v238 = vshrl.u32 %v237, 7
      %v239 = vsub.s32 0, %v238
      %v240 = vrot.slane %v235, %v239
      %v243 = vcombine.high %v170, %v170
      %v245 = vunpack.c.l.s4 1983009808
      %v246 = vunpack.c.0.s8 %v245
      %v247 = vlaneseq
      %v248 = vshrl.u32 %v247, 7
      %v249 = vsub.s32 %v246, %v248
      %v250 = vrot.slane %v170, %v249
      %v252 = vunpack.c.l.s4 1983009808
      %v253 = vunpack.c.0.s8 %v252
      %v254 = vlaneseq
      %v255 = vshrl.u32 %v254, 7
      %v256 = vsub.s32 %v253, %v255
      %v257 = vrot.slane %v243, %v256
      %v258 = vcombine.high %v250, %v250
      %v259 = vcombine.high %v257, %v257
      %v328 = vunpack.c.l.b16 %v171
      %v329 = vunpack.c.l.b16 %v172
      %v330 = vunpack.c.l.b16 %v173
      %v331 = vunpack.c.l.b16 %v174
      %v332 = vunpack.c.l.b16 %v175
      %v333 = vunpack.c.l.b16 %v176
      %v334 = vunpack.c.l.b16 %v177
      %v335 = vunpack.c.l.b16 %v178
      %v336 = vunpack.c.l.b16 %v179
      %v337 = vunpack.c.l.b16 %v180
      %v338 = vunpack.c.l.b16 %v181
      %v339 = vunpack.c.l.b16 %v182
      %v340 = vunpack.c.l.b16 %v183
      %v341 = vunpack.c.l.b16 %v184
      %v342 = vunpack.c.l.b16 %v185
      %v343 = vunpack.c.l.b16 %v186
      %v344 = vunpack.c.l.b16 %v187
      %v345 = vunpack.c.l.b16 %v188
      %v346 = vunpack.c.l.b16 %v189
      %v347 = vunpack.c.l.b16 %v190
      %v348 = vunpack.c.l.b16 %v191
      %v349 = vunpack.c.l.b16 %v192
      %v350 = vunpack.c.l.b16 %v193
      %v351 = vunpack.c.l.b16 %v194
      %v352 = vunpack.c.l.b16 %v195
      %v353 = vunpack.c.l.b16 %v196
      %v354 = vunpack.c.l.b16 %v197
      %v355 = vunpack.c.l.b16 %v198
      %v356 = vunpack.c.l.b16 %v199
      %v357 = vunpack.c.l.b16 %v200
      %v358 = vunpack.c.l.b16 %v201
      %v359 = vunpack.c.l.b16 %v202
      %v360 = vunpack.c.l.b16 %v203
      %v361 = vunpack.c.l.b16 %v204
      %v362 = vunpack.c.l.b16 %v205
      %v363 = vunpack.c.l.b16 %v206
      %v364 = vunpack.c.l.b16 %v207
      %v365 = vunpack.c.l.b16 %v208
      %v366 = vunpack.c.l.b16 %v209
      %v367 = vunpack.c.l.b16 %v210
      %v368 = vunpack.c.l.b16 %v211
      %v369 = vunpack.c.l.b16 %v212
      %v370 = vunpack.c.l.b16 %v213
      %v371 = vunpack.c.l.b16 %v214
      %v372 = vunpack.c.l.b16 %v215
      %v373 = vunpack.c.l.b16 %v216
      %v374 = vunpack.c.l.b16 %v217
      %v375 = vunpack.c.l.b16 %v218
      %v376 = vunpack.c.l.b16 %v219
      %v377 = vunpack.c.l.b16 %v220
      %v378 = vunpack.c.l.b16 %v221
      %v379 = vunpack.c.l.b16 %v222
      %v380 = vunpack.c.l.b16 %v223
      %v381 = vunpack.c.l.b16 %v224
      %v382 = vunpack.c.l.b16 %v225
      %v383 = vunpack.c.l.b16 %v226
      %v384 = vunpack.c.l.b16 %v227
      %v385 = vunpack.c.l.b16 %v228
      %v386 = vunpack.c.l.b16 %v229
      %v387 = vunpack.c.l.b16 %v230
      %v388 = vunpack.c.l.b16 %v231
      %v389 = vunpack.c.l.b16 %v232
      %v390 = vunpack.c.l.b16 %v233
      %v391 = vunpack.c.l.b16 %v234
      %v392 = vpack.c.b16 %v329, %v328
      %v393 = vpack.c.b16 %v331, %v330
      %v394 = vpack.c.b16 %v333, %v332
      %v395 = vpack.c.b16 %v335, %v334
      %v396 = vpack.c.b16 %v337, %v336
      %v397 = vpack.c.b16 %v339, %v338
      %v398 = vpack.c.b16 %v341, %v340
      %v399 = vpack.c.b16 %v343, %v342
      %v400 = vpack.c.b16 %v345, %v344
      %v401 = vpack.c.b16 %v347, %v346
      %v402 = vpack.c.b16 %v349, %v348
      %v403 = vpack.c.b16 %v351, %v350
      %v404 = vpack.c.b16 %v353, %v352
      %v405 = vpack.c.b16 %v355, %v354
      %v406 = vpack.c.b16 %v357, %v356
      %v407 = vpack.c.b16 %v359, %v358
      %v408 = vpack.c.b16 %v361, %v360
      %v409 = vpack.c.b16 %v363, %v362
      %v410 = vpack.c.b16 %v365, %v364
      %v411 = vpack.c.b16 %v367, %v366
      %v412 = vpack.c.b16 %v369, %v368
      %v413 = vpack.c.b16 %v371, %v370
      %v414 = vpack.c.b16 %v373, %v372
      %v415 = vpack.c.b16 %v375, %v374
      %v416 = vpack.c.b16 %v377, %v376
      %v417 = vpack.c.b16 %v379, %v378
      %v418 = vpack.c.b16 %v381, %v380
      %v419 = vpack.c.b16 %v383, %v382
      %v420 = vpack.c.b16 %v385, %v384
      %v421 = vpack.c.b16 %v387, %v386
      %v422 = vpack.c.b16 %v389, %v388
      %v423 = vpack.c.b16 %v391, %v390
      %456 = vmatprep.subr.bf16.mxu0 0
      %457 = vmatpush1.bf16.msra.mxu0 %v392
      %458 = vmatprep.subr.bf16.mxu0 0
      %459 = vmatpush1.bf16.msra.mxu0 %v393
      %460 = vmatprep.subr.bf16.mxu0 0
      %461 = vmatpush1.bf16.msra.mxu0 %v394
      %462 = vmatprep.subr.bf16.mxu0 0
      %463 = vmatpush1.bf16.msra.mxu0 %v395
      %464 = vmatprep.subr.bf16.mxu0 0
      %465 = vmatpush1.bf16.msra.mxu0 %v396
      %466 = vmatprep.subr.bf16.mxu0 0
      %467 = vmatpush1.bf16.msra.mxu0 %v397
      %468 = vmatprep.subr.bf16.mxu0 0
      %469 = vmatpush1.bf16.msra.mxu0 %v398
      %470 = vmatprep.subr.bf16.mxu0 0
      %471 = vmatpush1.bf16.msra.mxu0 %v399
      %472 = vmatprep.subr.bf16.mxu0 0
      %473 = vmatpush1.bf16.msra.mxu0 %v400
      %474 = vmatprep.subr.bf16.mxu0 0
      %475 = vmatpush1.bf16.msra.mxu0 %v401
      %476 = vmatprep.subr.bf16.mxu0 0
      %477 = vmatpush1.bf16.msra.mxu0 %v402
      %478 = vmatprep.subr.bf16.mxu0 0
      %479 = vmatpush1.bf16.msra.mxu0 %v403
      %480 = vmatprep.subr.bf16.mxu0 0
      %481 = vmatpush1.bf16.msra.mxu0 %v404
      %482 = vmatprep.subr.bf16.mxu0 0
      %483 = vmatpush1.bf16.msra.mxu0 %v405
      %484 = vmatprep.subr.bf16.mxu0 0
      %485 = vmatpush1.bf16.msra.mxu0 %v406
      %486 = vmatprep.subr.bf16.mxu0 0
      %487 = vmatpush1.bf16.msra.mxu0 %v407
      %488 = vmatprep.mubr.bf16.mxu0 %v258
      %489 = vmatmul.mubr.bf16.gmra.mrb[0].mxu0 %v250
      %v490 = vpop.f32.mrb[0].mxu0
      %v491 = vadd.f32 %v240, %v490
      %v492 = vpop.f32.mrb[0].mxu0
      %v493 = vpop.f32.mrb[0].mxu0
      %v494 = vpop.f32.mrb[0].mxu0
      %495 = vdwg.mxu0
      %496 = vmatprep.subr.bf16.mxu0 0
      %497 = vmatpush1.bf16.msra.mxu0 %v408
      %498 = vmatprep.subr.bf16.mxu0 0
      %499 = vmatpush1.bf16.msra.mxu0 %v409
      %500 = vmatprep.subr.bf16.mxu0 0
      %501 = vmatpush1.bf16.msra.mxu0 %v410
      %502 = vmatprep.subr.bf16.mxu0 0
      %503 = vmatpush1.bf16.msra.mxu0 %v411
      %504 = vmatprep.subr.bf16.mxu0 0
      %505 = vmatpush1.bf16.msra.mxu0 %v412
      %506 = vmatprep.subr.bf16.mxu0 0
      %507 = vmatpush1.bf16.msra.mxu0 %v413
      %508 = vmatprep.subr.bf16.mxu0 0
      %509 = vmatpush1.bf16.msra.mxu0 %v414
      %510 = vmatprep.subr.bf16.mxu0 0
      %511 = vmatpush1.bf16.msra.mxu0 %v415
      %512 = vmatprep.subr.bf16.mxu0 0
      %513 = vmatpush1.bf16.msra.mxu0 %v416
      %514 = vmatprep.subr.bf16.mxu0 0
      %515 = vmatpush1.bf16.msra.mxu0 %v417
      %516 = vmatprep.subr.bf16.mxu0 0
      %517 = vmatpush1.bf16.msra.mxu0 %v418
      %518 = vmatprep.subr.bf16.mxu0 0
      %519 = vmatpush1.bf16.msra.mxu0 %v419
      %520 = vmatprep.subr.bf16.mxu0 0
      %521 = vmatpush1.bf16.msra.mxu0 %v420
      %522 = vmatprep.subr.bf16.mxu0 0
      %523 = vmatpush1.bf16.msra.mxu0 %v421
      %524 = vmatprep.subr.bf16.mxu0 0
      %525 = vmatpush1.bf16.msra.mxu0 %v422
      %526 = vmatprep.subr.bf16.mxu0 0
      %527 = vmatpush1.bf16.msra.mxu0 %v423
      %528 = vmatprep.mubr.bf16.mxu0 %v259
      %529 = vmatmul.mubr.bf16.gmra.mrb[0].mxu0 %v257
      %v530 = vpop.f32.mrb[0].mxu0
      %v531 = vadd.f32 %v491, %v530
      %v532 = vpop.f32.mrb[0].mxu0
      %v533 = vpop.f32.mrb[0].mxu0
      %v534 = vpop.f32.mrb[0].mxu0
      %535 = vdwg.mxu0
      %v536 = vmax.f32 %v531, 0.0
      %v537 = vpack.c.bf16 %v536, %v536
      %538 = vst [vmem:[%s168] sm:$0x3] %v537
      %p539 = scmp.lt.s32.totalorder %s14, 1
      %s540 = scalar_select %p539, %s14, 1
      %s541 = smul.addr %s540, 2
      %s542 = scalar_lea.vmem %s3, %s541
      // Predicated region
      $region33: #{backbone_with_fpn_forward.8} parent=31 // pred_check
        %p543 = pneg %p100
      $region34: #{backbone_with_fpn_forward.8} parent=31 // pred_check_branch
        %545 = sbr.rel (%p543) target = $region36
      $region35: #{backbone_with_fpn_forward.8} parent=31 // pred_region
        _
      $region36: #{backbone_with_fpn_forward.8} parent=31 // pred_fallthru
        _
    $region32: #{backbone_with_fpn_forward.8} parent=5 // pred_fallthru
      _
    %p546 = scmp.le.s32.totalorder 2, %s9
    // Predicated region
    $region37: #{backbone_with_fpn_forward.8} parent=5 // pred_check
      %p547 = pneg %p546
    $region38: #{backbone_with_fpn_forward.8} parent=5 // pred_check_branch
      %549 = sbr.rel (%p547) target = $region40
    $region39: #{backbone_with_fpn_forward.8} parent=5 // pred_region
      %s550 = ssub.s32 %s9, 2
      // Predicated region
      $region41: #{backbone_with_fpn_forward.8} parent=39 // pred_check
        %p551 = pneg %p106
      $region42: #{backbone_with_fpn_forward.8} parent=39 // pred_check_branch
        %553 = sbr.rel (%p551) target = $region44
      $region43: #{backbone_with_fpn_forward.8} parent=39 // pred_region
        %p554 = scmp.lt.s32.totalorder %s15, 1
        %s555 = scalar_select %p554, %s15, 1
        %s556 = smul.addr %s555, 2
        %s557 = scalar_lea.vmem %s3, %s556
      $region44: #{backbone_with_fpn_forward.8} parent=39 // pred_fallthru
        _
    $region40: #{backbone_with_fpn_forward.8} parent=5 // pred_fallthru
      _
  $region6: #{backbone_with_fpn_forward.8} parent=0 // loop_footer
    %s13 = sadd.s32 1, %s9
  $region7: #{backbone_with_fpn_forward.8} parent=0 // loop_footer_branch
    %8 = sbr.rel target = $region3
  $region8: #{backbone_with_fpn_forward.8} parent=0 // loop_exit
    _

// kernel: backbone_with_fpn_forward.7
$region0: #{backbone_with_fpn_forward.7}
  #allocation0 [shape = 'u32[]', space=smem, size = 0x4, offset = 0x4, fixed_abs, tag = 'smem constant byte address 0x4 - core index']
  #allocation1 [shape = 'u32[144,128]{1,0:T(1,128)}', space=vmem, size = 0x12000, scoped, tag = 'internal scratch']
  %s0 = inlined_call_operand.vmem [shape: bf16[2,16,512], index: 0, kind: input, shape index: {}]
  %s1 = inlined_call_operand.vmem [shape: bf16[512,128], index: 1, kind: input, shape index: {}]
  %s2 = inlined_call_operand.vmem [shape: f32[1,128], index: 2, kind: input, shape index: {}]
  %s3 = inlined_call_operand.vmem [shape: bf16[2,16,128], index: 3, kind: output, shape index: {}]
  %s4 = sld [smem:[#allocation0]]
  $region45: #{backbone_with_fpn_forward.7} parent=0
    _
  %s6 = ssub.s32 1, %s4
  %s7 = scalar_select 0, %s6, %s4
  loop: start=0, step=1, limit=4
  $region2: #{backbone_with_fpn_forward.7} parent=0 // loop_pre_header
    _
  $region3: #{backbone_with_fpn_forward.7} parent=0 // loop_header
    %s9 = sphi 0, %s13
    %p10 = scmp.ge.s32.totalorder %s9, 4
    %s19 = sphi 0, %s21
    %s22 = sphi 0, %s19
    %s23 = sphi 0, %s22
    %s39 = sphi 0, %s23
    %s43 = sphi 0, %s43
    %s45 = sphi 0, %s43
    %s46 = sphi 0, %s45
    %s60 = sphi 0, %s46
    %s64 = sphi 0, %s64
    %s66 = sphi 0, %s64
    %s67 = sphi 0, %s66
    %s81 = sphi 0, %s67
    %s87 = sphi 0, %s89
    %s90 = sphi 0, %s87
    %s91 = sphi 0, %s90
    %s107 = sphi 0, %s91
  $region4: #{backbone_with_fpn_forward.7} parent=0 // loop_header_branch
    %12 = sbr.rel (%p10) target = $region8
  $region5: #{backbone_with_fpn_forward.7} parent=0 // loop_body
    %s14 = ssub.s32 %s9, 1
    %s15 = ssub.s32 %s9, 2
    %s16 = sadd.s32 %s9, 1
    %s17 = ssub.s32 %s9, %s16
    %p18 = scmp.eq.s32.totalorder %s17, 0
    %s20 = sadd.s32 %s19, 1
    %s21 = scalar_select %p18, %s19, %s20
    %p24 = pneg %p18
    %p25 = scmp.eq.s32.totalorder %s9, 1
    %p26 = por %p24, %p25
    %p27 = scmp.ne.s32.totalorder %s19, %s22
    %p28 = scmp.eq.s32.totalorder %s9, 0
    %p29 = por %p27, %p28
    %p30 = scmp.ne.s32.totalorder %s19, %s22
    %p31 = scmp.eq.s32.totalorder %s14, 1
    %p32 = por %p30, %p31
    %p33 = scmp.ne.s32.totalorder %s22, %s23
    %p34 = scmp.eq.s32.totalorder %s14, 0
    %p35 = por %p33, %p34
    %p36 = scmp.ne.s32.totalorder %s22, %s23
    %p37 = scmp.eq.s32.totalorder %s15, 1
    %p38 = por %p36, %p37
    %p40 = scmp.ne.s32.totalorder %s23, %s39
    %p41 = scmp.eq.s32.totalorder %s15, 0
    %p42 = por %p40, %p41
    %s44 = sadd.s32 %s43, 1
    %p47 = scmp.eq.s32.totalorder %s9, 1
    %p48 = scmp.ne.s32.totalorder %s43, %s45
    %p49 = scmp.eq.s32.totalorder %s9, 0
    %p50 = por %p48, %p49
    %p51 = scmp.ne.s32.totalorder %s43, %s45
    %p52 = scmp.eq.s32.totalorder %s14, 1
    %p53 = por %p51, %p52
    %p54 = scmp.ne.s32.totalorder %s45, %s46
    %p55 = scmp.eq.s32.totalorder %s14, 0
    %p56 = por %p54, %p55
    %p57 = scmp.ne.s32.totalorder %s45, %s46
    %p58 = scmp.eq.s32.totalorder %s15, 1
    %p59 = por %p57, %p58
    %p61 = scmp.ne.s32.totalorder %s46, %s60
    %p62 = scmp.eq.s32.totalorder %s15, 0
    %p63 = por %p61, %p62
    %s65 = sadd.s32 %s64, 1
    %p68 = scmp.eq.s32.totalorder %s9, 1
    %p69 = scmp.ne.s32.totalorder %s64, %s66
    %p70 = scmp.eq.s32.totalorder %s9, 0
    %p71 = por %p69, %p70
    %p72 = scmp.ne.s32.totalorder %s64, %s66
    %p73 = scmp.eq.s32.totalorder %s14, 1
    %p74 = por %p72, %p73
    %p75 = scmp.ne.s32.totalorder %s66, %s67
    %p76 = scmp.eq.s32.totalorder %s14, 0
    %p77 = por %p75, %p76
    %p78 = scmp.ne.s32.totalorder %s66, %s67
    %p79 = scmp.eq.s32.totalorder %s15, 1
    %p80 = por %p78, %p79
    %p82 = scmp.ne.s32.totalorder %s67, %s81
    %p83 = scmp.eq.s32.totalorder %s15, 0
    %p84 = por %p82, %p83
    %s85 = ssub.s32 %s9, %s16
    %p86 = scmp.eq.s32.totalorder %s85, 0
    %s88 = sadd.s32 %s87, 1
    %s89 = scalar_select %p86, %s87, %s88
    %p92 = pneg %p86
    %p93 = scmp.eq.s32.totalorder %s9, 1
    %p94 = por %p92, %p93
    %p95 = scmp.ne.s32.totalorder %s87, %s90
    %p96 = scmp.eq.s32.totalorder %s9, 0
    %p97 = por %p95, %p96
    %p98 = scmp.ne.s32.totalorder %s87, %s90
    %p99 = scmp.eq.s32.totalorder %s14, 1
    %p100 = por %p98, %p99
    %p101 = scmp.ne.s32.totalorder %s90, %s91
    %p102 = scmp.eq.s32.totalorder %s14, 0
    %p103 = por %p101, %p102
    %p104 = scmp.ne.s32.totalorder %s90, %s91
    %p105 = scmp.eq.s32.totalorder %s15, 1
    %p106 = por %p104, %p105
    %p108 = scmp.ne.s32.totalorder %s91, %s107
    %p109 = scmp.eq.s32.totalorder %s15, 0
    %p110 = por %p108, %p109
    %p111 = scmp.le.s32.totalorder 1, %s9
    %p112 = scmp.lt.s32.totalorder %s9, 3
    %p113 = pnand %p111, %p112
    %p114 = pneg %p113
    // Predicated region
    $region9: #{backbone_with_fpn_forward.7} parent=5 // pred_check
      _
    $region10: #{backbone_with_fpn_forward.7} parent=5 // pred_check_branch
      %116 = sbr.rel (%p113) target = $region12
    $region11: #{backbone_with_fpn_forward.7} parent=5 // pred_region
      %s117 = ssub.s32 %s9, 1
      // Predicated region
      $region13: #{backbone_with_fpn_forward.7} parent=11 // pred_check
        %p118 = pneg %p56
      $region14: #{backbone_with_fpn_forward.7} parent=11 // pred_check_branch
        %120 = sbr.rel (%p118) target = $region16
      $region15: #{backbone_with_fpn_forward.7} parent=11 // pred_region
        _
      $region16: #{backbone_with_fpn_forward.7} parent=11 // pred_fallthru
        _
      // Predicated region
      $region17: #{backbone_with_fpn_forward.7} parent=11 // pred_check
        %p121 = pneg %p77
      $region18: #{backbone_with_fpn_forward.7} parent=11 // pred_check_branch
        %123 = sbr.rel (%p121) target = $region20
      $region19: #{backbone_with_fpn_forward.7} parent=11 // pred_region
        _
      $region20: #{backbone_with_fpn_forward.7} parent=11 // pred_fallthru
        _
    $region12: #{backbone_with_fpn_forward.7} parent=5 // pred_fallthru
      _
    %p124 = scmp.lt.s32.totalorder %s9, 2
    // Predicated region
    $region21: #{backbone_with_fpn_forward.7} parent=5 // pred_check
      %p125 = pneg %p124
    $region22: #{backbone_with_fpn_forward.7} parent=5 // pred_check_branch
      %127 = sbr.rel (%p125) target = $region24
    $region23: #{backbone_with_fpn_forward.7} parent=5 // pred_region
      // Predicated region
      $region25: #{backbone_with_fpn_forward.7} parent=23 // pred_check
        %p128 = pneg %p29
      $region26: #{backbone_with_fpn_forward.7} parent=23 // pred_check_branch
        %130 = sbr.rel (%p128) target = $region28
      $region27: #{backbone_with_fpn_forward.7} parent=23 // pred_region
        %p131 = scmp.lt.s32.totalorder %s9, 1
        %s132 = scalar_select %p131, %s9, 1
        %s133 = smul.addr %s132, 8
        %s134 = smul.addr %s133, 4
        %s135 = scalar_lea.vmem %s0, %s134
      $region28: #{backbone_with_fpn_forward.7} parent=23 // pred_fallthru
        _
    $region24: #{backbone_with_fpn_forward.7} parent=5 // pred_fallthru
      _
    %p136 = scmp.le.s32.totalorder 1, %s9
    %p137 = scmp.lt.s32.totalorder %s9, 3
    %p138 = pnand %p136, %p137
    %p139 = pneg %p138
    // Predicated region
    $region29: #{backbone_with_fpn_forward.7} parent=5 // pred_check
      _
    $region30: #{backbone_with_fpn_forward.7} parent=5 // pred_check_branch
      %141 = sbr.rel (%p138) target = $region32
    $region31: #{backbone_with_fpn_forward.7} parent=5 // pred_region
      %s142 = ssub.s32 %s9, 1
      %p143 = scmp.lt.s32.totalorder %s14, 1
      %s144 = scalar_select %p143, %s14, 1
      %s145 = smul.addr %s144, 8
      %s146 = smul.addr %s145, 4
      %s147 = scalar_lea.vmem %s0, %s146
      %p148 = pneg %p35
      %p149 = pneg %p32
      %p150 = pneg %p56
      %p151 = pneg %p53
      %p152 = pneg %p77
      %p153 = pneg %p74
      %p154 = pneg %p103
      %p155 = pneg %p100
      %p156 = scmp.lt.s32.totalorder %s14, 1
      %s157 = scalar_select %p156, %s14, 1
      %s158 = smul.addr %s157, 2
      %s159 = smul.addr %s158, 4
      %s160 = scalar_lea.vmem %s3, %s159
      %p161 = scmp.lt.s32.totalorder %s14, 1
      %s162 = scalar_select %p161, %s14, 1
      %s163 = smul.addr %s162, 8
      %s164 = smul.addr %s163, 4
      %s165 = scalar_lea.vmem %s0, %s164
      %p166 = scmp.lt.s32.totalorder %s14, 1
      %s167 = scalar_select %p166, %s14, 1
      %s168 = smul.addr %s167, 2
      %s169 = smul.addr %s168, 4
      %s170 = scalar_lea.vmem %s3, %s169
      %v172 = vld [vmem:[%s165] sm:$0xff]
      %v173 = vld [vmem:[%s165 + $0x8] sm:$0xff]
      %v174 = vld [vmem:[%s165 + $0x10] sm:$0xff]
      %v175 = vld [vmem:[%s165 + $0x18] sm:$0xff]
      %v176 = vld [vmem:[%s1] sm:$0xf]
      %v177 = vld [vmem:[%s1 + $0x4] sm:$0xf]
      %v178 = vld [vmem:[%s1 + $0x8] sm:$0xf]
      %v179 = vld [vmem:[%s1 + $0xc] sm:$0xf]
      %v180 = vld [vmem:[%s1 + $0x10] sm:$0xf]
      %v181 = vld [vmem:[%s1 + $0x14] sm:$0xf]
      %v182 = vld [vmem:[%s1 + $0x18] sm:$0xf]
      %v183 = vld [vmem:[%s1 + $0x1c] sm:$0xf]
      %v184 = vld [vmem:[%s1 + $0x20] sm:$0xf]
      %v185 = vld [vmem:[%s1 + $0x24] sm:$0xf]
      %v186 = vld [vmem:[%s1 + $0x28] sm:$0xf]
      %v187 = vld [vmem:[%s1 + $0x2c] sm:$0xf]
      %v188 = vld [vmem:[%s1 + $0x30] sm:$0xf]
      %v189 = vld [vmem:[%s1 + $0x34] sm:$0xf]
      %v190 = vld [vmem:[%s1 + $0x38] sm:$0xf]
      %v191 = vld [vmem:[%s1 + $0x3c] sm:$0xf]
      %v192 = vld [vmem:[%s1 + $0x40] sm:$0xf]
      %v193 = vld [vmem:[%s1 + $0x44] sm:$0xf]
      %v194 = vld [vmem:[%s1 + $0x48] sm:$0xf]
      %v195 = vld [vmem:[%s1 + $0x4c] sm:$0xf]
      %v196 = vld [vmem:[%s1 + $0x50] sm:$0xf]
      %v197 = vld [vmem:[%s1 + $0x54] sm:$0xf]
      %v198 = vld [vmem:[%s1 + $0x58] sm:$0xf]
      %v199 = vld [vmem:[%s1 + $0x5c] sm:$0xf]
      %v200 = vld [vmem:[%s1 + $0x60] sm:$0xf]
      %v201 = vld [vmem:[%s1 + $0x64] sm:$0xf]
      %v202 = vld [vmem:[%s1 + $0x68] sm:$0xf]
      %v203 = vld [vmem:[%s1 + $0x6c] sm:$0xf]
      %v204 = vld [vmem:[%s1 + $0x70] sm:$0xf]
      %v205 = vld [vmem:[%s1 + $0x74] sm:$0xf]
      %v206 = vld [vmem:[%s1 + $0x78] sm:$0xf]
      %v207 = vld [vmem:[%s1 + $0x7c] sm:$0xf]
      %v208 = vld [vmem:[%s1 + $0x80] sm:$0xf]
      %v209 = vld [vmem:[%s1 + $0x84] sm:$0xf]
      %v210 = vld [vmem:[%s1 + $0x88] sm:$0xf]
      %v211 = vld [vmem:[%s1 + $0x8c] sm:$0xf]
      %v212 = vld [vmem:[%s1 + $0x90] sm:$0xf]
      %v213 = vld [vmem:[%s1 + $0x94] sm:$0xf]
      %v214 = vld [vmem:[%s1 + $0x98] sm:$0xf]
      %v215 = vld [vmem:[%s1 + $0x9c] sm:$0xf]
      %v216 = vld [vmem:[%s1 + $0xa0] sm:$0xf]
      %v217 = vld [vmem:[%s1 + $0xa4] sm:$0xf]
      %v218 = vld [vmem:[%s1 + $0xa8] sm:$0xf]
      %v219 = vld [vmem:[%s1 + $0xac] sm:$0xf]
      %v220 = vld [vmem:[%s1 + $0xb0] sm:$0xf]
      %v221 = vld [vmem:[%s1 + $0xb4] sm:$0xf]
      %v222 = vld [vmem:[%s1 + $0xb8] sm:$0xf]
      %v223 = vld [vmem:[%s1 + $0xbc] sm:$0xf]
      %v224 = vld [vmem:[%s1 + $0xc0] sm:$0xf]
      %v225 = vld [vmem:[%s1 + $0xc4] sm:$0xf]
      %v226 = vld [vmem:[%s1 + $0xc8] sm:$0xf]
      %v227 = vld [vmem:[%s1 + $0xcc] sm:$0xf]
      %v228 = vld [vmem:[%s1 + $0xd0] sm:$0xf]
      %v229 = vld [vmem:[%s1 + $0xd4] sm:$0xf]
      %v230 = vld [vmem:[%s1 + $0xd8] sm:$0xf]
      %v231 = vld [vmem:[%s1 + $0xdc] sm:$0xf]
      %v232 = vld [vmem:[%s1 + $0xe0] sm:$0xf]
      %v233 = vld [vmem:[%s1 + $0xe4] sm:$0xf]
      %v234 = vld [vmem:[%s1 + $0xe8] sm:$0xf]
      %v235 = vld [vmem:[%s1 + $0xec] sm:$0xf]
      %v236 = vld [vmem:[%s1 + $0xf0] sm:$0xf]
      %v237 = vld [vmem:[%s1 + $0xf4] sm:$0xf]
      %v238 = vld [vmem:[%s1 + $0xf8] sm:$0xf]
      %v239 = vld [vmem:[%s1 + $0xfc] sm:$0xf]
      %v240 = vld [vmem:[%s2] sm:$0x1]
      %v242 = vlaneseq
      %v243 = vshrl.u32 %v242, 7
      %v244 = vsub.s32 0, %v243
      %v245 = vrot.slane %v240, %v244
      %v251 = vunpack.c.l.b16 %v172
      %v252 = vunpack.c.h.b16 %v172
      %v253 = vunpack.c.l.b16 %v173
      %v254 = vunpack.c.h.b16 %v173
      %v255 = vunpack.c.l.b16 %v174
      %v256 = vunpack.c.h.b16 %v174
      %v257 = vunpack.c.l.b16 %v175
      %v258 = vunpack.c.h.b16 %v175
      %v259 = vpack.c.b16 %v255, %v251
      %v260 = vpack.c.b16 %v256, %v252
      %v261 = vpack.c.b16 %v257, %v253
      %v262 = vpack.c.b16 %v258, %v254
      %v331 = vunpack.c.l.b16 %v176
      %v332 = vunpack.c.l.b16 %v177
      %v333 = vunpack.c.l.b16 %v178
      %v334 = vunpack.c.l.b16 %v179
      %v335 = vunpack.c.l.b16 %v180
      %v336 = vunpack.c.l.b16 %v181
      %v337 = vunpack.c.l.b16 %v182
      %v338 = vunpack.c.l.b16 %v183
      %v339 = vunpack.c.l.b16 %v184
      %v340 = vunpack.c.l.b16 %v185
      %v341 = vunpack.c.l.b16 %v186
      %v342 = vunpack.c.l.b16 %v187
      %v343 = vunpack.c.l.b16 %v188
      %v344 = vunpack.c.l.b16 %v189
      %v345 = vunpack.c.l.b16 %v190
      %v346 = vunpack.c.l.b16 %v191
      %v347 = vunpack.c.l.b16 %v192
      %v348 = vunpack.c.l.b16 %v193
      %v349 = vunpack.c.l.b16 %v194
      %v350 = vunpack.c.l.b16 %v195
      %v351 = vunpack.c.l.b16 %v196
      %v352 = vunpack.c.l.b16 %v197
      %v353 = vunpack.c.l.b16 %v198
      %v354 = vunpack.c.l.b16 %v199
      %v355 = vunpack.c.l.b16 %v200
      %v356 = vunpack.c.l.b16 %v201
      %v357 = vunpack.c.l.b16 %v202
      %v358 = vunpack.c.l.b16 %v203
      %v359 = vunpack.c.l.b16 %v204
      %v360 = vunpack.c.l.b16 %v205
      %v361 = vunpack.c.l.b16 %v206
      %v362 = vunpack.c.l.b16 %v207
      %v363 = vunpack.c.l.b16 %v208
      %v364 = vunpack.c.l.b16 %v209
      %v365 = vunpack.c.l.b16 %v210
      %v366 = vunpack.c.l.b16 %v211
      %v367 = vunpack.c.l.b16 %v212
      %v368 = vunpack.c.l.b16 %v213
      %v369 = vunpack.c.l.b16 %v214
      %v370 = vunpack.c.l.b16 %v215
      %v371 = vunpack.c.l.b16 %v216
      %v372 = vunpack.c.l.b16 %v217
      %v373 = vunpack.c.l.b16 %v218
      %v374 = vunpack.c.l.b16 %v219
      %v375 = vunpack.c.l.b16 %v220
      %v376 = vunpack.c.l.b16 %v221
      %v377 = vunpack.c.l.b16 %v222
      %v378 = vunpack.c.l.b16 %v223
      %v379 = vunpack.c.l.b16 %v224
      %v380 = vunpack.c.l.b16 %v225
      %v381 = vunpack.c.l.b16 %v226
      %v382 = vunpack.c.l.b16 %v227
      %v383 = vunpack.c.l.b16 %v228
      %v384 = vunpack.c.l.b16 %v229
      %v385 = vunpack.c.l.b16 %v230
      %v386 = vunpack.c.l.b16 %v231
      %v387 = vunpack.c.l.b16 %v232
      %v388 = vunpack.c.l.b16 %v233
      %v389 = vunpack.c.l.b16 %v234
      %v390 = vunpack.c.l.b16 %v235
      %v391 = vunpack.c.l.b16 %v236
      %v392 = vunpack.c.l.b16 %v237
      %v393 = vunpack.c.l.b16 %v238
      %v394 = vunpack.c.l.b16 %v239
      %v395 = vpack.c.b16 %v332, %v331
      %v396 = vpack.c.b16 %v334, %v333
      %v397 = vpack.c.b16 %v336, %v335
      %v398 = vpack.c.b16 %v338, %v337
      %v399 = vpack.c.b16 %v340, %v339
      %v400 = vpack.c.b16 %v342, %v341
      %v401 = vpack.c.b16 %v344, %v343
      %v402 = vpack.c.b16 %v346, %v345
      %v403 = vpack.c.b16 %v348, %v347
      %v404 = vpack.c.b16 %v350, %v349
      %v405 = vpack.c.b16 %v352, %v351
      %v406 = vpack.c.b16 %v354, %v353
      %v407 = vpack.c.b16 %v356, %v355
      %v408 = vpack.c.b16 %v358, %v357
      %v409 = vpack.c.b16 %v360, %v359
      %v410 = vpack.c.b16 %v362, %v361
      %v411 = vpack.c.b16 %v364, %v363
      %v412 = vpack.c.b16 %v366, %v365
      %v413 = vpack.c.b16 %v368, %v367
      %v414 = vpack.c.b16 %v370, %v369
      %v415 = vpack.c.b16 %v372, %v371
      %v416 = vpack.c.b16 %v374, %v373
      %v417 = vpack.c.b16 %v376, %v375
      %v418 = vpack.c.b16 %v378, %v377
      %v419 = vpack.c.b16 %v380, %v379
      %v420 = vpack.c.b16 %v382, %v381
      %v421 = vpack.c.b16 %v384, %v383
      %v422 = vpack.c.b16 %v386, %v385
      %v423 = vpack.c.b16 %v388, %v387
      %v424 = vpack.c.b16 %v390, %v389
      %v425 = vpack.c.b16 %v392, %v391
      %v426 = vpack.c.b16 %v394, %v393
      %459 = vmatprep.subr.bf16.mxu0 0
      %460 = vmatpush1.bf16.msra.mxu0 %v395
      %461 = vmatprep.subr.bf16.mxu0 0
      %462 = vmatpush1.bf16.msra.mxu0 %v396
      %463 = vmatprep.subr.bf16.mxu0 0
      %464 = vmatpush1.bf16.msra.mxu0 %v397
      %465 = vmatprep.subr.bf16.mxu0 0
      %466 = vmatpush1.bf16.msra.mxu0 %v398
      %467 = vmatprep.subr.bf16.mxu0 0
      %468 = vmatpush1.bf16.msra.mxu0 %v399
      %469 = vmatprep.subr.bf16.mxu0 0
      %470 = vmatpush1.bf16.msra.mxu0 %v400
      %471 = vmatprep.subr.bf16.mxu0 0
      %472 = vmatpush1.bf16.msra.mxu0 %v401
      %473 = vmatprep.subr.bf16.mxu0 0
      %474 = vmatpush1.bf16.msra.mxu0 %v402
      %475 = vmatprep.subr.bf16.mxu0 0
      %476 = vmatpush1.bf16.msra.mxu0 %v403
      %477 = vmatprep.subr.bf16.mxu0 0
      %478 = vmatpush1.bf16.msra.mxu0 %v404
      %479 = vmatprep.subr.bf16.mxu0 0
      %480 = vmatpush1.bf16.msra.mxu0 %v405
      %481 = vmatprep.subr.bf16.mxu0 0
      %482 = vmatpush1.bf16.msra.mxu0 %v406
      %483 = vmatprep.subr.bf16.mxu0 0
      %484 = vmatpush1.bf16.msra.mxu0 %v407
      %485 = vmatprep.subr.bf16.mxu0 0
      %486 = vmatpush1.bf16.msra.mxu0 %v408
      %487 = vmatprep.subr.bf16.mxu0 0
      %488 = vmatpush1.bf16.msra.mxu0 %v409
      %489 = vmatprep.subr.bf16.mxu0 0
      %490 = vmatpush1.bf16.msra.mxu0 %v410
      %491 = vmatprep.mubr.bf16.mxu0 %v260
      %492 = vmatmul.mubr.bf16.gmra.mrb[0].mxu0 %v259
      %v493 = vpop.f32.mrb[0].mxu0
      %v494 = vadd.f32 %v245, %v493
      %v495 = vpop.f32.mrb[0].mxu0
      %v496 = vpop.f32.mrb[0].mxu0
      %v497 = vadd.f32 %v245, %v496
      %v498 = vpop.f32.mrb[0].mxu0
      %499 = vdwg.mxu0
      %500 = vmatprep.subr.bf16.mxu0 0
      %501 = vmatpush1.bf16.msra.mxu0 %v411
      %502 = vmatprep.subr.bf16.mxu0 0
      %503 = vmatpush1.bf16.msra.mxu0 %v412
      %504 = vmatprep.subr.bf16.mxu0 0
      %505 = vmatpush1.bf16.msra.mxu0 %v413
      %506 = vmatprep.subr.bf16.mxu0 0
      %507 = vmatpush1.bf16.msra.mxu0 %v414
      %508 = vmatprep.subr.bf16.mxu0 0
      %509 = vmatpush1.bf16.msra.mxu0 %v415
      %510 = vmatprep.subr.bf16.mxu0 0
      %511 = vmatpush1.bf16.msra.mxu0 %v416
      %512 = vmatprep.subr.bf16.mxu0 0
      %513 = vmatpush1.bf16.msra.mxu0 %v417
      %514 = vmatprep.subr.bf16.mxu0 0
      %515 = vmatpush1.bf16.msra.mxu0 %v418
      %516 = vmatprep.subr.bf16.mxu0 0
      %517 = vmatpush1.bf16.msra.mxu0 %v419
      %518 = vmatprep.subr.bf16.mxu0 0
      %519 = vmatpush1.bf16.msra.mxu0 %v420
      %520 = vmatprep.subr.bf16.mxu0 0
      %521 = vmatpush1.bf16.msra.mxu0 %v421
      %522 = vmatprep.subr.bf16.mxu0 0
      %523 = vmatpush1.bf16.msra.mxu0 %v422
      %524 = vmatprep.subr.bf16.mxu0 0
      %525 = vmatpush1.bf16.msra.mxu0 %v423
      %526 = vmatprep.subr.bf16.mxu0 0
      %527 = vmatpush1.bf16.msra.mxu0 %v424
      %528 = vmatprep.subr.bf16.mxu0 0
      %529 = vmatpush1.bf16.msra.mxu0 %v425
      %530 = vmatprep.subr.bf16.mxu0 0
      %531 = vmatpush1.bf16.msra.mxu0 %v426
      %532 = vmatprep.mubr.bf16.mxu0 %v262
      %533 = vmatmul.mubr.bf16.gmra.mrb[0].mxu0 %v261
      %v534 = vpop.f32.mrb[0].mxu0
      %v535 = vadd.f32 %v494, %v534
      %v536 = vpop.f32.mrb[0].mxu0
      %v537 = vpop.f32.mrb[0].mxu0
      %v538 = vadd.f32 %v497, %v537
      %v539 = vpop.f32.mrb[0].mxu0
      %540 = vdwg.mxu0
      %v541 = vmax.f32 %v535, 0.0
      %v542 = vmax.f32 %v538, 0.0
      %v543 = vpack.c.bf16 %v542, %v541
      %v545 = vunpack.c.l.b16 %v543
      %v546 = vunpack.c.h.b16 %v543
      %v547 = vpack.c.b16 %v545, %v545
      %v548 = vpack.c.b16 %v546, %v546
      %551 = vst [vmem:[%s170] sm:$0xf] %v547
      %552 = vst [vmem:[%s170 + $0x4] sm:$0xf] %v548
      %p553 = scmp.lt.s32.totalorder %s14, 1
      %s554 = scalar_select %p553, %s14, 1
      %s555 = smul.addr %s554, 2
      %s556 = smul.addr %s555, 4
      %s557 = scalar_lea.vmem %s3, %s556
      // Predicated region
      $region33: #{backbone_with_fpn_forward.7} parent=31 // pred_check
        %p558 = pneg %p100
      $region34: #{backbone_with_fpn_forward.7} parent=31 // pred_check_branch
        %560 = sbr.rel (%p558) target = $region36
      $region35: #{backbone_with_fpn_forward.7} parent=31 // pred_region
        _
      $region36: #{backbone_with_fpn_forward.7} parent=31 // pred_fallthru
        _
    $region32: #{backbone_with_fpn_forward.7} parent=5 // pred_fallthru
      _
    %p561 = scmp.le.s32.totalorder 2, %s9
    // Predicated region
    $region37: #{backbone_with_fpn_forward.7} parent=5 // pred_check
      %p562 = pneg %p561
    $region38: #{backbone_with_fpn_forward.7} parent=5 // pred_check_branch
      %564 = sbr.rel (%p562) target = $region40
    $region39: #{backbone_with_fpn_forward.7} parent=5 // pred_region
      %s565 = ssub.s32 %s9, 2
      // Predicated region
      $region41: #{backbone_with_fpn_forward.7} parent=39 // pred_check
        %p566 = pneg %p106
      $region42: #{backbone_with_fpn_forward.7} parent=39 // pred_check_branch
        %568 = sbr.rel (%p566) target = $region44
      $region43: #{backbone_with_fpn_forward.7} parent=39 // pred_region
        %p569 = scmp.lt.s32.totalorder %s15, 1
        %s570 = scalar_select %p569, %s15, 1
        %s571 = smul.addr %s570, 2
        %s572 = smul.addr %s571, 4
        %s573 = scalar_lea.vmem %s3, %s572
      $region44: #{backbone_with_fpn_forward.7} parent=39 // pred_fallthru
        _
    $region40: #{backbone_with_fpn_forward.7} parent=5 // pred_fallthru
      _
  $region6: #{backbone_with_fpn_forward.7} parent=0 // loop_footer
    %s13 = sadd.s32 1, %s9
  $region7: #{backbone_with_fpn_forward.7} parent=0 // loop_footer_branch
    %8 = sbr.rel target = $region3
  $region8: #{backbone_with_fpn_forward.7} parent=0 // loop_exit
    _

// kernel: backbone_with_fpn_forward.9
$region0: #{backbone_with_fpn_forward.9}
  #allocation0 [shape = 'u32[]', space=smem, size = 0x4, offset = 0x4, fixed_abs, tag = 'smem constant byte address 0x4 - core index']
  #allocation1 [shape = 'u32[144,128]{1,0:T(1,128)}', space=vmem, size = 0x12000, scoped, tag = 'internal scratch']
  #allocation2 [shape = 'f32[20,128]{1,0:T(8,128)}', space=vmem, size = 0x3000, scoped, tag = 'scratch operand']
  %s0 = inlined_call_operand.vmem [shape: bf16[2,4,128], index: 0, kind: input, shape index: {}]
  %s1 = inlined_call_operand.vmem [shape: bf16[128,128], index: 1, kind: input, shape index: {}]
  %s2 = inlined_call_operand.vmem [shape: f32[1,128], index: 2, kind: input, shape index: {}, may-alias: {2,4}]
  %s3 = inlined_call_operand.vmem [shape: bf16[9,128,128], index: 3, kind: input, shape index: {}]
  %s4 = inlined_call_operand.vmem [shape: f32[1,128], index: 4, kind: input, shape index: {}, may-alias: {2,4}]
  %s5 = inlined_call_operand.vmem [shape: bf16[2,128,128], index: 5, kind: output, shape index: {0}]
  %s6 = inlined_call_operand.vmem [shape: f32[2,4,128], index: 6, kind: output, shape index: {1}]
  %7 = xla_tuple %s5, %s6
  %s8 = sld [smem:[#allocation0]]
  $region61: #{backbone_with_fpn_forward.9} parent=0
    _
  %s10 = ssub.s32 1, %s8
  %s11 = scalar_select 0, %s10, %s8
  loop: start=0, step=1, limit=4
  $region2: #{backbone_with_fpn_forward.9} parent=0 // loop_pre_header
    _
  $region3: #{backbone_with_fpn_forward.9} parent=0 // loop_header
    %s13 = sphi 0, %s17
    %p14 = scmp.ge.s32.totalorder %s13, 4
    %s23 = sphi 0, %s25
    %s26 = sphi 0, %s23
    %s27 = sphi 0, %s26
    %s43 = sphi 0, %s27
    %s47 = sphi 0, %s47
    %s49 = sphi 0, %s47
    %s50 = sphi 0, %s49
    %s64 = sphi 0, %s50
    %s68 = sphi 0, %s68
    %s70 = sphi 0, %s68
    %s71 = sphi 0, %s70
    %s85 = sphi 0, %s71
    %s89 = sphi 0, %s89
    %s91 = sphi 0, %s89
    %s92 = sphi 0, %s91
    %s106 = sphi 0, %s92
    %s110 = sphi 0, %s110
    %s112 = sphi 0, %s110
    %s113 = sphi 0, %s112
    %s127 = sphi 0, %s113
    %s133 = sphi 0, %s135
    %s136 = sphi 0, %s133
    %s137 = sphi 0, %s136
    %s153 = sphi 0, %s137
    %s159 = sphi 0, %s161
    %s162 = sphi 0, %s159
    %s163 = sphi 0, %s162
    %s179 = sphi 0, %s163
  $region4: #{backbone_with_fpn_forward.9} parent=0 // loop_header_branch
    %16 = sbr.rel (%p14) target = $region8
  $region5: #{backbone_with_fpn_forward.9} parent=0 // loop_body
    %s18 = ssub.s32 %s13, 1
    %s19 = ssub.s32 %s13, 2
    %s20 = sadd.s32 %s13, 1
    %s21 = ssub.s32 %s13, %s20
    %p22 = scmp.eq.s32.totalorder %s21, 0
    %s24 = sadd.s32 %s23, 1
    %s25 = scalar_select %p22, %s23, %s24
    %p28 = pneg %p22
    %p29 = scmp.eq.s32.totalorder %s13, 1
    %p30 = por %p28, %p29
    %p31 = scmp.ne.s32.totalorder %s23, %s26
    %p32 = scmp.eq.s32.totalorder %s13, 0
    %p33 = por %p31, %p32
    %p34 = scmp.ne.s32.totalorder %s23, %s26
    %p35 = scmp.eq.s32.totalorder %s18, 1
    %p36 = por %p34, %p35
    %p37 = scmp.ne.s32.totalorder %s26, %s27
    %p38 = scmp.eq.s32.totalorder %s18, 0
    %p39 = por %p37, %p38
    %p40 = scmp.ne.s32.totalorder %s26, %s27
    %p41 = scmp.eq.s32.totalorder %s19, 1
    %p42 = por %p40, %p41
    %p44 = scmp.ne.s32.totalorder %s27, %s43
    %p45 = scmp.eq.s32.totalorder %s19, 0
    %p46 = por %p44, %p45
    %s48 = sadd.s32 %s47, 1
    %p51 = scmp.eq.s32.totalorder %s13, 1
    %p52 = scmp.ne.s32.totalorder %s47, %s49
    %p53 = scmp.eq.s32.totalorder %s13, 0
    %p54 = por %p52, %p53
    %p55 = scmp.ne.s32.totalorder %s47, %s49
    %p56 = scmp.eq.s32.totalorder %s18, 1
    %p57 = por %p55, %p56
    %p58 = scmp.ne.s32.totalorder %s49, %s50
    %p59 = scmp.eq.s32.totalorder %s18, 0
    %p60 = por %p58, %p59
    %p61 = scmp.ne.s32.totalorder %s49, %s50
    %p62 = scmp.eq.s32.totalorder %s19, 1
    %p63 = por %p61, %p62
    %p65 = scmp.ne.s32.totalorder %s50, %s64
    %p66 = scmp.eq.s32.totalorder %s19, 0
    %p67 = por %p65, %p66
    %s69 = sadd.s32 %s68, 1
    %p72 = scmp.eq.s32.totalorder %s13, 1
    %p73 = scmp.ne.s32.totalorder %s68, %s70
    %p74 = scmp.eq.s32.totalorder %s13, 0
    %p75 = por %p73, %p74
    %p76 = scmp.ne.s32.totalorder %s68, %s70
    %p77 = scmp.eq.s32.totalorder %s18, 1
    %p78 = por %p76, %p77
    %p79 = scmp.ne.s32.totalorder %s70, %s71
    %p80 = scmp.eq.s32.totalorder %s18, 0
    %p81 = por %p79, %p80
    %p82 = scmp.ne.s32.totalorder %s70, %s71
    %p83 = scmp.eq.s32.totalorder %s19, 1
    %p84 = por %p82, %p83
    %p86 = scmp.ne.s32.totalorder %s71, %s85
    %p87 = scmp.eq.s32.totalorder %s19, 0
    %p88 = por %p86, %p87
    %s90 = sadd.s32 %s89, 1
    %p93 = scmp.eq.s32.totalorder %s13, 1
    %p94 = scmp.ne.s32.totalorder %s89, %s91
    %p95 = scmp.eq.s32.totalorder %s13, 0
    %p96 = por %p94, %p95
    %p97 = scmp.ne.s32.totalorder %s89, %s91
    %p98 = scmp.eq.s32.totalorder %s18, 1
    %p99 = por %p97, %p98
    %p100 = scmp.ne.s32.totalorder %s91, %s92
    %p101 = scmp.eq.s32.totalorder %s18, 0
    %p102 = por %p100, %p101
    %p103 = scmp.ne.s32.totalorder %s91, %s92
    %p104 = scmp.eq.s32.totalorder %s19, 1
    %p105 = por %p103, %p104
    %p107 = scmp.ne.s32.totalorder %s92, %s106
    %p108 = scmp.eq.s32.totalorder %s19, 0
    %p109 = por %p107, %p108
    %s111 = sadd.s32 %s110, 1
    %p114 = scmp.eq.s32.totalorder %s13, 1
    %p115 = scmp.ne.s32.totalorder %s110, %s112
    %p116 = scmp.eq.s32.totalorder %s13, 0
    %p117 = por %p115, %p116
    %p118 = scmp.ne.s32.totalorder %s110, %s112
    %p119 = scmp.eq.s32.totalorder %s18, 1
    %p120 = por %p118, %p119
    %p121 = scmp.ne.s32.totalorder %s112, %s113
    %p122 = scmp.eq.s32.totalorder %s18, 0
    %p123 = por %p121, %p122
    %p124 = scmp.ne.s32.totalorder %s112, %s113
    %p125 = scmp.eq.s32.totalorder %s19, 1
    %p126 = por %p124, %p125
    %p128 = scmp.ne.s32.totalorder %s113, %s127
    %p129 = scmp.eq.s32.totalorder %s19, 0
    %p130 = por %p128, %p129
    %s131 = ssub.s32 %s13, %s20
    %p132 = scmp.eq.s32.totalorder %s131, 0
    %s134 = sadd.s32 %s133, 1
    %s135 = scalar_select %p132, %s133, %s134
    %p138 = pneg %p132
    %p139 = scmp.eq.s32.totalorder %s13, 1
    %p140 = por %p138, %p139
    %p141 = scmp.ne.s32.totalorder %s133, %s136
    %p142 = scmp.eq.s32.totalorder %s13, 0
    %p143 = por %p141, %p142
    %p144 = scmp.ne.s32.totalorder %s133, %s136
    %p145 = scmp.eq.s32.totalorder %s18, 1
    %p146 = por %p144, %p145
    %p147 = scmp.ne.s32.totalorder %s136, %s137
    %p148 = scmp.eq.s32.totalorder %s18, 0
    %p149 = por %p147, %p148
    %p150 = scmp.ne.s32.totalorder %s136, %s137
    %p151 = scmp.eq.s32.totalorder %s19, 1
    %p152 = por %p150, %p151
    %p154 = scmp.ne.s32.totalorder %s137, %s153
    %p155 = scmp.eq.s32.totalorder %s19, 0
    %p156 = por %p154, %p155
    %s157 = ssub.s32 %s13, %s20
    %p158 = scmp.eq.s32.totalorder %s157, 0
    %s160 = sadd.s32 %s159, 1
    %s161 = scalar_select %p158, %s159, %s160
    %p164 = pneg %p158
    %p165 = scmp.eq.s32.totalorder %s13, 1
    %p166 = por %p164, %p165
    %p167 = scmp.ne.s32.totalorder %s159, %s162
    %p168 = scmp.eq.s32.totalorder %s13, 0
    %p169 = por %p167, %p168
    %p170 = scmp.ne.s32.totalorder %s159, %s162
    %p171 = scmp.eq.s32.totalorder %s18, 1
    %p172 = por %p170, %p171
    %p173 = scmp.ne.s32.totalorder %s162, %s163
    %p174 = scmp.eq.s32.totalorder %s18, 0
    %p175 = por %p173, %p174
    %p176 = scmp.ne.s32.totalorder %s162, %s163
    %p177 = scmp.eq.s32.totalorder %s19, 1
    %p178 = por %p176, %p177
    %p180 = scmp.ne.s32.totalorder %s163, %s179
    %p181 = scmp.eq.s32.totalorder %s19, 0
    %p182 = por %p180, %p181
    %p183 = scmp.le.s32.totalorder 1, %s13
    %p184 = scmp.lt.s32.totalorder %s13, 3
    %p185 = pnand %p183, %p184
    %p186 = pneg %p185
    // Predicated region
    $region9: #{backbone_with_fpn_forward.9} parent=5 // pred_check
      _
    $region10: #{backbone_with_fpn_forward.9} parent=5 // pred_check_branch
      %188 = sbr.rel (%p185) target = $region12
    $region11: #{backbone_with_fpn_forward.9} parent=5 // pred_region
      %s189 = ssub.s32 %s13, 1
      // Predicated region
      $region13: #{backbone_with_fpn_forward.9} parent=11 // pred_check
        %p190 = pneg %p60
      $region14: #{backbone_with_fpn_forward.9} parent=11 // pred_check_branch
        %192 = sbr.rel (%p190) target = $region16
      $region15: #{backbone_with_fpn_forward.9} parent=11 // pred_region
        _
      $region16: #{backbone_with_fpn_forward.9} parent=11 // pred_fallthru
        _
      // Predicated region
      $region17: #{backbone_with_fpn_forward.9} parent=11 // pred_check
        %p193 = pneg %p81
      $region18: #{backbone_with_fpn_forward.9} parent=11 // pred_check_branch
        %195 = sbr.rel (%p193) target = $region20
      $region19: #{backbone_with_fpn_forward.9} parent=11 // pred_region
        _
      $region20: #{backbone_with_fpn_forward.9} parent=11 // pred_fallthru
        _
      // Predicated region
      $region21: #{backbone_with_fpn_forward.9} parent=11 // pred_check
        %p196 = pneg %p102
      $region22: #{backbone_with_fpn_forward.9} parent=11 // pred_check_branch
        %198 = sbr.rel (%p196) target = $region24
      $region23: #{backbone_with_fpn_forward.9} parent=11 // pred_region
        _
      $region24: #{backbone_with_fpn_forward.9} parent=11 // pred_fallthru
        _
      // Predicated region
      $region25: #{backbone_with_fpn_forward.9} parent=11 // pred_check
        %p199 = pneg %p123
      $region26: #{backbone_with_fpn_forward.9} parent=11 // pred_check_branch
        %201 = sbr.rel (%p199) target = $region28
      $region27: #{backbone_with_fpn_forward.9} parent=11 // pred_region
        _
      $region28: #{backbone_with_fpn_forward.9} parent=11 // pred_fallthru
        _
    $region12: #{backbone_with_fpn_forward.9} parent=5 // pred_fallthru
      _
    %p202 = scmp.lt.s32.totalorder %s13, 2
    // Predicated region
    $region29: #{backbone_with_fpn_forward.9} parent=5 // pred_check
      %p203 = pneg %p202
    $region30: #{backbone_with_fpn_forward.9} parent=5 // pred_check_branch
      %205 = sbr.rel (%p203) target = $region32
    $region31: #{backbone_with_fpn_forward.9} parent=5 // pred_region
      // Predicated region
      $region33: #{backbone_with_fpn_forward.9} parent=31 // pred_check
        %p206 = pneg %p33
      $region34: #{backbone_with_fpn_forward.9} parent=31 // pred_check_branch
        %208 = sbr.rel (%p206) target = $region36
      $region35: #{backbone_with_fpn_forward.9} parent=31 // pred_region
        %p209 = scmp.lt.s32.totalorder %s13, 1
        %s210 = scalar_select %p209, %s13, 1
        %s211 = smul.addr %s210, 2
        %s212 = scalar_lea.vmem %s0, %s211
      $region36: #{backbone_with_fpn_forward.9} parent=31 // pred_fallthru
        _
    $region32: #{backbone_with_fpn_forward.9} parent=5 // pred_fallthru
      _
    %p213 = scmp.le.s32.totalorder 1, %s13
    %p214 = scmp.lt.s32.totalorder %s13, 3
    %p215 = pnand %p213, %p214
    %p216 = pneg %p215
    // Predicated region
    $region37: #{backbone_with_fpn_forward.9} parent=5 // pred_check
      _
    $region38: #{backbone_with_fpn_forward.9} parent=5 // pred_check_branch
      %218 = sbr.rel (%p215) target = $region40
    $region39: #{backbone_with_fpn_forward.9} parent=5 // pred_region
      %s219 = ssub.s32 %s13, 1
      %p220 = scmp.lt.s32.totalorder %s18, 1
      %s221 = scalar_select %p220, %s18, 1
      %s222 = smul.addr %s221, 2
      %s223 = scalar_lea.vmem %s0, %s222
      %p224 = pneg %p39
      %p225 = pneg %p36
      %p226 = pneg %p60
      %p227 = pneg %p57
      %p228 = pneg %p81
      %p229 = pneg %p78
      %p230 = pneg %p102
      %p231 = pneg %p99
      %p232 = pneg %p123
      %p233 = pneg %p120
      %p234 = pneg %p149
      %p235 = pneg %p146
      %p236 = scmp.lt.s32.totalorder %s18, 1
      %s237 = scalar_select %p236, %s18, 1
      %s238 = smul.addr %s237, 16
      %s239 = smul.addr %s238, 4
      %s240 = scalar_lea.vmem %s5, %s239
      %p241 = pneg %p175
      %p242 = pneg %p172
      %p243 = scmp.lt.s32.totalorder %s18, 1
      %s244 = scalar_select %p243, %s18, 1
      %s245 = smul.addr %s244, 4
      %s246 = scalar_lea.vmem %s6, %s245
      %p247 = scmp.lt.s32.totalorder %s18, 1
      %s248 = scalar_select %p247, %s18, 1
      %s249 = smul.addr %s248, 2
      %s250 = scalar_lea.vmem %s0, %s249
      %p251 = scmp.lt.s32.totalorder %s18, 1
      %s252 = scalar_select %p251, %s18, 1
      %s253 = smul.addr %s252, 16
      %s254 = smul.addr %s253, 4
      %s255 = scalar_lea.vmem %s5, %s254
      %p256 = scmp.lt.s32.totalorder %s18, 1
      %s257 = scalar_select %p256, %s18, 1
      %s258 = smul.addr %s257, 4
      %s259 = scalar_lea.vmem %s6, %s258
      %v261 = vld [vmem:[%s250] sm:$0x3]
      %v262 = vld [vmem:[%s1] sm:$0xf]
      %v263 = vld [vmem:[%s1 + $0x4] sm:$0xf]
      %v264 = vld [vmem:[%s1 + $0x8] sm:$0xf]
      %v265 = vld [vmem:[%s1 + $0xc] sm:$0xf]
      %v266 = vld [vmem:[%s1 + $0x10] sm:$0xf]
      %v267 = vld [vmem:[%s1 + $0x14] sm:$0xf]
      %v268 = vld [vmem:[%s1 + $0x18] sm:$0xf]
      %v269 = vld [vmem:[%s1 + $0x1c] sm:$0xf]
      %v270 = vld [vmem:[%s1 + $0x20] sm:$0xf]
      %v271 = vld [vmem:[%s1 + $0x24] sm:$0xf]
      %v272 = vld [vmem:[%s1 + $0x28] sm:$0xf]
      %v273 = vld [vmem:[%s1 + $0x2c] sm:$0xf]
      %v274 = vld [vmem:[%s1 + $0x30] sm:$0xf]
      %v275 = vld [vmem:[%s1 + $0x34] sm:$0xf]
      %v276 = vld [vmem:[%s1 + $0x38] sm:$0xf]
      %v277 = vld [vmem:[%s1 + $0x3c] sm:$0xf]
      %v278 = vld [vmem:[%s2] sm:$0x1]
      %v280 = vlaneseq
      %v281 = vshrl.u32 %v280, 7
      %v282 = vsub.s32 0, %v281
      %v283 = vrot.slane %v278, %v282
      %v301 = vunpack.c.l.b16 %v262
      %v302 = vunpack.c.l.b16 %v263
      %v303 = vunpack.c.l.b16 %v264
      %v304 = vunpack.c.l.b16 %v265
      %v305 = vunpack.c.l.b16 %v266
      %v306 = vunpack.c.l.b16 %v267
      %v307 = vunpack.c.l.b16 %v268
      %v308 = vunpack.c.l.b16 %v269
      %v309 = vunpack.c.l.b16 %v270
      %v310 = vunpack.c.l.b16 %v271
      %v311 = vunpack.c.l.b16 %v272
      %v312 = vunpack.c.l.b16 %v273
      %v313 = vunpack.c.l.b16 %v274
      %v314 = vunpack.c.l.b16 %v275
      %v315 = vunpack.c.l.b16 %v276
      %v316 = vunpack.c.l.b16 %v277
      %v317 = vpack.c.b16 %v302, %v301
      %v318 = vpack.c.b16 %v304, %v303
      %v319 = vpack.c.b16 %v306, %v305
      %v320 = vpack.c.b16 %v308, %v307
      %v321 = vpack.c.b16 %v310, %v309
      %v322 = vpack.c.b16 %v312, %v311
      %v323 = vpack.c.b16 %v314, %v313
      %v324 = vpack.c.b16 %v316, %v315
      %333 = vmatprep.subr.bf16.mxu0 0
      %334 = vmatpush1.bf16.msra.mxu0 %v317
      %335 = vmatprep.subr.bf16.mxu0 0
      %336 = vmatpush1.bf16.msra.mxu0 %v318
      %337 = vmatprep.subr.bf16.mxu0 0
      %338 = vmatpush1.bf16.msra.mxu0 %v319
      %339 = vmatprep.subr.bf16.mxu0 0
      %340 = vmatpush1.bf16.msra.mxu0 %v320
      %341 = vmatprep.subr.bf16.mxu0 0
      %342 = vmatpush1.bf16.msra.mxu0 %v321
      %343 = vmatprep.subr.bf16.mxu0 0
      %344 = vmatpush1.bf16.msra.mxu0 %v322
      %345 = vmatprep.subr.bf16.mxu0 0
      %346 = vmatpush1.bf16.msra.mxu0 %v323
      %347 = vmatprep.subr.bf16.mxu0 0
      %348 = vmatpush1.bf16.msra.mxu0 %v324
      %349 = vmatprep.subr.bf16.mxu0 0
      %350 = vmatpush1.bf16.msra.mxu0 0
      %351 = vmatprep.subr.bf16.mxu0 0
      %352 = vmatpush1.bf16.msra.mxu0 0
      %353 = vmatprep.subr.bf16.mxu0 0
      %354 = vmatpush1.bf16.msra.mxu0 0
      %355 = vmatprep.subr.bf16.mxu0 0
      %356 = vmatpush1.bf16.msra.mxu0 0
      %357 = vmatprep.subr.bf16.mxu0 0
      %358 = vmatpush1.bf16.msra.mxu0 0
      %359 = vmatprep.subr.bf16.mxu0 0
      %360 = vmatpush1.bf16.msra.mxu0 0
      %361 = vmatprep.subr.bf16.mxu0 0
      %362 = vmatpush1.bf16.msra.mxu0 0
      %363 = vmatprep.subr.bf16.mxu0 0
      %364 = vmatpush1.bf16.msra.mxu0 0
      %365 = vmatprep.mubr.bf16.mxu0 0
      %366 = vmatmul.mubr.bf16.gmra.mrb[0].mxu0 %v261
      %v367 = vpop.f32.mrb[0].mxu0
      %v368 = vadd.f32 %v283, %v367
      %v369 = vpop.f32.mrb[0].mxu0
      %v370 = vpop.f32.mrb[0].mxu0
      %v371 = vpop.f32.mrb[0].mxu0
      %372 = vdwg.mxu0
      %373 = vst [vmem:[%s255] sm:$0xf] 0
      %374 = vst [vmem:[%s255 + $0x4] sm:$0xf] 0
      %375 = vst [vmem:[%s255 + $0x8] sm:$0xf] 0
      %376 = vst [vmem:[%s255 + $0xc] sm:$0xf] 0
      %377 = vst [vmem:[%s255 + $0x10] sm:$0xf] 0
      %378 = vst [vmem:[%s255 + $0x14] sm:$0xf] 0
      %379 = vst [vmem:[%s255 + $0x18] sm:$0xf] 0
      %380 = vst [vmem:[%s255 + $0x1c] sm:$0xf] 0
      %381 = vst [vmem:[%s255 + $0x20] sm:$0xf] 0
      %382 = vst [vmem:[%s255 + $0x24] sm:$0xf] 0
      %383 = vst [vmem:[%s255 + $0x28] sm:$0xf] 0
      %384 = vst [vmem:[%s255 + $0x2c] sm:$0xf] 0
      %385 = vst [vmem:[%s255 + $0x30] sm:$0xf] 0
      %386 = vst [vmem:[%s255 + $0x34] sm:$0xf] 0
      %387 = vst [vmem:[%s255 + $0x38] sm:$0xf] 0
      %388 = vst [vmem:[%s255 + $0x3c] sm:$0xf] 0
      %v389 = vpack.c.bf16 %v368, %v368
      %390 = vst [vmem:[%s255] sm:$0x3] %v389
      %391 = vst [vmem:[#allocation2] sm:$0xff] 0.0
      %392 = vst [vmem:[#allocation2 + $0x8] sm:$0xff] 0.0
      %393 = vst [vmem:[#allocation2 + $0x10] sm:$0xf] 0.0
      %394 = vst [vmem:[#allocation2 + $0x8] sm:$0xf] %v368
      %v395 = vlaneseq
      %v396 = vshrl.u32 %v395, 7
      %v397 = vand.u32 %v396, 1
      %v398 = vld [vmem:[#allocation2 + $0x5] sm:$0xf]
      %v399 = vadd.s32 %v397, 4294967295
      %vm400 = vcmp.ge.s32.totalorder %v399, 0
      %vm401 = vcmp.lt.s32.totalorder %v399, 2
      %vm402 = vmand %vm400, %vm401
      %v403 = vsel %vm402, 1, 0
      %vm404 = vcmp.eq.s32.totalorder %v403, 1
      %v405 = vsel %vm404, %v398, 0.0
      %v406 = vpack.c.bf16 %v405, %v405
      %v407 = vld [vmem:[%s3] sm:$0xf]
      %v408 = vld [vmem:[%s3 + $0x4] sm:$0xf]
      %v409 = vld [vmem:[%s3 + $0x8] sm:$0xf]
      %v410 = vld [vmem:[%s3 + $0xc] sm:$0xf]
      %v411 = vld [vmem:[%s3 + $0x10] sm:$0xf]
      %v412 = vld [vmem:[%s3 + $0x14] sm:$0xf]
      %v413 = vld [vmem:[%s3 + $0x18] sm:$0xf]
      %v414 = vld [vmem:[%s3 + $0x1c] sm:$0xf]
      %v415 = vld [vmem:[%s3 + $0x20] sm:$0xf]
      %v416 = vld [vmem:[%s3 + $0x24] sm:$0xf]
      %v417 = vld [vmem:[%s3 + $0x28] sm:$0xf]
      %v418 = vld [vmem:[%s3 + $0x2c] sm:$0xf]
      %v419 = vld [vmem:[%s3 + $0x30] sm:$0xf]
      %v420 = vld [vmem:[%s3 + $0x34] sm:$0xf]
      %v421 = vld [vmem:[%s3 + $0x38] sm:$0xf]
      %v422 = vld [vmem:[%s3 + $0x3c] sm:$0xf]
      %v423 = vld [vmem:[#allocation2 + $0x6] sm:$0xf]
      %v424 = vpack.c.bf16 %v423, %v423
      %s425 = scalar_lea.vmem %s3, 64
      %v426 = vld [vmem:[%s425] sm:$0xf]
      %v427 = vld [vmem:[%s425 + $0x4] sm:$0xf]
      %v428 = vld [vmem:[%s425 + $0x8] sm:$0xf]
      %v429 = vld [vmem:[%s425 + $0xc] sm:$0xf]
      %v430 = vld [vmem:[%s425 + $0x10] sm:$0xf]
      %v431 = vld [vmem:[%s425 + $0x14] sm:$0xf]
      %v432 = vld [vmem:[%s425 + $0x18] sm:$0xf]
      %v433 = vld [vmem:[%s425 + $0x1c] sm:$0xf]
      %v434 = vld [vmem:[%s425 + $0x20] sm:$0xf]
      %v435 = vld [vmem:[%s425 + $0x24] sm:$0xf]
      %v436 = vld [vmem:[%s425 + $0x28] sm:$0xf]
      %v437 = vld [vmem:[%s425 + $0x2c] sm:$0xf]
      %v438 = vld [vmem:[%s425 + $0x30] sm:$0xf]
      %v439 = vld [vmem:[%s425 + $0x34] sm:$0xf]
      %v440 = vld [vmem:[%s425 + $0x38] sm:$0xf]
      %v441 = vld [vmem:[%s425 + $0x3c] sm:$0xf]
      %v458 = vunpack.c.l.b16 %v426
      %v459 = vunpack.c.l.b16 %v427
      %v460 = vunpack.c.l.b16 %v428
      %v461 = vunpack.c.l.b16 %v429
      %v462 = vunpack.c.l.b16 %v430
      %v463 = vunpack.c.l.b16 %v431
      %v464 = vunpack.c.l.b16 %v432
      %v465 = vunpack.c.l.b16 %v433
      %v466 = vunpack.c.l.b16 %v434
      %v467 = vunpack.c.l.b16 %v435
      %v468 = vunpack.c.l.b16 %v436
      %v469 = vunpack.c.l.b16 %v437
      %v470 = vunpack.c.l.b16 %v438
      %v471 = vunpack.c.l.b16 %v439
      %v472 = vunpack.c.l.b16 %v440
      %v473 = vunpack.c.l.b16 %v441
      %v474 = vpack.c.b16 %v459, %v458
      %v475 = vpack.c.b16 %v461, %v460
      %v476 = vpack.c.b16 %v463, %v462
      %v477 = vpack.c.b16 %v465, %v464
      %v478 = vpack.c.b16 %v467, %v466
      %v479 = vpack.c.b16 %v469, %v468
      %v480 = vpack.c.b16 %v471, %v470
      %v481 = vpack.c.b16 %v473, %v472
      %490 = vmatprep.subr.bf16.mxu0 0
      %491 = vmatpush1.bf16.msra.mxu0 %v474
      %492 = vmatprep.subr.bf16.mxu0 0
      %493 = vmatpush1.bf16.msra.mxu0 %v475
      %494 = vmatprep.subr.bf16.mxu0 0
      %495 = vmatpush1.bf16.msra.mxu0 %v476
      %496 = vmatprep.subr.bf16.mxu0 0
      %497 = vmatpush1.bf16.msra.mxu0 %v477
      %498 = vmatprep.subr.bf16.mxu0 0
      %499 = vmatpush1.bf16.msra.mxu0 %v478
      %500 = vmatprep.subr.bf16.mxu0 0
      %501 = vmatpush1.bf16.msra.mxu0 %v479
      %502 = vmatprep.subr.bf16.mxu0 0
      %503 = vmatpush1.bf16.msra.mxu0 %v480
      %504 = vmatprep.subr.bf16.mxu0 0
      %505 = vmatpush1.bf16.msra.mxu0 %v481
      %506 = vmatprep.subr.bf16.mxu0 0
      %507 = vmatpush1.bf16.msra.mxu0 0
      %508 = vmatprep.subr.bf16.mxu0 0
      %509 = vmatpush1.bf16.msra.mxu0 0
      %510 = vmatprep.subr.bf16.mxu0 0
      %511 = vmatpush1.bf16.msra.mxu0 0
      %512 = vmatprep.subr.bf16.mxu0 0
      %513 = vmatpush1.bf16.msra.mxu0 0
      %514 = vmatprep.subr.bf16.mxu0 0
      %515 = vmatpush1.bf16.msra.mxu0 0
      %516 = vmatprep.subr.bf16.mxu0 0
      %517 = vmatpush1.bf16.msra.mxu0 0
      %518 = vmatprep.subr.bf16.mxu0 0
      %519 = vmatpush1.bf16.msra.mxu0 0
      %520 = vmatprep.subr.bf16.mxu0 0
      %521 = vmatpush1.bf16.msra.mxu0 0
      %522 = vmatprep.mubr.bf16.mxu0 0
      %523 = vmatmul.mubr.bf16.gmra.mrb[0].mxu0 %v424
      %v524 = vpop.f32.mrb[0].mxu0
      %v525 = vadd.f32 0.0, %v524
      %v526 = vpop.f32.mrb[0].mxu0
      %v527 = vpop.f32.mrb[0].mxu0
      %v528 = vpop.f32.mrb[0].mxu0
      %529 = vdwg.mxu0
      %v546 = vunpack.c.l.b16 %v407
      %v547 = vunpack.c.l.b16 %v408
      %v548 = vunpack.c.l.b16 %v409
      %v549 = vunpack.c.l.b16 %v410
      %v550 = vunpack.c.l.b16 %v411
      %v551 = vunpack.c.l.b16 %v412
      %v552 = vunpack.c.l.b16 %v413
      %v553 = vunpack.c.l.b16 %v414
      %v554 = vunpack.c.l.b16 %v415
      %v555 = vunpack.c.l.b16 %v416
      %v556 = vunpack.c.l.b16 %v417
      %v557 = vunpack.c.l.b16 %v418
      %v558 = vunpack.c.l.b16 %v419
      %v559 = vunpack.c.l.b16 %v420
      %v560 = vunpack.c.l.b16 %v421
      %v561 = vunpack.c.l.b16 %v422
      %v562 = vpack.c.b16 %v547, %v546
      %v563 = vpack.c.b16 %v549, %v548
      %v564 = vpack.c.b16 %v551, %v550
      %v565 = vpack.c.b16 %v553, %v552
      %v566 = vpack.c.b16 %v555, %v554
      %v567 = vpack.c.b16 %v557, %v556
      %v568 = vpack.c.b16 %v559, %v558
      %v569 = vpack.c.b16 %v561, %v560
      %578 = vmatprep.subr.bf16.mxu0 0
      %579 = vmatpush1.bf16.msra.mxu0 %v562
      %580 = vmatprep.subr.bf16.mxu0 0
      %581 = vmatpush1.bf16.msra.mxu0 %v563
      %582 = vmatprep.subr.bf16.mxu0 0
      %583 = vmatpush1.bf16.msra.mxu0 %v564
      %584 = vmatprep.subr.bf16.mxu0 0
      %585 = vmatpush1.bf16.msra.mxu0 %v565
      %586 = vmatprep.subr.bf16.mxu0 0
      %587 = vmatpush1.bf16.msra.mxu0 %v566
      %588 = vmatprep.subr.bf16.mxu0 0
      %589 = vmatpush1.bf16.msra.mxu0 %v567
      %590 = vmatprep.subr.bf16.mxu0 0
      %591 = vmatpush1.bf16.msra.mxu0 %v568
      %592 = vmatprep.subr.bf16.mxu0 0
      %593 = vmatpush1.bf16.msra.mxu0 %v569
      %594 = vmatprep.subr.bf16.mxu0 0
      %595 = vmatpush1.bf16.msra.mxu0 0
      %596 = vmatprep.subr.bf16.mxu0 0
      %597 = vmatpush1.bf16.msra.mxu0 0
      %598 = vmatprep.subr.bf16.mxu0 0
      %599 = vmatpush1.bf16.msra.mxu0 0
      %600 = vmatprep.subr.bf16.mxu0 0
      %601 = vmatpush1.bf16.msra.mxu0 0
      %602 = vmatprep.subr.bf16.mxu0 0
      %603 = vmatpush1.bf16.msra.mxu0 0
      %604 = vmatprep.subr.bf16.mxu0 0
      %605 = vmatpush1.bf16.msra.mxu0 0
      %606 = vmatprep.subr.bf16.mxu0 0
      %607 = vmatpush1.bf16.msra.mxu0 0
      %608 = vmatprep.subr.bf16.mxu0 0
      %609 = vmatpush1.bf16.msra.mxu0 0
      %610 = vmatprep.mubr.bf16.mxu0 0
      %611 = vmatmul.mubr.bf16.gmra.mrb[0].mxu0 %v406
      %v612 = vpop.f32.mrb[0].mxu0
      %v613 = vadd.f32 %v525, %v612
      %v614 = vpop.f32.mrb[0].mxu0
      %v615 = vpop.f32.mrb[0].mxu0
      %v616 = vpop.f32.mrb[0].mxu0
      %617 = vdwg.mxu0
      %v618 = vld [vmem:[#allocation2 + $0x7] sm:$0xf]
      %v619 = vadd.s32 %v397, 1
      %vm620 = vcmp.ge.s32.totalorder %v619, 0
      %vm621 = vcmp.lt.s32.totalorder %v619, 2
      %vm622 = vmand %vm620, %vm621
      %v623 = vsel %vm622, 1, 0
      %vm624 = vcmp.eq.s32.totalorder %v623, 1
      %v625 = vsel %vm624, %v618, 0.0
      %v626 = vpack.c.bf16 %v625, %v625
      %s627 = scalar_lea.vmem %s3, 128
      %v628 = vld [vmem:[%s627] sm:$0xf]
      %v629 = vld [vmem:[%s627 + $0x4] sm:$0xf]
      %v630 = vld [vmem:[%s627 + $0x8] sm:$0xf]
      %v631 = vld [vmem:[%s627 + $0xc] sm:$0xf]
      %v632 = vld [vmem:[%s627 + $0x10] sm:$0xf]
      %v633 = vld [vmem:[%s627 + $0x14] sm:$0xf]
      %v634 = vld [vmem:[%s627 + $0x18] sm:$0xf]
      %v635 = vld [vmem:[%s627 + $0x1c] sm:$0xf]
      %v636 = vld [vmem:[%s627 + $0x20] sm:$0xf]
      %v637 = vld [vmem:[%s627 + $0x24] sm:$0xf]
      %v638 = vld [vmem:[%s627 + $0x28] sm:$0xf]
      %v639 = vld [vmem:[%s627 + $0x2c] sm:$0xf]
      %v640 = vld [vmem:[%s627 + $0x30] sm:$0xf]
      %v641 = vld [vmem:[%s627 + $0x34] sm:$0xf]
      %v642 = vld [vmem:[%s627 + $0x38] sm:$0xf]
      %v643 = vld [vmem:[%s627 + $0x3c] sm:$0xf]
      %v660 = vunpack.c.l.b16 %v628
      %v661 = vunpack.c.l.b16 %v629
      %v662 = vunpack.c.l.b16 %v630
      %v663 = vunpack.c.l.b16 %v631
      %v664 = vunpack.c.l.b16 %v632
      %v665 = vunpack.c.l.b16 %v633
      %v666 = vunpack.c.l.b16 %v634
      %v667 = vunpack.c.l.b16 %v635
      %v668 = vunpack.c.l.b16 %v636
      %v669 = vunpack.c.l.b16 %v637
      %v670 = vunpack.c.l.b16 %v638
      %v671 = vunpack.c.l.b16 %v639
      %v672 = vunpack.c.l.b16 %v640
      %v673 = vunpack.c.l.b16 %v641
      %v674 = vunpack.c.l.b16 %v642
      %v675 = vunpack.c.l.b16 %v643
      %v676 = vpack.c.b16 %v661, %v660
      %v677 = vpack.c.b16 %v663, %v662
      %v678 = vpack.c.b16 %v665, %v664
      %v679 = vpack.c.b16 %v667, %v666
      %v680 = vpack.c.b16 %v669, %v668
      %v681 = vpack.c.b16 %v671, %v670
      %v682 = vpack.c.b16 %v673, %v672
      %v683 = vpack.c.b16 %v675, %v674
      %692 = vmatprep.subr.bf16.mxu0 0
      %693 = vmatpush1.bf16.msra.mxu0 %v676
      %694 = vmatprep.subr.bf16.mxu0 0
      %695 = vmatpush1.bf16.msra.mxu0 %v677
      %696 = vmatprep.subr.bf16.mxu0 0
      %697 = vmatpush1.bf16.msra.mxu0 %v678
      %698 = vmatprep.subr.bf16.mxu0 0
      %699 = vmatpush1.bf16.msra.mxu0 %v679
      %700 = vmatprep.subr.bf16.mxu0 0
      %701 = vmatpush1.bf16.msra.mxu0 %v680
      %702 = vmatprep.subr.bf16.mxu0 0
      %703 = vmatpush1.bf16.msra.mxu0 %v681
      %704 = vmatprep.subr.bf16.mxu0 0
      %705 = vmatpush1.bf16.msra.mxu0 %v682
      %706 = vmatprep.subr.bf16.mxu0 0
      %707 = vmatpush1.bf16.msra.mxu0 %v683
      %708 = vmatprep.subr.bf16.mxu0 0
      %709 = vmatpush1.bf16.msra.mxu0 0
      %710 = vmatprep.subr.bf16.mxu0 0
      %711 = vmatpush1.bf16.msra.mxu0 0
      %712 = vmatprep.subr.bf16.mxu0 0
      %713 = vmatpush1.bf16.msra.mxu0 0
      %714 = vmatprep.subr.bf16.mxu0 0
      %715 = vmatpush1.bf16.msra.mxu0 0
      %716 = vmatprep.subr.bf16.mxu0 0
      %717 = vmatpush1.bf16.msra.mxu0 0
      %718 = vmatprep.subr.bf16.mxu0 0
      %719 = vmatpush1.bf16.msra.mxu0 0
      %720 = vmatprep.subr.bf16.mxu0 0
      %721 = vmatpush1.bf16.msra.mxu0 0
      %722 = vmatprep.subr.bf16.mxu0 0
      %723 = vmatpush1.bf16.msra.mxu0 0
      %724 = vmatprep.mubr.bf16.mxu0 0
      %725 = vmatmul.mubr.bf16.gmra.mrb[0].mxu0 %v626
      %v726 = vpop.f32.mrb[0].mxu0
      %v727 = vadd.f32 0.0, %v726
      %v728 = vpop.f32.mrb[0].mxu0
      %v729 = vpop.f32.mrb[0].mxu0
      %v730 = vpop.f32.mrb[0].mxu0
      %731 = vdwg.mxu0
      %v732 = vadd.f32 %v613, %v727
      %v733 = vsel %vm404, %v618, 0.0
      %v734 = vpack.c.bf16 %v733, %v733
      %s735 = scalar_lea.vmem %s3, 192
      %v736 = vld [vmem:[%s735] sm:$0xf]
      %v737 = vld [vmem:[%s735 + $0x4] sm:$0xf]
      %v738 = vld [vmem:[%s735 + $0x8] sm:$0xf]
      %v739 = vld [vmem:[%s735 + $0xc] sm:$0xf]
      %v740 = vld [vmem:[%s735 + $0x10] sm:$0xf]
      %v741 = vld [vmem:[%s735 + $0x14] sm:$0xf]
      %v742 = vld [vmem:[%s735 + $0x18] sm:$0xf]
      %v743 = vld [vmem:[%s735 + $0x1c] sm:$0xf]
      %v744 = vld [vmem:[%s735 + $0x20] sm:$0xf]
      %v745 = vld [vmem:[%s735 + $0x24] sm:$0xf]
      %v746 = vld [vmem:[%s735 + $0x28] sm:$0xf]
      %v747 = vld [vmem:[%s735 + $0x2c] sm:$0xf]
      %v748 = vld [vmem:[%s735 + $0x30] sm:$0xf]
      %v749 = vld [vmem:[%s735 + $0x34] sm:$0xf]
      %v750 = vld [vmem:[%s735 + $0x38] sm:$0xf]
      %v751 = vld [vmem:[%s735 + $0x3c] sm:$0xf]
      %v768 = vunpack.c.l.b16 %v736
      %v769 = vunpack.c.l.b16 %v737
      %v770 = vunpack.c.l.b16 %v738
      %v771 = vunpack.c.l.b16 %v739
      %v772 = vunpack.c.l.b16 %v740
      %v773 = vunpack.c.l.b16 %v741
      %v774 = vunpack.c.l.b16 %v742
      %v775 = vunpack.c.l.b16 %v743
      %v776 = vunpack.c.l.b16 %v744
      %v777 = vunpack.c.l.b16 %v745
      %v778 = vunpack.c.l.b16 %v746
      %v779 = vunpack.c.l.b16 %v747
      %v780 = vunpack.c.l.b16 %v748
      %v781 = vunpack.c.l.b16 %v749
      %v782 = vunpack.c.l.b16 %v750
      %v783 = vunpack.c.l.b16 %v751
      %v784 = vpack.c.b16 %v769, %v768
      %v785 = vpack.c.b16 %v771, %v770
      %v786 = vpack.c.b16 %v773, %v772
      %v787 = vpack.c.b16 %v775, %v774
      %v788 = vpack.c.b16 %v777, %v776
      %v789 = vpack.c.b16 %v779, %v778
      %v790 = vpack.c.b16 %v781, %v780
      %v791 = vpack.c.b16 %v783, %v782
      %800 = vmatprep.subr.bf16.mxu0 0
      %801 = vmatpush1.bf16.msra.mxu0 %v784
      %802 = vmatprep.subr.bf16.mxu0 0
      %803 = vmatpush1.bf16.msra.mxu0 %v785
      %804 = vmatprep.subr.bf16.mxu0 0
      %805 = vmatpush1.bf16.msra.mxu0 %v786
      %806 = vmatprep.subr.bf16.mxu0 0
      %807 = vmatpush1.bf16.msra.mxu0 %v787
      %808 = vmatprep.subr.bf16.mxu0 0
      %809 = vmatpush1.bf16.msra.mxu0 %v788
      %810 = vmatprep.subr.bf16.mxu0 0
      %811 = vmatpush1.bf16.msra.mxu0 %v789
      %812 = vmatprep.subr.bf16.mxu0 0
      %813 = vmatpush1.bf16.msra.mxu0 %v790
      %814 = vmatprep.subr.bf16.mxu0 0
      %815 = vmatpush1.bf16.msra.mxu0 %v791
      %816 = vmatprep.subr.bf16.mxu0 0
      %817 = vmatpush1.bf16.msra.mxu0 0
      %818 = vmatprep.subr.bf16.mxu0 0
      %819 = vmatpush1.bf16.msra.mxu0 0
      %820 = vmatprep.subr.bf16.mxu0 0
      %821 = vmatpush1.bf16.msra.mxu0 0
      %822 = vmatprep.subr.bf16.mxu0 0
      %823 = vmatpush1.bf16.msra.mxu0 0
      %824 = vmatprep.subr.bf16.mxu0 0
      %825 = vmatpush1.bf16.msra.mxu0 0
      %826 = vmatprep.subr.bf16.mxu0 0
      %827 = vmatpush1.bf16.msra.mxu0 0
      %828 = vmatprep.subr.bf16.mxu0 0
      %829 = vmatpush1.bf16.msra.mxu0 0
      %830 = vmatprep.subr.bf16.mxu0 0
      %831 = vmatpush1.bf16.msra.mxu0 0
      %832 = vmatprep.mubr.bf16.mxu0 0
      %833 = vmatmul.mubr.bf16.gmra.mrb[0].mxu0 %v734
      %v834 = vpop.f32.mrb[0].mxu0
      %v835 = vadd.f32 0.0, %v834
      %v836 = vpop.f32.mrb[0].mxu0
      %v837 = vpop.f32.mrb[0].mxu0
      %v838 = vpop.f32.mrb[0].mxu0
      %839 = vdwg.mxu0
      %v840 = vadd.f32 %v732, %v835
      %v841 = vld [vmem:[#allocation2 + $0x8] sm:$0xf]
      %v842 = vpack.c.bf16 %v841, %v841
      %s843 = scalar_lea.vmem %s3, 256
      %v844 = vld [vmem:[%s843] sm:$0xf]
      %v845 = vld [vmem:[%s843 + $0x4] sm:$0xf]
      %v846 = vld [vmem:[%s843 + $0x8] sm:$0xf]
      %v847 = vld [vmem:[%s843 + $0xc] sm:$0xf]
      %v848 = vld [vmem:[%s843 + $0x10] sm:$0xf]
      %v849 = vld [vmem:[%s843 + $0x14] sm:$0xf]
      %v850 = vld [vmem:[%s843 + $0x18] sm:$0xf]
      %v851 = vld [vmem:[%s843 + $0x1c] sm:$0xf]
      %v852 = vld [vmem:[%s843 + $0x20] sm:$0xf]
      %v853 = vld [vmem:[%s843 + $0x24] sm:$0xf]
      %v854 = vld [vmem:[%s843 + $0x28] sm:$0xf]
      %v855 = vld [vmem:[%s843 + $0x2c] sm:$0xf]
      %v856 = vld [vmem:[%s843 + $0x30] sm:$0xf]
      %v857 = vld [vmem:[%s843 + $0x34] sm:$0xf]
      %v858 = vld [vmem:[%s843 + $0x38] sm:$0xf]
      %v859 = vld [vmem:[%s843 + $0x3c] sm:$0xf]
      %v876 = vunpack.c.l.b16 %v844
      %v877 = vunpack.c.l.b16 %v845
      %v878 = vunpack.c.l.b16 %v846
      %v879 = vunpack.c.l.b16 %v847
      %v880 = vunpack.c.l.b16 %v848
      %v881 = vunpack.c.l.b16 %v849
      %v882 = vunpack.c.l.b16 %v850
      %v883 = vunpack.c.l.b16 %v851
      %v884 = vunpack.c.l.b16 %v852
      %v885 = vunpack.c.l.b16 %v853
      %v886 = vunpack.c.l.b16 %v854
      %v887 = vunpack.c.l.b16 %v855
      %v888 = vunpack.c.l.b16 %v856
      %v889 = vunpack.c.l.b16 %v857
      %v890 = vunpack.c.l.b16 %v858
      %v891 = vunpack.c.l.b16 %v859
      %v892 = vpack.c.b16 %v877, %v876
      %v893 = vpack.c.b16 %v879, %v878
      %v894 = vpack.c.b16 %v881, %v880
      %v895 = vpack.c.b16 %v883, %v882
      %v896 = vpack.c.b16 %v885, %v884
      %v897 = vpack.c.b16 %v887, %v886
      %v898 = vpack.c.b16 %v889, %v888
      %v899 = vpack.c.b16 %v891, %v890
      %908 = vmatprep.subr.bf16.mxu0 0
      %909 = vmatpush1.bf16.msra.mxu0 %v892
      %910 = vmatprep.subr.bf16.mxu0 0
      %911 = vmatpush1.bf16.msra.mxu0 %v893
      %912 = vmatprep.subr.bf16.mxu0 0
      %913 = vmatpush1.bf16.msra.mxu0 %v894
      %914 = vmatprep.subr.bf16.mxu0 0
      %915 = vmatpush1.bf16.msra.mxu0 %v895
      %916 = vmatprep.subr.bf16.mxu0 0
      %917 = vmatpush1.bf16.msra.mxu0 %v896
      %918 = vmatprep.subr.bf16.mxu0 0
      %919 = vmatpush1.bf16.msra.mxu0 %v897
      %920 = vmatprep.subr.bf16.mxu0 0
      %921 = vmatpush1.bf16.msra.mxu0 %v898
      %922 = vmatprep.subr.bf16.mxu0 0
      %923 = vmatpush1.bf16.msra.mxu0 %v899
      %924 = vmatprep.subr.bf16.mxu0 0
      %925 = vmatpush1.bf16.msra.mxu0 0
      %926 = vmatprep.subr.bf16.mxu0 0
      %927 = vmatpush1.bf16.msra.mxu0 0
      %928 = vmatprep.subr.bf16.mxu0 0
      %929 = vmatpush1.bf16.msra.mxu0 0
      %930 = vmatprep.subr.bf16.mxu0 0
      %931 = vmatpush1.bf16.msra.mxu0 0
      %932 = vmatprep.subr.bf16.mxu0 0
      %933 = vmatpush1.bf16.msra.mxu0 0
      %934 = vmatprep.subr.bf16.mxu0 0
      %935 = vmatpush1.bf16.msra.mxu0 0
      %936 = vmatprep.subr.bf16.mxu0 0
      %937 = vmatpush1.bf16.msra.mxu0 0
      %938 = vmatprep.subr.bf16.mxu0 0
      %939 = vmatpush1.bf16.msra.mxu0 0
      %940 = vmatprep.mubr.bf16.mxu0 0
      %941 = vmatmul.mubr.bf16.gmra.mrb[0].mxu0 %v842
      %v942 = vpop.f32.mrb[0].mxu0
      %v943 = vadd.f32 0.0, %v942
      %v944 = vpop.f32.mrb[0].mxu0
      %v945 = vpop.f32.mrb[0].mxu0
      %v946 = vpop.f32.mrb[0].mxu0
      %947 = vdwg.mxu0
      %v948 = vadd.f32 %v840, %v943
      %v949 = vld [vmem:[#allocation2 + $0x9] sm:$0xf]
      %v950 = vsel %vm624, %v949, 0.0
      %v951 = vpack.c.bf16 %v950, %v950
      %s952 = scalar_lea.vmem %s3, 320
      %v953 = vld [vmem:[%s952] sm:$0xf]
      %v954 = vld [vmem:[%s952 + $0x4] sm:$0xf]
      %v955 = vld [vmem:[%s952 + $0x8] sm:$0xf]
      %v956 = vld [vmem:[%s952 + $0xc] sm:$0xf]
      %v957 = vld [vmem:[%s952 + $0x10] sm:$0xf]
      %v958 = vld [vmem:[%s952 + $0x14] sm:$0xf]
      %v959 = vld [vmem:[%s952 + $0x18] sm:$0xf]
      %v960 = vld [vmem:[%s952 + $0x1c] sm:$0xf]
      %v961 = vld [vmem:[%s952 + $0x20] sm:$0xf]
      %v962 = vld [vmem:[%s952 + $0x24] sm:$0xf]
      %v963 = vld [vmem:[%s952 + $0x28] sm:$0xf]
      %v964 = vld [vmem:[%s952 + $0x2c] sm:$0xf]
      %v965 = vld [vmem:[%s952 + $0x30] sm:$0xf]
      %v966 = vld [vmem:[%s952 + $0x34] sm:$0xf]
      %v967 = vld [vmem:[%s952 + $0x38] sm:$0xf]
      %v968 = vld [vmem:[%s952 + $0x3c] sm:$0xf]
      %v985 = vunpack.c.l.b16 %v953
      %v986 = vunpack.c.l.b16 %v954
      %v987 = vunpack.c.l.b16 %v955
      %v988 = vunpack.c.l.b16 %v956
      %v989 = vunpack.c.l.b16 %v957
      %v990 = vunpack.c.l.b16 %v958
      %v991 = vunpack.c.l.b16 %v959
      %v992 = vunpack.c.l.b16 %v960
      %v993 = vunpack.c.l.b16 %v961
      %v994 = vunpack.c.l.b16 %v962
      %v995 = vunpack.c.l.b16 %v963
      %v996 = vunpack.c.l.b16 %v964
      %v997 = vunpack.c.l.b16 %v965
      %v998 = vunpack.c.l.b16 %v966
      %v999 = vunpack.c.l.b16 %v967
      %v1000 = vunpack.c.l.b16 %v968
      %v1001 = vpack.c.b16 %v986, %v985
      %v1002 = vpack.c.b16 %v988, %v987
      %v1003 = vpack.c.b16 %v990, %v989
      %v1004 = vpack.c.b16 %v992, %v991
      %v1005 = vpack.c.b16 %v994, %v993
      %v1006 = vpack.c.b16 %v996, %v995
      %v1007 = vpack.c.b16 %v998, %v997
      %v1008 = vpack.c.b16 %v1000, %v999
      %1017 = vmatprep.subr.bf16.mxu0 0
      %1018 = vmatpush1.bf16.msra.mxu0 %v1001
      %1019 = vmatprep.subr.bf16.mxu0 0
      %1020 = vmatpush1.bf16.msra.mxu0 %v1002
      %1021 = vmatprep.subr.bf16.mxu0 0
      %1022 = vmatpush1.bf16.msra.mxu0 %v1003
      %1023 = vmatprep.subr.bf16.mxu0 0
      %1024 = vmatpush1.bf16.msra.mxu0 %v1004
      %1025 = vmatprep.subr.bf16.mxu0 0
      %1026 = vmatpush1.bf16.msra.mxu0 %v1005
      %1027 = vmatprep.subr.bf16.mxu0 0
      %1028 = vmatpush1.bf16.msra.mxu0 %v1006
      %1029 = vmatprep.subr.bf16.mxu0 0
      %1030 = vmatpush1.bf16.msra.mxu0 %v1007
      %1031 = vmatprep.subr.bf16.mxu0 0
      %1032 = vmatpush1.bf16.msra.mxu0 %v1008
      %1033 = vmatprep.subr.bf16.mxu0 0
      %1034 = vmatpush1.bf16.msra.mxu0 0
      %1035 = vmatprep.subr.bf16.mxu0 0
      %1036 = vmatpush1.bf16.msra.mxu0 0
      %1037 = vmatprep.subr.bf16.mxu0 0
      %1038 = vmatpush1.bf16.msra.mxu0 0
      %1039 = vmatprep.subr.bf16.mxu0 0
      %1040 = vmatpush1.bf16.msra.mxu0 0
      %1041 = vmatprep.subr.bf16.mxu0 0
      %1042 = vmatpush1.bf16.msra.mxu0 0
      %1043 = vmatprep.subr.bf16.mxu0 0
      %1044 = vmatpush1.bf16.msra.mxu0 0
      %1045 = vmatprep.subr.bf16.mxu0 0
      %1046 = vmatpush1.bf16.msra.mxu0 0
      %1047 = vmatprep.subr.bf16.mxu0 0
      %1048 = vmatpush1.bf16.msra.mxu0 0
      %1049 = vmatprep.mubr.bf16.mxu0 0
      %1050 = vmatmul.mubr.bf16.gmra.mrb[0].mxu0 %v951
      %v1051 = vpop.f32.mrb[0].mxu0
      %v1052 = vadd.f32 0.0, %v1051
      %v1053 = vpop.f32.mrb[0].mxu0
      %v1054 = vpop.f32.mrb[0].mxu0
      %v1055 = vpop.f32.mrb[0].mxu0
      %1056 = vdwg.mxu0
      %v1057 = vadd.f32 %v948, %v1052
      %v1058 = vsel %vm404, %v949, 0.0
      %v1059 = vpack.c.bf16 %v1058, %v1058
      %s1060 = scalar_lea.vmem %s3, 384
      %v1061 = vld [vmem:[%s1060] sm:$0xf]
      %v1062 = vld [vmem:[%s1060 + $0x4] sm:$0xf]
      %v1063 = vld [vmem:[%s1060 + $0x8] sm:$0xf]
      %v1064 = vld [vmem:[%s1060 + $0xc] sm:$0xf]
      %v1065 = vld [vmem:[%s1060 + $0x10] sm:$0xf]
      %v1066 = vld [vmem:[%s1060 + $0x14] sm:$0xf]
      %v1067 = vld [vmem:[%s1060 + $0x18] sm:$0xf]
      %v1068 = vld [vmem:[%s1060 + $0x1c] sm:$0xf]
      %v1069 = vld [vmem:[%s1060 + $0x20] sm:$0xf]
      %v1070 = vld [vmem:[%s1060 + $0x24] sm:$0xf]
      %v1071 = vld [vmem:[%s1060 + $0x28] sm:$0xf]
      %v1072 = vld [vmem:[%s1060 + $0x2c] sm:$0xf]
      %v1073 = vld [vmem:[%s1060 + $0x30] sm:$0xf]
      %v1074 = vld [vmem:[%s1060 + $0x34] sm:$0xf]
      %v1075 = vld [vmem:[%s1060 + $0x38] sm:$0xf]
      %v1076 = vld [vmem:[%s1060 + $0x3c] sm:$0xf]
      %v1093 = vunpack.c.l.b16 %v1061
      %v1094 = vunpack.c.l.b16 %v1062
      %v1095 = vunpack.c.l.b16 %v1063
      %v1096 = vunpack.c.l.b16 %v1064
      %v1097 = vunpack.c.l.b16 %v1065
      %v1098 = vunpack.c.l.b16 %v1066
      %v1099 = vunpack.c.l.b16 %v1067
      %v1100 = vunpack.c.l.b16 %v1068
      %v1101 = vunpack.c.l.b16 %v1069
      %v1102 = vunpack.c.l.b16 %v1070
      %v1103 = vunpack.c.l.b16 %v1071
      %v1104 = vunpack.c.l.b16 %v1072
      %v1105 = vunpack.c.l.b16 %v1073
      %v1106 = vunpack.c.l.b16 %v1074
      %v1107 = vunpack.c.l.b16 %v1075
      %v1108 = vunpack.c.l.b16 %v1076
      %v1109 = vpack.c.b16 %v1094, %v1093
      %v1110 = vpack.c.b16 %v1096, %v1095
      %v1111 = vpack.c.b16 %v1098, %v1097
      %v1112 = vpack.c.b16 %v1100, %v1099
      %v1113 = vpack.c.b16 %v1102, %v1101
      %v1114 = vpack.c.b16 %v1104, %v1103
      %v1115 = vpack.c.b16 %v1106, %v1105
      %v1116 = vpack.c.b16 %v1108, %v1107
      %1125 = vmatprep.subr.bf16.mxu0 0
      %1126 = vmatpush1.bf16.msra.mxu0 %v1109
      %1127 = vmatprep.subr.bf16.mxu0 0
      %1128 = vmatpush1.bf16.msra.mxu0 %v1110
      %1129 = vmatprep.subr.bf16.mxu0 0
      %1130 = vmatpush1.bf16.msra.mxu0 %v1111
      %1131 = vmatprep.subr.bf16.mxu0 0
      %1132 = vmatpush1.bf16.msra.mxu0 %v1112
      %1133 = vmatprep.subr.bf16.mxu0 0
      %1134 = vmatpush1.bf16.msra.mxu0 %v1113
      %1135 = vmatprep.subr.bf16.mxu0 0
      %1136 = vmatpush1.bf16.msra.mxu0 %v1114
      %1137 = vmatprep.subr.bf16.mxu0 0
      %1138 = vmatpush1.bf16.msra.mxu0 %v1115
      %1139 = vmatprep.subr.bf16.mxu0 0
      %1140 = vmatpush1.bf16.msra.mxu0 %v1116
      %1141 = vmatprep.subr.bf16.mxu0 0
      %1142 = vmatpush1.bf16.msra.mxu0 0
      %1143 = vmatprep.subr.bf16.mxu0 0
      %1144 = vmatpush1.bf16.msra.mxu0 0
      %1145 = vmatprep.subr.bf16.mxu0 0
      %1146 = vmatpush1.bf16.msra.mxu0 0
      %1147 = vmatprep.subr.bf16.mxu0 0
      %1148 = vmatpush1.bf16.msra.mxu0 0
      %1149 = vmatprep.subr.bf16.mxu0 0
      %1150 = vmatpush1.bf16.msra.mxu0 0
      %1151 = vmatprep.subr.bf16.mxu0 0
      %1152 = vmatpush1.bf16.msra.mxu0 0
      %1153 = vmatprep.subr.bf16.mxu0 0
      %1154 = vmatpush1.bf16.msra.mxu0 0
      %1155 = vmatprep.subr.bf16.mxu0 0
      %1156 = vmatpush1.bf16.msra.mxu0 0
      %1157 = vmatprep.mubr.bf16.mxu0 0
      %1158 = vmatmul.mubr.bf16.gmra.mrb[0].mxu0 %v1059
      %v1159 = vpop.f32.mrb[0].mxu0
      %v1160 = vadd.f32 0.0, %v1159
      %v1161 = vpop.f32.mrb[0].mxu0
      %v1162 = vpop.f32.mrb[0].mxu0
      %v1163 = vpop.f32.mrb[0].mxu0
      %1164 = vdwg.mxu0
      %v1165 = vadd.f32 %v1057, %v1160
      %v1166 = vld [vmem:[#allocation2 + $0xa] sm:$0xf]
      %v1167 = vpack.c.bf16 %v1166, %v1166
      %s1168 = scalar_lea.vmem %s3, 448
      %v1169 = vld [vmem:[%s1168] sm:$0xf]
      %v1170 = vld [vmem:[%s1168 + $0x4] sm:$0xf]
      %v1171 = vld [vmem:[%s1168 + $0x8] sm:$0xf]
      %v1172 = vld [vmem:[%s1168 + $0xc] sm:$0xf]
      %v1173 = vld [vmem:[%s1168 + $0x10] sm:$0xf]
      %v1174 = vld [vmem:[%s1168 + $0x14] sm:$0xf]
      %v1175 = vld [vmem:[%s1168 + $0x18] sm:$0xf]
      %v1176 = vld [vmem:[%s1168 + $0x1c] sm:$0xf]
      %v1177 = vld [vmem:[%s1168 + $0x20] sm:$0xf]
      %v1178 = vld [vmem:[%s1168 + $0x24] sm:$0xf]
      %v1179 = vld [vmem:[%s1168 + $0x28] sm:$0xf]
      %v1180 = vld [vmem:[%s1168 + $0x2c] sm:$0xf]
      %v1181 = vld [vmem:[%s1168 + $0x30] sm:$0xf]
      %v1182 = vld [vmem:[%s1168 + $0x34] sm:$0xf]
      %v1183 = vld [vmem:[%s1168 + $0x38] sm:$0xf]
      %v1184 = vld [vmem:[%s1168 + $0x3c] sm:$0xf]
      %v1201 = vunpack.c.l.b16 %v1169
      %v1202 = vunpack.c.l.b16 %v1170
      %v1203 = vunpack.c.l.b16 %v1171
      %v1204 = vunpack.c.l.b16 %v1172
      %v1205 = vunpack.c.l.b16 %v1173
      %v1206 = vunpack.c.l.b16 %v1174
      %v1207 = vunpack.c.l.b16 %v1175
      %v1208 = vunpack.c.l.b16 %v1176
      %v1209 = vunpack.c.l.b16 %v1177
      %v1210 = vunpack.c.l.b16 %v1178
      %v1211 = vunpack.c.l.b16 %v1179
      %v1212 = vunpack.c.l.b16 %v1180
      %v1213 = vunpack.c.l.b16 %v1181
      %v1214 = vunpack.c.l.b16 %v1182
      %v1215 = vunpack.c.l.b16 %v1183
      %v1216 = vunpack.c.l.b16 %v1184
      %v1217 = vpack.c.b16 %v1202, %v1201
      %v1218 = vpack.c.b16 %v1204, %v1203
      %v1219 = vpack.c.b16 %v1206, %v1205
      %v1220 = vpack.c.b16 %v1208, %v1207
      %v1221 = vpack.c.b16 %v1210, %v1209
      %v1222 = vpack.c.b16 %v1212, %v1211
      %v1223 = vpack.c.b16 %v1214, %v1213
      %v1224 = vpack.c.b16 %v1216, %v1215
      %1233 = vmatprep.subr.bf16.mxu0 0
      %1234 = vmatpush1.bf16.msra.mxu0 %v1217
      %1235 = vmatprep.subr.bf16.mxu0 0
      %1236 = vmatpush1.bf16.msra.mxu0 %v1218
      %1237 = vmatprep.subr.bf16.mxu0 0
      %1238 = vmatpush1.bf16.msra.mxu0 %v1219
      %1239 = vmatprep.subr.bf16.mxu0 0
      %1240 = vmatpush1.bf16.msra.mxu0 %v1220
      %1241 = vmatprep.subr.bf16.mxu0 0
      %1242 = vmatpush1.bf16.msra.mxu0 %v1221
      %1243 = vmatprep.subr.bf16.mxu0 0
      %1244 = vmatpush1.bf16.msra.mxu0 %v1222
      %1245 = vmatprep.subr.bf16.mxu0 0
      %1246 = vmatpush1.bf16.msra.mxu0 %v1223
      %1247 = vmatprep.subr.bf16.mxu0 0
      %1248 = vmatpush1.bf16.msra.mxu0 %v1224
      %1249 = vmatprep.subr.bf16.mxu0 0
      %1250 = vmatpush1.bf16.msra.mxu0 0
      %1251 = vmatprep.subr.bf16.mxu0 0
      %1252 = vmatpush1.bf16.msra.mxu0 0
      %1253 = vmatprep.subr.bf16.mxu0 0
      %1254 = vmatpush1.bf16.msra.mxu0 0
      %1255 = vmatprep.subr.bf16.mxu0 0
      %1256 = vmatpush1.bf16.msra.mxu0 0
      %1257 = vmatprep.subr.bf16.mxu0 0
      %1258 = vmatpush1.bf16.msra.mxu0 0
      %1259 = vmatprep.subr.bf16.mxu0 0
      %1260 = vmatpush1.bf16.msra.mxu0 0
      %1261 = vmatprep.subr.bf16.mxu0 0
      %1262 = vmatpush1.bf16.msra.mxu0 0
      %1263 = vmatprep.subr.bf16.mxu0 0
      %1264 = vmatpush1.bf16.msra.mxu0 0
      %1265 = vmatprep.mubr.bf16.mxu0 0
      %1266 = vmatmul.mubr.bf16.gmra.mrb[0].mxu0 %v1167
      %v1267 = vpop.f32.mrb[0].mxu0
      %v1268 = vadd.f32 0.0, %v1267
      %v1269 = vpop.f32.mrb[0].mxu0
      %v1270 = vpop.f32.mrb[0].mxu0
      %v1271 = vpop.f32.mrb[0].mxu0
      %1272 = vdwg.mxu0
      %v1273 = vadd.f32 %v1165, %v1268
      %v1274 = vld [vmem:[#allocation2 + $0xb] sm:$0xf]
      %v1275 = vsel %vm624, %v1274, 0.0
      %v1276 = vpack.c.bf16 %v1275, %v1275
      %s1277 = scalar_lea.vmem %s3, 512
      %v1278 = vld [vmem:[%s1277] sm:$0xf]
      %v1279 = vld [vmem:[%s1277 + $0x4] sm:$0xf]
      %v1280 = vld [vmem:[%s1277 + $0x8] sm:$0xf]
      %v1281 = vld [vmem:[%s1277 + $0xc] sm:$0xf]
      %v1282 = vld [vmem:[%s1277 + $0x10] sm:$0xf]
      %v1283 = vld [vmem:[%s1277 + $0x14] sm:$0xf]
      %v1284 = vld [vmem:[%s1277 + $0x18] sm:$0xf]
      %v1285 = vld [vmem:[%s1277 + $0x1c] sm:$0xf]
      %v1286 = vld [vmem:[%s1277 + $0x20] sm:$0xf]
      %v1287 = vld [vmem:[%s1277 + $0x24] sm:$0xf]
      %v1288 = vld [vmem:[%s1277 + $0x28] sm:$0xf]
      %v1289 = vld [vmem:[%s1277 + $0x2c] sm:$0xf]
      %v1290 = vld [vmem:[%s1277 + $0x30] sm:$0xf]
      %v1291 = vld [vmem:[%s1277 + $0x34] sm:$0xf]
      %v1292 = vld [vmem:[%s1277 + $0x38] sm:$0xf]
      %v1293 = vld [vmem:[%s1277 + $0x3c] sm:$0xf]
      %v1310 = vunpack.c.l.b16 %v1278
      %v1311 = vunpack.c.l.b16 %v1279
      %v1312 = vunpack.c.l.b16 %v1280
      %v1313 = vunpack.c.l.b16 %v1281
      %v1314 = vunpack.c.l.b16 %v1282
      %v1315 = vunpack.c.l.b16 %v1283
      %v1316 = vunpack.c.l.b16 %v1284
      %v1317 = vunpack.c.l.b16 %v1285
      %v1318 = vunpack.c.l.b16 %v1286
      %v1319 = vunpack.c.l.b16 %v1287
      %v1320 = vunpack.c.l.b16 %v1288
      %v1321 = vunpack.c.l.b16 %v1289
      %v1322 = vunpack.c.l.b16 %v1290
      %v1323 = vunpack.c.l.b16 %v1291
      %v1324 = vunpack.c.l.b16 %v1292
      %v1325 = vunpack.c.l.b16 %v1293
      %v1326 = vpack.c.b16 %v1311, %v1310
      %v1327 = vpack.c.b16 %v1313, %v1312
      %v1328 = vpack.c.b16 %v1315, %v1314
      %v1329 = vpack.c.b16 %v1317, %v1316
      %v1330 = vpack.c.b16 %v1319, %v1318
      %v1331 = vpack.c.b16 %v1321, %v1320
      %v1332 = vpack.c.b16 %v1323, %v1322
      %v1333 = vpack.c.b16 %v1325, %v1324
      %1342 = vmatprep.subr.bf16.mxu0 0
      %1343 = vmatpush1.bf16.msra.mxu0 %v1326
      %1344 = vmatprep.subr.bf16.mxu0 0
      %1345 = vmatpush1.bf16.msra.mxu0 %v1327
      %1346 = vmatprep.subr.bf16.mxu0 0
      %1347 = vmatpush1.bf16.msra.mxu0 %v1328
      %1348 = vmatprep.subr.bf16.mxu0 0
      %1349 = vmatpush1.bf16.msra.mxu0 %v1329
      %1350 = vmatprep.subr.bf16.mxu0 0
      %1351 = vmatpush1.bf16.msra.mxu0 %v1330
      %1352 = vmatprep.subr.bf16.mxu0 0
      %1353 = vmatpush1.bf16.msra.mxu0 %v1331
      %1354 = vmatprep.subr.bf16.mxu0 0
      %1355 = vmatpush1.bf16.msra.mxu0 %v1332
      %1356 = vmatprep.subr.bf16.mxu0 0
      %1357 = vmatpush1.bf16.msra.mxu0 %v1333
      %1358 = vmatprep.subr.bf16.mxu0 0
      %1359 = vmatpush1.bf16.msra.mxu0 0
      %1360 = vmatprep.subr.bf16.mxu0 0
      %1361 = vmatpush1.bf16.msra.mxu0 0
      %1362 = vmatprep.subr.bf16.mxu0 0
      %1363 = vmatpush1.bf16.msra.mxu0 0
      %1364 = vmatprep.subr.bf16.mxu0 0
      %1365 = vmatpush1.bf16.msra.mxu0 0
      %1366 = vmatprep.subr.bf16.mxu0 0
      %1367 = vmatpush1.bf16.msra.mxu0 0
      %1368 = vmatprep.subr.bf16.mxu0 0
      %1369 = vmatpush1.bf16.msra.mxu0 0
      %1370 = vmatprep.subr.bf16.mxu0 0
      %1371 = vmatpush1.bf16.msra.mxu0 0
      %1372 = vmatprep.subr.bf16.mxu0 0
      %1373 = vmatpush1.bf16.msra.mxu0 0
      %1374 = vmatprep.mubr.bf16.mxu0 0
      %1375 = vmatmul.mubr.bf16.gmra.mrb[0].mxu0 %v1276
      %v1376 = vpop.f32.mrb[0].mxu0
      %v1377 = vadd.f32 0.0, %v1376
      %v1378 = vpop.f32.mrb[0].mxu0
      %v1379 = vpop.f32.mrb[0].mxu0
      %v1380 = vpop.f32.mrb[0].mxu0
      %1381 = vdwg.mxu0
      %v1382 = vadd.f32 %v1273, %v1377
      %v1383 = vld [vmem:[%s4] sm:$0x1]
      %v1385 = vlaneseq
      %v1386 = vshrl.u32 %v1385, 7
      %v1387 = vsub.s32 0, %v1386
      %v1388 = vrot.slane %v1383, %v1387
      %v1390 = vadd.f32 %v1382, %v1388
      %1391 = vst [vmem:[%s259] sm:$0xf] %v1390
      %p1392 = scmp.lt.s32.totalorder %s18, 1
      %s1393 = scalar_select %p1392, %s18, 1
      %s1394 = smul.addr %s1393, 16
      %s1395 = smul.addr %s1394, 4
      %s1396 = scalar_lea.vmem %s5, %s1395
      %p1397 = scmp.lt.s32.totalorder %s18, 1
      %s1398 = scalar_select %p1397, %s18, 1
      %s1399 = smul.addr %s1398, 4
      %s1400 = scalar_lea.vmem %s6, %s1399
      // Predicated region
      $region41: #{backbone_with_fpn_forward.9} parent=39 // pred_check
        %p1401 = pneg %p146
      $region42: #{backbone_with_fpn_forward.9} parent=39 // pred_check_branch
        %1403 = sbr.rel (%p1401) target = $region44
      $region43: #{backbone_with_fpn_forward.9} parent=39 // pred_region
        _
      $region44: #{backbone_with_fpn_forward.9} parent=39 // pred_fallthru
        _
      // Predicated region
      $region45: #{backbone_with_fpn_forward.9} parent=39 // pred_check
        %p1404 = pneg %p172
      $region46: #{backbone_with_fpn_forward.9} parent=39 // pred_check_branch
        %1406 = sbr.rel (%p1404) target = $region48
      $region47: #{backbone_with_fpn_forward.9} parent=39 // pred_region
        _
      $region48: #{backbone_with_fpn_forward.9} parent=39 // pred_fallthru
        _
    $region40: #{backbone_with_fpn_forward.9} parent=5 // pred_fallthru
      _
    %p1407 = scmp.le.s32.totalorder 2, %s13
    // Predicated region
    $region49: #{backbone_with_fpn_forward.9} parent=5 // pred_check
      %p1408 = pneg %p1407
    $region50: #{backbone_with_fpn_forward.9} parent=5 // pred_check_branch
      %1410 = sbr.rel (%p1408) target = $region52
    $region51: #{backbone_with_fpn_forward.9} parent=5 // pred_region
      %s1411 = ssub.s32 %s13, 2
      // Predicated region
      $region53: #{backbone_with_fpn_forward.9} parent=51 // pred_check
        %p1412 = pneg %p152
      $region54: #{backbone_with_fpn_forward.9} parent=51 // pred_check_branch
        %1414 = sbr.rel (%p1412) target = $region56
      $region55: #{backbone_with_fpn_forward.9} parent=51 // pred_region
        %p1415 = scmp.lt.s32.totalorder %s19, 1
        %s1416 = scalar_select %p1415, %s19, 1
        %s1417 = smul.addr %s1416, 16
        %s1418 = smul.addr %s1417, 4
        %s1419 = scalar_lea.vmem %s5, %s1418
      $region56: #{backbone_with_fpn_forward.9} parent=51 // pred_fallthru
        _
      // Predicated region
      $region57: #{backbone_with_fpn_forward.9} parent=51 // pred_check
        %p1420 = pneg %p178
      $region58: #{backbone_with_fpn_forward.9} parent=51 // pred_check_branch
        %1422 = sbr.rel (%p1420) target = $region60
      $region59: #{backbone_with_fpn_forward.9} parent=51 // pred_region
        %p1423 = scmp.lt.s32.totalorder %s19, 1
        %s1424 = scalar_select %p1423, %s19, 1
        %s1425 = smul.addr %s1424, 4
        %s1426 = scalar_lea.vmem %s6, %s1425
      $region60: #{backbone_with_fpn_forward.9} parent=51 // pred_fallthru
        _
    $region52: #{backbone_with_fpn_forward.9} parent=5 // pred_fallthru
      _
  $region6: #{backbone_with_fpn_forward.9} parent=0 // loop_footer
    %s17 = sadd.s32 1, %s13
  $region7: #{backbone_with_fpn_forward.9} parent=0 // loop_footer_branch
    %12 = sbr.rel target = $region3
  $region8: #{backbone_with_fpn_forward.9} parent=0 // loop_exit
    _

// kernel: backbone_with_fpn_forward.10
$region0: #{backbone_with_fpn_forward.10}
  #allocation0 [shape = 'u32[]', space=smem, size = 0x4, offset = 0x4, fixed_abs, tag = 'smem constant byte address 0x4 - core index']
  #allocation1 [shape = 'u32[144,128]{1,0:T(1,128)}', space=vmem, size = 0x12000, scoped, tag = 'internal scratch']
  #allocation2 [shape = 'f32[32,128]{1,0:T(8,128)}', space=vmem, size = 0x4000, scoped, tag = 'scratch operand']
  %s0 = inlined_call_operand.vmem [shape: bf16[2,16,128], index: 0, kind: input, shape index: {}]
  %s1 = inlined_call_operand.vmem [shape: bf16[2,128,128], index: 1, kind: input, shape index: {}]
  %s2 = inlined_call_operand.vmem [shape: bf16[16,128], index: 2, kind: input, shape index: {}]
  %s3 = inlined_call_operand.vmem [shape: bf16[128,128], index: 3, kind: input, shape index: {}]
  %s4 = inlined_call_operand.vmem [shape: f32[1,128], index: 4, kind: input, shape index: {}, may-alias: {4,6}]
  %s5 = inlined_call_operand.vmem [shape: bf16[9,128,128], index: 5, kind: input, shape index: {}]
  %s6 = inlined_call_operand.vmem [shape: f32[1,128], index: 6, kind: input, shape index: {}, may-alias: {4,6}]
  %s7 = inlined_call_operand.vmem [shape: bf16[2,128,128], index: 7, kind: output, shape index: {0}]
  %s8 = inlined_call_operand.vmem [shape: f32[2,16,128], index: 8, kind: output, shape index: {1}]
  %9 = xla_tuple %s7, %s8
  %s10 = sld [smem:[#allocation0]]
  $region69: #{backbone_with_fpn_forward.10} parent=0
    _
  %s12 = ssub.s32 1, %s10
  %s13 = scalar_select 0, %s12, %s10
  loop: start=0, step=1, limit=4
  $region2: #{backbone_with_fpn_forward.10} parent=0 // loop_pre_header
    _
  $region3: #{backbone_with_fpn_forward.10} parent=0 // loop_header
    %s15 = sphi 0, %s19
    %p16 = scmp.ge.s32.totalorder %s15, 4
    %s25 = sphi 0, %s27
    %s28 = sphi 0, %s25
    %s29 = sphi 0, %s28
    %s45 = sphi 0, %s29
    %s51 = sphi 0, %s53
    %s54 = sphi 0, %s51
    %s55 = sphi 0, %s54
    %s71 = sphi 0, %s55
    %s75 = sphi 0, %s75
    %s77 = sphi 0, %s75
    %s78 = sphi 0, %s77
    %s92 = sphi 0, %s78
    %s96 = sphi 0, %s96
    %s98 = sphi 0, %s96
    %s99 = sphi 0, %s98
    %s113 = sphi 0, %s99
    %s117 = sphi 0, %s117
    %s119 = sphi 0, %s117
    %s120 = sphi 0, %s119
    %s134 = sphi 0, %s120
    %s138 = sphi 0, %s138
    %s140 = sphi 0, %s138
    %s141 = sphi 0, %s140
    %s155 = sphi 0, %s141
    %s159 = sphi 0, %s159
    %s161 = sphi 0, %s159
    %s162 = sphi 0, %s161
    %s176 = sphi 0, %s162
    %s182 = sphi 0, %s184
    %s185 = sphi 0, %s182
    %s186 = sphi 0, %s185
    %s202 = sphi 0, %s186
    %s208 = sphi 0, %s210
    %s211 = sphi 0, %s208
    %s212 = sphi 0, %s211
    %s228 = sphi 0, %s212
  $region4: #{backbone_with_fpn_forward.10} parent=0 // loop_header_branch
    %18 = sbr.rel (%p16) target = $region8
  $region5: #{backbone_with_fpn_forward.10} parent=0 // loop_body
    %s20 = ssub.s32 %s15, 1
    %s21 = ssub.s32 %s15, 2
    %s22 = sadd.s32 %s15, 1
    %s23 = ssub.s32 %s15, %s22
    %p24 = scmp.eq.s32.totalorder %s23, 0
    %s26 = sadd.s32 %s25, 1
    %s27 = scalar_select %p24, %s25, %s26
    %p30 = pneg %p24
    %p31 = scmp.eq.s32.totalorder %s15, 1
    %p32 = por %p30, %p31
    %p33 = scmp.ne.s32.totalorder %s25, %s28
    %p34 = scmp.eq.s32.totalorder %s15, 0
    %p35 = por %p33, %p34
    %p36 = scmp.ne.s32.totalorder %s25, %s28
    %p37 = scmp.eq.s32.totalorder %s20, 1
    %p38 = por %p36, %p37
    %p39 = scmp.ne.s32.totalorder %s28, %s29
    %p40 = scmp.eq.s32.totalorder %s20, 0
    %p41 = por %p39, %p40
    %p42 = scmp.ne.s32.totalorder %s28, %s29
    %p43 = scmp.eq.s32.totalorder %s21, 1
    %p44 = por %p42, %p43
    %p46 = scmp.ne.s32.totalorder %s29, %s45
    %p47 = scmp.eq.s32.totalorder %s21, 0
    %p48 = por %p46, %p47
    %s49 = ssub.s32 %s15, %s22
    %p50 = scmp.eq.s32.totalorder %s49, 0
    %s52 = sadd.s32 %s51, 1
    %s53 = scalar_select %p50, %s51, %s52
    %p56 = pneg %p50
    %p57 = scmp.eq.s32.totalorder %s15, 1
    %p58 = por %p56, %p57
    %p59 = scmp.ne.s32.totalorder %s51, %s54
    %p60 = scmp.eq.s32.totalorder %s15, 0
    %p61 = por %p59, %p60
    %p62 = scmp.ne.s32.totalorder %s51, %s54
    %p63 = scmp.eq.s32.totalorder %s20, 1
    %p64 = por %p62, %p63
    %p65 = scmp.ne.s32.totalorder %s54, %s55
    %p66 = scmp.eq.s32.totalorder %s20, 0
    %p67 = por %p65, %p66
    %p68 = scmp.ne.s32.totalorder %s54, %s55
    %p69 = scmp.eq.s32.totalorder %s21, 1
    %p70 = por %p68, %p69
    %p72 = scmp.ne.s32.totalorder %s55, %s71
    %p73 = scmp.eq.s32.totalorder %s21, 0
    %p74 = por %p72, %p73
    %s76 = sadd.s32 %s75, 1
    %p79 = scmp.eq.s32.totalorder %s15, 1
    %p80 = scmp.ne.s32.totalorder %s75, %s77
    %p81 = scmp.eq.s32.totalorder %s15, 0
    %p82 = por %p80, %p81
    %p83 = scmp.ne.s32.totalorder %s75, %s77
    %p84 = scmp.eq.s32.totalorder %s20, 1
    %p85 = por %p83, %p84
    %p86 = scmp.ne.s32.totalorder %s77, %s78
    %p87 = scmp.eq.s32.totalorder %s20, 0
    %p88 = por %p86, %p87
    %p89 = scmp.ne.s32.totalorder %s77, %s78
    %p90 = scmp.eq.s32.totalorder %s21, 1
    %p91 = por %p89, %p90
    %p93 = scmp.ne.s32.totalorder %s78, %s92
    %p94 = scmp.eq.s32.totalorder %s21, 0
    %p95 = por %p93, %p94
    %s97 = sadd.s32 %s96, 1
    %p100 = scmp.eq.s32.totalorder %s15, 1
    %p101 = scmp.ne.s32.totalorder %s96, %s98
    %p102 = scmp.eq.s32.totalorder %s15, 0
    %p103 = por %p101, %p102
    %p104 = scmp.ne.s32.totalorder %s96, %s98
    %p105 = scmp.eq.s32.totalorder %s20, 1
    %p106 = por %p104, %p105
    %p107 = scmp.ne.s32.totalorder %s98, %s99
    %p108 = scmp.eq.s32.totalorder %s20, 0
    %p109 = por %p107, %p108
    %p110 = scmp.ne.s32.totalorder %s98, %s99
    %p111 = scmp.eq.s32.totalorder %s21, 1
    %p112 = por %p110, %p111
    %p114 = scmp.ne.s32.totalorder %s99, %s113
    %p115 = scmp.eq.s32.totalorder %s21, 0
    %p116 = por %p114, %p115
    %s118 = sadd.s32 %s117, 1
    %p121 = scmp.eq.s32.totalorder %s15, 1
    %p122 = scmp.ne.s32.totalorder %s117, %s119
    %p123 = scmp.eq.s32.totalorder %s15, 0
    %p124 = por %p122, %p123
    %p125 = scmp.ne.s32.totalorder %s117, %s119
    %p126 = scmp.eq.s32.totalorder %s20, 1
    %p127 = por %p125, %p126
    %p128 = scmp.ne.s32.totalorder %s119, %s120
    %p129 = scmp.eq.s32.totalorder %s20, 0
    %p130 = por %p128, %p129
    %p131 = scmp.ne.s32.totalorder %s119, %s120
    %p132 = scmp.eq.s32.totalorder %s21, 1
    %p133 = por %p131, %p132
    %p135 = scmp.ne.s32.totalorder %s120, %s134
    %p136 = scmp.eq.s32.totalorder %s21, 0
    %p137 = por %p135, %p136
    %s139 = sadd.s32 %s138, 1
    %p142 = scmp.eq.s32.totalorder %s15, 1
    %p143 = scmp.ne.s32.totalorder %s138, %s140
    %p144 = scmp.eq.s32.totalorder %s15, 0
    %p145 = por %p143, %p144
    %p146 = scmp.ne.s32.totalorder %s138, %s140
    %p147 = scmp.eq.s32.totalorder %s20, 1
    %p148 = por %p146, %p147
    %p149 = scmp.ne.s32.totalorder %s140, %s141
    %p150 = scmp.eq.s32.totalorder %s20, 0
    %p151 = por %p149, %p150
    %p152 = scmp.ne.s32.totalorder %s140, %s141
    %p153 = scmp.eq.s32.totalorder %s21, 1
    %p154 = por %p152, %p153
    %p156 = scmp.ne.s32.totalorder %s141, %s155
    %p157 = scmp.eq.s32.totalorder %s21, 0
    %p158 = por %p156, %p157
    %s160 = sadd.s32 %s159, 1
    %p163 = scmp.eq.s32.totalorder %s15, 1
    %p164 = scmp.ne.s32.totalorder %s159, %s161
    %p165 = scmp.eq.s32.totalorder %s15, 0
    %p166 = por %p164, %p165
    %p167 = scmp.ne.s32.totalorder %s159, %s161
    %p168 = scmp.eq.s32.totalorder %s20, 1
    %p169 = por %p167, %p168
    %p170 = scmp.ne.s32.totalorder %s161, %s162
    %p171 = scmp.eq.s32.totalorder %s20, 0
    %p172 = por %p170, %p171
    %p173 = scmp.ne.s32.totalorder %s161, %s162
    %p174 = scmp.eq.s32.totalorder %s21, 1
    %p175 = por %p173, %p174
    %p177 = scmp.ne.s32.totalorder %s162, %s176
    %p178 = scmp.eq.s32.totalorder %s21, 0
    %p179 = por %p177, %p178
    %s180 = ssub.s32 %s15, %s22
    %p181 = scmp.eq.s32.totalorder %s180, 0
    %s183 = sadd.s32 %s182, 1
    %s184 = scalar_select %p181, %s182, %s183
    %p187 = pneg %p181
    %p188 = scmp.eq.s32.totalorder %s15, 1
    %p189 = por %p187, %p188
    %p190 = scmp.ne.s32.totalorder %s182, %s185
    %p191 = scmp.eq.s32.totalorder %s15, 0
    %p192 = por %p190, %p191
    %p193 = scmp.ne.s32.totalorder %s182, %s185
    %p194 = scmp.eq.s32.totalorder %s20, 1
    %p195 = por %p193, %p194
    %p196 = scmp.ne.s32.totalorder %s185, %s186
    %p197 = scmp.eq.s32.totalorder %s20, 0
    %p198 = por %p196, %p197
    %p199 = scmp.ne.s32.totalorder %s185, %s186
    %p200 = scmp.eq.s32.totalorder %s21, 1
    %p201 = por %p199, %p200
    %p203 = scmp.ne.s32.totalorder %s186, %s202
    %p204 = scmp.eq.s32.totalorder %s21, 0
    %p205 = por %p203, %p204
    %s206 = ssub.s32 %s15, %s22
    %p207 = scmp.eq.s32.totalorder %s206, 0
    %s209 = sadd.s32 %s208, 1
    %s210 = scalar_select %p207, %s208, %s209
    %p213 = pneg %p207
    %p214 = scmp.eq.s32.totalorder %s15, 1
    %p215 = por %p213, %p214
    %p216 = scmp.ne.s32.totalorder %s208, %s211
    %p217 = scmp.eq.s32.totalorder %s15, 0
    %p218 = por %p216, %p217
    %p219 = scmp.ne.s32.totalorder %s208, %s211
    %p220 = scmp.eq.s32.totalorder %s20, 1
    %p221 = por %p219, %p220
    %p222 = scmp.ne.s32.totalorder %s211, %s212
    %p223 = scmp.eq.s32.totalorder %s20, 0
    %p224 = por %p222, %p223
    %p225 = scmp.ne.s32.totalorder %s211, %s212
    %p226 = scmp.eq.s32.totalorder %s21, 1
    %p227 = por %p225, %p226
    %p229 = scmp.ne.s32.totalorder %s212, %s228
    %p230 = scmp.eq.s32.totalorder %s21, 0
    %p231 = por %p229, %p230
    %p232 = scmp.le.s32.totalorder 1, %s15
    %p233 = scmp.lt.s32.totalorder %s15, 3
    %p234 = pnand %p232, %p233
    %p235 = pneg %p234
    // Predicated region
    $region9: #{backbone_with_fpn_forward.10} parent=5 // pred_check
      _
    $region10: #{backbone_with_fpn_forward.10} parent=5 // pred_check_branch
      %237 = sbr.rel (%p234) target = $region12
    $region11: #{backbone_with_fpn_forward.10} parent=5 // pred_region
      %s238 = ssub.s32 %s15, 1
      // Predicated region
      $region13: #{backbone_with_fpn_forward.10} parent=11 // pred_check
        %p239 = pneg %p88
      $region14: #{backbone_with_fpn_forward.10} parent=11 // pred_check_branch
        %241 = sbr.rel (%p239) target = $region16
      $region15: #{backbone_with_fpn_forward.10} parent=11 // pred_region
        _
      $region16: #{backbone_with_fpn_forward.10} parent=11 // pred_fallthru
        _
      // Predicated region
      $region17: #{backbone_with_fpn_forward.10} parent=11 // pred_check
        %p242 = pneg %p109
      $region18: #{backbone_with_fpn_forward.10} parent=11 // pred_check_branch
        %244 = sbr.rel (%p242) target = $region20
      $region19: #{backbone_with_fpn_forward.10} parent=11 // pred_region
        _
      $region20: #{backbone_with_fpn_forward.10} parent=11 // pred_fallthru
        _
      // Predicated region
      $region21: #{backbone_with_fpn_forward.10} parent=11 // pred_check
        %p245 = pneg %p130
      $region22: #{backbone_with_fpn_forward.10} parent=11 // pred_check_branch
        %247 = sbr.rel (%p245) target = $region24
      $region23: #{backbone_with_fpn_forward.10} parent=11 // pred_region
        _
      $region24: #{backbone_with_fpn_forward.10} parent=11 // pred_fallthru
        _
      // Predicated region
      $region25: #{backbone_with_fpn_forward.10} parent=11 // pred_check
        %p248 = pneg %p151
      $region26: #{backbone_with_fpn_forward.10} parent=11 // pred_check_branch
        %250 = sbr.rel (%p248) target = $region28
      $region27: #{backbone_with_fpn_forward.10} parent=11 // pred_region
        _
      $region28: #{backbone_with_fpn_forward.10} parent=11 // pred_fallthru
        _
      // Predicated region
      $region29: #{backbone_with_fpn_forward.10} parent=11 // pred_check
        %p251 = pneg %p172
      $region30: #{backbone_with_fpn_forward.10} parent=11 // pred_check_branch
        %253 = sbr.rel (%p251) target = $region32
      $region31: #{backbone_with_fpn_forward.10} parent=11 // pred_region
        _
      $region32: #{backbone_with_fpn_forward.10} parent=11 // pred_fallthru
        _
    $region12: #{backbone_with_fpn_forward.10} parent=5 // pred_fallthru
      _
    %p254 = scmp.lt.s32.totalorder %s15, 2
    // Predicated region
    $region33: #{backbone_with_fpn_forward.10} parent=5 // pred_check
      %p255 = pneg %p254
    $region34: #{backbone_with_fpn_forward.10} parent=5 // pred_check_branch
      %257 = sbr.rel (%p255) target = $region36
    $region35: #{backbone_with_fpn_forward.10} parent=5 // pred_region
      // Predicated region
      $region37: #{backbone_with_fpn_forward.10} parent=35 // pred_check
        %p258 = pneg %p35
      $region38: #{backbone_with_fpn_forward.10} parent=35 // pred_check_branch
        %260 = sbr.rel (%p258) target = $region40
      $region39: #{backbone_with_fpn_forward.10} parent=35 // pred_region
        %p261 = scmp.lt.s32.totalorder %s15, 1
        %s262 = scalar_select %p261, %s15, 1
        %s263 = smul.addr %s262, 2
        %s264 = smul.addr %s263, 4
        %s265 = scalar_lea.vmem %s0, %s264
      $region40: #{backbone_with_fpn_forward.10} parent=35 // pred_fallthru
        _
      // Predicated region
      $region41: #{backbone_with_fpn_forward.10} parent=35 // pred_check
        %p266 = pneg %p61
      $region42: #{backbone_with_fpn_forward.10} parent=35 // pred_check_branch
        %268 = sbr.rel (%p266) target = $region44
      $region43: #{backbone_with_fpn_forward.10} parent=35 // pred_region
        %p269 = scmp.lt.s32.totalorder %s15, 1
        %s270 = scalar_select %p269, %s15, 1
        %s271 = smul.addr %s270, 16
        %s272 = smul.addr %s271, 4
        %s273 = scalar_lea.vmem %s1, %s272
      $region44: #{backbone_with_fpn_forward.10} parent=35 // pred_fallthru
        _
    $region36: #{backbone_with_fpn_forward.10} parent=5 // pred_fallthru
      _
    %p274 = scmp.le.s32.totalorder 1, %s15
    %p275 = scmp.lt.s32.totalorder %s15, 3
    %p276 = pnand %p274, %p275
    %p277 = pneg %p276
    // Predicated region
    $region45: #{backbone_with_fpn_forward.10} parent=5 // pred_check
      _
    $region46: #{backbone_with_fpn_forward.10} parent=5 // pred_check_branch
      %279 = sbr.rel (%p276) target = $region48
    $region47: #{backbone_with_fpn_forward.10} parent=5 // pred_region
      %s280 = ssub.s32 %s15, 1
      %p281 = scmp.lt.s32.totalorder %s20, 1
      %s282 = scalar_select %p281, %s20, 1
      %s283 = smul.addr %s282, 2
      %s284 = smul.addr %s283, 4
      %s285 = scalar_lea.vmem %s0, %s284
      %p286 = pneg %p41
      %p287 = pneg %p38
      %p288 = scmp.lt.s32.totalorder %s20, 1
      %s289 = scalar_select %p288, %s20, 1
      %s290 = smul.addr %s289, 16
      %s291 = smul.addr %s290, 4
      %s292 = scalar_lea.vmem %s1, %s291
      %p293 = pneg %p67
      %p294 = pneg %p64
      %p295 = pneg %p88
      %p296 = pneg %p85
      %p297 = pneg %p109
      %p298 = pneg %p106
      %p299 = pneg %p130
      %p300 = pneg %p127
      %p301 = pneg %p151
      %p302 = pneg %p148
      %p303 = pneg %p172
      %p304 = pneg %p169
      %p305 = pneg %p198
      %p306 = pneg %p195
      %p307 = scmp.lt.s32.totalorder %s20, 1
      %s308 = scalar_select %p307, %s20, 1
      %s309 = smul.addr %s308, 16
      %s310 = smul.addr %s309, 4
      %s311 = scalar_lea.vmem %s7, %s310
      %p312 = pneg %p224
      %p313 = pneg %p221
      %p314 = scmp.lt.s32.totalorder %s20, 1
      %s315 = scalar_select %p314, %s20, 1
      %s316 = smul.addr %s315, 2
      %s317 = smul.addr %s316, 8
      %s318 = scalar_lea.vmem %s8, %s317
      %p319 = scmp.lt.s32.totalorder %s20, 1
      %s320 = scalar_select %p319, %s20, 1
      %s321 = smul.addr %s320, 2
      %s322 = smul.addr %s321, 4
      %s323 = scalar_lea.vmem %s0, %s322
      %p324 = scmp.lt.s32.totalorder %s20, 1
      %s325 = scalar_select %p324, %s20, 1
      %s326 = smul.addr %s325, 16
      %s327 = smul.addr %s326, 4
      %s328 = scalar_lea.vmem %s1, %s327
      %p329 = scmp.lt.s32.totalorder %s20, 1
      %s330 = scalar_select %p329, %s20, 1
      %s331 = smul.addr %s330, 16
      %s332 = smul.addr %s331, 4
      %s333 = scalar_lea.vmem %s7, %s332
      %p334 = scmp.lt.s32.totalorder %s20, 1
      %s335 = scalar_select %p334, %s20, 1
      %s336 = smul.addr %s335, 2
      %s337 = smul.addr %s336, 8
      %s338 = scalar_lea.vmem %s8, %s337
      %v340 = vld [vmem:[%s323] sm:$0xf]
      %v341 = vld [vmem:[%s323 + $0x4] sm:$0xf]
      %v342 = vld [vmem:[%s3] sm:$0xf]
      %v343 = vld [vmem:[%s3 + $0x4] sm:$0xf]
      %v344 = vld [vmem:[%s3 + $0x8] sm:$0xf]
      %v345 = vld [vmem:[%s3 + $0xc] sm:$0xf]
      %v346 = vld [vmem:[%s3 + $0x10] sm:$0xf]
      %v347 = vld [vmem:[%s3 + $0x14] sm:$0xf]
      %v348 = vld [vmem:[%s3 + $0x18] sm:$0xf]
      %v349 = vld [vmem:[%s3 + $0x1c] sm:$0xf]
      %v350 = vld [vmem:[%s3 + $0x20] sm:$0xf]
      %v351 = vld [vmem:[%s3 + $0x24] sm:$0xf]
      %v352 = vld [vmem:[%s3 + $0x28] sm:$0xf]
      %v353 = vld [vmem:[%s3 + $0x2c] sm:$0xf]
      %v354 = vld [vmem:[%s3 + $0x30] sm:$0xf]
      %v355 = vld [vmem:[%s3 + $0x34] sm:$0xf]
      %v356 = vld [vmem:[%s3 + $0x38] sm:$0xf]
      %v357 = vld [vmem:[%s3 + $0x3c] sm:$0xf]
      %v358 = vld [vmem:[%s4] sm:$0x1]
      %v360 = vlaneseq
      %v361 = vshrl.u32 %v360, 7
      %v362 = vsub.s32 0, %v361
      %v363 = vrot.slane %v358, %v362
      %v367 = vunpack.c.l.b16 %v340
      %v368 = vunpack.c.l.b16 %v341
      %v369 = vpack.c.b16 %v368, %v367
      %v387 = vunpack.c.l.b16 %v342
      %v388 = vunpack.c.l.b16 %v343
      %v389 = vunpack.c.l.b16 %v344
      %v390 = vunpack.c.l.b16 %v345
      %v391 = vunpack.c.l.b16 %v346
      %v392 = vunpack.c.l.b16 %v347
      %v393 = vunpack.c.l.b16 %v348
      %v394 = vunpack.c.l.b16 %v349
      %v395 = vunpack.c.l.b16 %v350
      %v396 = vunpack.c.l.b16 %v351
      %v397 = vunpack.c.l.b16 %v352
      %v398 = vunpack.c.l.b16 %v353
      %v399 = vunpack.c.l.b16 %v354
      %v400 = vunpack.c.l.b16 %v355
      %v401 = vunpack.c.l.b16 %v356
      %v402 = vunpack.c.l.b16 %v357
      %v403 = vpack.c.b16 %v388, %v387
      %v404 = vpack.c.b16 %v390, %v389
      %v405 = vpack.c.b16 %v392, %v391
      %v406 = vpack.c.b16 %v394, %v393
      %v407 = vpack.c.b16 %v396, %v395
      %v408 = vpack.c.b16 %v398, %v397
      %v409 = vpack.c.b16 %v400, %v399
      %v410 = vpack.c.b16 %v402, %v401
      %419 = vmatprep.subr.bf16.mxu0 0
      %420 = vmatpush1.bf16.msra.mxu0 %v403
      %421 = vmatprep.subr.bf16.mxu0 0
      %422 = vmatpush1.bf16.msra.mxu0 %v404
      %423 = vmatprep.subr.bf16.mxu0 0
      %424 = vmatpush1.bf16.msra.mxu0 %v405
      %425 = vmatprep.subr.bf16.mxu0 0
      %426 = vmatpush1.bf16.msra.mxu0 %v406
      %427 = vmatprep.subr.bf16.mxu0 0
      %428 = vmatpush1.bf16.msra.mxu0 %v407
      %429 = vmatprep.subr.bf16.mxu0 0
      %430 = vmatpush1.bf16.msra.mxu0 %v408
      %431 = vmatprep.subr.bf16.mxu0 0
      %432 = vmatpush1.bf16.msra.mxu0 %v409
      %433 = vmatprep.subr.bf16.mxu0 0
      %434 = vmatpush1.bf16.msra.mxu0 %v410
      %435 = vmatprep.subr.bf16.mxu0 0
      %436 = vmatpush1.bf16.msra.mxu0 0
      %437 = vmatprep.subr.bf16.mxu0 0
      %438 = vmatpush1.bf16.msra.mxu0 0
      %439 = vmatprep.subr.bf16.mxu0 0
      %440 = vmatpush1.bf16.msra.mxu0 0
      %441 = vmatprep.subr.bf16.mxu0 0
      %442 = vmatpush1.bf16.msra.mxu0 0
      %443 = vmatprep.subr.bf16.mxu0 0
      %444 = vmatpush1.bf16.msra.mxu0 0
      %445 = vmatprep.subr.bf16.mxu0 0
      %446 = vmatpush1.bf16.msra.mxu0 0
      %447 = vmatprep.subr.bf16.mxu0 0
      %448 = vmatpush1.bf16.msra.mxu0 0
      %449 = vmatprep.subr.bf16.mxu0 0
      %450 = vmatpush1.bf16.msra.mxu0 0
      %451 = vmatprep.mubr.bf16.mxu0 0
      %452 = vmatmul.mubr.bf16.gmra.mrb[0].mxu0 %v369
      %v453 = vpop.f32.mrb[0].mxu0
      %v454 = vadd.f32 %v363, %v453
      %v455 = vpop.f32.mrb[0].mxu0
      %v456 = vpop.f32.mrb[0].mxu0
      %v457 = vadd.f32 %v363, %v456
      %v458 = vpop.f32.mrb[0].mxu0
      %459 = vdwg.mxu0
      %v460 = vld [vmem:[%s2] sm:$0xf]
      %v461 = vld [vmem:[%s2 + $0x4] sm:$0xf]
      %v462 = vld [vmem:[%s328] sm:$0xf]
      %v463 = vld [vmem:[%s328 + $0x4] sm:$0xf]
      %v464 = vld [vmem:[%s328 + $0x8] sm:$0xf]
      %v465 = vld [vmem:[%s328 + $0xc] sm:$0xf]
      %v466 = vld [vmem:[%s328 + $0x10] sm:$0xf]
      %v467 = vld [vmem:[%s328 + $0x14] sm:$0xf]
      %v468 = vld [vmem:[%s328 + $0x18] sm:$0xf]
      %v469 = vld [vmem:[%s328 + $0x1c] sm:$0xf]
      %v470 = vld [vmem:[%s328 + $0x20] sm:$0xf]
      %v471 = vld [vmem:[%s328 + $0x24] sm:$0xf]
      %v472 = vld [vmem:[%s328 + $0x28] sm:$0xf]
      %v473 = vld [vmem:[%s328 + $0x2c] sm:$0xf]
      %v474 = vld [vmem:[%s328 + $0x30] sm:$0xf]
      %v475 = vld [vmem:[%s328 + $0x34] sm:$0xf]
      %v476 = vld [vmem:[%s328 + $0x38] sm:$0xf]
      %v477 = vld [vmem:[%s328 + $0x3c] sm:$0xf]
      %v480 = vunpack.c.l.b16 %v460
      %v481 = vunpack.c.l.b16 %v461
      %v482 = vpack.c.b16 %v481, %v480
      %v500 = vunpack.c.l.b16 %v462
      %v501 = vunpack.c.l.b16 %v463
      %v502 = vunpack.c.l.b16 %v464
      %v503 = vunpack.c.l.b16 %v465
      %v504 = vunpack.c.l.b16 %v466
      %v505 = vunpack.c.l.b16 %v467
      %v506 = vunpack.c.l.b16 %v468
      %v507 = vunpack.c.l.b16 %v469
      %v508 = vunpack.c.l.b16 %v470
      %v509 = vunpack.c.l.b16 %v471
      %v510 = vunpack.c.l.b16 %v472
      %v511 = vunpack.c.l.b16 %v473
      %v512 = vunpack.c.l.b16 %v474
      %v513 = vunpack.c.l.b16 %v475
      %v514 = vunpack.c.l.b16 %v476
      %v515 = vunpack.c.l.b16 %v477
      %v516 = vpack.c.b16 %v501, %v500
      %v517 = vpack.c.b16 %v503, %v502
      %v518 = vpack.c.b16 %v505, %v504
      %v519 = vpack.c.b16 %v507, %v506
      %v520 = vpack.c.b16 %v509, %v508
      %v521 = vpack.c.b16 %v511, %v510
      %v522 = vpack.c.b16 %v513, %v512
      %v523 = vpack.c.b16 %v515, %v514
      %532 = vmatprep.subr.bf16.mxu0 0
      %533 = vmatpush1.bf16.msra.mxu0 %v516
      %534 = vmatprep.subr.bf16.mxu0 0
      %535 = vmatpush1.bf16.msra.mxu0 %v517
      %536 = vmatprep.subr.bf16.mxu0 0
      %537 = vmatpush1.bf16.msra.mxu0 %v518
      %538 = vmatprep.subr.bf16.mxu0 0
      %539 = vmatpush1.bf16.msra.mxu0 %v519
      %540 = vmatprep.subr.bf16.mxu0 0
      %541 = vmatpush1.bf16.msra.mxu0 %v520
      %542 = vmatprep.subr.bf16.mxu0 0
      %543 = vmatpush1.bf16.msra.mxu0 %v521
      %544 = vmatprep.subr.bf16.mxu0 0
      %545 = vmatpush1.bf16.msra.mxu0 %v522
      %546 = vmatprep.subr.bf16.mxu0 0
      %547 = vmatpush1.bf16.msra.mxu0 %v523
      %548 = vmatprep.subr.bf16.mxu0 0
      %549 = vmatpush1.bf16.msra.mxu0 0
      %550 = vmatprep.subr.bf16.mxu0 0
      %551 = vmatpush1.bf16.msra.mxu0 0
      %552 = vmatprep.subr.bf16.mxu0 0
      %553 = vmatpush1.bf16.msra.mxu0 0
      %554 = vmatprep.subr.bf16.mxu0 0
      %555 = vmatpush1.bf16.msra.mxu0 0
      %556 = vmatprep.subr.bf16.mxu0 0
      %557 = vmatpush1.bf16.msra.mxu0 0
      %558 = vmatprep.subr.bf16.mxu0 0
      %559 = vmatpush1.bf16.msra.mxu0 0
      %560 = vmatprep.subr.bf16.mxu0 0
      %561 = vmatpush1.bf16.msra.mxu0 0
      %562 = vmatprep.subr.bf16.mxu0 0
      %563 = vmatpush1.bf16.msra.mxu0 0
      %564 = vmatprep.mubr.bf16.mxu0 0
      %565 = vmatmul.mubr.bf16.gmra.mrb[0].mxu0 %v482
      %v566 = vpop.f32.mrb[0].mxu0
      %v567 = vadd.f32 0.0, %v566
      %v568 = vpop.f32.mrb[0].mxu0
      %v569 = vpop.f32.mrb[0].mxu0
      %v570 = vadd.f32 0.0, %v569
      %v571 = vpop.f32.mrb[0].mxu0
      %572 = vdwg.mxu0
      %v573 = vadd.f32 %v454, %v567
      %v574 = vadd.f32 %v457, %v570
      %575 = vst [vmem:[%s333] sm:$0xf] 0
      %576 = vst [vmem:[%s333 + $0x4] sm:$0xf] 0
      %577 = vst [vmem:[%s333 + $0x8] sm:$0xf] 0
      %578 = vst [vmem:[%s333 + $0xc] sm:$0xf] 0
      %579 = vst [vmem:[%s333 + $0x10] sm:$0xf] 0
      %580 = vst [vmem:[%s333 + $0x14] sm:$0xf] 0
      %581 = vst [vmem:[%s333 + $0x18] sm:$0xf] 0
      %582 = vst [vmem:[%s333 + $0x1c] sm:$0xf] 0
      %583 = vst [vmem:[%s333 + $0x20] sm:$0xf] 0
      %584 = vst [vmem:[%s333 + $0x24] sm:$0xf] 0
      %585 = vst [vmem:[%s333 + $0x28] sm:$0xf] 0
      %586 = vst [vmem:[%s333 + $0x2c] sm:$0xf] 0
      %587 = vst [vmem:[%s333 + $0x30] sm:$0xf] 0
      %588 = vst [vmem:[%s333 + $0x34] sm:$0xf] 0
      %589 = vst [vmem:[%s333 + $0x38] sm:$0xf] 0
      %590 = vst [vmem:[%s333 + $0x3c] sm:$0xf] 0
      %v591 = vpack.c.bf16 %v574, %v573
      %v593 = vunpack.c.l.b16 %v591
      %v594 = vunpack.c.h.b16 %v591
      %v595 = vpack.c.b16 %v593, %v593
      %v596 = vpack.c.b16 %v594, %v594
      %599 = vst [vmem:[%s333] sm:$0xf] %v595
      %600 = vst [vmem:[%s333 + $0x4] sm:$0xf] %v596
      %601 = vst [vmem:[#allocation2] sm:$0xff] 0.0
      %602 = vst [vmem:[#allocation2 + $0x8] sm:$0xff] 0.0
      %603 = vst [vmem:[#allocation2 + $0x10] sm:$0xff] 0.0
      %604 = vst [vmem:[#allocation2 + $0x18] sm:$0xff] 0.0
      %605 = vst [vmem:[#allocation2 + $0x8] sm:$0xff] %v573
      %606 = vst [vmem:[#allocation2 + $0x10] sm:$0xff] %v574
      %v607 = vlaneseq
      %v608 = vshrl.u32 %v607, 7
      %v609 = vadd.s32 %v608, 8
      %v610 = vand.u32 %v608, 3
      %v611 = vand.u32 %v609, 3
      %v612 = vld [vmem:[#allocation2 + $0x3] sm:$0xff]
      %v613 = vld [vmem:[#allocation2 + $0xb] sm:$0xff]
      %v614 = vadd.s32 %v610, 4294967295
      %v615 = vadd.s32 %v611, 4294967295
      %vm616 = vcmp.ge.s32.totalorder %v614, 0
      %vm617 = vcmp.ge.s32.totalorder %v615, 0
      %vm618 = vcmp.lt.s32.totalorder %v614, 4
      %vm619 = vcmp.lt.s32.totalorder %v615, 4
      %vm620 = vmand %vm616, %vm618
      %vm621 = vmand %vm617, %vm619
      %v622 = vsel %vm620, 1, 0
      %v623 = vsel %vm621, 1, 0
      %vm624 = vcmp.eq.s32.totalorder %v622, 1
      %vm625 = vcmp.eq.s32.totalorder %v623, 1
      %v626 = vsel %vm624, %v612, 0.0
      %v627 = vsel %vm625, %v613, 0.0
      %v628 = vpack.c.bf16 %v627, %v626
      %v629 = vld [vmem:[%s5] sm:$0xf]
      %v630 = vld [vmem:[%s5 + $0x4] sm:$0xf]
      %v631 = vld [vmem:[%s5 + $0x8] sm:$0xf]
      %v632 = vld [vmem:[%s5 + $0xc] sm:$0xf]
      %v633 = vld [vmem:[%s5 + $0x10] sm:$0xf]
      %v634 = vld [vmem:[%s5 + $0x14] sm:$0xf]
      %v635 = vld [vmem:[%s5 + $0x18] sm:$0xf]
      %v636 = vld [vmem:[%s5 + $0x1c] sm:$0xf]
      %v637 = vld [vmem:[%s5 + $0x20] sm:$0xf]
      %v638 = vld [vmem:[%s5 + $0x24] sm:$0xf]
      %v639 = vld [vmem:[%s5 + $0x28] sm:$0xf]
      %v640 = vld [vmem:[%s5 + $0x2c] sm:$0xf]
      %v641 = vld [vmem:[%s5 + $0x30] sm:$0xf]
      %v642 = vld [vmem:[%s5 + $0x34] sm:$0xf]
      %v643 = vld [vmem:[%s5 + $0x38] sm:$0xf]
      %v644 = vld [vmem:[%s5 + $0x3c] sm:$0xf]
      %v645 = vld [vmem:[#allocation2 + $0x4] sm:$0xff]
      %v646 = vld [vmem:[#allocation2 + $0xc] sm:$0xff]
      %v647 = vpack.c.bf16 %v646, %v645
      %s648 = scalar_lea.vmem %s5, 64
      %v649 = vld [vmem:[%s648] sm:$0xf]
      %v650 = vld [vmem:[%s648 + $0x4] sm:$0xf]
      %v651 = vld [vmem:[%s648 + $0x8] sm:$0xf]
      %v652 = vld [vmem:[%s648 + $0xc] sm:$0xf]
      %v653 = vld [vmem:[%s648 + $0x10] sm:$0xf]
      %v654 = vld [vmem:[%s648 + $0x14] sm:$0xf]
      %v655 = vld [vmem:[%s648 + $0x18] sm:$0xf]
      %v656 = vld [vmem:[%s648 + $0x1c] sm:$0xf]
      %v657 = vld [vmem:[%s648 + $0x20] sm:$0xf]
      %v658 = vld [vmem:[%s648 + $0x24] sm:$0xf]
      %v659 = vld [vmem:[%s648 + $0x28] sm:$0xf]
      %v660 = vld [vmem:[%s648 + $0x2c] sm:$0xf]
      %v661 = vld [vmem:[%s648 + $0x30] sm:$0xf]
      %v662 = vld [vmem:[%s648 + $0x34] sm:$0xf]
      %v663 = vld [vmem:[%s648 + $0x38] sm:$0xf]
      %v664 = vld [vmem:[%s648 + $0x3c] sm:$0xf]
      %v681 = vunpack.c.l.b16 %v649
      %v682 = vunpack.c.l.b16 %v650
      %v683 = vunpack.c.l.b16 %v651
      %v684 = vunpack.c.l.b16 %v652
      %v685 = vunpack.c.l.b16 %v653
      %v686 = vunpack.c.l.b16 %v654
      %v687 = vunpack.c.l.b16 %v655
      %v688 = vunpack.c.l.b16 %v656
      %v689 = vunpack.c.l.b16 %v657
      %v690 = vunpack.c.l.b16 %v658
      %v691 = vunpack.c.l.b16 %v659
      %v692 = vunpack.c.l.b16 %v660
      %v693 = vunpack.c.l.b16 %v661
      %v694 = vunpack.c.l.b16 %v662
      %v695 = vunpack.c.l.b16 %v663
      %v696 = vunpack.c.l.b16 %v664
      %v697 = vpack.c.b16 %v682, %v681
      %v698 = vpack.c.b16 %v684, %v683
      %v699 = vpack.c.b16 %v686, %v685
      %v700 = vpack.c.b16 %v688, %v687
      %v701 = vpack.c.b16 %v690, %v689
      %v702 = vpack.c.b16 %v692, %v691
      %v703 = vpack.c.b16 %v694, %v693
      %v704 = vpack.c.b16 %v696, %v695
      %713 = vmatprep.subr.bf16.mxu0 0
      %714 = vmatpush1.bf16.msra.mxu0 %v697
      %715 = vmatprep.subr.bf16.mxu0 0
      %716 = vmatpush1.bf16.msra.mxu0 %v698
      %717 = vmatprep.subr.bf16.mxu0 0
      %718 = vmatpush1.bf16.msra.mxu0 %v699
      %719 = vmatprep.subr.bf16.mxu0 0
      %720 = vmatpush1.bf16.msra.mxu0 %v700
      %721 = vmatprep.subr.bf16.mxu0 0
      %722 = vmatpush1.bf16.msra.mxu0 %v701
      %723 = vmatprep.subr.bf16.mxu0 0
      %724 = vmatpush1.bf16.msra.mxu0 %v702
      %725 = vmatprep.subr.bf16.mxu0 0
      %726 = vmatpush1.bf16.msra.mxu0 %v703
      %727 = vmatprep.subr.bf16.mxu0 0
      %728 = vmatpush1.bf16.msra.mxu0 %v704
      %729 = vmatprep.subr.bf16.mxu0 0
      %730 = vmatpush1.bf16.msra.mxu0 0
      %731 = vmatprep.subr.bf16.mxu0 0
      %732 = vmatpush1.bf16.msra.mxu0 0
      %733 = vmatprep.subr.bf16.mxu0 0
      %734 = vmatpush1.bf16.msra.mxu0 0
      %735 = vmatprep.subr.bf16.mxu0 0
      %736 = vmatpush1.bf16.msra.mxu0 0
      %737 = vmatprep.subr.bf16.mxu0 0
      %738 = vmatpush1.bf16.msra.mxu0 0
      %739 = vmatprep.subr.bf16.mxu0 0
      %740 = vmatpush1.bf16.msra.mxu0 0
      %741 = vmatprep.subr.bf16.mxu0 0
      %742 = vmatpush1.bf16.msra.mxu0 0
      %743 = vmatprep.subr.bf16.mxu0 0
      %744 = vmatpush1.bf16.msra.mxu0 0
      %745 = vmatprep.mubr.bf16.mxu0 0
      %746 = vmatmul.mubr.bf16.gmra.mrb[0].mxu0 %v647
      %v747 = vpop.f32.mrb[0].mxu0
      %v748 = vadd.f32 0.0, %v747
      %v749 = vpop.f32.mrb[0].mxu0
      %v750 = vpop.f32.mrb[0].mxu0
      %v751 = vadd.f32 0.0, %v750
      %v752 = vpop.f32.mrb[0].mxu0
      %753 = vdwg.mxu0
      %v770 = vunpack.c.l.b16 %v629
      %v771 = vunpack.c.l.b16 %v630
      %v772 = vunpack.c.l.b16 %v631
      %v773 = vunpack.c.l.b16 %v632
      %v774 = vunpack.c.l.b16 %v633
      %v775 = vunpack.c.l.b16 %v634
      %v776 = vunpack.c.l.b16 %v635
      %v777 = vunpack.c.l.b16 %v636
      %v778 = vunpack.c.l.b16 %v637
      %v779 = vunpack.c.l.b16 %v638
      %v780 = vunpack.c.l.b16 %v639
      %v781 = vunpack.c.l.b16 %v640
      %v782 = vunpack.c.l.b16 %v641
      %v783 = vunpack.c.l.b16 %v642
      %v784 = vunpack.c.l.b16 %v643
      %v785 = vunpack.c.l.b16 %v644
      %v786 = vpack.c.b16 %v771, %v770
      %v787 = vpack.c.b16 %v773, %v772
      %v788 = vpack.c.b16 %v775, %v774
      %v789 = vpack.c.b16 %v777, %v776
      %v790 = vpack.c.b16 %v779, %v778
      %v791 = vpack.c.b16 %v781, %v780
      %v792 = vpack.c.b16 %v783, %v782
      %v793 = vpack.c.b16 %v785, %v784
      %802 = vmatprep.subr.bf16.mxu0 0
      %803 = vmatpush1.bf16.msra.mxu0 %v786
      %804 = vmatprep.subr.bf16.mxu0 0
      %805 = vmatpush1.bf16.msra.mxu0 %v787
      %806 = vmatprep.subr.bf16.mxu0 0
      %807 = vmatpush1.bf16.msra.mxu0 %v788
      %808 = vmatprep.subr.bf16.mxu0 0
      %809 = vmatpush1.bf16.msra.mxu0 %v789
      %810 = vmatprep.subr.bf16.mxu0 0
      %811 = vmatpush1.bf16.msra.mxu0 %v790
      %812 = vmatprep.subr.bf16.mxu0 0
      %813 = vmatpush1.bf16.msra.mxu0 %v791
      %814 = vmatprep.subr.bf16.mxu0 0
      %815 = vmatpush1.bf16.msra.mxu0 %v792
      %816 = vmatprep.subr.bf16.mxu0 0
      %817 = vmatpush1.bf16.msra.mxu0 %v793
      %818 = vmatprep.subr.bf16.mxu0 0
      %819 = vmatpush1.bf16.msra.mxu0 0
      %820 = vmatprep.subr.bf16.mxu0 0
      %821 = vmatpush1.bf16.msra.mxu0 0
      %822 = vmatprep.subr.bf16.mxu0 0
      %823 = vmatpush1.bf16.msra.mxu0 0
      %824 = vmatprep.subr.bf16.mxu0 0
      %825 = vmatpush1.bf16.msra.mxu0 0
      %826 = vmatprep.subr.bf16.mxu0 0
      %827 = vmatpush1.bf16.msra.mxu0 0
      %828 = vmatprep.subr.bf16.mxu0 0
      %829 = vmatpush1.bf16.msra.mxu0 0
      %830 = vmatprep.subr.bf16.mxu0 0
      %831 = vmatpush1.bf16.msra.mxu0 0
      %832 = vmatprep.subr.bf16.mxu0 0
      %833 = vmatpush1.bf16.msra.mxu0 0
      %834 = vmatprep.mubr.bf16.mxu0 0
      %835 = vmatmul.mubr.bf16.gmra.mrb[0].mxu0 %v628
      %v836 = vpop.f32.mrb[0].mxu0
      %v837 = vadd.f32 %v748, %v836
      %v838 = vpop.f32.mrb[0].mxu0
      %v839 = vpop.f32.mrb[0].mxu0
      %v840 = vadd.f32 %v751, %v839
      %v841 = vpop.f32.mrb[0].mxu0
      %842 = vdwg.mxu0
      %v843 = vld [vmem:[#allocation2 + $0x5] sm:$0xff]
      %v844 = vld [vmem:[#allocation2 + $0xd] sm:$0xff]
      %v845 = vadd.s32 %v610, 1
      %v846 = vadd.s32 %v611, 1
      %vm847 = vcmp.ge.s32.totalorder %v845, 0
      %vm848 = vcmp.ge.s32.totalorder %v846, 0
      %vm849 = vcmp.lt.s32.totalorder %v845, 4
      %vm850 = vcmp.lt.s32.totalorder %v846, 4
      %vm851 = vmand %vm847, %vm849
      %vm852 = vmand %vm848, %vm850
      %v853 = vsel %vm851, 1, 0
      %v854 = vsel %vm852, 1, 0
      %vm855 = vcmp.eq.s32.totalorder %v853, 1
      %vm856 = vcmp.eq.s32.totalorder %v854, 1
      %v857 = vsel %vm855, %v843, 0.0
      %v858 = vsel %vm856, %v844, 0.0
      %v859 = vpack.c.bf16 %v858, %v857
      %s860 = scalar_lea.vmem %s5, 128
      %v861 = vld [vmem:[%s860] sm:$0xf]
      %v862 = vld [vmem:[%s860 + $0x4] sm:$0xf]
      %v863 = vld [vmem:[%s860 + $0x8] sm:$0xf]
      %v864 = vld [vmem:[%s860 + $0xc] sm:$0xf]
      %v865 = vld [vmem:[%s860 + $0x10] sm:$0xf]
      %v866 = vld [vmem:[%s860 + $0x14] sm:$0xf]
      %v867 = vld [vmem:[%s860 + $0x18] sm:$0xf]
      %v868 = vld [vmem:[%s860 + $0x1c] sm:$0xf]
      %v869 = vld [vmem:[%s860 + $0x20] sm:$0xf]
      %v870 = vld [vmem:[%s860 + $0x24] sm:$0xf]
      %v871 = vld [vmem:[%s860 + $0x28] sm:$0xf]
      %v872 = vld [vmem:[%s860 + $0x2c] sm:$0xf]
      %v873 = vld [vmem:[%s860 + $0x30] sm:$0xf]
      %v874 = vld [vmem:[%s860 + $0x34] sm:$0xf]
      %v875 = vld [vmem:[%s860 + $0x38] sm:$0xf]
      %v876 = vld [vmem:[%s860 + $0x3c] sm:$0xf]
      %v893 = vunpack.c.l.b16 %v861
      %v894 = vunpack.c.l.b16 %v862
      %v895 = vunpack.c.l.b16 %v863
      %v896 = vunpack.c.l.b16 %v864
      %v897 = vunpack.c.l.b16 %v865
      %v898 = vunpack.c.l.b16 %v866
      %v899 = vunpack.c.l.b16 %v867
      %v900 = vunpack.c.l.b16 %v868
      %v901 = vunpack.c.l.b16 %v869
      %v902 = vunpack.c.l.b16 %v870
      %v903 = vunpack.c.l.b16 %v871
      %v904 = vunpack.c.l.b16 %v872
      %v905 = vunpack.c.l.b16 %v873
      %v906 = vunpack.c.l.b16 %v874
      %v907 = vunpack.c.l.b16 %v875
      %v908 = vunpack.c.l.b16 %v876
      %v909 = vpack.c.b16 %v894, %v893
      %v910 = vpack.c.b16 %v896, %v895
      %v911 = vpack.c.b16 %v898, %v897
      %v912 = vpack.c.b16 %v900, %v899
      %v913 = vpack.c.b16 %v902, %v901
      %v914 = vpack.c.b16 %v904, %v903
      %v915 = vpack.c.b16 %v906, %v905
      %v916 = vpack.c.b16 %v908, %v907
      %925 = vmatprep.subr.bf16.mxu0 0
      %926 = vmatpush1.bf16.msra.mxu0 %v909
      %927 = vmatprep.subr.bf16.mxu0 0
      %928 = vmatpush1.bf16.msra.mxu0 %v910
      %929 = vmatprep.subr.bf16.mxu0 0
      %930 = vmatpush1.bf16.msra.mxu0 %v911
      %931 = vmatprep.subr.bf16.mxu0 0
      %932 = vmatpush1.bf16.msra.mxu0 %v912
      %933 = vmatprep.subr.bf16.mxu0 0
      %934 = vmatpush1.bf16.msra.mxu0 %v913
      %935 = vmatprep.subr.bf16.mxu0 0
      %936 = vmatpush1.bf16.msra.mxu0 %v914
      %937 = vmatprep.subr.bf16.mxu0 0
      %938 = vmatpush1.bf16.msra.mxu0 %v915
      %939 = vmatprep.subr.bf16.mxu0 0
      %940 = vmatpush1.bf16.msra.mxu0 %v916
      %941 = vmatprep.subr.bf16.mxu0 0
      %942 = vmatpush1.bf16.msra.mxu0 0
      %943 = vmatprep.subr.bf16.mxu0 0
      %944 = vmatpush1.bf16.msra.mxu0 0
      %945 = vmatprep.subr.bf16.mxu0 0
      %946 = vmatpush1.bf16.msra.mxu0 0
      %947 = vmatprep.subr.bf16.mxu0 0
      %948 = vmatpush1.bf16.msra.mxu0 0
      %949 = vmatprep.subr.bf16.mxu0 0
      %950 = vmatpush1.bf16.msra.mxu0 0
      %951 = vmatprep.subr.bf16.mxu0 0
      %952 = vmatpush1.bf16.msra.mxu0 0
      %953 = vmatprep.subr.bf16.mxu0 0
      %954 = vmatpush1.bf16.msra.mxu0 0
      %955 = vmatprep.subr.bf16.mxu0 0
      %956 = vmatpush1.bf16.msra.mxu0 0
      %957 = vmatprep.mubr.bf16.mxu0 0
      %958 = vmatmul.mubr.bf16.gmra.mrb[0].mxu0 %v859
      %v959 = vpop.f32.mrb[0].mxu0
      %v960 = vadd.f32 0.0, %v959
      %v961 = vpop.f32.mrb[0].mxu0
      %v962 = vpop.f32.mrb[0].mxu0
      %v963 = vadd.f32 0.0, %v962
      %v964 = vpop.f32.mrb[0].mxu0
      %965 = vdwg.mxu0
      %v966 = vadd.f32 %v837, %v960
      %v967 = vadd.f32 %v840, %v963
      %v968 = vld [vmem:[#allocation2 + $0x7] sm:$0xff]
      %v969 = vld [vmem:[#allocation2 + $0xf] sm:$0xff]
      %v970 = vsel %vm624, %v968, 0.0
      %v971 = vsel %vm625, %v969, 0.0
      %v972 = vpack.c.bf16 %v971, %v970
      %s973 = scalar_lea.vmem %s5, 192
      %v974 = vld [vmem:[%s973] sm:$0xf]
      %v975 = vld [vmem:[%s973 + $0x4] sm:$0xf]
      %v976 = vld [vmem:[%s973 + $0x8] sm:$0xf]
      %v977 = vld [vmem:[%s973 + $0xc] sm:$0xf]
      %v978 = vld [vmem:[%s973 + $0x10] sm:$0xf]
      %v979 = vld [vmem:[%s973 + $0x14] sm:$0xf]
      %v980 = vld [vmem:[%s973 + $0x18] sm:$0xf]
      %v981 = vld [vmem:[%s973 + $0x1c] sm:$0xf]
      %v982 = vld [vmem:[%s973 + $0x20] sm:$0xf]
      %v983 = vld [vmem:[%s973 + $0x24] sm:$0xf]
      %v984 = vld [vmem:[%s973 + $0x28] sm:$0xf]
      %v985 = vld [vmem:[%s973 + $0x2c] sm:$0xf]
      %v986 = vld [vmem:[%s973 + $0x30] sm:$0xf]
      %v987 = vld [vmem:[%s973 + $0x34] sm:$0xf]
      %v988 = vld [vmem:[%s973 + $0x38] sm:$0xf]
      %v989 = vld [vmem:[%s973 + $0x3c] sm:$0xf]
      %v1006 = vunpack.c.l.b16 %v974
      %v1007 = vunpack.c.l.b16 %v975
      %v1008 = vunpack.c.l.b16 %v976
      %v1009 = vunpack.c.l.b16 %v977
      %v1010 = vunpack.c.l.b16 %v978
      %v1011 = vunpack.c.l.b16 %v979
      %v1012 = vunpack.c.l.b16 %v980
      %v1013 = vunpack.c.l.b16 %v981
      %v1014 = vunpack.c.l.b16 %v982
      %v1015 = vunpack.c.l.b16 %v983
      %v1016 = vunpack.c.l.b16 %v984
      %v1017 = vunpack.c.l.b16 %v985
      %v1018 = vunpack.c.l.b16 %v986
      %v1019 = vunpack.c.l.b16 %v987
      %v1020 = vunpack.c.l.b16 %v988
      %v1021 = vunpack.c.l.b16 %v989
      %v1022 = vpack.c.b16 %v1007, %v1006
      %v1023 = vpack.c.b16 %v1009, %v1008
      %v1024 = vpack.c.b16 %v1011, %v1010
      %v1025 = vpack.c.b16 %v1013, %v1012
      %v1026 = vpack.c.b16 %v1015, %v1014
      %v1027 = vpack.c.b16 %v1017, %v1016
      %v1028 = vpack.c.b16 %v1019, %v1018
      %v1029 = vpack.c.b16 %v1021, %v1020
      %1038 = vmatprep.subr.bf16.mxu0 0
      %1039 = vmatpush1.bf16.msra.mxu0 %v1022
      %1040 = vmatprep.subr.bf16.mxu0 0
      %1041 = vmatpush1.bf16.msra.mxu0 %v1023
      %1042 = vmatprep.subr.bf16.mxu0 0
      %1043 = vmatpush1.bf16.msra.mxu0 %v1024
      %1044 = vmatprep.subr.bf16.mxu0 0
      %1045 = vmatpush1.bf16.msra.mxu0 %v1025
      %1046 = vmatprep.subr.bf16.mxu0 0
      %1047 = vmatpush1.bf16.msra.mxu0 %v1026
      %1048 = vmatprep.subr.bf16.mxu0 0
      %1049 = vmatpush1.bf16.msra.mxu0 %v1027
      %1050 = vmatprep.subr.bf16.mxu0 0
      %1051 = vmatpush1.bf16.msra.mxu0 %v1028
      %1052 = vmatprep.subr.bf16.mxu0 0
      %1053 = vmatpush1.bf16.msra.mxu0 %v1029
      %1054 = vmatprep.subr.bf16.mxu0 0
      %1055 = vmatpush1.bf16.msra.mxu0 0
      %1056 = vmatprep.subr.bf16.mxu0 0
      %1057 = vmatpush1.bf16.msra.mxu0 0
      %1058 = vmatprep.subr.bf16.mxu0 0
      %1059 = vmatpush1.bf16.msra.mxu0 0
      %1060 = vmatprep.subr.bf16.mxu0 0
      %1061 = vmatpush1.bf16.msra.mxu0 0
      %1062 = vmatprep.subr.bf16.mxu0 0
      %1063 = vmatpush1.bf16.msra.mxu0 0
      %1064 = vmatprep.subr.bf16.mxu0 0
      %1065 = vmatpush1.bf16.msra.mxu0 0
      %1066 = vmatprep.subr.bf16.mxu0 0
      %1067 = vmatpush1.bf16.msra.mxu0 0
      %1068 = vmatprep.subr.bf16.mxu0 0
      %1069 = vmatpush1.bf16.msra.mxu0 0
      %1070 = vmatprep.mubr.bf16.mxu0 0
      %1071 = vmatmul.mubr.bf16.gmra.mrb[0].mxu0 %v972
      %v1072 = vpop.f32.mrb[0].mxu0
      %v1073 = vadd.f32 0.0, %v1072
      %v1074 = vpop.f32.mrb[0].mxu0
      %v1075 = vpop.f32.mrb[0].mxu0
      %v1076 = vadd.f32 0.0, %v1075
      %v1077 = vpop.f32.mrb[0].mxu0
      %1078 = vdwg.mxu0
      %v1079 = vadd.f32 %v966, %v1073
      %v1080 = vadd.f32 %v967, %v1076
      %v1081 = vld [vmem:[#allocation2 + $0x8] sm:$0xff]
      %v1082 = vld [vmem:[#allocation2 + $0x10] sm:$0xff]
      %v1083 = vpack.c.bf16 %v1082, %v1081
      %s1084 = scalar_lea.vmem %s5, 256
      %v1085 = vld [vmem:[%s1084] sm:$0xf]
      %v1086 = vld [vmem:[%s1084 + $0x4] sm:$0xf]
      %v1087 = vld [vmem:[%s1084 + $0x8] sm:$0xf]
      %v1088 = vld [vmem:[%s1084 + $0xc] sm:$0xf]
      %v1089 = vld [vmem:[%s1084 + $0x10] sm:$0xf]
      %v1090 = vld [vmem:[%s1084 + $0x14] sm:$0xf]
      %v1091 = vld [vmem:[%s1084 + $0x18] sm:$0xf]
      %v1092 = vld [vmem:[%s1084 + $0x1c] sm:$0xf]
      %v1093 = vld [vmem:[%s1084 + $0x20] sm:$0xf]
      %v1094 = vld [vmem:[%s1084 + $0x24] sm:$0xf]
      %v1095 = vld [vmem:[%s1084 + $0x28] sm:$0xf]
      %v1096 = vld [vmem:[%s1084 + $0x2c] sm:$0xf]
      %v1097 = vld [vmem:[%s1084 + $0x30] sm:$0xf]
      %v1098 = vld [vmem:[%s1084 + $0x34] sm:$0xf]
      %v1099 = vld [vmem:[%s1084 + $0x38] sm:$0xf]
      %v1100 = vld [vmem:[%s1084 + $0x3c] sm:$0xf]
      %v1117 = vunpack.c.l.b16 %v1085
      %v1118 = vunpack.c.l.b16 %v1086
      %v1119 = vunpack.c.l.b16 %v1087
      %v1120 = vunpack.c.l.b16 %v1088
      %v1121 = vunpack.c.l.b16 %v1089
      %v1122 = vunpack.c.l.b16 %v1090
      %v1123 = vunpack.c.l.b16 %v1091
      %v1124 = vunpack.c.l.b16 %v1092
      %v1125 = vunpack.c.l.b16 %v1093
      %v1126 = vunpack.c.l.b16 %v1094
      %v1127 = vunpack.c.l.b16 %v1095
      %v1128 = vunpack.c.l.b16 %v1096
      %v1129 = vunpack.c.l.b16 %v1097
      %v1130 = vunpack.c.l.b16 %v1098
      %v1131 = vunpack.c.l.b16 %v1099
      %v1132 = vunpack.c.l.b16 %v1100
      %v1133 = vpack.c.b16 %v1118, %v1117
      %v1134 = vpack.c.b16 %v1120, %v1119
      %v1135 = vpack.c.b16 %v1122, %v1121
      %v1136 = vpack.c.b16 %v1124, %v1123
      %v1137 = vpack.c.b16 %v1126, %v1125
      %v1138 = vpack.c.b16 %v1128, %v1127
      %v1139 = vpack.c.b16 %v1130, %v1129
      %v1140 = vpack.c.b16 %v1132, %v1131
      %1149 = vmatprep.subr.bf16.mxu0 0
      %1150 = vmatpush1.bf16.msra.mxu0 %v1133
      %1151 = vmatprep.subr.bf16.mxu0 0
      %1152 = vmatpush1.bf16.msra.mxu0 %v1134
      %1153 = vmatprep.subr.bf16.mxu0 0
      %1154 = vmatpush1.bf16.msra.mxu0 %v1135
      %1155 = vmatprep.subr.bf16.mxu0 0
      %1156 = vmatpush1.bf16.msra.mxu0 %v1136
      %1157 = vmatprep.subr.bf16.mxu0 0
      %1158 = vmatpush1.bf16.msra.mxu0 %v1137
      %1159 = vmatprep.subr.bf16.mxu0 0
      %1160 = vmatpush1.bf16.msra.mxu0 %v1138
      %1161 = vmatprep.subr.bf16.mxu0 0
      %1162 = vmatpush1.bf16.msra.mxu0 %v1139
      %1163 = vmatprep.subr.bf16.mxu0 0
      %1164 = vmatpush1.bf16.msra.mxu0 %v1140
      %1165 = vmatprep.subr.bf16.mxu0 0
      %1166 = vmatpush1.bf16.msra.mxu0 0
      %1167 = vmatprep.subr.bf16.mxu0 0
      %1168 = vmatpush1.bf16.msra.mxu0 0
      %1169 = vmatprep.subr.bf16.mxu0 0
      %1170 = vmatpush1.bf16.msra.mxu0 0
      %1171 = vmatprep.subr.bf16.mxu0 0
      %1172 = vmatpush1.bf16.msra.mxu0 0
      %1173 = vmatprep.subr.bf16.mxu0 0
      %1174 = vmatpush1.bf16.msra.mxu0 0
      %1175 = vmatprep.subr.bf16.mxu0 0
      %1176 = vmatpush1.bf16.msra.mxu0 0
      %1177 = vmatprep.subr.bf16.mxu0 0
      %1178 = vmatpush1.bf16.msra.mxu0 0
      %1179 = vmatprep.subr.bf16.mxu0 0
      %1180 = vmatpush1.bf16.msra.mxu0 0
      %1181 = vmatprep.mubr.bf16.mxu0 0
      %1182 = vmatmul.mubr.bf16.gmra.mrb[0].mxu0 %v1083
      %v1183 = vpop.f32.mrb[0].mxu0
      %v1184 = vadd.f32 0.0, %v1183
      %v1185 = vpop.f32.mrb[0].mxu0
      %v1186 = vpop.f32.mrb[0].mxu0
      %v1187 = vadd.f32 0.0, %v1186
      %v1188 = vpop.f32.mrb[0].mxu0
      %1189 = vdwg.mxu0
      %v1190 = vadd.f32 %v1079, %v1184
      %v1191 = vadd.f32 %v1080, %v1187
      %v1192 = vld [vmem:[#allocation2 + $0x9] sm:$0xff]
      %v1193 = vld [vmem:[#allocation2 + $0x11] sm:$0xff]
      %v1194 = vsel %vm855, %v1192, 0.0
      %v1195 = vsel %vm856, %v1193, 0.0
      %v1196 = vpack.c.bf16 %v1195, %v1194
      %s1197 = scalar_lea.vmem %s5, 320
      %v1198 = vld [vmem:[%s1197] sm:$0xf]
      %v1199 = vld [vmem:[%s1197 + $0x4] sm:$0xf]
      %v1200 = vld [vmem:[%s1197 + $0x8] sm:$0xf]
      %v1201 = vld [vmem:[%s1197 + $0xc] sm:$0xf]
      %v1202 = vld [vmem:[%s1197 + $0x10] sm:$0xf]
      %v1203 = vld [vmem:[%s1197 + $0x14] sm:$0xf]
      %v1204 = vld [vmem:[%s1197 + $0x18] sm:$0xf]
      %v1205 = vld [vmem:[%s1197 + $0x1c] sm:$0xf]
      %v1206 = vld [vmem:[%s1197 + $0x20] sm:$0xf]
      %v1207 = vld [vmem:[%s1197 + $0x24] sm:$0xf]
      %v1208 = vld [vmem:[%s1197 + $0x28] sm:$0xf]
      %v1209 = vld [vmem:[%s1197 + $0x2c] sm:$0xf]
      %v1210 = vld [vmem:[%s1197 + $0x30] sm:$0xf]
      %v1211 = vld [vmem:[%s1197 + $0x34] sm:$0xf]
      %v1212 = vld [vmem:[%s1197 + $0x38] sm:$0xf]
      %v1213 = vld [vmem:[%s1197 + $0x3c] sm:$0xf]
      %v1230 = vunpack.c.l.b16 %v1198
      %v1231 = vunpack.c.l.b16 %v1199
      %v1232 = vunpack.c.l.b16 %v1200
      %v1233 = vunpack.c.l.b16 %v1201
      %v1234 = vunpack.c.l.b16 %v1202
      %v1235 = vunpack.c.l.b16 %v1203
      %v1236 = vunpack.c.l.b16 %v1204
      %v1237 = vunpack.c.l.b16 %v1205
      %v1238 = vunpack.c.l.b16 %v1206
      %v1239 = vunpack.c.l.b16 %v1207
      %v1240 = vunpack.c.l.b16 %v1208
      %v1241 = vunpack.c.l.b16 %v1209
      %v1242 = vunpack.c.l.b16 %v1210
      %v1243 = vunpack.c.l.b16 %v1211
      %v1244 = vunpack.c.l.b16 %v1212
      %v1245 = vunpack.c.l.b16 %v1213
      %v1246 = vpack.c.b16 %v1231, %v1230
      %v1247 = vpack.c.b16 %v1233, %v1232
      %v1248 = vpack.c.b16 %v1235, %v1234
      %v1249 = vpack.c.b16 %v1237, %v1236
      %v1250 = vpack.c.b16 %v1239, %v1238
      %v1251 = vpack.c.b16 %v1241, %v1240
      %v1252 = vpack.c.b16 %v1243, %v1242
      %v1253 = vpack.c.b16 %v1245, %v1244
      %1262 = vmatprep.subr.bf16.mxu0 0
      %1263 = vmatpush1.bf16.msra.mxu0 %v1246
      %1264 = vmatprep.subr.bf16.mxu0 0
      %1265 = vmatpush1.bf16.msra.mxu0 %v1247
      %1266 = vmatprep.subr.bf16.mxu0 0
      %1267 = vmatpush1.bf16.msra.mxu0 %v1248
      %1268 = vmatprep.subr.bf16.mxu0 0
      %1269 = vmatpush1.bf16.msra.mxu0 %v1249
      %1270 = vmatprep.subr.bf16.mxu0 0
      %1271 = vmatpush1.bf16.msra.mxu0 %v1250
      %1272 = vmatprep.subr.bf16.mxu0 0
      %1273 = vmatpush1.bf16.msra.mxu0 %v1251
      %1274 = vmatprep.subr.bf16.mxu0 0
      %1275 = vmatpush1.bf16.msra.mxu0 %v1252
      %1276 = vmatprep.subr.bf16.mxu0 0
      %1277 = vmatpush1.bf16.msra.mxu0 %v1253
      %1278 = vmatprep.subr.bf16.mxu0 0
      %1279 = vmatpush1.bf16.msra.mxu0 0
      %1280 = vmatprep.subr.bf16.mxu0 0
      %1281 = vmatpush1.bf16.msra.mxu0 0
      %1282 = vmatprep.subr.bf16.mxu0 0
      %1283 = vmatpush1.bf16.msra.mxu0 0
      %1284 = vmatprep.subr.bf16.mxu0 0
      %1285 = vmatpush1.bf16.msra.mxu0 0
      %1286 = vmatprep.subr.bf16.mxu0 0
      %1287 = vmatpush1.bf16.msra.mxu0 0
      %1288 = vmatprep.subr.bf16.mxu0 0
      %1289 = vmatpush1.bf16.msra.mxu0 0
      %1290 = vmatprep.subr.bf16.mxu0 0
      %1291 = vmatpush1.bf16.msra.mxu0 0
      %1292 = vmatprep.subr.bf16.mxu0 0
      %1293 = vmatpush1.bf16.msra.mxu0 0
      %1294 = vmatprep.mubr.bf16.mxu0 0
      %1295 = vmatmul.mubr.bf16.gmra.mrb[0].mxu0 %v1196
      %v1296 = vpop.f32.mrb[0].mxu0
      %v1297 = vadd.f32 0.0, %v1296
      %v1298 = vpop.f32.mrb[0].mxu0
      %v1299 = vpop.f32.mrb[0].mxu0
      %v1300 = vadd.f32 0.0, %v1299
      %v1301 = vpop.f32.mrb[0].mxu0
      %1302 = vdwg.mxu0
      %v1303 = vadd.f32 %v1190, %v1297
      %v1304 = vadd.f32 %v1191, %v1300
      %v1305 = vld [vmem:[#allocation2 + $0xb] sm:$0xff]
      %v1306 = vld [vmem:[#allocation2 + $0x13] sm:$0xff]
      %v1307 = vsel %vm624, %v1305, 0.0
      %v1308 = vsel %vm625, %v1306, 0.0
      %v1309 = vpack.c.bf16 %v1308, %v1307
      %s1310 = scalar_lea.vmem %s5, 384
      %v1311 = vld [vmem:[%s1310] sm:$0xf]
      %v1312 = vld [vmem:[%s1310 + $0x4] sm:$0xf]
      %v1313 = vld [vmem:[%s1310 + $0x8] sm:$0xf]
      %v1314 = vld [vmem:[%s1310 + $0xc] sm:$0xf]
      %v1315 = vld [vmem:[%s1310 + $0x10] sm:$0xf]
      %v1316 = vld [vmem:[%s1310 + $0x14] sm:$0xf]
      %v1317 = vld [vmem:[%s1310 + $0x18] sm:$0xf]
      %v1318 = vld [vmem:[%s1310 + $0x1c] sm:$0xf]
      %v1319 = vld [vmem:[%s1310 + $0x20] sm:$0xf]
      %v1320 = vld [vmem:[%s1310 + $0x24] sm:$0xf]
      %v1321 = vld [vmem:[%s1310 + $0x28] sm:$0xf]
      %v1322 = vld [vmem:[%s1310 + $0x2c] sm:$0xf]
      %v1323 = vld [vmem:[%s1310 + $0x30] sm:$0xf]
      %v1324 = vld [vmem:[%s1310 + $0x34] sm:$0xf]
      %v1325 = vld [vmem:[%s1310 + $0x38] sm:$0xf]
      %v1326 = vld [vmem:[%s1310 + $0x3c] sm:$0xf]
      %v1343 = vunpack.c.l.b16 %v1311
      %v1344 = vunpack.c.l.b16 %v1312
      %v1345 = vunpack.c.l.b16 %v1313
      %v1346 = vunpack.c.l.b16 %v1314
      %v1347 = vunpack.c.l.b16 %v1315
      %v1348 = vunpack.c.l.b16 %v1316
      %v1349 = vunpack.c.l.b16 %v1317
      %v1350 = vunpack.c.l.b16 %v1318
      %v1351 = vunpack.c.l.b16 %v1319
      %v1352 = vunpack.c.l.b16 %v1320
      %v1353 = vunpack.c.l.b16 %v1321
      %v1354 = vunpack.c.l.b16 %v1322
      %v1355 = vunpack.c.l.b16 %v1323
      %v1356 = vunpack.c.l.b16 %v1324
      %v1357 = vunpack.c.l.b16 %v1325
      %v1358 = vunpack.c.l.b16 %v1326
      %v1359 = vpack.c.b16 %v1344, %v1343
      %v1360 = vpack.c.b16 %v1346, %v1345
      %v1361 = vpack.c.b16 %v1348, %v1347
      %v1362 = vpack.c.b16 %v1350, %v1349
      %v1363 = vpack.c.b16 %v1352, %v1351
      %v1364 = vpack.c.b16 %v1354, %v1353
      %v1365 = vpack.c.b16 %v1356, %v1355
      %v1366 = vpack.c.b16 %v1358, %v1357
      %1375 = vmatprep.subr.bf16.mxu0 0
      %1376 = vmatpush1.bf16.msra.mxu0 %v1359
      %1377 = vmatprep.subr.bf16.mxu0 0
      %1378 = vmatpush1.bf16.msra.mxu0 %v1360
      %1379 = vmatprep.subr.bf16.mxu0 0
      %1380 = vmatpush1.bf16.msra.mxu0 %v1361
      %1381 = vmatprep.subr.bf16.mxu0 0
      %1382 = vmatpush1.bf16.msra.mxu0 %v1362
      %1383 = vmatprep.subr.bf16.mxu0 0
      %1384 = vmatpush1.bf16.msra.mxu0 %v1363
      %1385 = vmatprep.subr.bf16.mxu0 0
      %1386 = vmatpush1.bf16.msra.mxu0 %v1364
      %1387 = vmatprep.subr.bf16.mxu0 0
      %1388 = vmatpush1.bf16.msra.mxu0 %v1365
      %1389 = vmatprep.subr.bf16.mxu0 0
      %1390 = vmatpush1.bf16.msra.mxu0 %v1366
      %1391 = vmatprep.subr.bf16.mxu0 0
      %1392 = vmatpush1.bf16.msra.mxu0 0
      %1393 = vmatprep.subr.bf16.mxu0 0
      %1394 = vmatpush1.bf16.msra.mxu0 0
      %1395 = vmatprep.subr.bf16.mxu0 0
      %1396 = vmatpush1.bf16.msra.mxu0 0
      %1397 = vmatprep.subr.bf16.mxu0 0
      %1398 = vmatpush1.bf16.msra.mxu0 0
      %1399 = vmatprep.subr.bf16.mxu0 0
      %1400 = vmatpush1.bf16.msra.mxu0 0
      %1401 = vmatprep.subr.bf16.mxu0 0
      %1402 = vmatpush1.bf16.msra.mxu0 0
      %1403 = vmatprep.subr.bf16.mxu0 0
      %1404 = vmatpush1.bf16.msra.mxu0 0
      %1405 = vmatprep.subr.bf16.mxu0 0
      %1406 = vmatpush1.bf16.msra.mxu0 0
      %1407 = vmatprep.mubr.bf16.mxu0 0
      %1408 = vmatmul.mubr.bf16.gmra.mrb[0].mxu0 %v1309
      %v1409 = vpop.f32.mrb[0].mxu0
      %v1410 = vadd.f32 0.0, %v1409
      %v1411 = vpop.f32.mrb[0].mxu0
      %v1412 = vpop.f32.mrb[0].mxu0
      %v1413 = vadd.f32 0.0, %v1412
      %v1414 = vpop.f32.mrb[0].mxu0
      %1415 = vdwg.mxu0
      %v1416 = vadd.f32 %v1303, %v1410
      %v1417 = vadd.f32 %v1304, %v1413
      %v1418 = vld [vmem:[#allocation2 + $0xc] sm:$0xff]
      %v1419 = vld [vmem:[#allocation2 + $0x14] sm:$0xff]
      %v1420 = vpack.c.bf16 %v1419, %v1418
      %s1421 = scalar_lea.vmem %s5, 448
      %v1422 = vld [vmem:[%s1421] sm:$0xf]
      %v1423 = vld [vmem:[%s1421 + $0x4] sm:$0xf]
      %v1424 = vld [vmem:[%s1421 + $0x8] sm:$0xf]
      %v1425 = vld [vmem:[%s1421 + $0xc] sm:$0xf]
      %v1426 = vld [vmem:[%s1421 + $0x10] sm:$0xf]
      %v1427 = vld [vmem:[%s1421 + $0x14] sm:$0xf]
      %v1428 = vld [vmem:[%s1421 + $0x18] sm:$0xf]
      %v1429 = vld [vmem:[%s1421 + $0x1c] sm:$0xf]
      %v1430 = vld [vmem:[%s1421 + $0x20] sm:$0xf]
      %v1431 = vld [vmem:[%s1421 + $0x24] sm:$0xf]
      %v1432 = vld [vmem:[%s1421 + $0x28] sm:$0xf]
      %v1433 = vld [vmem:[%s1421 + $0x2c] sm:$0xf]
      %v1434 = vld [vmem:[%s1421 + $0x30] sm:$0xf]
      %v1435 = vld [vmem:[%s1421 + $0x34] sm:$0xf]
      %v1436 = vld [vmem:[%s1421 + $0x38] sm:$0xf]
      %v1437 = vld [vmem:[%s1421 + $0x3c] sm:$0xf]
      %v1454 = vunpack.c.l.b16 %v1422
      %v1455 = vunpack.c.l.b16 %v1423
      %v1456 = vunpack.c.l.b16 %v1424
      %v1457 = vunpack.c.l.b16 %v1425
      %v1458 = vunpack.c.l.b16 %v1426
      %v1459 = vunpack.c.l.b16 %v1427
      %v1460 = vunpack.c.l.b16 %v1428
      %v1461 = vunpack.c.l.b16 %v1429
      %v1462 = vunpack.c.l.b16 %v1430
      %v1463 = vunpack.c.l.b16 %v1431
      %v1464 = vunpack.c.l.b16 %v1432
      %v1465 = vunpack.c.l.b16 %v1433
      %v1466 = vunpack.c.l.b16 %v1434
      %v1467 = vunpack.c.l.b16 %v1435
      %v1468 = vunpack.c.l.b16 %v1436
      %v1469 = vunpack.c.l.b16 %v1437
      %v1470 = vpack.c.b16 %v1455, %v1454
      %v1471 = vpack.c.b16 %v1457, %v1456
      %v1472 = vpack.c.b16 %v1459, %v1458
      %v1473 = vpack.c.b16 %v1461, %v1460
      %v1474 = vpack.c.b16 %v1463, %v1462
      %v1475 = vpack.c.b16 %v1465, %v1464
      %v1476 = vpack.c.b16 %v1467, %v1466
      %v1477 = vpack.c.b16 %v1469, %v1468
      %1486 = vmatprep.subr.bf16.mxu0 0
      %1487 = vmatpush1.bf16.msra.mxu0 %v1470
      %1488 = vmatprep.subr.bf16.mxu0 0
      %1489 = vmatpush1.bf16.msra.mxu0 %v1471
      %1490 = vmatprep.subr.bf16.mxu0 0
      %1491 = vmatpush1.bf16.msra.mxu0 %v1472
      %1492 = vmatprep.subr.bf16.mxu0 0
      %1493 = vmatpush1.bf16.msra.mxu0 %v1473
      %1494 = vmatprep.subr.bf16.mxu0 0
      %1495 = vmatpush1.bf16.msra.mxu0 %v1474
      %1496 = vmatprep.subr.bf16.mxu0 0
      %1497 = vmatpush1.bf16.msra.mxu0 %v1475
      %1498 = vmatprep.subr.bf16.mxu0 0
      %1499 = vmatpush1.bf16.msra.mxu0 %v1476
      %1500 = vmatprep.subr.bf16.mxu0 0
      %1501 = vmatpush1.bf16.msra.mxu0 %v1477
      %1502 = vmatprep.subr.bf16.mxu0 0
      %1503 = vmatpush1.bf16.msra.mxu0 0
      %1504 = vmatprep.subr.bf16.mxu0 0
      %1505 = vmatpush1.bf16.msra.mxu0 0
      %1506 = vmatprep.subr.bf16.mxu0 0
      %1507 = vmatpush1.bf16.msra.mxu0 0
      %1508 = vmatprep.subr.bf16.mxu0 0
      %1509 = vmatpush1.bf16.msra.mxu0 0
      %1510 = vmatprep.subr.bf16.mxu0 0
      %1511 = vmatpush1.bf16.msra.mxu0 0
      %1512 = vmatprep.subr.bf16.mxu0 0
      %1513 = vmatpush1.bf16.msra.mxu0 0
      %1514 = vmatprep.subr.bf16.mxu0 0
      %1515 = vmatpush1.bf16.msra.mxu0 0
      %1516 = vmatprep.subr.bf16.mxu0 0
      %1517 = vmatpush1.bf16.msra.mxu0 0
      %1518 = vmatprep.mubr.bf16.mxu0 0
      %1519 = vmatmul.mubr.bf16.gmra.mrb[0].mxu0 %v1420
      %v1520 = vpop.f32.mrb[0].mxu0
      %v1521 = vadd.f32 0.0, %v1520
      %v1522 = vpop.f32.mrb[0].mxu0
      %v1523 = vpop.f32.mrb[0].mxu0
      %v1524 = vadd.f32 0.0, %v1523
      %v1525 = vpop.f32.mrb[0].mxu0
      %1526 = vdwg.mxu0
      %v1527 = vadd.f32 %v1416, %v1521
      %v1528 = vadd.f32 %v1417, %v1524
      %v1529 = vld [vmem:[#allocation2 + $0xd] sm:$0xff]
      %v1530 = vld [vmem:[#allocation2 + $0x15] sm:$0xff]
      %v1531 = vsel %vm855, %v1529, 0.0
      %v1532 = vsel %vm856, %v1530, 0.0
      %v1533 = vpack.c.bf16 %v1532, %v1531
      %s1534 = scalar_lea.vmem %s5, 512
      %v1535 = vld [vmem:[%s1534] sm:$0xf]
      %v1536 = vld [vmem:[%s1534 + $0x4] sm:$0xf]
      %v1537 = vld [vmem:[%s1534 + $0x8] sm:$0xf]
      %v1538 = vld [vmem:[%s1534 + $0xc] sm:$0xf]
      %v1539 = vld [vmem:[%s1534 + $0x10] sm:$0xf]
      %v1540 = vld [vmem:[%s1534 + $0x14] sm:$0xf]
      %v1541 = vld [vmem:[%s1534 + $0x18] sm:$0xf]
      %v1542 = vld [vmem:[%s1534 + $0x1c] sm:$0xf]
      %v1543 = vld [vmem:[%s1534 + $0x20] sm:$0xf]
      %v1544 = vld [vmem:[%s1534 + $0x24] sm:$0xf]
      %v1545 = vld [vmem:[%s1534 + $0x28] sm:$0xf]
      %v1546 = vld [vmem:[%s1534 + $0x2c] sm:$0xf]
      %v1547 = vld [vmem:[%s1534 + $0x30] sm:$0xf]
      %v1548 = vld [vmem:[%s1534 + $0x34] sm:$0xf]
      %v1549 = vld [vmem:[%s1534 + $0x38] sm:$0xf]
      %v1550 = vld [vmem:[%s1534 + $0x3c] sm:$0xf]
      %v1567 = vunpack.c.l.b16 %v1535
      %v1568 = vunpack.c.l.b16 %v1536
      %v1569 = vunpack.c.l.b16 %v1537
      %v1570 = vunpack.c.l.b16 %v1538
      %v1571 = vunpack.c.l.b16 %v1539
      %v1572 = vunpack.c.l.b16 %v1540
      %v1573 = vunpack.c.l.b16 %v1541
      %v1574 = vunpack.c.l.b16 %v1542
      %v1575 = vunpack.c.l.b16 %v1543
      %v1576 = vunpack.c.l.b16 %v1544
      %v1577 = vunpack.c.l.b16 %v1545
      %v1578 = vunpack.c.l.b16 %v1546
      %v1579 = vunpack.c.l.b16 %v1547
      %v1580 = vunpack.c.l.b16 %v1548
      %v1581 = vunpack.c.l.b16 %v1549
      %v1582 = vunpack.c.l.b16 %v1550
      %v1583 = vpack.c.b16 %v1568, %v1567
      %v1584 = vpack.c.b16 %v1570, %v1569
      %v1585 = vpack.c.b16 %v1572, %v1571
      %v1586 = vpack.c.b16 %v1574, %v1573
      %v1587 = vpack.c.b16 %v1576, %v1575
      %v1588 = vpack.c.b16 %v1578, %v1577
      %v1589 = vpack.c.b16 %v1580, %v1579
      %v1590 = vpack.c.b16 %v1582, %v1581
      %1599 = vmatprep.subr.bf16.mxu0 0
      %1600 = vmatpush1.bf16.msra.mxu0 %v1583
      %1601 = vmatprep.subr.bf16.mxu0 0
      %1602 = vmatpush1.bf16.msra.mxu0 %v1584
      %1603 = vmatprep.subr.bf16.mxu0 0
      %1604 = vmatpush1.bf16.msra.mxu0 %v1585
      %1605 = vmatprep.subr.bf16.mxu0 0
      %1606 = vmatpush1.bf16.msra.mxu0 %v1586
      %1607 = vmatprep.subr.bf16.mxu0 0
      %1608 = vmatpush1.bf16.msra.mxu0 %v1587
      %1609 = vmatprep.subr.bf16.mxu0 0
      %1610 = vmatpush1.bf16.msra.mxu0 %v1588
      %1611 = vmatprep.subr.bf16.mxu0 0
      %1612 = vmatpush1.bf16.msra.mxu0 %v1589
      %1613 = vmatprep.subr.bf16.mxu0 0
      %1614 = vmatpush1.bf16.msra.mxu0 %v1590
      %1615 = vmatprep.subr.bf16.mxu0 0
      %1616 = vmatpush1.bf16.msra.mxu0 0
      %1617 = vmatprep.subr.bf16.mxu0 0
      %1618 = vmatpush1.bf16.msra.mxu0 0
      %1619 = vmatprep.subr.bf16.mxu0 0
      %1620 = vmatpush1.bf16.msra.mxu0 0
      %1621 = vmatprep.subr.bf16.mxu0 0
      %1622 = vmatpush1.bf16.msra.mxu0 0
      %1623 = vmatprep.subr.bf16.mxu0 0
      %1624 = vmatpush1.bf16.msra.mxu0 0
      %1625 = vmatprep.subr.bf16.mxu0 0
      %1626 = vmatpush1.bf16.msra.mxu0 0
      %1627 = vmatprep.subr.bf16.mxu0 0
      %1628 = vmatpush1.bf16.msra.mxu0 0
      %1629 = vmatprep.subr.bf16.mxu0 0
      %1630 = vmatpush1.bf16.msra.mxu0 0
      %1631 = vmatprep.mubr.bf16.mxu0 0
      %1632 = vmatmul.mubr.bf16.gmra.mrb[0].mxu0 %v1533
      %v1633 = vpop.f32.mrb[0].mxu0
      %v1634 = vadd.f32 0.0, %v1633
      %v1635 = vpop.f32.mrb[0].mxu0
      %v1636 = vpop.f32.mrb[0].mxu0
      %v1637 = vadd.f32 0.0, %v1636
      %v1638 = vpop.f32.mrb[0].mxu0
      %1639 = vdwg.mxu0
      %v1640 = vadd.f32 %v1527, %v1634
      %v1641 = vadd.f32 %v1528, %v1637
      %v1642 = vld [vmem:[%s6] sm:$0x1]
      %v1644 = vlaneseq
      %v1645 = vshrl.u32 %v1644, 7
      %v1646 = vsub.s32 0, %v1645
      %v1647 = vrot.slane %v1642, %v1646
      %v1649 = vadd.f32 %v1640, %v1647
      %v1650 = vadd.f32 %v1641, %v1647
      %1651 = vst [vmem:[%s338] sm:$0xff] %v1649
      %1652 = vst [vmem:[%s338 + $0x8] sm:$0xff] %v1650
      %p1653 = scmp.lt.s32.totalorder %s20, 1
      %s1654 = scalar_select %p1653, %s20, 1
      %s1655 = smul.addr %s1654, 16
      %s1656 = smul.addr %s1655, 4
      %s1657 = scalar_lea.vmem %s7, %s1656
      %p1658 = scmp.lt.s32.totalorder %s20, 1
      %s1659 = scalar_select %p1658, %s20, 1
      %s1660 = smul.addr %s1659, 2
      %s1661 = smul.addr %s1660, 8
      %s1662 = scalar_lea.vmem %s8, %s1661
      // Predicated region
      $region49: #{backbone_with_fpn_forward.10} parent=47 // pred_check
        %p1663 = pneg %p195
      $region50: #{backbone_with_fpn_forward.10} parent=47 // pred_check_branch
        %1665 = sbr.rel (%p1663) target = $region52
      $region51: #{backbone_with_fpn_forward.10} parent=47 // pred_region
        _
      $region52: #{backbone_with_fpn_forward.10} parent=47 // pred_fallthru
        _
      // Predicated region
      $region53: #{backbone_with_fpn_forward.10} parent=47 // pred_check
        %p1666 = pneg %p221
      $region54: #{backbone_with_fpn_forward.10} parent=47 // pred_check_branch
        %1668 = sbr.rel (%p1666) target = $region56
      $region55: #{backbone_with_fpn_forward.10} parent=47 // pred_region
        _
      $region56: #{backbone_with_fpn_forward.10} parent=47 // pred_fallthru
        _
    $region48: #{backbone_with_fpn_forward.10} parent=5 // pred_fallthru
      _
    %p1669 = scmp.le.s32.totalorder 2, %s15
    // Predicated region
    $region57: #{backbone_with_fpn_forward.10} parent=5 // pred_check
      %p1670 = pneg %p1669
    $region58: #{backbone_with_fpn_forward.10} parent=5 // pred_check_branch
      %1672 = sbr.rel (%p1670) target = $region60
    $region59: #{backbone_with_fpn_forward.10} parent=5 // pred_region
      %s1673 = ssub.s32 %s15, 2
      // Predicated region
      $region61: #{backbone_with_fpn_forward.10} parent=59 // pred_check
        %p1674 = pneg %p201
      $region62: #{backbone_with_fpn_forward.10} parent=59 // pred_check_branch
        %1676 = sbr.rel (%p1674) target = $region64
      $region63: #{backbone_with_fpn_forward.10} parent=59 // pred_region
        %p1677 = scmp.lt.s32.totalorder %s21, 1
        %s1678 = scalar_select %p1677, %s21, 1
        %s1679 = smul.addr %s1678, 16
        %s1680 = smul.addr %s1679, 4
        %s1681 = scalar_lea.vmem %s7, %s1680
      $region64: #{backbone_with_fpn_forward.10} parent=59 // pred_fallthru
        _
      // Predicated region
      $region65: #{backbone_with_fpn_forward.10} parent=59 // pred_check
        %p1682 = pneg %p227
      $region66: #{backbone_with_fpn_forward.10} parent=59 // pred_check_branch
        %1684 = sbr.rel (%p1682) target = $region68
      $region67: #{backbone_with_fpn_forward.10} parent=59 // pred_region
        %p1685 = scmp.lt.s32.totalorder %s21, 1
        %s1686 = scalar_select %p1685, %s21, 1
        %s1687 = smul.addr %s1686, 2
        %s1688 = smul.addr %s1687, 8
        %s1689 = scalar_lea.vmem %s8, %s1688
      $region68: #{backbone_with_fpn_forward.10} parent=59 // pred_fallthru
        _
    $region60: #{backbone_with_fpn_forward.10} parent=5 // pred_fallthru
      _
  $region6: #{backbone_with_fpn_forward.10} parent=0 // loop_footer
    %s19 = sadd.s32 1, %s15
  $region7: #{backbone_with_fpn_forward.10} parent=0 // loop_footer_branch
    %14 = sbr.rel target = $region3
  $region8: #{backbone_with_fpn_forward.10} parent=0 // loop_exit
    _

// kernel: backbone_with_fpn_forward.11
$region0: #{backbone_with_fpn_forward.11}
  #allocation0 [shape = 'u32[]', space=smem, size = 0x4, offset = 0x4, fixed_abs, tag = 'smem constant byte address 0x4 - core index']
  #allocation1 [shape = 'u32[144,128]{1,0:T(1,128)}', space=vmem, size = 0x12000, scoped, tag = 'internal scratch']
  #allocation2 [shape = 'f32[96,128]{1,0:T(8,128)}', space=vmem, size = 0xc000, scoped, tag = 'scratch operand']
  %s0 = inlined_call_operand.vmem [shape: bf16[2,64,128], index: 0, kind: input, shape index: {}]
  %s1 = inlined_call_operand.vmem [shape: bf16[2,128,128], index: 1, kind: input, shape index: {}]
  %s2 = inlined_call_operand.vmem [shape: bf16[64,128], index: 2, kind: input, shape index: {}]
  %s3 = inlined_call_operand.vmem [shape: bf16[128,128], index: 3, kind: input, shape index: {}]
  %s4 = inlined_call_operand.vmem [shape: f32[1,128], index: 4, kind: input, shape index: {}, may-alias: {4,6}]
  %s5 = inlined_call_operand.vmem [shape: bf16[9,128,128], index: 5, kind: input, shape index: {}]
  %s6 = inlined_call_operand.vmem [shape: f32[1,128], index: 6, kind: input, shape index: {}, may-alias: {4,6}]
  %s7 = inlined_call_operand.hbm [shape: bf16[2,128,128], index: 7, kind: output, shape index: {0}]
  %s8 = inlined_call_operand.vmem [shape: f32[2,64,128], index: 8, kind: output, shape index: {1}]
  %9 = xla_tuple %s7, %s8
  %s10 = sld [smem:[#allocation0]]
  $region69: #{backbone_with_fpn_forward.11} parent=0
    _
  %s12 = ssub.s32 1, %s10
  %s13 = scalar_select 0, %s12, %s10
  $region1: #{backbone_with_fpn_forward.11} parent=0
    #allocation3 [shape = 'u8[65536]{0}', space=vmem, size = 0x10000, scoped, tag = 'output window, operand 0']
    #allocation4 [shape = 's32[2]{0}', space=sflag, size = 0x8, scoped, tag = 'scoped memory for backbone_with_fpn_forward.11']
    %14 = vsyncpa [#allocation4], 0
    %s15 = scalar_lea.sflag [#allocation4], 1
    %16 = vsyncpa %s15, 0
    loop: start=0, step=1, limit=4
    $region2: #{backbone_with_fpn_forward.11} parent=1 // loop_pre_header
      _
    $region3: #{backbone_with_fpn_forward.11} parent=1 // loop_header
      %s18 = sphi 0, %s22
      %p19 = scmp.ge.s32.totalorder %s18, 4
      %s28 = sphi 0, %s30
      %s31 = sphi 0, %s28
      %s32 = sphi 0, %s31
      %s48 = sphi 0, %s32
      %s54 = sphi 0, %s56
      %s57 = sphi 0, %s54
      %s58 = sphi 0, %s57
      %s74 = sphi 0, %s58
      %s78 = sphi 0, %s78
      %s80 = sphi 0, %s78
      %s81 = sphi 0, %s80
      %s95 = sphi 0, %s81
      %s99 = sphi 0, %s99
      %s101 = sphi 0, %s99
      %s102 = sphi 0, %s101
      %s116 = sphi 0, %s102
      %s120 = sphi 0, %s120
      %s122 = sphi 0, %s120
      %s123 = sphi 0, %s122
      %s137 = sphi 0, %s123
      %s141 = sphi 0, %s141
      %s143 = sphi 0, %s141
      %s144 = sphi 0, %s143
      %s158 = sphi 0, %s144
      %s162 = sphi 0, %s162
      %s164 = sphi 0, %s162
      %s165 = sphi 0, %s164
      %s179 = sphi 0, %s165
      %s185 = sphi 0, %s187
      %s188 = sphi 0, %s185
      %s189 = sphi 0, %s188
      %s205 = sphi 0, %s189
      %s211 = sphi 0, %s213
      %s214 = sphi 0, %s211
      %s215 = sphi 0, %s214
      %s231 = sphi 0, %s215
    $region4: #{backbone_with_fpn_forward.11} parent=1 // loop_header_branch
      %21 = sbr.rel (%p19) target = $region8
    $region5: #{backbone_with_fpn_forward.11} parent=1 // loop_body
      %s23 = ssub.s32 %s18, 1
      %s24 = ssub.s32 %s18, 2
      %s25 = sadd.s32 %s18, 1
      %s26 = ssub.s32 %s18, %s25
      %p27 = scmp.eq.s32.totalorder %s26, 0
      %s29 = sadd.s32 %s28, 1
      %s30 = scalar_select %p27, %s28, %s29
      %p33 = pneg %p27
      %p34 = scmp.eq.s32.totalorder %s18, 1
      %p35 = por %p33, %p34
      %p36 = scmp.ne.s32.totalorder %s28, %s31
      %p37 = scmp.eq.s32.totalorder %s18, 0
      %p38 = por %p36, %p37
      %p39 = scmp.ne.s32.totalorder %s28, %s31
      %p40 = scmp.eq.s32.totalorder %s23, 1
      %p41 = por %p39, %p40
      %p42 = scmp.ne.s32.totalorder %s31, %s32
      %p43 = scmp.eq.s32.totalorder %s23, 0
      %p44 = por %p42, %p43
      %p45 = scmp.ne.s32.totalorder %s31, %s32
      %p46 = scmp.eq.s32.totalorder %s24, 1
      %p47 = por %p45, %p46
      %p49 = scmp.ne.s32.totalorder %s32, %s48
      %p50 = scmp.eq.s32.totalorder %s24, 0
      %p51 = por %p49, %p50
      %s52 = ssub.s32 %s18, %s25
      %p53 = scmp.eq.s32.totalorder %s52, 0
      %s55 = sadd.s32 %s54, 1
      %s56 = scalar_select %p53, %s54, %s55
      %p59 = pneg %p53
      %p60 = scmp.eq.s32.totalorder %s18, 1
      %p61 = por %p59, %p60
      %p62 = scmp.ne.s32.totalorder %s54, %s57
      %p63 = scmp.eq.s32.totalorder %s18, 0
      %p64 = por %p62, %p63
      %p65 = scmp.ne.s32.totalorder %s54, %s57
      %p66 = scmp.eq.s32.totalorder %s23, 1
      %p67 = por %p65, %p66
      %p68 = scmp.ne.s32.totalorder %s57, %s58
      %p69 = scmp.eq.s32.totalorder %s23, 0
      %p70 = por %p68, %p69
      %p71 = scmp.ne.s32.totalorder %s57, %s58
      %p72 = scmp.eq.s32.totalorder %s24, 1
      %p73 = por %p71, %p72
      %p75 = scmp.ne.s32.totalorder %s58, %s74
      %p76 = scmp.eq.s32.totalorder %s24, 0
      %p77 = por %p75, %p76
      %s79 = sadd.s32 %s78, 1
      %p82 = scmp.eq.s32.totalorder %s18, 1
      %p83 = scmp.ne.s32.totalorder %s78, %s80
      %p84 = scmp.eq.s32.totalorder %s18, 0
      %p85 = por %p83, %p84
      %p86 = scmp.ne.s32.totalorder %s78, %s80
      %p87 = scmp.eq.s32.totalorder %s23, 1
      %p88 = por %p86, %p87
      %p89 = scmp.ne.s32.totalorder %s80, %s81
      %p90 = scmp.eq.s32.totalorder %s23, 0
      %p91 = por %p89, %p90
      %p92 = scmp.ne.s32.totalorder %s80, %s81
      %p93 = scmp.eq.s32.totalorder %s24, 1
      %p94 = por %p92, %p93
      %p96 = scmp.ne.s32.totalorder %s81, %s95
      %p97 = scmp.eq.s32.totalorder %s24, 0
      %p98 = por %p96, %p97
      %s100 = sadd.s32 %s99, 1
      %p103 = scmp.eq.s32.totalorder %s18, 1
      %p104 = scmp.ne.s32.totalorder %s99, %s101
      %p105 = scmp.eq.s32.totalorder %s18, 0
      %p106 = por %p104, %p105
      %p107 = scmp.ne.s32.totalorder %s99, %s101
      %p108 = scmp.eq.s32.totalorder %s23, 1
      %p109 = por %p107, %p108
      %p110 = scmp.ne.s32.totalorder %s101, %s102
      %p111 = scmp.eq.s32.totalorder %s23, 0
      %p112 = por %p110, %p111
      %p113 = scmp.ne.s32.totalorder %s101, %s102
      %p114 = scmp.eq.s32.totalorder %s24, 1
      %p115 = por %p113, %p114
      %p117 = scmp.ne.s32.totalorder %s102, %s116
      %p118 = scmp.eq.s32.totalorder %s24, 0
      %p119 = por %p117, %p118
      %s121 = sadd.s32 %s120, 1
      %p124 = scmp.eq.s32.totalorder %s18, 1
      %p125 = scmp.ne.s32.totalorder %s120, %s122
      %p126 = scmp.eq.s32.totalorder %s18, 0
      %p127 = por %p125, %p126
      %p128 = scmp.ne.s32.totalorder %s120, %s122
      %p129 = scmp.eq.s32.totalorder %s23, 1
      %p130 = por %p128, %p129
      %p131 = scmp.ne.s32.totalorder %s122, %s123
      %p132 = scmp.eq.s32.totalorder %s23, 0
      %p133 = por %p131, %p132
      %p134 = scmp.ne.s32.totalorder %s122, %s123
      %p135 = scmp.eq.s32.totalorder %s24, 1
      %p136 = por %p134, %p135
      %p138 = scmp.ne.s32.totalorder %s123, %s137
      %p139 = scmp.eq.s32.totalorder %s24, 0
      %p140 = por %p138, %p139
      %s142 = sadd.s32 %s141, 1
      %p145 = scmp.eq.s32.totalorder %s18, 1
      %p146 = scmp.ne.s32.totalorder %s141, %s143
      %p147 = scmp.eq.s32.totalorder %s18, 0
      %p148 = por %p146, %p147
      %p149 = scmp.ne.s32.totalorder %s141, %s143
      %p150 = scmp.eq.s32.totalorder %s23, 1
      %p151 = por %p149, %p150
      %p152 = scmp.ne.s32.totalorder %s143, %s144
      %p153 = scmp.eq.s32.totalorder %s23, 0
      %p154 = por %p152, %p153
      %p155 = scmp.ne.s32.totalorder %s143, %s144
      %p156 = scmp.eq.s32.totalorder %s24, 1
      %p157 = por %p155, %p156
      %p159 = scmp.ne.s32.totalorder %s144, %s158
      %p160 = scmp.eq.s32.totalorder %s24, 0
      %p161 = por %p159, %p160
      %s163 = sadd.s32 %s162, 1
      %p166 = scmp.eq.s32.totalorder %s18, 1
      %p167 = scmp.ne.s32.totalorder %s162, %s164
      %p168 = scmp.eq.s32.totalorder %s18, 0
      %p169 = por %p167, %p168
      %p170 = scmp.ne.s32.totalorder %s162, %s164
      %p171 = scmp.eq.s32.totalorder %s23, 1
      %p172 = por %p170, %p171
      %p173 = scmp.ne.s32.totalorder %s164, %s165
      %p174 = scmp.eq.s32.totalorder %s23, 0
      %p175 = por %p173, %p174
      %p176 = scmp.ne.s32.totalorder %s164, %s165
      %p177 = scmp.eq.s32.totalorder %s24, 1
      %p178 = por %p176, %p177
      %p180 = scmp.ne.s32.totalorder %s165, %s179
      %p181 = scmp.eq.s32.totalorder %s24, 0
      %p182 = por %p180, %p181
      %s183 = ssub.s32 %s18, %s25
      %p184 = scmp.eq.s32.totalorder %s183, 0
      %s186 = sadd.s32 %s185, 1
      %s187 = scalar_select %p184, %s185, %s186
      %p190 = pneg %p184
      %p191 = scmp.eq.s32.totalorder %s18, 1
      %p192 = por %p190, %p191
      %p193 = scmp.ne.s32.totalorder %s185, %s188
      %p194 = scmp.eq.s32.totalorder %s18, 0
      %p195 = por %p193, %p194
      %p196 = scmp.ne.s32.totalorder %s185, %s188
      %p197 = scmp.eq.s32.totalorder %s23, 1
      %p198 = por %p196, %p197
      %p199 = scmp.ne.s32.totalorder %s188, %s189
      %p200 = scmp.eq.s32.totalorder %s23, 0
      %p201 = por %p199, %p200
      %p202 = scmp.ne.s32.totalorder %s188, %s189
      %p203 = scmp.eq.s32.totalorder %s24, 1
      %p204 = por %p202, %p203
      %p206 = scmp.ne.s32.totalorder %s189, %s205
      %p207 = scmp.eq.s32.totalorder %s24, 0
      %p208 = por %p206, %p207
      %s209 = ssub.s32 %s18, %s25
      %p210 = scmp.eq.s32.totalorder %s209, 0
      %s212 = sadd.s32 %s211, 1
      %s213 = scalar_select %p210, %s211, %s212
      %p216 = pneg %p210
      %p217 = scmp.eq.s32.totalorder %s18, 1
      %p218 = por %p216, %p217
      %p219 = scmp.ne.s32.totalorder %s211, %s214
      %p220 = scmp.eq.s32.totalorder %s18, 0
      %p221 = por %p219, %p220
      %p222 = scmp.ne.s32.totalorder %s211, %s214
      %p223 = scmp.eq.s32.totalorder %s23, 1
      %p224 = por %p222, %p223
      %p225 = scmp.ne.s32.totalorder %s214, %s215
      %p226 = scmp.eq.s32.totalorder %s23, 0
      %p227 = por %p225, %p226
      %p228 = scmp.ne.s32.totalorder %s214, %s215
      %p229 = scmp.eq.s32.totalorder %s24, 1
      %p230 = por %p228, %p229
      %p232 = scmp.ne.s32.totalorder %s215, %s231
      %p233 = scmp.eq.s32.totalorder %s24, 0
      %p234 = por %p232, %p233
      %p235 = scmp.le.s32.totalorder 1, %s18
      %p236 = scmp.lt.s32.totalorder %s18, 3
      %p237 = pnand %p235, %p236
      %p238 = pneg %p237
      // Predicated region
      $region9: #{backbone_with_fpn_forward.11} parent=5 // pred_check
        _
      $region10: #{backbone_with_fpn_forward.11} parent=5 // pred_check_branch
        %240 = sbr.rel (%p237) target = $region12
      $region11: #{backbone_with_fpn_forward.11} parent=5 // pred_region
        %s241 = ssub.s32 %s18, 1
        // Predicated region
        $region13: #{backbone_with_fpn_forward.11} parent=11 // pred_check
          %p242 = pneg %p91
        $region14: #{backbone_with_fpn_forward.11} parent=11 // pred_check_branch
          %244 = sbr.rel (%p242) target = $region16
        $region15: #{backbone_with_fpn_forward.11} parent=11 // pred_region
          _
        $region16: #{backbone_with_fpn_forward.11} parent=11 // pred_fallthru
          _
        // Predicated region
        $region17: #{backbone_with_fpn_forward.11} parent=11 // pred_check
          %p245 = pneg %p112
        $region18: #{backbone_with_fpn_forward.11} parent=11 // pred_check_branch
          %247 = sbr.rel (%p245) target = $region20
        $region19: #{backbone_with_fpn_forward.11} parent=11 // pred_region
          _
        $region20: #{backbone_with_fpn_forward.11} parent=11 // pred_fallthru
          _
        // Predicated region
        $region21: #{backbone_with_fpn_forward.11} parent=11 // pred_check
          %p248 = pneg %p133
        $region22: #{backbone_with_fpn_forward.11} parent=11 // pred_check_branch
          %250 = sbr.rel (%p248) target = $region24
        $region23: #{backbone_with_fpn_forward.11} parent=11 // pred_region
          _
        $region24: #{backbone_with_fpn_forward.11} parent=11 // pred_fallthru
          _
        // Predicated region
        $region25: #{backbone_with_fpn_forward.11} parent=11 // pred_check
          %p251 = pneg %p154
        $region26: #{backbone_with_fpn_forward.11} parent=11 // pred_check_branch
          %253 = sbr.rel (%p251) target = $region28
        $region27: #{backbone_with_fpn_forward.11} parent=11 // pred_region
          _
        $region28: #{backbone_with_fpn_forward.11} parent=11 // pred_fallthru
          _
        // Predicated region
        $region29: #{backbone_with_fpn_forward.11} parent=11 // pred_check
          %p254 = pneg %p175
        $region30: #{backbone_with_fpn_forward.11} parent=11 // pred_check_branch
          %256 = sbr.rel (%p254) target = $region32
        $region31: #{backbone_with_fpn_forward.11} parent=11 // pred_region
          _
        $region32: #{backbone_with_fpn_forward.11} parent=11 // pred_fallthru
          _
      $region12: #{backbone_with_fpn_forward.11} parent=5 // pred_fallthru
        _
      %p257 = scmp.lt.s32.totalorder %s18, 2
      // Predicated region
      $region33: #{backbone_with_fpn_forward.11} parent=5 // pred_check
        %p258 = pneg %p257
      $region34: #{backbone_with_fpn_forward.11} parent=5 // pred_check_branch
        %260 = sbr.rel (%p258) target = $region36
      $region35: #{backbone_with_fpn_forward.11} parent=5 // pred_region
        // Predicated region
        $region37: #{backbone_with_fpn_forward.11} parent=35 // pred_check
          %p261 = pneg %p38
        $region38: #{backbone_with_fpn_forward.11} parent=35 // pred_check_branch
          %263 = sbr.rel (%p261) target = $region40
        $region39: #{backbone_with_fpn_forward.11} parent=35 // pred_region
          %p264 = scmp.lt.s32.totalorder %s18, 1
          %s265 = scalar_select %p264, %s18, 1
          %s266 = smul.addr %s265, 8
          %s267 = smul.addr %s266, 4
          %s268 = scalar_lea.vmem %s0, %s267
        $region40: #{backbone_with_fpn_forward.11} parent=35 // pred_fallthru
          _
        // Predicated region
        $region41: #{backbone_with_fpn_forward.11} parent=35 // pred_check
          %p269 = pneg %p64
        $region42: #{backbone_with_fpn_forward.11} parent=35 // pred_check_branch
          %271 = sbr.rel (%p269) target = $region44
        $region43: #{backbone_with_fpn_forward.11} parent=35 // pred_region
          %p272 = scmp.lt.s32.totalorder %s18, 1
          %s273 = scalar_select %p272, %s18, 1
          %s274 = smul.addr %s273, 16
          %s275 = smul.addr %s274, 4
          %s276 = scalar_lea.vmem %s1, %s275
        $region44: #{backbone_with_fpn_forward.11} parent=35 // pred_fallthru
          _
      $region36: #{backbone_with_fpn_forward.11} parent=5 // pred_fallthru
        _
      %p277 = scmp.le.s32.totalorder 1, %s18
      %p278 = scmp.lt.s32.totalorder %s18, 3
      %p279 = pnand %p277, %p278
      %p280 = pneg %p279
      // Predicated region
      $region45: #{backbone_with_fpn_forward.11} parent=5 // pred_check
        _
      $region46: #{backbone_with_fpn_forward.11} parent=5 // pred_check_branch
        %282 = sbr.rel (%p279) target = $region48
      $region47: #{backbone_with_fpn_forward.11} parent=5 // pred_region
        %s283 = ssub.s32 %s18, 1
        %p284 = scmp.lt.s32.totalorder %s23, 1
        %s285 = scalar_select %p284, %s23, 1
        %s286 = smul.addr %s285, 8
        %s287 = smul.addr %s286, 4
        %s288 = scalar_lea.vmem %s0, %s287
        %p289 = pneg %p44
        %p290 = pneg %p41
        %p291 = scmp.lt.s32.totalorder %s23, 1
        %s292 = scalar_select %p291, %s23, 1
        %s293 = smul.addr %s292, 16
        %s294 = smul.addr %s293, 4
        %s295 = scalar_lea.vmem %s1, %s294
        %p296 = pneg %p70
        %p297 = pneg %p67
        %p298 = pneg %p91
        %p299 = pneg %p88
        %p300 = pneg %p112
        %p301 = pneg %p109
        %p302 = pneg %p133
        %p303 = pneg %p130
        %p304 = pneg %p154
        %p305 = pneg %p151
        %p306 = pneg %p175
        %p307 = pneg %p172
        %p308 = pneg %p201
        %p309 = pneg %p198
        %s310 = sand.u32 %s188, 1
        %s311 = scalar_lea.sflag [#allocation4], %s310
        %s312 = sand.u32 %s188, 1
        %s313 = smul.addr %s312, 64
        %s314 = scalar_lea.vmem [#allocation3], %s313
        %p315 = pneg %p227
        %p316 = pneg %p224
        %p317 = scmp.lt.s32.totalorder %s23, 1
        %s318 = scalar_select %p317, %s23, 1
        %s319 = smul.addr %s318, 8
        %s320 = smul.addr %s319, 8
        %s321 = scalar_lea.vmem %s8, %s320
        %p322 = scmp.lt.s32.totalorder %s23, 1
        %s323 = scalar_select %p322, %s23, 1
        %s324 = smul.addr %s323, 8
        %s325 = smul.addr %s324, 4
        %s326 = scalar_lea.vmem %s0, %s325
        %p327 = scmp.lt.s32.totalorder %s23, 1
        %s328 = scalar_select %p327, %s23, 1
        %s329 = smul.addr %s328, 16
        %s330 = smul.addr %s329, 4
        %s331 = scalar_lea.vmem %s1, %s330
        %p332 = scmp.lt.s32.totalorder %s23, 1
        %s333 = scalar_select %p332, %s23, 1
        %s334 = smul.addr %s333, 8
        %s335 = smul.addr %s334, 8
        %s336 = scalar_lea.vmem %s8, %s335
        %v338 = vld [vmem:[%s326] sm:$0xf]
        %v339 = vld [vmem:[%s326 + $0x4] sm:$0xf]
        %v340 = vld [vmem:[%s326 + $0x8] sm:$0xf]
        %v341 = vld [vmem:[%s326 + $0xc] sm:$0xf]
        %v342 = vld [vmem:[%s326 + $0x10] sm:$0xf]
        %v343 = vld [vmem:[%s326 + $0x14] sm:$0xf]
        %v344 = vld [vmem:[%s326 + $0x18] sm:$0xf]
        %v345 = vld [vmem:[%s326 + $0x1c] sm:$0xf]
        %v346 = vld [vmem:[%s3] sm:$0xf]
        %v347 = vld [vmem:[%s3 + $0x4] sm:$0xf]
        %v348 = vld [vmem:[%s3 + $0x8] sm:$0xf]
        %v349 = vld [vmem:[%s3 + $0xc] sm:$0xf]
        %v350 = vld [vmem:[%s3 + $0x10] sm:$0xf]
        %v351 = vld [vmem:[%s3 + $0x14] sm:$0xf]
        %v352 = vld [vmem:[%s3 + $0x18] sm:$0xf]
        %v353 = vld [vmem:[%s3 + $0x1c] sm:$0xf]
        %v354 = vld [vmem:[%s3 + $0x20] sm:$0xf]
        %v355 = vld [vmem:[%s3 + $0x24] sm:$0xf]
        %v356 = vld [vmem:[%s3 + $0x28] sm:$0xf]
        %v357 = vld [vmem:[%s3 + $0x2c] sm:$0xf]
        %v358 = vld [vmem:[%s3 + $0x30] sm:$0xf]
        %v359 = vld [vmem:[%s3 + $0x34] sm:$0xf]
        %v360 = vld [vmem:[%s3 + $0x38] sm:$0xf]
        %v361 = vld [vmem:[%s3 + $0x3c] sm:$0xf]
        %v362 = vld [vmem:[%s4] sm:$0x1]
        %v364 = vlaneseq
        %v365 = vshrl.u32 %v364, 7
        %v366 = vsub.s32 0, %v365
        %v367 = vrot.slane %v362, %v366
        %v377 = vunpack.c.l.b16 %v338
        %v378 = vunpack.c.l.b16 %v339
        %v379 = vunpack.c.l.b16 %v340
        %v380 = vunpack.c.l.b16 %v341
        %v381 = vunpack.c.l.b16 %v342
        %v382 = vunpack.c.l.b16 %v343
        %v383 = vunpack.c.l.b16 %v344
        %v384 = vunpack.c.l.b16 %v345
        %v385 = vpack.c.b16 %v378, %v377
        %v386 = vpack.c.b16 %v380, %v379
        %v387 = vpack.c.b16 %v382, %v381
        %v388 = vpack.c.b16 %v384, %v383
        %v409 = vunpack.c.l.b16 %v346
        %v410 = vunpack.c.l.b16 %v347
        %v411 = vunpack.c.l.b16 %v348
        %v412 = vunpack.c.l.b16 %v349
        %v413 = vunpack.c.l.b16 %v350
        %v414 = vunpack.c.l.b16 %v351
        %v415 = vunpack.c.l.b16 %v352
        %v416 = vunpack.c.l.b16 %v353
        %v417 = vunpack.c.l.b16 %v354
        %v418 = vunpack.c.l.b16 %v355
        %v419 = vunpack.c.l.b16 %v356
        %v420 = vunpack.c.l.b16 %v357
        %v421 = vunpack.c.l.b16 %v358
        %v422 = vunpack.c.l.b16 %v359
        %v423 = vunpack.c.l.b16 %v360
        %v424 = vunpack.c.l.b16 %v361
        %v425 = vpack.c.b16 %v410, %v409
        %v426 = vpack.c.b16 %v412, %v411
        %v427 = vpack.c.b16 %v414, %v413
        %v428 = vpack.c.b16 %v416, %v415
        %v429 = vpack.c.b16 %v418, %v417
        %v430 = vpack.c.b16 %v420, %v419
        %v431 = vpack.c.b16 %v422, %v421
        %v432 = vpack.c.b16 %v424, %v423
        %441 = vmatprep.subr.bf16.mxu0 0
        %442 = vmatpush1.bf16.msra.mxu0 %v425
        %443 = vmatprep.subr.bf16.mxu0 0
        %444 = vmatpush1.bf16.msra.mxu0 %v426
        %445 = vmatprep.subr.bf16.mxu0 0
        %446 = vmatpush1.bf16.msra.mxu0 %v427
        %447 = vmatprep.subr.bf16.mxu0 0
        %448 = vmatpush1.bf16.msra.mxu0 %v428
        %449 = vmatprep.subr.bf16.mxu0 0
        %450 = vmatpush1.bf16.msra.mxu0 %v429
        %451 = vmatprep.subr.bf16.mxu0 0
        %452 = vmatpush1.bf16.msra.mxu0 %v430
        %453 = vmatprep.subr.bf16.mxu0 0
        %454 = vmatpush1.bf16.msra.mxu0 %v431
        %455 = vmatprep.subr.bf16.mxu0 0
        %456 = vmatpush1.bf16.msra.mxu0 %v432
        %457 = vmatprep.subr.bf16.mxu0 0
        %458 = vmatpush1.bf16.msra.mxu0 0
        %459 = vmatprep.subr.bf16.mxu0 0
        %460 = vmatpush1.bf16.msra.mxu0 0
        %461 = vmatprep.subr.bf16.mxu0 0
        %462 = vmatpush1.bf16.msra.mxu0 0
        %463 = vmatprep.subr.bf16.mxu0 0
        %464 = vmatpush1.bf16.msra.mxu0 0
        %465 = vmatprep.subr.bf16.mxu0 0
        %466 = vmatpush1.bf16.msra.mxu0 0
        %467 = vmatprep.subr.bf16.mxu0 0
        %468 = vmatpush1.bf16.msra.mxu0 0
        %469 = vmatprep.subr.bf16.mxu0 0
        %470 = vmatpush1.bf16.msra.mxu0 0
        %471 = vmatprep.subr.bf16.mxu0 0
        %472 = vmatpush1.bf16.msra.mxu0 0
        %473 = vmatprep.mubr.bf16.mxu0 0
        %474 = vmatmul.mubr.bf16.gmra.mrb[0].mxu0 %v385
        %v475 = vpop.f32.mrb[0].mxu0
        %v476 = vadd.f32 %v367, %v475
        %v477 = vpop.f32.mrb[0].mxu0
        %v478 = vpop.f32.mrb[0].mxu0
        %v479 = vadd.f32 %v367, %v478
        %v480 = vpop.f32.mrb[0].mxu0
        %481 = vmatprep.mubr.bf16.mxu0 0
        %482 = vmatmul.mubr.bf16.gmra.mrb[0].mxu0 %v386
        %v483 = vpop.f32.mrb[0].mxu0
        %v484 = vadd.f32 %v367, %v483
        %v485 = vpop.f32.mrb[0].mxu0
        %v486 = vpop.f32.mrb[0].mxu0
        %v487 = vadd.f32 %v367, %v486
        %v488 = vpop.f32.mrb[0].mxu0
        %489 = vmatprep.mubr.bf16.mxu0 0
        %490 = vmatmul.mubr.bf16.gmra.mrb[0].mxu0 %v387
        %v491 = vpop.f32.mrb[0].mxu0
        %v492 = vadd.f32 %v367, %v491
        %v493 = vpop.f32.mrb[0].mxu0
        %v494 = vpop.f32.mrb[0].mxu0
        %v495 = vadd.f32 %v367, %v494
        %v496 = vpop.f32.mrb[0].mxu0
        %497 = vmatprep.mubr.bf16.mxu0 0
        %498 = vmatmul.mubr.bf16.gmra.mrb[0].mxu0 %v388
        %v499 = vpop.f32.mrb[0].mxu0
        %v500 = vadd.f32 %v367, %v499
        %v501 = vpop.f32.mrb[0].mxu0
        %v502 = vpop.f32.mrb[0].mxu0
        %v503 = vadd.f32 %v367, %v502
        %v504 = vpop.f32.mrb[0].mxu0
        %505 = vdwg.mxu0
        %v506 = vld [vmem:[%s2] sm:$0xf]
        %v507 = vld [vmem:[%s2 + $0x4] sm:$0xf]
        %v508 = vld [vmem:[%s2 + $0x8] sm:$0xf]
        %v509 = vld [vmem:[%s2 + $0xc] sm:$0xf]
        %v510 = vld [vmem:[%s2 + $0x10] sm:$0xf]
        %v511 = vld [vmem:[%s2 + $0x14] sm:$0xf]
        %v512 = vld [vmem:[%s2 + $0x18] sm:$0xf]
        %v513 = vld [vmem:[%s2 + $0x1c] sm:$0xf]
        %v514 = vld [vmem:[%s331] sm:$0xf]
        %v515 = vld [vmem:[%s331 + $0x4] sm:$0xf]
        %v516 = vld [vmem:[%s331 + $0x8] sm:$0xf]
        %v517 = vld [vmem:[%s331 + $0xc] sm:$0xf]
        %v518 = vld [vmem:[%s331 + $0x10] sm:$0xf]
        %v519 = vld [vmem:[%s331 + $0x14] sm:$0xf]
        %v520 = vld [vmem:[%s331 + $0x18] sm:$0xf]
        %v521 = vld [vmem:[%s331 + $0x1c] sm:$0xf]
        %v522 = vld [vmem:[%s331 + $0x20] sm:$0xf]
        %v523 = vld [vmem:[%s331 + $0x24] sm:$0xf]
        %v524 = vld [vmem:[%s331 + $0x28] sm:$0xf]
        %v525 = vld [vmem:[%s331 + $0x2c] sm:$0xf]
        %v526 = vld [vmem:[%s331 + $0x30] sm:$0xf]
        %v527 = vld [vmem:[%s331 + $0x34] sm:$0xf]
        %v528 = vld [vmem:[%s331 + $0x38] sm:$0xf]
        %v529 = vld [vmem:[%s331 + $0x3c] sm:$0xf]
        %v538 = vunpack.c.l.b16 %v506
        %v539 = vunpack.c.l.b16 %v507
        %v540 = vunpack.c.l.b16 %v508
        %v541 = vunpack.c.l.b16 %v509
        %v542 = vunpack.c.l.b16 %v510
        %v543 = vunpack.c.l.b16 %v511
        %v544 = vunpack.c.l.b16 %v512
        %v545 = vunpack.c.l.b16 %v513
        %v546 = vpack.c.b16 %v539, %v538
        %v547 = vpack.c.b16 %v541, %v540
        %v548 = vpack.c.b16 %v543, %v542
        %v549 = vpack.c.b16 %v545, %v544
        %v570 = vunpack.c.l.b16 %v514
        %v571 = vunpack.c.l.b16 %v515
        %v572 = vunpack.c.l.b16 %v516
        %v573 = vunpack.c.l.b16 %v517
        %v574 = vunpack.c.l.b16 %v518
        %v575 = vunpack.c.l.b16 %v519
        %v576 = vunpack.c.l.b16 %v520
        %v577 = vunpack.c.l.b16 %v521
        %v578 = vunpack.c.l.b16 %v522
        %v579 = vunpack.c.l.b16 %v523
        %v580 = vunpack.c.l.b16 %v524
        %v581 = vunpack.c.l.b16 %v525
        %v582 = vunpack.c.l.b16 %v526
        %v583 = vunpack.c.l.b16 %v527
        %v584 = vunpack.c.l.b16 %v528
        %v585 = vunpack.c.l.b16 %v529
        %v586 = vpack.c.b16 %v571, %v570
        %v587 = vpack.c.b16 %v573, %v572
        %v588 = vpack.c.b16 %v575, %v574
        %v589 = vpack.c.b16 %v577, %v576
        %v590 = vpack.c.b16 %v579, %v578
        %v591 = vpack.c.b16 %v581, %v580
        %v592 = vpack.c.b16 %v583, %v582
        %v593 = vpack.c.b16 %v585, %v584
        %602 = vmatprep.subr.bf16.mxu0 0
        %603 = vmatpush1.bf16.msra.mxu0 %v586
        %604 = vmatprep.subr.bf16.mxu0 0
        %605 = vmatpush1.bf16.msra.mxu0 %v587
        %606 = vmatprep.subr.bf16.mxu0 0
        %607 = vmatpush1.bf16.msra.mxu0 %v588
        %608 = vmatprep.subr.bf16.mxu0 0
        %609 = vmatpush1.bf16.msra.mxu0 %v589
        %610 = vmatprep.subr.bf16.mxu0 0
        %611 = vmatpush1.bf16.msra.mxu0 %v590
        %612 = vmatprep.subr.bf16.mxu0 0
        %613 = vmatpush1.bf16.msra.mxu0 %v591
        %614 = vmatprep.subr.bf16.mxu0 0
        %615 = vmatpush1.bf16.msra.mxu0 %v592
        %616 = vmatprep.subr.bf16.mxu0 0
        %617 = vmatpush1.bf16.msra.mxu0 %v593
        %618 = vmatprep.subr.bf16.mxu0 0
        %619 = vmatpush1.bf16.msra.mxu0 0
        %620 = vmatprep.subr.bf16.mxu0 0
        %621 = vmatpush1.bf16.msra.mxu0 0
        %622 = vmatprep.subr.bf16.mxu0 0
        %623 = vmatpush1.bf16.msra.mxu0 0
        %624 = vmatprep.subr.bf16.mxu0 0
        %625 = vmatpush1.bf16.msra.mxu0 0
        %626 = vmatprep.subr.bf16.mxu0 0
        %627 = vmatpush1.bf16.msra.mxu0 0
        %628 = vmatprep.subr.bf16.mxu0 0
        %629 = vmatpush1.bf16.msra.mxu0 0
        %630 = vmatprep.subr.bf16.mxu0 0
        %631 = vmatpush1.bf16.msra.mxu0 0
        %632 = vmatprep.subr.bf16.mxu0 0
        %633 = vmatpush1.bf16.msra.mxu0 0
        %634 = vmatprep.mubr.bf16.mxu0 0
        %635 = vmatmul.mubr.bf16.gmra.mrb[0].mxu0 %v546
        %v636 = vpop.f32.mrb[0].mxu0
        %v637 = vadd.f32 0.0, %v636
        %v638 = vpop.f32.mrb[0].mxu0
        %v639 = vpop.f32.mrb[0].mxu0
        %v640 = vadd.f32 0.0, %v639
        %v641 = vpop.f32.mrb[0].mxu0
        %642 = vmatprep.mubr.bf16.mxu0 0
        %643 = vmatmul.mubr.bf16.gmra.mrb[0].mxu0 %v547
        %v644 = vpop.f32.mrb[0].mxu0
        %v645 = vadd.f32 0.0, %v644
        %v646 = vpop.f32.mrb[0].mxu0
        %v647 = vpop.f32.mrb[0].mxu0
        %v648 = vadd.f32 0.0, %v647
        %v649 = vpop.f32.mrb[0].mxu0
        %650 = vmatprep.mubr.bf16.mxu0 0
        %651 = vmatmul.mubr.bf16.gmra.mrb[0].mxu0 %v548
        %v652 = vpop.f32.mrb[0].mxu0
        %v653 = vadd.f32 0.0, %v652
        %v654 = vpop.f32.mrb[0].mxu0
        %v655 = vpop.f32.mrb[0].mxu0
        %v656 = vadd.f32 0.0, %v655
        %v657 = vpop.f32.mrb[0].mxu0
        %658 = vmatprep.mubr.bf16.mxu0 0
        %659 = vmatmul.mubr.bf16.gmra.mrb[0].mxu0 %v549
        %v660 = vpop.f32.mrb[0].mxu0
        %v661 = vadd.f32 0.0, %v660
        %v662 = vpop.f32.mrb[0].mxu0
        %v663 = vpop.f32.mrb[0].mxu0
        %v664 = vadd.f32 0.0, %v663
        %v665 = vpop.f32.mrb[0].mxu0
        %666 = vdwg.mxu0
        %v667 = vadd.f32 %v476, %v637
        %v668 = vadd.f32 %v479, %v640
        %v669 = vadd.f32 %v484, %v645
        %v670 = vadd.f32 %v487, %v648
        %v671 = vadd.f32 %v492, %v653
        %v672 = vadd.f32 %v495, %v656
        %v673 = vadd.f32 %v500, %v661
        %v674 = vadd.f32 %v503, %v664
        %675 = vst [vmem:[%s314] sm:$0xf] 0
        %676 = vst [vmem:[%s314 + $0x4] sm:$0xf] 0
        %677 = vst [vmem:[%s314 + $0x8] sm:$0xf] 0
        %678 = vst [vmem:[%s314 + $0xc] sm:$0xf] 0
        %679 = vst [vmem:[%s314 + $0x10] sm:$0xf] 0
        %680 = vst [vmem:[%s314 + $0x14] sm:$0xf] 0
        %681 = vst [vmem:[%s314 + $0x18] sm:$0xf] 0
        %682 = vst [vmem:[%s314 + $0x1c] sm:$0xf] 0
        %683 = vst [vmem:[%s314 + $0x20] sm:$0xf] 0
        %684 = vst [vmem:[%s314 + $0x24] sm:$0xf] 0
        %685 = vst [vmem:[%s314 + $0x28] sm:$0xf] 0
        %686 = vst [vmem:[%s314 + $0x2c] sm:$0xf] 0
        %687 = vst [vmem:[%s314 + $0x30] sm:$0xf] 0
        %688 = vst [vmem:[%s314 + $0x34] sm:$0xf] 0
        %689 = vst [vmem:[%s314 + $0x38] sm:$0xf] 0
        %690 = vst [vmem:[%s314 + $0x3c] sm:$0xf] 0
        %v691 = vpack.c.bf16 %v668, %v667
        %v692 = vpack.c.bf16 %v670, %v669
        %v693 = vpack.c.bf16 %v672, %v671
        %v694 = vpack.c.bf16 %v674, %v673
        %v699 = vunpack.c.l.b16 %v691
        %v700 = vunpack.c.h.b16 %v691
        %v701 = vunpack.c.l.b16 %v692
        %v702 = vunpack.c.h.b16 %v692
        %v703 = vunpack.c.l.b16 %v693
        %v704 = vunpack.c.h.b16 %v693
        %v705 = vunpack.c.l.b16 %v694
        %v706 = vunpack.c.h.b16 %v694
        %v707 = vpack.c.b16 %v699, %v699
        %v708 = vpack.c.b16 %v700, %v700
        %v709 = vpack.c.b16 %v701, %v701
        %v710 = vpack.c.b16 %v702, %v702
        %v711 = vpack.c.b16 %v703, %v703
        %v712 = vpack.c.b16 %v704, %v704
        %v713 = vpack.c.b16 %v705, %v705
        %v714 = vpack.c.b16 %v706, %v706
        %723 = vst [vmem:[%s314] sm:$0xf] %v707
        %724 = vst [vmem:[%s314 + $0x4] sm:$0xf] %v708
        %725 = vst [vmem:[%s314 + $0x8] sm:$0xf] %v709
        %726 = vst [vmem:[%s314 + $0xc] sm:$0xf] %v710
        %727 = vst [vmem:[%s314 + $0x10] sm:$0xf] %v711
        %728 = vst [vmem:[%s314 + $0x14] sm:$0xf] %v712
        %729 = vst [vmem:[%s314 + $0x18] sm:$0xf] %v713
        %730 = vst [vmem:[%s314 + $0x1c] sm:$0xf] %v714
        %731 = vst [vmem:[#allocation2] sm:$0xff] 0.0
        %732 = vst [vmem:[#allocation2 + $0x8] sm:$0xff] 0.0
        %733 = vst [vmem:[#allocation2 + $0x10] sm:$0xff] 0.0
        %734 = vst [vmem:[#allocation2 + $0x18] sm:$0xff] 0.0
        %735 = vst [vmem:[#allocation2 + $0x20] sm:$0xff] 0.0
        %736 = vst [vmem:[#allocation2 + $0x28] sm:$0xff] 0.0
        %737 = vst [vmem:[#allocation2 + $0x30] sm:$0xff] 0.0
        %738 = vst [vmem:[#allocation2 + $0x38] sm:$0xff] 0.0
        %739 = vst [vmem:[#allocation2 + $0x40] sm:$0xff] 0.0
        %740 = vst [vmem:[#allocation2 + $0x48] sm:$0xff] 0.0
        %741 = vst [vmem:[#allocation2 + $0x50] sm:$0xff] 0.0
        %742 = vst [vmem:[#allocation2 + $0x58] sm:$0xff] 0.0
        %743 = vst [vmem:[#allocation2 + $0x10] sm:$0xff] %v667
        %744 = vst [vmem:[#allocation2 + $0x18] sm:$0xff] %v668
        %745 = vst [vmem:[#allocation2 + $0x20] sm:$0xff] %v669
        %746 = vst [vmem:[#allocation2 + $0x28] sm:$0xff] %v670
        %747 = vst [vmem:[#allocation2 + $0x30] sm:$0xff] %v671
        %748 = vst [vmem:[#allocation2 + $0x38] sm:$0xff] %v672
        %749 = vst [vmem:[#allocation2 + $0x40] sm:$0xff] %v673
        %750 = vst [vmem:[#allocation2 + $0x48] sm:$0xff] %v674
        %v751 = vlaneseq
        %v752 = vshrl.u32 %v751, 7
        %v753 = vadd.s32 %v752, 8
        %v754 = vadd.s32 %v752, 16
        %v755 = vadd.s32 %v752, 24
        %v756 = vadd.s32 %v752, 32
        %v757 = vadd.s32 %v752, 40
        %v758 = vadd.s32 %v752, 48
        %v759 = vadd.s32 %v752, 56
        %v760 = vand.u32 %v752, 7
        %v761 = vand.u32 %v753, 7
        %v762 = vand.u32 %v754, 7
        %v763 = vand.u32 %v755, 7
        %v764 = vand.u32 %v756, 7
        %v765 = vand.u32 %v757, 7
        %v766 = vand.u32 %v758, 7
        %v767 = vand.u32 %v759, 7
        %v768 = vld [vmem:[#allocation2 + $0x7] sm:$0xff]
        %v769 = vld [vmem:[#allocation2 + $0xf] sm:$0xff]
        %v770 = vld [vmem:[#allocation2 + $0x17] sm:$0xff]
        %v771 = vld [vmem:[#allocation2 + $0x1f] sm:$0xff]
        %v772 = vld [vmem:[#allocation2 + $0x27] sm:$0xff]
        %v773 = vld [vmem:[#allocation2 + $0x2f] sm:$0xff]
        %v774 = vld [vmem:[#allocation2 + $0x37] sm:$0xff]
        %v775 = vld [vmem:[#allocation2 + $0x3f] sm:$0xff]
        %v776 = vadd.s32 %v760, 4294967295
        %v777 = vadd.s32 %v761, 4294967295
        %v778 = vadd.s32 %v762, 4294967295
        %v779 = vadd.s32 %v763, 4294967295
        %v780 = vadd.s32 %v764, 4294967295
        %v781 = vadd.s32 %v765, 4294967295
        %v782 = vadd.s32 %v766, 4294967295
        %v783 = vadd.s32 %v767, 4294967295
        %vm784 = vcmp.ge.s32.totalorder %v776, 0
        %vm785 = vcmp.ge.s32.totalorder %v777, 0
        %vm786 = vcmp.ge.s32.totalorder %v778, 0
        %vm787 = vcmp.ge.s32.totalorder %v779, 0
        %vm788 = vcmp.ge.s32.totalorder %v780, 0
        %vm789 = vcmp.ge.s32.totalorder %v781, 0
        %vm790 = vcmp.ge.s32.totalorder %v782, 0
        %vm791 = vcmp.ge.s32.totalorder %v783, 0
        %vm792 = vcmp.lt.s32.totalorder %v776, 8
        %vm793 = vcmp.lt.s32.totalorder %v777, 8
        %vm794 = vcmp.lt.s32.totalorder %v778, 8
        %vm795 = vcmp.lt.s32.totalorder %v779, 8
        %vm796 = vcmp.lt.s32.totalorder %v780, 8
        %vm797 = vcmp.lt.s32.totalorder %v781, 8
        %vm798 = vcmp.lt.s32.totalorder %v782, 8
        %vm799 = vcmp.lt.s32.totalorder %v783, 8
        %vm800 = vmand %vm784, %vm792
        %vm801 = vmand %vm785, %vm793
        %vm802 = vmand %vm786, %vm794
        %vm803 = vmand %vm787, %vm795
        %vm804 = vmand %vm788, %vm796
        %vm805 = vmand %vm789, %vm797
        %vm806 = vmand %vm790, %vm798
        %vm807 = vmand %vm791, %vm799
        %v808 = vsel %vm800, 1, 0
        %v809 = vsel %vm801, 1, 0
        %v810 = vsel %vm802, 1, 0
        %v811 = vsel %vm803, 1, 0
        %v812 = vsel %vm804, 1, 0
        %v813 = vsel %vm805, 1, 0
        %v814 = vsel %vm806, 1, 0
        %v815 = vsel %vm807, 1, 0
        %vm816 = vcmp.eq.s32.totalorder %v808, 1
        %vm817 = vcmp.eq.s32.totalorder %v809, 1
        %vm818 = vcmp.eq.s32.totalorder %v810, 1
        %vm819 = vcmp.eq.s32.totalorder %v811, 1
        %vm820 = vcmp.eq.s32.totalorder %v812, 1
        %vm821 = vcmp.eq.s32.totalorder %v813, 1
        %vm822 = vcmp.eq.s32.totalorder %v814, 1
        %vm823 = vcmp.eq.s32.totalorder %v815, 1
        %v824 = vsel %vm816, %v768, 0.0
        %v825 = vsel %vm817, %v769, 0.0
        %v826 = vsel %vm818, %v770, 0.0
        %v827 = vsel %vm819, %v771, 0.0
        %v828 = vsel %vm820, %v772, 0.0
        %v829 = vsel %vm821, %v773, 0.0
        %v830 = vsel %vm822, %v774, 0.0
        %v831 = vsel %vm823, %v775, 0.0
        %v832 = vpack.c.bf16 %v825, %v824
        %v833 = vpack.c.bf16 %v827, %v826
        %v834 = vpack.c.bf16 %v829, %v828
        %v835 = vpack.c.bf16 %v831, %v830
        %v836 = vld [vmem:[%s5] sm:$0xf]
        %v837 = vld [vmem:[%s5 + $0x4] sm:$0xf]
        %v838 = vld [vmem:[%s5 + $0x8] sm:$0xf]
        %v839 = vld [vmem:[%s5 + $0xc] sm:$0xf]
        %v840 = vld [vmem:[%s5 + $0x10] sm:$0xf]
        %v841 = vld [vmem:[%s5 + $0x14] sm:$0xf]
        %v842 = vld [vmem:[%s5 + $0x18] sm:$0xf]
        %v843 = vld [vmem:[%s5 + $0x1c] sm:$0xf]
        %v844 = vld [vmem:[%s5 + $0x20] sm:$0xf]
        %v845 = vld [vmem:[%s5 + $0x24] sm:$0xf]
        %v846 = vld [vmem:[%s5 + $0x28] sm:$0xf]
        %v847 = vld [vmem:[%s5 + $0x2c] sm:$0xf]
        %v848 = vld [vmem:[%s5 + $0x30] sm:$0xf]
        %v849 = vld [vmem:[%s5 + $0x34] sm:$0xf]
        %v850 = vld [vmem:[%s5 + $0x38] sm:$0xf]
        %v851 = vld [vmem:[%s5 + $0x3c] sm:$0xf]
        %v852 = vld [vmem:[#allocation2 + $0x8] sm:$0xff]
        %v853 = vld [vmem:[#allocation2 + $0x10] sm:$0xff]
        %v854 = vld [vmem:[#allocation2 + $0x18] sm:$0xff]
        %v855 = vld [vmem:[#allocation2 + $0x20] sm:$0xff]
        %v856 = vld [vmem:[#allocation2 + $0x28] sm:$0xff]
        %v857 = vld [vmem:[#allocation2 + $0x30] sm:$0xff]
        %v858 = vld [vmem:[#allocation2 + $0x38] sm:$0xff]
        %v859 = vld [vmem:[#allocation2 + $0x40] sm:$0xff]
        %v860 = vpack.c.bf16 %v853, %v852
        %v861 = vpack.c.bf16 %v855, %v854
        %v862 = vpack.c.bf16 %v857, %v856
        %v863 = vpack.c.bf16 %v859, %v858
        %s864 = scalar_lea.vmem %s5, 64
        %v865 = vld [vmem:[%s864] sm:$0xf]
        %v866 = vld [vmem:[%s864 + $0x4] sm:$0xf]
        %v867 = vld [vmem:[%s864 + $0x8] sm:$0xf]
        %v868 = vld [vmem:[%s864 + $0xc] sm:$0xf]
        %v869 = vld [vmem:[%s864 + $0x10] sm:$0xf]
        %v870 = vld [vmem:[%s864 + $0x14] sm:$0xf]
        %v871 = vld [vmem:[%s864 + $0x18] sm:$0xf]
        %v872 = vld [vmem:[%s864 + $0x1c] sm:$0xf]
        %v873 = vld [vmem:[%s864 + $0x20] sm:$0xf]
        %v874 = vld [vmem:[%s864 + $0x24] sm:$0xf]
        %v875 = vld [vmem:[%s864 + $0x28] sm:$0xf]
        %v876 = vld [vmem:[%s864 + $0x2c] sm:$0xf]
        %v877 = vld [vmem:[%s864 + $0x30] sm:$0xf]
        %v878 = vld [vmem:[%s864 + $0x34] sm:$0xf]
        %v879 = vld [vmem:[%s864 + $0x38] sm:$0xf]
        %v880 = vld [vmem:[%s864 + $0x3c] sm:$0xf]
        %v897 = vunpack.c.l.b16 %v865
        %v898 = vunpack.c.l.b16 %v866
        %v899 = vunpack.c.l.b16 %v867
        %v900 = vunpack.c.l.b16 %v868
        %v901 = vunpack.c.l.b16 %v869
        %v902 = vunpack.c.l.b16 %v870
        %v903 = vunpack.c.l.b16 %v871
        %v904 = vunpack.c.l.b16 %v872
        %v905 = vunpack.c.l.b16 %v873
        %v906 = vunpack.c.l.b16 %v874
        %v907 = vunpack.c.l.b16 %v875
        %v908 = vunpack.c.l.b16 %v876
        %v909 = vunpack.c.l.b16 %v877
        %v910 = vunpack.c.l.b16 %v878
        %v911 = vunpack.c.l.b16 %v879
        %v912 = vunpack.c.l.b16 %v880
        %v913 = vpack.c.b16 %v898, %v897
        %v914 = vpack.c.b16 %v900, %v899
        %v915 = vpack.c.b16 %v902, %v901
        %v916 = vpack.c.b16 %v904, %v903
        %v917 = vpack.c.b16 %v906, %v905
        %v918 = vpack.c.b16 %v908, %v907
        %v919 = vpack.c.b16 %v910, %v909
        %v920 = vpack.c.b16 %v912, %v911
        %929 = vmatprep.subr.bf16.mxu0 0
        %930 = vmatpush1.bf16.msra.mxu0 %v913
        %931 = vmatprep.subr.bf16.mxu0 0
        %932 = vmatpush1.bf16.msra.mxu0 %v914
        %933 = vmatprep.subr.bf16.mxu0 0
        %934 = vmatpush1.bf16.msra.mxu0 %v915
        %935 = vmatprep.subr.bf16.mxu0 0
        %936 = vmatpush1.bf16.msra.mxu0 %v916
        %937 = vmatprep.subr.bf16.mxu0 0
        %938 = vmatpush1.bf16.msra.mxu0 %v917
        %939 = vmatprep.subr.bf16.mxu0 0
        %940 = vmatpush1.bf16.msra.mxu0 %v918
        %941 = vmatprep.subr.bf16.mxu0 0
        %942 = vmatpush1.bf16.msra.mxu0 %v919
        %943 = vmatprep.subr.bf16.mxu0 0
        %944 = vmatpush1.bf16.msra.mxu0 %v920
        %945 = vmatprep.subr.bf16.mxu0 0
        %946 = vmatpush1.bf16.msra.mxu0 0
        %947 = vmatprep.subr.bf16.mxu0 0
        %948 = vmatpush1.bf16.msra.mxu0 0
        %949 = vmatprep.subr.bf16.mxu0 0
        %950 = vmatpush1.bf16.msra.mxu0 0
        %951 = vmatprep.subr.bf16.mxu0 0
        %952 = vmatpush1.bf16.msra.mxu0 0
        %953 = vmatprep.subr.bf16.mxu0 0
        %954 = vmatpush1.bf16.msra.mxu0 0
        %955 = vmatprep.subr.bf16.mxu0 0
        %956 = vmatpush1.bf16.msra.mxu0 0
        %957 = vmatprep.subr.bf16.mxu0 0
        %958 = vmatpush1.bf16.msra.mxu0 0
        %959 = vmatprep.subr.bf16.mxu0 0
        %960 = vmatpush1.bf16.msra.mxu0 0
        %961 = vmatprep.mubr.bf16.mxu0 0
        %962 = vmatmul.mubr.bf16.gmra.mrb[0].mxu0 %v860
        %v963 = vpop.f32.mrb[0].mxu0
        %v964 = vadd.f32 0.0, %v963
        %v965 = vpop.f32.mrb[0].mxu0
        %v966 = vpop.f32.mrb[0].mxu0
        %v967 = vadd.f32 0.0, %v966
        %v968 = vpop.f32.mrb[0].mxu0
        %969 = vmatprep.mubr.bf16.mxu0 0
        %970 = vmatmul.mubr.bf16.gmra.mrb[0].mxu0 %v861
        %v971 = vpop.f32.mrb[0].mxu0
        %v972 = vadd.f32 0.0, %v971
        %v973 = vpop.f32.mrb[0].mxu0
        %v974 = vpop.f32.mrb[0].mxu0
        %v975 = vadd.f32 0.0, %v974
        %v976 = vpop.f32.mrb[0].mxu0
        %977 = vmatprep.mubr.bf16.mxu0 0
        %978 = vmatmul.mubr.bf16.gmra.mrb[0].mxu0 %v862
        %v979 = vpop.f32.mrb[0].mxu0
        %v980 = vadd.f32 0.0, %v979
        %v981 = vpop.f32.mrb[0].mxu0
        %v982 = vpop.f32.mrb[0].mxu0
        %v983 = vadd.f32 0.0, %v982
        %v984 = vpop.f32.mrb[0].mxu0
        %985 = vmatprep.mubr.bf16.mxu0 0
        %986 = vmatmul.mubr.bf16.gmra.mrb[0].mxu0 %v863
        %v987 = vpop.f32.mrb[0].mxu0
        %v988 = vadd.f32 0.0, %v987
        %v989 = vpop.f32.mrb[0].mxu0
        %v990 = vpop.f32.mrb[0].mxu0
        %v991 = vadd.f32 0.0, %v990
        %v992 = vpop.f32.mrb[0].mxu0
        %993 = vdwg.mxu0
        %v1010 = vunpack.c.l.b16 %v836
        %v1011 = vunpack.c.l.b16 %v837
        %v1012 = vunpack.c.l.b16 %v838
        %v1013 = vunpack.c.l.b16 %v839
        %v1014 = vunpack.c.l.b16 %v840
        %v1015 = vunpack.c.l.b16 %v841
        %v1016 = vunpack.c.l.b16 %v842
        %v1017 = vunpack.c.l.b16 %v843
        %v1018 = vunpack.c.l.b16 %v844
        %v1019 = vunpack.c.l.b16 %v845
        %v1020 = vunpack.c.l.b16 %v846
        %v1021 = vunpack.c.l.b16 %v847
        %v1022 = vunpack.c.l.b16 %v848
        %v1023 = vunpack.c.l.b16 %v849
        %v1024 = vunpack.c.l.b16 %v850
        %v1025 = vunpack.c.l.b16 %v851
        %v1026 = vpack.c.b16 %v1011, %v1010
        %v1027 = vpack.c.b16 %v1013, %v1012
        %v1028 = vpack.c.b16 %v1015, %v1014
        %v1029 = vpack.c.b16 %v1017, %v1016
        %v1030 = vpack.c.b16 %v1019, %v1018
        %v1031 = vpack.c.b16 %v1021, %v1020
        %v1032 = vpack.c.b16 %v1023, %v1022
        %v1033 = vpack.c.b16 %v1025, %v1024
        %1042 = vmatprep.subr.bf16.mxu0 0
        %1043 = vmatpush1.bf16.msra.mxu0 %v1026
        %1044 = vmatprep.subr.bf16.mxu0 0
        %1045 = vmatpush1.bf16.msra.mxu0 %v1027
        %1046 = vmatprep.subr.bf16.mxu0 0
        %1047 = vmatpush1.bf16.msra.mxu0 %v1028
        %1048 = vmatprep.subr.bf16.mxu0 0
        %1049 = vmatpush1.bf16.msra.mxu0 %v1029
        %1050 = vmatprep.subr.bf16.mxu0 0
        %1051 = vmatpush1.bf16.msra.mxu0 %v1030
        %1052 = vmatprep.subr.bf16.mxu0 0
        %1053 = vmatpush1.bf16.msra.mxu0 %v1031
        %1054 = vmatprep.subr.bf16.mxu0 0
        %1055 = vmatpush1.bf16.msra.mxu0 %v1032
        %1056 = vmatprep.subr.bf16.mxu0 0
        %1057 = vmatpush1.bf16.msra.mxu0 %v1033
        %1058 = vmatprep.subr.bf16.mxu0 0
        %1059 = vmatpush1.bf16.msra.mxu0 0
        %1060 = vmatprep.subr.bf16.mxu0 0
        %1061 = vmatpush1.bf16.msra.mxu0 0
        %1062 = vmatprep.subr.bf16.mxu0 0
        %1063 = vmatpush1.bf16.msra.mxu0 0
        %1064 = vmatprep.subr.bf16.mxu0 0
        %1065 = vmatpush1.bf16.msra.mxu0 0
        %1066 = vmatprep.subr.bf16.mxu0 0
        %1067 = vmatpush1.bf16.msra.mxu0 0
        %1068 = vmatprep.subr.bf16.mxu0 0
        %1069 = vmatpush1.bf16.msra.mxu0 0
        %1070 = vmatprep.subr.bf16.mxu0 0
        %1071 = vmatpush1.bf16.msra.mxu0 0
        %1072 = vmatprep.subr.bf16.mxu0 0
        %1073 = vmatpush1.bf16.msra.mxu0 0
        %1074 = vmatprep.mubr.bf16.mxu0 0
        %1075 = vmatmul.mubr.bf16.gmra.mrb[0].mxu0 %v832
        %v1076 = vpop.f32.mrb[0].mxu0
        %v1077 = vadd.f32 %v964, %v1076
        %v1078 = vpop.f32.mrb[0].mxu0
        %v1079 = vpop.f32.mrb[0].mxu0
        %v1080 = vadd.f32 %v967, %v1079
        %v1081 = vpop.f32.mrb[0].mxu0
        %1082 = vmatprep.mubr.bf16.mxu0 0
        %1083 = vmatmul.mubr.bf16.gmra.mrb[0].mxu0 %v833
        %v1084 = vpop.f32.mrb[0].mxu0
        %v1085 = vadd.f32 %v972, %v1084
        %v1086 = vpop.f32.mrb[0].mxu0
        %v1087 = vpop.f32.mrb[0].mxu0
        %v1088 = vadd.f32 %v975, %v1087
        %v1089 = vpop.f32.mrb[0].mxu0
        %1090 = vmatprep.mubr.bf16.mxu0 0
        %1091 = vmatmul.mubr.bf16.gmra.mrb[0].mxu0 %v834
        %v1092 = vpop.f32.mrb[0].mxu0
        %v1093 = vadd.f32 %v980, %v1092
        %v1094 = vpop.f32.mrb[0].mxu0
        %v1095 = vpop.f32.mrb[0].mxu0
        %v1096 = vadd.f32 %v983, %v1095
        %v1097 = vpop.f32.mrb[0].mxu0
        %1098 = vmatprep.mubr.bf16.mxu0 0
        %1099 = vmatmul.mubr.bf16.gmra.mrb[0].mxu0 %v835
        %v1100 = vpop.f32.mrb[0].mxu0
        %v1101 = vadd.f32 %v988, %v1100
        %v1102 = vpop.f32.mrb[0].mxu0
        %v1103 = vpop.f32.mrb[0].mxu0
        %v1104 = vadd.f32 %v991, %v1103
        %v1105 = vpop.f32.mrb[0].mxu0
        %1106 = vdwg.mxu0
        %v1107 = vld [vmem:[#allocation2 + $0x9] sm:$0xff]
        %v1108 = vld [vmem:[#allocation2 + $0x11] sm:$0xff]
        %v1109 = vld [vmem:[#allocation2 + $0x19] sm:$0xff]
        %v1110 = vld [vmem:[#allocation2 + $0x21] sm:$0xff]
        %v1111 = vld [vmem:[#allocation2 + $0x29] sm:$0xff]
        %v1112 = vld [vmem:[#allocation2 + $0x31] sm:$0xff]
        %v1113 = vld [vmem:[#allocation2 + $0x39] sm:$0xff]
        %v1114 = vld [vmem:[#allocation2 + $0x41] sm:$0xff]
        %v1115 = vadd.s32 %v760, 1
        %v1116 = vadd.s32 %v761, 1
        %v1117 = vadd.s32 %v762, 1
        %v1118 = vadd.s32 %v763, 1
        %v1119 = vadd.s32 %v764, 1
        %v1120 = vadd.s32 %v765, 1
        %v1121 = vadd.s32 %v766, 1
        %v1122 = vadd.s32 %v767, 1
        %vm1123 = vcmp.ge.s32.totalorder %v1115, 0
        %vm1124 = vcmp.ge.s32.totalorder %v1116, 0
        %vm1125 = vcmp.ge.s32.totalorder %v1117, 0
        %vm1126 = vcmp.ge.s32.totalorder %v1118, 0
        %vm1127 = vcmp.ge.s32.totalorder %v1119, 0
        %vm1128 = vcmp.ge.s32.totalorder %v1120, 0
        %vm1129 = vcmp.ge.s32.totalorder %v1121, 0
        %vm1130 = vcmp.ge.s32.totalorder %v1122, 0
        %vm1131 = vcmp.lt.s32.totalorder %v1115, 8
        %vm1132 = vcmp.lt.s32.totalorder %v1116, 8
        %vm1133 = vcmp.lt.s32.totalorder %v1117, 8
        %vm1134 = vcmp.lt.s32.totalorder %v1118, 8
        %vm1135 = vcmp.lt.s32.totalorder %v1119, 8
        %vm1136 = vcmp.lt.s32.totalorder %v1120, 8
        %vm1137 = vcmp.lt.s32.totalorder %v1121, 8
        %vm1138 = vcmp.lt.s32.totalorder %v1122, 8
        %vm1139 = vmand %vm1123, %vm1131
        %vm1140 = vmand %vm1124, %vm1132
        %vm1141 = vmand %vm1125, %vm1133
        %vm1142 = vmand %vm1126, %vm1134
        %vm1143 = vmand %vm1127, %vm1135
        %vm1144 = vmand %vm1128, %vm1136
        %vm1145 = vmand %vm1129, %vm1137
        %vm1146 = vmand %vm1130, %vm1138
        %v1147 = vsel %vm1139, 1, 0
        %v1148 = vsel %vm1140, 1, 0
        %v1149 = vsel %vm1141, 1, 0
        %v1150 = vsel %vm1142, 1, 0
        %v1151 = vsel %vm1143, 1, 0
        %v1152 = vsel %vm1144, 1, 0
        %v1153 = vsel %vm1145, 1, 0
        %v1154 = vsel %vm1146, 1, 0
        %vm1155 = vcmp.eq.s32.totalorder %v1147, 1
        %vm1156 = vcmp.eq.s32.totalorder %v1148, 1
        %vm1157 = vcmp.eq.s32.totalorder %v1149, 1
        %vm1158 = vcmp.eq.s32.totalorder %v1150, 1
        %vm1159 = vcmp.eq.s32.totalorder %v1151, 1
        %vm1160 = vcmp.eq.s32.totalorder %v1152, 1
        %vm1161 = vcmp.eq.s32.totalorder %v1153, 1
        %vm1162 = vcmp.eq.s32.totalorder %v1154, 1
        %v1163 = vsel %vm1155, %v1107, 0.0
        %v1164 = vsel %vm1156, %v1108, 0.0
        %v1165 = vsel %vm1157, %v1109, 0.0
        %v1166 = vsel %vm1158, %v1110, 0.0
        %v1167 = vsel %vm1159, %v1111, 0.0
        %v1168 = vsel %vm1160, %v1112, 0.0
        %v1169 = vsel %vm1161, %v1113, 0.0
        %v1170 = vsel %vm1162, %v1114, 0.0
        %v1171 = vpack.c.bf16 %v1164, %v1163
        %v1172 = vpack.c.bf16 %v1166, %v1165
        %v1173 = vpack.c.bf16 %v1168, %v1167
        %v1174 = vpack.c.bf16 %v1170, %v1169
        %s1175 = scalar_lea.vmem %s5, 128
        %v1176 = vld [vmem:[%s1175] sm:$0xf]
        %v1177 = vld [vmem:[%s1175 + $0x4] sm:$0xf]
        %v1178 = vld [vmem:[%s1175 + $0x8] sm:$0xf]
        %v1179 = vld [vmem:[%s1175 + $0xc] sm:$0xf]
        %v1180 = vld [vmem:[%s1175 + $0x10] sm:$0xf]
        %v1181 = vld [vmem:[%s1175 + $0x14] sm:$0xf]
        %v1182 = vld [vmem:[%s1175 + $0x18] sm:$0xf]
        %v1183 = vld [vmem:[%s1175 + $0x1c] sm:$0xf]
        %v1184 = vld [vmem:[%s1175 + $0x20] sm:$0xf]
        %v1185 = vld [vmem:[%s1175 + $0x24] sm:$0xf]
        %v1186 = vld [vmem:[%s1175 + $0x28] sm:$0xf]
        %v1187 = vld [vmem:[%s1175 + $0x2c] sm:$0xf]
        %v1188 = vld [vmem:[%s1175 + $0x30] sm:$0xf]
        %v1189 = vld [vmem:[%s1175 + $0x34] sm:$0xf]
        %v1190 = vld [vmem:[%s1175 + $0x38] sm:$0xf]
        %v1191 = vld [vmem:[%s1175 + $0x3c] sm:$0xf]
        %v1208 = vunpack.c.l.b16 %v1176
        %v1209 = vunpack.c.l.b16 %v1177
        %v1210 = vunpack.c.l.b16 %v1178
        %v1211 = vunpack.c.l.b16 %v1179
        %v1212 = vunpack.c.l.b16 %v1180
        %v1213 = vunpack.c.l.b16 %v1181
        %v1214 = vunpack.c.l.b16 %v1182
        %v1215 = vunpack.c.l.b16 %v1183
        %v1216 = vunpack.c.l.b16 %v1184
        %v1217 = vunpack.c.l.b16 %v1185
        %v1218 = vunpack.c.l.b16 %v1186
        %v1219 = vunpack.c.l.b16 %v1187
        %v1220 = vunpack.c.l.b16 %v1188
        %v1221 = vunpack.c.l.b16 %v1189
        %v1222 = vunpack.c.l.b16 %v1190
        %v1223 = vunpack.c.l.b16 %v1191
        %v1224 = vpack.c.b16 %v1209, %v1208
        %v1225 = vpack.c.b16 %v1211, %v1210
        %v1226 = vpack.c.b16 %v1213, %v1212
        %v1227 = vpack.c.b16 %v1215, %v1214
        %v1228 = vpack.c.b16 %v1217, %v1216
        %v1229 = vpack.c.b16 %v1219, %v1218
        %v1230 = vpack.c.b16 %v1221, %v1220
        %v1231 = vpack.c.b16 %v1223, %v1222
        %1240 = vmatprep.subr.bf16.mxu0 0
        %1241 = vmatpush1.bf16.msra.mxu0 %v1224
        %1242 = vmatprep.subr.bf16.mxu0 0
        %1243 = vmatpush1.bf16.msra.mxu0 %v1225
        %1244 = vmatprep.subr.bf16.mxu0 0
        %1245 = vmatpush1.bf16.msra.mxu0 %v1226
        %1246 = vmatprep.subr.bf16.mxu0 0
        %1247 = vmatpush1.bf16.msra.mxu0 %v1227
        %1248 = vmatprep.subr.bf16.mxu0 0
        %1249 = vmatpush1.bf16.msra.mxu0 %v1228
        %1250 = vmatprep.subr.bf16.mxu0 0
        %1251 = vmatpush1.bf16.msra.mxu0 %v1229
        %1252 = vmatprep.subr.bf16.mxu0 0
        %1253 = vmatpush1.bf16.msra.mxu0 %v1230
        %1254 = vmatprep.subr.bf16.mxu0 0
        %1255 = vmatpush1.bf16.msra.mxu0 %v1231
        %1256 = vmatprep.subr.bf16.mxu0 0
        %1257 = vmatpush1.bf16.msra.mxu0 0
        %1258 = vmatprep.subr.bf16.mxu0 0
        %1259 = vmatpush1.bf16.msra.mxu0 0
        %1260 = vmatprep.subr.bf16.mxu0 0
        %1261 = vmatpush1.bf16.msra.mxu0 0
        %1262 = vmatprep.subr.bf16.mxu0 0
        %1263 = vmatpush1.bf16.msra.mxu0 0
        %1264 = vmatprep.subr.bf16.mxu0 0
        %1265 = vmatpush1.bf16.msra.mxu0 0
        %1266 = vmatprep.subr.bf16.mxu0 0
        %1267 = vmatpush1.bf16.msra.mxu0 0
        %1268 = vmatprep.subr.bf16.mxu0 0
        %1269 = vmatpush1.bf16.msra.mxu0 0
        %1270 = vmatprep.subr.bf16.mxu0 0
        %1271 = vmatpush1.bf16.msra.mxu0 0
        %1272 = vmatprep.mubr.bf16.mxu0 0
        %1273 = vmatmul.mubr.bf16.gmra.mrb[0].mxu0 %v1171
        %v1274 = vpop.f32.mrb[0].mxu0
        %v1275 = vadd.f32 0.0, %v1274
        %v1276 = vpop.f32.mrb[0].mxu0
        %v1277 = vpop.f32.mrb[0].mxu0
        %v1278 = vadd.f32 0.0, %v1277
        %v1279 = vpop.f32.mrb[0].mxu0
        %1280 = vmatprep.mubr.bf16.mxu0 0
        %1281 = vmatmul.mubr.bf16.gmra.mrb[0].mxu0 %v1172
        %v1282 = vpop.f32.mrb[0].mxu0
        %v1283 = vadd.f32 0.0, %v1282
        %v1284 = vpop.f32.mrb[0].mxu0
        %v1285 = vpop.f32.mrb[0].mxu0
        %v1286 = vadd.f32 0.0, %v1285
        %v1287 = vpop.f32.mrb[0].mxu0
        %1288 = vmatprep.mubr.bf16.mxu0 0
        %1289 = vmatmul.mubr.bf16.gmra.mrb[0].mxu0 %v1173
        %v1290 = vpop.f32.mrb[0].mxu0
        %v1291 = vadd.f32 0.0, %v1290
        %v1292 = vpop.f32.mrb[0].mxu0
        %v1293 = vpop.f32.mrb[0].mxu0
        %v1294 = vadd.f32 0.0, %v1293
        %v1295 = vpop.f32.mrb[0].mxu0
        %1296 = vmatprep.mubr.bf16.mxu0 0
        %1297 = vmatmul.mubr.bf16.gmra.mrb[0].mxu0 %v1174
        %v1298 = vpop.f32.mrb[0].mxu0
        %v1299 = vadd.f32 0.0, %v1298
        %v1300 = vpop.f32.mrb[0].mxu0
        %v1301 = vpop.f32.mrb[0].mxu0
        %v1302 = vadd.f32 0.0, %v1301
        %v1303 = vpop.f32.mrb[0].mxu0
        %1304 = vdwg.mxu0
        %v1305 = vadd.f32 %v1077, %v1275
        %v1306 = vadd.f32 %v1080, %v1278
        %v1307 = vadd.f32 %v1085, %v1283
        %v1308 = vadd.f32 %v1088, %v1286
        %v1309 = vadd.f32 %v1093, %v1291
        %v1310 = vadd.f32 %v1096, %v1294
        %v1311 = vadd.f32 %v1101, %v1299
        %v1312 = vadd.f32 %v1104, %v1302
        %v1313 = vld [vmem:[#allocation2 + $0xf] sm:$0xff]
        %v1314 = vld [vmem:[#allocation2 + $0x17] sm:$0xff]
        %v1315 = vld [vmem:[#allocation2 + $0x1f] sm:$0xff]
        %v1316 = vld [vmem:[#allocation2 + $0x27] sm:$0xff]
        %v1317 = vld [vmem:[#allocation2 + $0x2f] sm:$0xff]
        %v1318 = vld [vmem:[#allocation2 + $0x37] sm:$0xff]
        %v1319 = vld [vmem:[#allocation2 + $0x3f] sm:$0xff]
        %v1320 = vld [vmem:[#allocation2 + $0x47] sm:$0xff]
        %v1321 = vsel %vm816, %v1313, 0.0
        %v1322 = vsel %vm817, %v1314, 0.0
        %v1323 = vsel %vm818, %v1315, 0.0
        %v1324 = vsel %vm819, %v1316, 0.0
        %v1325 = vsel %vm820, %v1317, 0.0
        %v1326 = vsel %vm821, %v1318, 0.0
        %v1327 = vsel %vm822, %v1319, 0.0
        %v1328 = vsel %vm823, %v1320, 0.0
        %v1329 = vpack.c.bf16 %v1322, %v1321
        %v1330 = vpack.c.bf16 %v1324, %v1323
        %v1331 = vpack.c.bf16 %v1326, %v1325
        %v1332 = vpack.c.bf16 %v1328, %v1327
        %s1333 = scalar_lea.vmem %s5, 192
        %v1334 = vld [vmem:[%s1333] sm:$0xf]
        %v1335 = vld [vmem:[%s1333 + $0x4] sm:$0xf]
        %v1336 = vld [vmem:[%s1333 + $0x8] sm:$0xf]
        %v1337 = vld [vmem:[%s1333 + $0xc] sm:$0xf]
        %v1338 = vld [vmem:[%s1333 + $0x10] sm:$0xf]
        %v1339 = vld [vmem:[%s1333 + $0x14] sm:$0xf]
        %v1340 = vld [vmem:[%s1333 + $0x18] sm:$0xf]
        %v1341 = vld [vmem:[%s1333 + $0x1c] sm:$0xf]
        %v1342 = vld [vmem:[%s1333 + $0x20] sm:$0xf]
        %v1343 = vld [vmem:[%s1333 + $0x24] sm:$0xf]
        %v1344 = vld [vmem:[%s1333 + $0x28] sm:$0xf]
        %v1345 = vld [vmem:[%s1333 + $0x2c] sm:$0xf]
        %v1346 = vld [vmem:[%s1333 + $0x30] sm:$0xf]
        %v1347 = vld [vmem:[%s1333 + $0x34] sm:$0xf]
        %v1348 = vld [vmem:[%s1333 + $0x38] sm:$0xf]
        %v1349 = vld [vmem:[%s1333 + $0x3c] sm:$0xf]
        %v1366 = vunpack.c.l.b16 %v1334
        %v1367 = vunpack.c.l.b16 %v1335
        %v1368 = vunpack.c.l.b16 %v1336
        %v1369 = vunpack.c.l.b16 %v1337
        %v1370 = vunpack.c.l.b16 %v1338
        %v1371 = vunpack.c.l.b16 %v1339
        %v1372 = vunpack.c.l.b16 %v1340
        %v1373 = vunpack.c.l.b16 %v1341
        %v1374 = vunpack.c.l.b16 %v1342
        %v1375 = vunpack.c.l.b16 %v1343
        %v1376 = vunpack.c.l.b16 %v1344
        %v1377 = vunpack.c.l.b16 %v1345
        %v1378 = vunpack.c.l.b16 %v1346
        %v1379 = vunpack.c.l.b16 %v1347
        %v1380 = vunpack.c.l.b16 %v1348
        %v1381 = vunpack.c.l.b16 %v1349
        %v1382 = vpack.c.b16 %v1367, %v1366
        %v1383 = vpack.c.b16 %v1369, %v1368
        %v1384 = vpack.c.b16 %v1371, %v1370
        %v1385 = vpack.c.b16 %v1373, %v1372
        %v1386 = vpack.c.b16 %v1375, %v1374
        %v1387 = vpack.c.b16 %v1377, %v1376
        %v1388 = vpack.c.b16 %v1379, %v1378
        %v1389 = vpack.c.b16 %v1381, %v1380
        %1398 = vmatprep.subr.bf16.mxu0 0
        %1399 = vmatpush1.bf16.msra.mxu0 %v1382
        %1400 = vmatprep.subr.bf16.mxu0 0
        %1401 = vmatpush1.bf16.msra.mxu0 %v1383
        %1402 = vmatprep.subr.bf16.mxu0 0
        %1403 = vmatpush1.bf16.msra.mxu0 %v1384
        %1404 = vmatprep.subr.bf16.mxu0 0
        %1405 = vmatpush1.bf16.msra.mxu0 %v1385
        %1406 = vmatprep.subr.bf16.mxu0 0
        %1407 = vmatpush1.bf16.msra.mxu0 %v1386
        %1408 = vmatprep.subr.bf16.mxu0 0
        %1409 = vmatpush1.bf16.msra.mxu0 %v1387
        %1410 = vmatprep.subr.bf16.mxu0 0
        %1411 = vmatpush1.bf16.msra.mxu0 %v1388
        %1412 = vmatprep.subr.bf16.mxu0 0
        %1413 = vmatpush1.bf16.msra.mxu0 %v1389
        %1414 = vmatprep.subr.bf16.mxu0 0
        %1415 = vmatpush1.bf16.msra.mxu0 0
        %1416 = vmatprep.subr.bf16.mxu0 0
        %1417 = vmatpush1.bf16.msra.mxu0 0
        %1418 = vmatprep.subr.bf16.mxu0 0
        %1419 = vmatpush1.bf16.msra.mxu0 0
        %1420 = vmatprep.subr.bf16.mxu0 0
        %1421 = vmatpush1.bf16.msra.mxu0 0
        %1422 = vmatprep.subr.bf16.mxu0 0
        %1423 = vmatpush1.bf16.msra.mxu0 0
        %1424 = vmatprep.subr.bf16.mxu0 0
        %1425 = vmatpush1.bf16.msra.mxu0 0
        %1426 = vmatprep.subr.bf16.mxu0 0
        %1427 = vmatpush1.bf16.msra.mxu0 0
        %1428 = vmatprep.subr.bf16.mxu0 0
        %1429 = vmatpush1.bf16.msra.mxu0 0
        %1430 = vmatprep.mubr.bf16.mxu0 0
        %1431 = vmatmul.mubr.bf16.gmra.mrb[0].mxu0 %v1329
        %v1432 = vpop.f32.mrb[0].mxu0
        %v1433 = vadd.f32 0.0, %v1432
        %v1434 = vpop.f32.mrb[0].mxu0
        %v1435 = vpop.f32.mrb[0].mxu0
        %v1436 = vadd.f32 0.0, %v1435
        %v1437 = vpop.f32.mrb[0].mxu0
        %1438 = vmatprep.mubr.bf16.mxu0 0
        %1439 = vmatmul.mubr.bf16.gmra.mrb[0].mxu0 %v1330
        %v1440 = vpop.f32.mrb[0].mxu0
        %v1441 = vadd.f32 0.0, %v1440
        %v1442 = vpop.f32.mrb[0].mxu0
        %v1443 = vpop.f32.mrb[0].mxu0
        %v1444 = vadd.f32 0.0, %v1443
        %v1445 = vpop.f32.mrb[0].mxu0
        %1446 = vmatprep.mubr.bf16.mxu0 0
        %1447 = vmatmul.mubr.bf16.gmra.mrb[0].mxu0 %v1331
        %v1448 = vpop.f32.mrb[0].mxu0
        %v1449 = vadd.f32 0.0, %v1448
        %v1450 = vpop.f32.mrb[0].mxu0
        %v1451 = vpop.f32.mrb[0].mxu0
        %v1452 = vadd.f32 0.0, %v1451
        %v1453 = vpop.f32.mrb[0].mxu0
        %1454 = vmatprep.mubr.bf16.mxu0 0
        %1455 = vmatmul.mubr.bf16.gmra.mrb[0].mxu0 %v1332
        %v1456 = vpop.f32.mrb[0].mxu0
        %v1457 = vadd.f32 0.0, %v1456
        %v1458 = vpop.f32.mrb[0].mxu0
        %v1459 = vpop.f32.mrb[0].mxu0
        %v1460 = vadd.f32 0.0, %v1459
        %v1461 = vpop.f32.mrb[0].mxu0
        %1462 = vdwg.mxu0
        %v1463 = vadd.f32 %v1305, %v1433
        %v1464 = vadd.f32 %v1306, %v1436
        %v1465 = vadd.f32 %v1307, %v1441
        %v1466 = vadd.f32 %v1308, %v1444
        %v1467 = vadd.f32 %v1309, %v1449
        %v1468 = vadd.f32 %v1310, %v1452
        %v1469 = vadd.f32 %v1311, %v1457
        %v1470 = vadd.f32 %v1312, %v1460
        %v1471 = vld [vmem:[#allocation2 + $0x10] sm:$0xff]
        %v1472 = vld [vmem:[#allocation2 + $0x18] sm:$0xff]
        %v1473 = vld [vmem:[#allocation2 + $0x20] sm:$0xff]
        %v1474 = vld [vmem:[#allocation2 + $0x28] sm:$0xff]
        %v1475 = vld [vmem:[#allocation2 + $0x30] sm:$0xff]
        %v1476 = vld [vmem:[#allocation2 + $0x38] sm:$0xff]
        %v1477 = vld [vmem:[#allocation2 + $0x40] sm:$0xff]
        %v1478 = vld [vmem:[#allocation2 + $0x48] sm:$0xff]
        %v1479 = vpack.c.bf16 %v1472, %v1471
        %v1480 = vpack.c.bf16 %v1474, %v1473
        %v1481 = vpack.c.bf16 %v1476, %v1475
        %v1482 = vpack.c.bf16 %v1478, %v1477
        %s1483 = scalar_lea.vmem %s5, 256
        %v1484 = vld [vmem:[%s1483] sm:$0xf]
        %v1485 = vld [vmem:[%s1483 + $0x4] sm:$0xf]
        %v1486 = vld [vmem:[%s1483 + $0x8] sm:$0xf]
        %v1487 = vld [vmem:[%s1483 + $0xc] sm:$0xf]
        %v1488 = vld [vmem:[%s1483 + $0x10] sm:$0xf]
        %v1489 = vld [vmem:[%s1483 + $0x14] sm:$0xf]
        %v1490 = vld [vmem:[%s1483 + $0x18] sm:$0xf]
        %v1491 = vld [vmem:[%s1483 + $0x1c] sm:$0xf]
        %v1492 = vld [vmem:[%s1483 + $0x20] sm:$0xf]
        %v1493 = vld [vmem:[%s1483 + $0x24] sm:$0xf]
        %v1494 = vld [vmem:[%s1483 + $0x28] sm:$0xf]
        %v1495 = vld [vmem:[%s1483 + $0x2c] sm:$0xf]
        %v1496 = vld [vmem:[%s1483 + $0x30] sm:$0xf]
        %v1497 = vld [vmem:[%s1483 + $0x34] sm:$0xf]
        %v1498 = vld [vmem:[%s1483 + $0x38] sm:$0xf]
        %v1499 = vld [vmem:[%s1483 + $0x3c] sm:$0xf]
        %v1516 = vunpack.c.l.b16 %v1484
        %v1517 = vunpack.c.l.b16 %v1485
        %v1518 = vunpack.c.l.b16 %v1486
        %v1519 = vunpack.c.l.b16 %v1487
        %v1520 = vunpack.c.l.b16 %v1488
        %v1521 = vunpack.c.l.b16 %v1489
        %v1522 = vunpack.c.l.b16 %v1490
        %v1523 = vunpack.c.l.b16 %v1491
        %v1524 = vunpack.c.l.b16 %v1492
        %v1525 = vunpack.c.l.b16 %v1493
        %v1526 = vunpack.c.l.b16 %v1494
        %v1527 = vunpack.c.l.b16 %v1495
        %v1528 = vunpack.c.l.b16 %v1496
        %v1529 = vunpack.c.l.b16 %v1497
        %v1530 = vunpack.c.l.b16 %v1498
        %v1531 = vunpack.c.l.b16 %v1499
        %v1532 = vpack.c.b16 %v1517, %v1516
        %v1533 = vpack.c.b16 %v1519, %v1518
        %v1534 = vpack.c.b16 %v1521, %v1520
        %v1535 = vpack.c.b16 %v1523, %v1522
        %v1536 = vpack.c.b16 %v1525, %v1524
        %v1537 = vpack.c.b16 %v1527, %v1526
        %v1538 = vpack.c.b16 %v1529, %v1528
        %v1539 = vpack.c.b16 %v1531, %v1530
        %1548 = vmatprep.subr.bf16.mxu0 0
        %1549 = vmatpush1.bf16.msra.mxu0 %v1532
        %1550 = vmatprep.subr.bf16.mxu0 0
        %1551 = vmatpush1.bf16.msra.mxu0 %v1533
        %1552 = vmatprep.subr.bf16.mxu0 0
        %1553 = vmatpush1.bf16.msra.mxu0 %v1534
        %1554 = vmatprep.subr.bf16.mxu0 0
        %1555 = vmatpush1.bf16.msra.mxu0 %v1535
        %1556 = vmatprep.subr.bf16.mxu0 0
        %1557 = vmatpush1.bf16.msra.mxu0 %v1536
        %1558 = vmatprep.subr.bf16.mxu0 0
        %1559 = vmatpush1.bf16.msra.mxu0 %v1537
        %1560 = vmatprep.subr.bf16.mxu0 0
        %1561 = vmatpush1.bf16.msra.mxu0 %v1538
        %1562 = vmatprep.subr.bf16.mxu0 0
        %1563 = vmatpush1.bf16.msra.mxu0 %v1539
        %1564 = vmatprep.subr.bf16.mxu0 0
        %1565 = vmatpush1.bf16.msra.mxu0 0
        %1566 = vmatprep.subr.bf16.mxu0 0
        %1567 = vmatpush1.bf16.msra.mxu0 0
        %1568 = vmatprep.subr.bf16.mxu0 0
        %1569 = vmatpush1.bf16.msra.mxu0 0
        %1570 = vmatprep.subr.bf16.mxu0 0
        %1571 = vmatpush1.bf16.msra.mxu0 0
        %1572 = vmatprep.subr.bf16.mxu0 0
        %1573 = vmatpush1.bf16.msra.mxu0 0
        %1574 = vmatprep.subr.bf16.mxu0 0
        %1575 = vmatpush1.bf16.msra.mxu0 0
        %1576 = vmatprep.subr.bf16.mxu0 0
        %1577 = vmatpush1.bf16.msra.mxu0 0
        %1578 = vmatprep.subr.bf16.mxu0 0
        %1579 = vmatpush1.bf16.msra.mxu0 0
        %1580 = vmatprep.mubr.bf16.mxu0 0
        %1581 = vmatmul.mubr.bf16.gmra.mrb[0].mxu0 %v1479
        %v1582 = vpop.f32.mrb[0].mxu0
        %v1583 = vadd.f32 0.0, %v1582
        %v1584 = vpop.f32.mrb[0].mxu0
        %v1585 = vpop.f32.mrb[0].mxu0
        %v1586 = vadd.f32 0.0, %v1585
        %v1587 = vpop.f32.mrb[0].mxu0
        %1588 = vmatprep.mubr.bf16.mxu0 0
        %1589 = vmatmul.mubr.bf16.gmra.mrb[0].mxu0 %v1480
        %v1590 = vpop.f32.mrb[0].mxu0
        %v1591 = vadd.f32 0.0, %v1590
        %v1592 = vpop.f32.mrb[0].mxu0
        %v1593 = vpop.f32.mrb[0].mxu0
        %v1594 = vadd.f32 0.0, %v1593
        %v1595 = vpop.f32.mrb[0].mxu0
        %1596 = vmatprep.mubr.bf16.mxu0 0
        %1597 = vmatmul.mubr.bf16.gmra.mrb[0].mxu0 %v1481
        %v1598 = vpop.f32.mrb[0].mxu0
        %v1599 = vadd.f32 0.0, %v1598
        %v1600 = vpop.f32.mrb[0].mxu0
        %v1601 = vpop.f32.mrb[0].mxu0
        %v1602 = vadd.f32 0.0, %v1601
        %v1603 = vpop.f32.mrb[0].mxu0
        %1604 = vmatprep.mubr.bf16.mxu0 0
        %1605 = vmatmul.mubr.bf16.gmra.mrb[0].mxu0 %v1482
        %v1606 = vpop.f32.mrb[0].mxu0
        %v1607 = vadd.f32 0.0, %v1606
        %v1608 = vpop.f32.mrb[0].mxu0
        %v1609 = vpop.f32.mrb[0].mxu0
        %v1610 = vadd.f32 0.0, %v1609
        %v1611 = vpop.f32.mrb[0].mxu0
        %1612 = vdwg.mxu0
        %v1613 = vadd.f32 %v1463, %v1583
        %v1614 = vadd.f32 %v1464, %v1586
        %v1615 = vadd.f32 %v1465, %v1591
        %v1616 = vadd.f32 %v1466, %v1594
        %v1617 = vadd.f32 %v1467, %v1599
        %v1618 = vadd.f32 %v1468, %v1602
        %v1619 = vadd.f32 %v1469, %v1607
        %v1620 = vadd.f32 %v1470, %v1610
        %v1621 = vld [vmem:[#allocation2 + $0x11] sm:$0xff]
        %v1622 = vld [vmem:[#allocation2 + $0x19] sm:$0xff]
        %v1623 = vld [vmem:[#allocation2 + $0x21] sm:$0xff]
        %v1624 = vld [vmem:[#allocation2 + $0x29] sm:$0xff]
        %v1625 = vld [vmem:[#allocation2 + $0x31] sm:$0xff]
        %v1626 = vld [vmem:[#allocation2 + $0x39] sm:$0xff]
        %v1627 = vld [vmem:[#allocation2 + $0x41] sm:$0xff]
        %v1628 = vld [vmem:[#allocation2 + $0x49] sm:$0xff]
        %v1629 = vsel %vm1155, %v1621, 0.0
        %v1630 = vsel %vm1156, %v1622, 0.0
        %v1631 = vsel %vm1157, %v1623, 0.0
        %v1632 = vsel %vm1158, %v1624, 0.0
        %v1633 = vsel %vm1159, %v1625, 0.0
        %v1634 = vsel %vm1160, %v1626, 0.0
        %v1635 = vsel %vm1161, %v1627, 0.0
        %v1636 = vsel %vm1162, %v1628, 0.0
        %v1637 = vpack.c.bf16 %v1630, %v1629
        %v1638 = vpack.c.bf16 %v1632, %v1631
        %v1639 = vpack.c.bf16 %v1634, %v1633
        %v1640 = vpack.c.bf16 %v1636, %v1635
        %s1641 = scalar_lea.vmem %s5, 320
        %v1642 = vld [vmem:[%s1641] sm:$0xf]
        %v1643 = vld [vmem:[%s1641 + $0x4] sm:$0xf]
        %v1644 = vld [vmem:[%s1641 + $0x8] sm:$0xf]
        %v1645 = vld [vmem:[%s1641 + $0xc] sm:$0xf]
        %v1646 = vld [vmem:[%s1641 + $0x10] sm:$0xf]
        %v1647 = vld [vmem:[%s1641 + $0x14] sm:$0xf]
        %v1648 = vld [vmem:[%s1641 + $0x18] sm:$0xf]
        %v1649 = vld [vmem:[%s1641 + $0x1c] sm:$0xf]
        %v1650 = vld [vmem:[%s1641 + $0x20] sm:$0xf]
        %v1651 = vld [vmem:[%s1641 + $0x24] sm:$0xf]
        %v1652 = vld [vmem:[%s1641 + $0x28] sm:$0xf]
        %v1653 = vld [vmem:[%s1641 + $0x2c] sm:$0xf]
        %v1654 = vld [vmem:[%s1641 + $0x30] sm:$0xf]
        %v1655 = vld [vmem:[%s1641 + $0x34] sm:$0xf]
        %v1656 = vld [vmem:[%s1641 + $0x38] sm:$0xf]
        %v1657 = vld [vmem:[%s1641 + $0x3c] sm:$0xf]
        %v1674 = vunpack.c.l.b16 %v1642
        %v1675 = vunpack.c.l.b16 %v1643
        %v1676 = vunpack.c.l.b16 %v1644
        %v1677 = vunpack.c.l.b16 %v1645
        %v1678 = vunpack.c.l.b16 %v1646
        %v1679 = vunpack.c.l.b16 %v1647
        %v1680 = vunpack.c.l.b16 %v1648
        %v1681 = vunpack.c.l.b16 %v1649
        %v1682 = vunpack.c.l.b16 %v1650
        %v1683 = vunpack.c.l.b16 %v1651
        %v1684 = vunpack.c.l.b16 %v1652
        %v1685 = vunpack.c.l.b16 %v1653
        %v1686 = vunpack.c.l.b16 %v1654
        %v1687 = vunpack.c.l.b16 %v1655
        %v1688 = vunpack.c.l.b16 %v1656
        %v1689 = vunpack.c.l.b16 %v1657
        %v1690 = vpack.c.b16 %v1675, %v1674
        %v1691 = vpack.c.b16 %v1677, %v1676
        %v1692 = vpack.c.b16 %v1679, %v1678
        %v1693 = vpack.c.b16 %v1681, %v1680
        %v1694 = vpack.c.b16 %v1683, %v1682
        %v1695 = vpack.c.b16 %v1685, %v1684
        %v1696 = vpack.c.b16 %v1687, %v1686
        %v1697 = vpack.c.b16 %v1689, %v1688
        %1706 = vmatprep.subr.bf16.mxu0 0
        %1707 = vmatpush1.bf16.msra.mxu0 %v1690
        %1708 = vmatprep.subr.bf16.mxu0 0
        %1709 = vmatpush1.bf16.msra.mxu0 %v1691
        %1710 = vmatprep.subr.bf16.mxu0 0
        %1711 = vmatpush1.bf16.msra.mxu0 %v1692
        %1712 = vmatprep.subr.bf16.mxu0 0
        %1713 = vmatpush1.bf16.msra.mxu0 %v1693
        %1714 = vmatprep.subr.bf16.mxu0 0
        %1715 = vmatpush1.bf16.msra.mxu0 %v1694
        %1716 = vmatprep.subr.bf16.mxu0 0
        %1717 = vmatpush1.bf16.msra.mxu0 %v1695
        %1718 = vmatprep.subr.bf16.mxu0 0
        %1719 = vmatpush1.bf16.msra.mxu0 %v1696
        %1720 = vmatprep.subr.bf16.mxu0 0
        %1721 = vmatpush1.bf16.msra.mxu0 %v1697
        %1722 = vmatprep.subr.bf16.mxu0 0
        %1723 = vmatpush1.bf16.msra.mxu0 0
        %1724 = vmatprep.subr.bf16.mxu0 0
        %1725 = vmatpush1.bf16.msra.mxu0 0
        %1726 = vmatprep.subr.bf16.mxu0 0
        %1727 = vmatpush1.bf16.msra.mxu0 0
        %1728 = vmatprep.subr.bf16.mxu0 0
        %1729 = vmatpush1.bf16.msra.mxu0 0
        %1730 = vmatprep.subr.bf16.mxu0 0
        %1731 = vmatpush1.bf16.msra.mxu0 0
        %1732 = vmatprep.subr.bf16.mxu0 0
        %1733 = vmatpush1.bf16.msra.mxu0 0
        %1734 = vmatprep.subr.bf16.mxu0 0
        %1735 = vmatpush1.bf16.msra.mxu0 0
        %1736 = vmatprep.subr.bf16.mxu0 0
        %1737 = vmatpush1.bf16.msra.mxu0 0
        %1738 = vmatprep.mubr.bf16.mxu0 0
        %1739 = vmatmul.mubr.bf16.gmra.mrb[0].mxu0 %v1637
        %v1740 = vpop.f32.mrb[0].mxu0
        %v1741 = vadd.f32 0.0, %v1740
        %v1742 = vpop.f32.mrb[0].mxu0
        %v1743 = vpop.f32.mrb[0].mxu0
        %v1744 = vadd.f32 0.0, %v1743
        %v1745 = vpop.f32.mrb[0].mxu0
        %1746 = vmatprep.mubr.bf16.mxu0 0
        %1747 = vmatmul.mubr.bf16.gmra.mrb[0].mxu0 %v1638
        %v1748 = vpop.f32.mrb[0].mxu0
        %v1749 = vadd.f32 0.0, %v1748
        %v1750 = vpop.f32.mrb[0].mxu0
        %v1751 = vpop.f32.mrb[0].mxu0
        %v1752 = vadd.f32 0.0, %v1751
        %v1753 = vpop.f32.mrb[0].mxu0
        %1754 = vmatprep.mubr.bf16.mxu0 0
        %1755 = vmatmul.mubr.bf16.gmra.mrb[0].mxu0 %v1639
        %v1756 = vpop.f32.mrb[0].mxu0
        %v1757 = vadd.f32 0.0, %v1756
        %v1758 = vpop.f32.mrb[0].mxu0
        %v1759 = vpop.f32.mrb[0].mxu0
        %v1760 = vadd.f32 0.0, %v1759
        %v1761 = vpop.f32.mrb[0].mxu0
        %1762 = vmatprep.mubr.bf16.mxu0 0
        %1763 = vmatmul.mubr.bf16.gmra.mrb[0].mxu0 %v1640
        %v1764 = vpop.f32.mrb[0].mxu0
        %v1765 = vadd.f32 0.0, %v1764
        %v1766 = vpop.f32.mrb[0].mxu0
        %v1767 = vpop.f32.mrb[0].mxu0
        %v1768 = vadd.f32 0.0, %v1767
        %v1769 = vpop.f32.mrb[0].mxu0
        %1770 = vdwg.mxu0
        %v1771 = vadd.f32 %v1613, %v1741
        %v1772 = vadd.f32 %v1614, %v1744
        %v1773 = vadd.f32 %v1615, %v1749
        %v1774 = vadd.f32 %v1616, %v1752
        %v1775 = vadd.f32 %v1617, %v1757
        %v1776 = vadd.f32 %v1618, %v1760
        %v1777 = vadd.f32 %v1619, %v1765
        %v1778 = vadd.f32 %v1620, %v1768
        %v1779 = vld [vmem:[#allocation2 + $0x17] sm:$0xff]
        %v1780 = vld [vmem:[#allocation2 + $0x1f] sm:$0xff]
        %v1781 = vld [vmem:[#allocation2 + $0x27] sm:$0xff]
        %v1782 = vld [vmem:[#allocation2 + $0x2f] sm:$0xff]
        %v1783 = vld [vmem:[#allocation2 + $0x37] sm:$0xff]
        %v1784 = vld [vmem:[#allocation2 + $0x3f] sm:$0xff]
        %v1785 = vld [vmem:[#allocation2 + $0x47] sm:$0xff]
        %v1786 = vld [vmem:[#allocation2 + $0x4f] sm:$0xff]
        %v1787 = vsel %vm816, %v1779, 0.0
        %v1788 = vsel %vm817, %v1780, 0.0
        %v1789 = vsel %vm818, %v1781, 0.0
        %v1790 = vsel %vm819, %v1782, 0.0
        %v1791 = vsel %vm820, %v1783, 0.0
        %v1792 = vsel %vm821, %v1784, 0.0
        %v1793 = vsel %vm822, %v1785, 0.0
        %v1794 = vsel %vm823, %v1786, 0.0
        %v1795 = vpack.c.bf16 %v1788, %v1787
        %v1796 = vpack.c.bf16 %v1790, %v1789
        %v1797 = vpack.c.bf16 %v1792, %v1791
        %v1798 = vpack.c.bf16 %v1794, %v1793
        %s1799 = scalar_lea.vmem %s5, 384
        %v1800 = vld [vmem:[%s1799] sm:$0xf]
        %v1801 = vld [vmem:[%s1799 + $0x4] sm:$0xf]
        %v1802 = vld [vmem:[%s1799 + $0x8] sm:$0xf]
        %v1803 = vld [vmem:[%s1799 + $0xc] sm:$0xf]
        %v1804 = vld [vmem:[%s1799 + $0x10] sm:$0xf]
        %v1805 = vld [vmem:[%s1799 + $0x14] sm:$0xf]
        %v1806 = vld [vmem:[%s1799 + $0x18] sm:$0xf]
        %v1807 = vld [vmem:[%s1799 + $0x1c] sm:$0xf]
        %v1808 = vld [vmem:[%s1799 + $0x20] sm:$0xf]
        %v1809 = vld [vmem:[%s1799 + $0x24] sm:$0xf]
        %v1810 = vld [vmem:[%s1799 + $0x28] sm:$0xf]
        %v1811 = vld [vmem:[%s1799 + $0x2c] sm:$0xf]
        %v1812 = vld [vmem:[%s1799 + $0x30] sm:$0xf]
        %v1813 = vld [vmem:[%s1799 + $0x34] sm:$0xf]
        %v1814 = vld [vmem:[%s1799 + $0x38] sm:$0xf]
        %v1815 = vld [vmem:[%s1799 + $0x3c] sm:$0xf]
        %v1832 = vunpack.c.l.b16 %v1800
        %v1833 = vunpack.c.l.b16 %v1801
        %v1834 = vunpack.c.l.b16 %v1802
        %v1835 = vunpack.c.l.b16 %v1803
        %v1836 = vunpack.c.l.b16 %v1804
        %v1837 = vunpack.c.l.b16 %v1805
        %v1838 = vunpack.c.l.b16 %v1806
        %v1839 = vunpack.c.l.b16 %v1807
        %v1840 = vunpack.c.l.b16 %v1808
        %v1841 = vunpack.c.l.b16 %v1809
        %v1842 = vunpack.c.l.b16 %v1810
        %v1843 = vunpack.c.l.b16 %v1811
        %v1844 = vunpack.c.l.b16 %v1812
        %v1845 = vunpack.c.l.b16 %v1813
        %v1846 = vunpack.c.l.b16 %v1814
        %v1847 = vunpack.c.l.b16 %v1815
        %v1848 = vpack.c.b16 %v1833, %v1832
        %v1849 = vpack.c.b16 %v1835, %v1834
        %v1850 = vpack.c.b16 %v1837, %v1836
        %v1851 = vpack.c.b16 %v1839, %v1838
        %v1852 = vpack.c.b16 %v1841, %v1840
        %v1853 = vpack.c.b16 %v1843, %v1842
        %v1854 = vpack.c.b16 %v1845, %v1844
        %v1855 = vpack.c.b16 %v1847, %v1846
        %1864 = vmatprep.subr.bf16.mxu0 0
        %1865 = vmatpush1.bf16.msra.mxu0 %v1848
        %1866 = vmatprep.subr.bf16.mxu0 0
        %1867 = vmatpush1.bf16.msra.mxu0 %v1849
        %1868 = vmatprep.subr.bf16.mxu0 0
        %1869 = vmatpush1.bf16.msra.mxu0 %v1850
        %1870 = vmatprep.subr.bf16.mxu0 0
        %1871 = vmatpush1.bf16.msra.mxu0 %v1851
        %1872 = vmatprep.subr.bf16.mxu0 0
        %1873 = vmatpush1.bf16.msra.mxu0 %v1852
        %1874 = vmatprep.subr.bf16.mxu0 0
        %1875 = vmatpush1.bf16.msra.mxu0 %v1853
        %1876 = vmatprep.subr.bf16.mxu0 0
        %1877 = vmatpush1.bf16.msra.mxu0 %v1854
        %1878 = vmatprep.subr.bf16.mxu0 0
        %1879 = vmatpush1.bf16.msra.mxu0 %v1855
        %1880 = vmatprep.subr.bf16.mxu0 0
        %1881 = vmatpush1.bf16.msra.mxu0 0
        %1882 = vmatprep.subr.bf16.mxu0 0
        %1883 = vmatpush1.bf16.msra.mxu0 0
        %1884 = vmatprep.subr.bf16.mxu0 0
        %1885 = vmatpush1.bf16.msra.mxu0 0
        %1886 = vmatprep.subr.bf16.mxu0 0
        %1887 = vmatpush1.bf16.msra.mxu0 0
        %1888 = vmatprep.subr.bf16.mxu0 0
        %1889 = vmatpush1.bf16.msra.mxu0 0
        %1890 = vmatprep.subr.bf16.mxu0 0
        %1891 = vmatpush1.bf16.msra.mxu0 0
        %1892 = vmatprep.subr.bf16.mxu0 0
        %1893 = vmatpush1.bf16.msra.mxu0 0
        %1894 = vmatprep.subr.bf16.mxu0 0
        %1895 = vmatpush1.bf16.msra.mxu0 0
        %1896 = vmatprep.mubr.bf16.mxu0 0
        %1897 = vmatmul.mubr.bf16.gmra.mrb[0].mxu0 %v1795
        %v1898 = vpop.f32.mrb[0].mxu0
        %v1899 = vadd.f32 0.0, %v1898
        %v1900 = vpop.f32.mrb[0].mxu0
        %v1901 = vpop.f32.mrb[0].mxu0
        %v1902 = vadd.f32 0.0, %v1901
        %v1903 = vpop.f32.mrb[0].mxu0
        %1904 = vmatprep.mubr.bf16.mxu0 0
        %1905 = vmatmul.mubr.bf16.gmra.mrb[0].mxu0 %v1796
        %v1906 = vpop.f32.mrb[0].mxu0
        %v1907 = vadd.f32 0.0, %v1906
        %v1908 = vpop.f32.mrb[0].mxu0
        %v1909 = vpop.f32.mrb[0].mxu0
        %v1910 = vadd.f32 0.0, %v1909
        %v1911 = vpop.f32.mrb[0].mxu0
        %1912 = vmatprep.mubr.bf16.mxu0 0
        %1913 = vmatmul.mubr.bf16.gmra.mrb[0].mxu0 %v1797
        %v1914 = vpop.f32.mrb[0].mxu0
        %v1915 = vadd.f32 0.0, %v1914
        %v1916 = vpop.f32.mrb[0].mxu0
        %v1917 = vpop.f32.mrb[0].mxu0
        %v1918 = vadd.f32 0.0, %v1917
        %v1919 = vpop.f32.mrb[0].mxu0
        %1920 = vmatprep.mubr.bf16.mxu0 0
        %1921 = vmatmul.mubr.bf16.gmra.mrb[0].mxu0 %v1798
        %v1922 = vpop.f32.mrb[0].mxu0
        %v1923 = vadd.f32 0.0, %v1922
        %v1924 = vpop.f32.mrb[0].mxu0
        %v1925 = vpop.f32.mrb[0].mxu0
        %v1926 = vadd.f32 0.0, %v1925
        %v1927 = vpop.f32.mrb[0].mxu0
        %1928 = vdwg.mxu0
        %v1929 = vadd.f32 %v1771, %v1899
        %v1930 = vadd.f32 %v1772, %v1902
        %v1931 = vadd.f32 %v1773, %v1907
        %v1932 = vadd.f32 %v1774, %v1910
        %v1933 = vadd.f32 %v1775, %v1915
        %v1934 = vadd.f32 %v1776, %v1918
        %v1935 = vadd.f32 %v1777, %v1923
        %v1936 = vadd.f32 %v1778, %v1926
        %v1937 = vld [vmem:[#allocation2 + $0x18] sm:$0xff]
        %v1938 = vld [vmem:[#allocation2 + $0x20] sm:$0xff]
        %v1939 = vld [vmem:[#allocation2 + $0x28] sm:$0xff]
        %v1940 = vld [vmem:[#allocation2 + $0x30] sm:$0xff]
        %v1941 = vld [vmem:[#allocation2 + $0x38] sm:$0xff]
        %v1942 = vld [vmem:[#allocation2 + $0x40] sm:$0xff]
        %v1943 = vld [vmem:[#allocation2 + $0x48] sm:$0xff]
        %v1944 = vld [vmem:[#allocation2 + $0x50] sm:$0xff]
        %v1945 = vpack.c.bf16 %v1938, %v1937
        %v1946 = vpack.c.bf16 %v1940, %v1939
        %v1947 = vpack.c.bf16 %v1942, %v1941
        %v1948 = vpack.c.bf16 %v1944, %v1943
        %s1949 = scalar_lea.vmem %s5, 448
        %v1950 = vld [vmem:[%s1949] sm:$0xf]
        %v1951 = vld [vmem:[%s1949 + $0x4] sm:$0xf]
        %v1952 = vld [vmem:[%s1949 + $0x8] sm:$0xf]
        %v1953 = vld [vmem:[%s1949 + $0xc] sm:$0xf]
        %v1954 = vld [vmem:[%s1949 + $0x10] sm:$0xf]
        %v1955 = vld [vmem:[%s1949 + $0x14] sm:$0xf]
        %v1956 = vld [vmem:[%s1949 + $0x18] sm:$0xf]
        %v1957 = vld [vmem:[%s1949 + $0x1c] sm:$0xf]
        %v1958 = vld [vmem:[%s1949 + $0x20] sm:$0xf]
        %v1959 = vld [vmem:[%s1949 + $0x24] sm:$0xf]
        %v1960 = vld [vmem:[%s1949 + $0x28] sm:$0xf]
        %v1961 = vld [vmem:[%s1949 + $0x2c] sm:$0xf]
        %v1962 = vld [vmem:[%s1949 + $0x30] sm:$0xf]
        %v1963 = vld [vmem:[%s1949 + $0x34] sm:$0xf]
        %v1964 = vld [vmem:[%s1949 + $0x38] sm:$0xf]
        %v1965 = vld [vmem:[%s1949 + $0x3c] sm:$0xf]
        %v1982 = vunpack.c.l.b16 %v1950
        %v1983 = vunpack.c.l.b16 %v1951
        %v1984 = vunpack.c.l.b16 %v1952
        %v1985 = vunpack.c.l.b16 %v1953
        %v1986 = vunpack.c.l.b16 %v1954
        %v1987 = vunpack.c.l.b16 %v1955
        %v1988 = vunpack.c.l.b16 %v1956
        %v1989 = vunpack.c.l.b16 %v1957
        %v1990 = vunpack.c.l.b16 %v1958
        %v1991 = vunpack.c.l.b16 %v1959
        %v1992 = vunpack.c.l.b16 %v1960
        %v1993 = vunpack.c.l.b16 %v1961
        %v1994 = vunpack.c.l.b16 %v1962
        %v1995 = vunpack.c.l.b16 %v1963
        %v1996 = vunpack.c.l.b16 %v1964
        %v1997 = vunpack.c.l.b16 %v1965
        %v1998 = vpack.c.b16 %v1983, %v1982
        %v1999 = vpack.c.b16 %v1985, %v1984
        %v2000 = vpack.c.b16 %v1987, %v1986
        %v2001 = vpack.c.b16 %v1989, %v1988
        %v2002 = vpack.c.b16 %v1991, %v1990
        %v2003 = vpack.c.b16 %v1993, %v1992
        %v2004 = vpack.c.b16 %v1995, %v1994
        %v2005 = vpack.c.b16 %v1997, %v1996
        %2014 = vmatprep.subr.bf16.mxu0 0
        %2015 = vmatpush1.bf16.msra.mxu0 %v1998
        %2016 = vmatprep.subr.bf16.mxu0 0
        %2017 = vmatpush1.bf16.msra.mxu0 %v1999
        %2018 = vmatprep.subr.bf16.mxu0 0
        %2019 = vmatpush1.bf16.msra.mxu0 %v2000
        %2020 = vmatprep.subr.bf16.mxu0 0
        %2021 = vmatpush1.bf16.msra.mxu0 %v2001
        %2022 = vmatprep.subr.bf16.mxu0 0
        %2023 = vmatpush1.bf16.msra.mxu0 %v2002
        %2024 = vmatprep.subr.bf16.mxu0 0
        %2025 = vmatpush1.bf16.msra.mxu0 %v2003
        %2026 = vmatprep.subr.bf16.mxu0 0
        %2027 = vmatpush1.bf16.msra.mxu0 %v2004
        %2028 = vmatprep.subr.bf16.mxu0 0
        %2029 = vmatpush1.bf16.msra.mxu0 %v2005
        %2030 = vmatprep.subr.bf16.mxu0 0
        %2031 = vmatpush1.bf16.msra.mxu0 0
        %2032 = vmatprep.subr.bf16.mxu0 0
        %2033 = vmatpush1.bf16.msra.mxu0 0
        %2034 = vmatprep.subr.bf16.mxu0 0
        %2035 = vmatpush1.bf16.msra.mxu0 0
        %2036 = vmatprep.subr.bf16.mxu0 0
        %2037 = vmatpush1.bf16.msra.mxu0 0
        %2038 = vmatprep.subr.bf16.mxu0 0
        %2039 = vmatpush1.bf16.msra.mxu0 0
        %2040 = vmatprep.subr.bf16.mxu0 0
        %2041 = vmatpush1.bf16.msra.mxu0 0
        %2042 = vmatprep.subr.bf16.mxu0 0
        %2043 = vmatpush1.bf16.msra.mxu0 0
        %2044 = vmatprep.subr.bf16.mxu0 0
        %2045 = vmatpush1.bf16.msra.mxu0 0
        %2046 = vmatprep.mubr.bf16.mxu0 0
        %2047 = vmatmul.mubr.bf16.gmra.mrb[0].mxu0 %v1945
        %v2048 = vpop.f32.mrb[0].mxu0
        %v2049 = vadd.f32 0.0, %v2048
        %v2050 = vpop.f32.mrb[0].mxu0
        %v2051 = vpop.f32.mrb[0].mxu0
        %v2052 = vadd.f32 0.0, %v2051
        %v2053 = vpop.f32.mrb[0].mxu0
        %2054 = vmatprep.mubr.bf16.mxu0 0
        %2055 = vmatmul.mubr.bf16.gmra.mrb[0].mxu0 %v1946
        %v2056 = vpop.f32.mrb[0].mxu0
        %v2057 = vadd.f32 0.0, %v2056
        %v2058 = vpop.f32.mrb[0].mxu0
        %v2059 = vpop.f32.mrb[0].mxu0
        %v2060 = vadd.f32 0.0, %v2059
        %v2061 = vpop.f32.mrb[0].mxu0
        %2062 = vmatprep.mubr.bf16.mxu0 0
        %2063 = vmatmul.mubr.bf16.gmra.mrb[0].mxu0 %v1947
        %v2064 = vpop.f32.mrb[0].mxu0
        %v2065 = vadd.f32 0.0, %v2064
        %v2066 = vpop.f32.mrb[0].mxu0
        %v2067 = vpop.f32.mrb[0].mxu0
        %v2068 = vadd.f32 0.0, %v2067
        %v2069 = vpop.f32.mrb[0].mxu0
        %2070 = vmatprep.mubr.bf16.mxu0 0
        %2071 = vmatmul.mubr.bf16.gmra.mrb[0].mxu0 %v1948
        %v2072 = vpop.f32.mrb[0].mxu0
        %v2073 = vadd.f32 0.0, %v2072
        %v2074 = vpop.f32.mrb[0].mxu0
        %v2075 = vpop.f32.mrb[0].mxu0
        %v2076 = vadd.f32 0.0, %v2075
        %v2077 = vpop.f32.mrb[0].mxu0
        %2078 = vdwg.mxu0
        %v2079 = vadd.f32 %v1929, %v2049
        %v2080 = vadd.f32 %v1930, %v2052
        %v2081 = vadd.f32 %v1931, %v2057
        %v2082 = vadd.f32 %v1932, %v2060
        %v2083 = vadd.f32 %v1933, %v2065
        %v2084 = vadd.f32 %v1934, %v2068
        %v2085 = vadd.f32 %v1935, %v2073
        %v2086 = vadd.f32 %v1936, %v2076
        %v2087 = vld [vmem:[#allocation2 + $0x19] sm:$0xff]
        %v2088 = vld [vmem:[#allocation2 + $0x21] sm:$0xff]
        %v2089 = vld [vmem:[#allocation2 + $0x29] sm:$0xff]
        %v2090 = vld [vmem:[#allocation2 + $0x31] sm:$0xff]
        %v2091 = vld [vmem:[#allocation2 + $0x39] sm:$0xff]
        %v2092 = vld [vmem:[#allocation2 + $0x41] sm:$0xff]
        %v2093 = vld [vmem:[#allocation2 + $0x49] sm:$0xff]
        %v2094 = vld [vmem:[#allocation2 + $0x51] sm:$0xff]
        %v2095 = vsel %vm1155, %v2087, 0.0
        %v2096 = vsel %vm1156, %v2088, 0.0
        %v2097 = vsel %vm1157, %v2089, 0.0
        %v2098 = vsel %vm1158, %v2090, 0.0
        %v2099 = vsel %vm1159, %v2091, 0.0
        %v2100 = vsel %vm1160, %v2092, 0.0
        %v2101 = vsel %vm1161, %v2093, 0.0
        %v2102 = vsel %vm1162, %v2094, 0.0
        %v2103 = vpack.c.bf16 %v2096, %v2095
        %v2104 = vpack.c.bf16 %v2098, %v2097
        %v2105 = vpack.c.bf16 %v2100, %v2099
        %v2106 = vpack.c.bf16 %v2102, %v2101
        %s2107 = scalar_lea.vmem %s5, 512
        %v2108 = vld [vmem:[%s2107] sm:$0xf]
        %v2109 = vld [vmem:[%s2107 + $0x4] sm:$0xf]
        %v2110 = vld [vmem:[%s2107 + $0x8] sm:$0xf]
        %v2111 = vld [vmem:[%s2107 + $0xc] sm:$0xf]
        %v2112 = vld [vmem:[%s2107 + $0x10] sm:$0xf]
        %v2113 = vld [vmem:[%s2107 + $0x14] sm:$0xf]
        %v2114 = vld [vmem:[%s2107 + $0x18] sm:$0xf]
        %v2115 = vld [vmem:[%s2107 + $0x1c] sm:$0xf]
        %v2116 = vld [vmem:[%s2107 + $0x20] sm:$0xf]
        %v2117 = vld [vmem:[%s2107 + $0x24] sm:$0xf]
        %v2118 = vld [vmem:[%s2107 + $0x28] sm:$0xf]
        %v2119 = vld [vmem:[%s2107 + $0x2c] sm:$0xf]
        %v2120 = vld [vmem:[%s2107 + $0x30] sm:$0xf]
        %v2121 = vld [vmem:[%s2107 + $0x34] sm:$0xf]
        %v2122 = vld [vmem:[%s2107 + $0x38] sm:$0xf]
        %v2123 = vld [vmem:[%s2107 + $0x3c] sm:$0xf]
        %v2140 = vunpack.c.l.b16 %v2108
        %v2141 = vunpack.c.l.b16 %v2109
        %v2142 = vunpack.c.l.b16 %v2110
        %v2143 = vunpack.c.l.b16 %v2111
        %v2144 = vunpack.c.l.b16 %v2112
        %v2145 = vunpack.c.l.b16 %v2113
        %v2146 = vunpack.c.l.b16 %v2114
        %v2147 = vunpack.c.l.b16 %v2115
        %v2148 = vunpack.c.l.b16 %v2116
        %v2149 = vunpack.c.l.b16 %v2117
        %v2150 = vunpack.c.l.b16 %v2118
        %v2151 = vunpack.c.l.b16 %v2119
        %v2152 = vunpack.c.l.b16 %v2120
        %v2153 = vunpack.c.l.b16 %v2121
        %v2154 = vunpack.c.l.b16 %v2122
        %v2155 = vunpack.c.l.b16 %v2123
        %v2156 = vpack.c.b16 %v2141, %v2140
        %v2157 = vpack.c.b16 %v2143, %v2142
        %v2158 = vpack.c.b16 %v2145, %v2144
        %v2159 = vpack.c.b16 %v2147, %v2146
        %v2160 = vpack.c.b16 %v2149, %v2148
        %v2161 = vpack.c.b16 %v2151, %v2150
        %v2162 = vpack.c.b16 %v2153, %v2152
        %v2163 = vpack.c.b16 %v2155, %v2154
        %2172 = vmatprep.subr.bf16.mxu0 0
        %2173 = vmatpush1.bf16.msra.mxu0 %v2156
        %2174 = vmatprep.subr.bf16.mxu0 0
        %2175 = vmatpush1.bf16.msra.mxu0 %v2157
        %2176 = vmatprep.subr.bf16.mxu0 0
        %2177 = vmatpush1.bf16.msra.mxu0 %v2158
        %2178 = vmatprep.subr.bf16.mxu0 0
        %2179 = vmatpush1.bf16.msra.mxu0 %v2159
        %2180 = vmatprep.subr.bf16.mxu0 0
        %2181 = vmatpush1.bf16.msra.mxu0 %v2160
        %2182 = vmatprep.subr.bf16.mxu0 0
        %2183 = vmatpush1.bf16.msra.mxu0 %v2161
        %2184 = vmatprep.subr.bf16.mxu0 0
        %2185 = vmatpush1.bf16.msra.mxu0 %v2162
        %2186 = vmatprep.subr.bf16.mxu0 0
        %2187 = vmatpush1.bf16.msra.mxu0 %v2163
        %2188 = vmatprep.subr.bf16.mxu0 0
        %2189 = vmatpush1.bf16.msra.mxu0 0
        %2190 = vmatprep.subr.bf16.mxu0 0
        %2191 = vmatpush1.bf16.msra.mxu0 0
        %2192 = vmatprep.subr.bf16.mxu0 0
        %2193 = vmatpush1.bf16.msra.mxu0 0
        %2194 = vmatprep.subr.bf16.mxu0 0
        %2195 = vmatpush1.bf16.msra.mxu0 0
        %2196 = vmatprep.subr.bf16.mxu0 0
        %2197 = vmatpush1.bf16.msra.mxu0 0
        %2198 = vmatprep.subr.bf16.mxu0 0
        %2199 = vmatpush1.bf16.msra.mxu0 0
        %2200 = vmatprep.subr.bf16.mxu0 0
        %2201 = vmatpush1.bf16.msra.mxu0 0
        %2202 = vmatprep.subr.bf16.mxu0 0
        %2203 = vmatpush1.bf16.msra.mxu0 0
        %2204 = vmatprep.mubr.bf16.mxu0 0
        %2205 = vmatmul.mubr.bf16.gmra.mrb[0].mxu0 %v2103
        %v2206 = vpop.f32.mrb[0].mxu0
        %v2207 = vadd.f32 0.0, %v2206
        %v2208 = vpop.f32.mrb[0].mxu0
        %v2209 = vpop.f32.mrb[0].mxu0
        %v2210 = vadd.f32 0.0, %v2209
        %v2211 = vpop.f32.mrb[0].mxu0
        %2212 = vmatprep.mubr.bf16.mxu0 0
        %2213 = vmatmul.mubr.bf16.gmra.mrb[0].mxu0 %v2104
        %v2214 = vpop.f32.mrb[0].mxu0
        %v2215 = vadd.f32 0.0, %v2214
        %v2216 = vpop.f32.mrb[0].mxu0
        %v2217 = vpop.f32.mrb[0].mxu0
        %v2218 = vadd.f32 0.0, %v2217
        %v2219 = vpop.f32.mrb[0].mxu0
        %2220 = vmatprep.mubr.bf16.mxu0 0
        %2221 = vmatmul.mubr.bf16.gmra.mrb[0].mxu0 %v2105
        %v2222 = vpop.f32.mrb[0].mxu0
        %v2223 = vadd.f32 0.0, %v2222
        %v2224 = vpop.f32.mrb[0].mxu0
        %v2225 = vpop.f32.mrb[0].mxu0
        %v2226 = vadd.f32 0.0, %v2225
        %v2227 = vpop.f32.mrb[0].mxu0
        %2228 = vmatprep.mubr.bf16.mxu0 0
        %2229 = vmatmul.mubr.bf16.gmra.mrb[0].mxu0 %v2106
        %v2230 = vpop.f32.mrb[0].mxu0
        %v2231 = vadd.f32 0.0, %v2230
        %v2232 = vpop.f32.mrb[0].mxu0
        %v2233 = vpop.f32.mrb[0].mxu0
        %v2234 = vadd.f32 0.0, %v2233
        %v2235 = vpop.f32.mrb[0].mxu0
        %2236 = vdwg.mxu0
        %v2237 = vadd.f32 %v2079, %v2207
        %v2238 = vadd.f32 %v2080, %v2210
        %v2239 = vadd.f32 %v2081, %v2215
        %v2240 = vadd.f32 %v2082, %v2218
        %v2241 = vadd.f32 %v2083, %v2223
        %v2242 = vadd.f32 %v2084, %v2226
        %v2243 = vadd.f32 %v2085, %v2231
        %v2244 = vadd.f32 %v2086, %v2234
        %v2245 = vld [vmem:[%s6] sm:$0x1]
        %v2247 = vlaneseq
        %v2248 = vshrl.u32 %v2247, 7
        %v2249 = vsub.s32 0, %v2248
        %v2250 = vrot.slane %v2245, %v2249
        %v2252 = vadd.f32 %v2237, %v2250
        %v2253 = vadd.f32 %v2238, %v2250
        %v2254 = vadd.f32 %v2239, %v2250
        %v2255 = vadd.f32 %v2240, %v2250
        %v2256 = vadd.f32 %v2241, %v2250
        %v2257 = vadd.f32 %v2242, %v2250
        %v2258 = vadd.f32 %v2243, %v2250
        %v2259 = vadd.f32 %v2244, %v2250
        %2260 = vst [vmem:[%s336] sm:$0xff] %v2252
        %2261 = vst [vmem:[%s336 + $0x8] sm:$0xff] %v2253
        %2262 = vst [vmem:[%s336 + $0x10] sm:$0xff] %v2254
        %2263 = vst [vmem:[%s336 + $0x18] sm:$0xff] %v2255
        %2264 = vst [vmem:[%s336 + $0x20] sm:$0xff] %v2256
        %2265 = vst [vmem:[%s336 + $0x28] sm:$0xff] %v2257
        %2266 = vst [vmem:[%s336 + $0x30] sm:$0xff] %v2258
        %2267 = vst [vmem:[%s336 + $0x38] sm:$0xff] %v2259
        %s2268 = sand.u32 %s188, 1
        %s2269 = scalar_lea.sflag [#allocation4], %s2268
        %s2270 = sand.u32 %s188, 1
        %s2271 = smul.addr %s2270, 64
        %s2272 = scalar_lea.vmem [#allocation3], %s2271
        %p2273 = scmp.lt.s32.totalorder %s23, 1
        %s2274 = scalar_select %p2273, %s23, 1
        %s2275 = smul.addr %s2274, 8
        %s2276 = smul.addr %s2275, 8
        %s2277 = scalar_lea.vmem %s8, %s2276
        // Predicated region
        $region49: #{backbone_with_fpn_forward.11} parent=47 // pred_check
          %p2278 = pneg %p198
        $region50: #{backbone_with_fpn_forward.11} parent=47 // pred_check_branch
          %2280 = sbr.rel (%p2278) target = $region52
        $region51: #{backbone_with_fpn_forward.11} parent=47 // pred_region
          %s2282 = ssub.s32 1024, 1024
          %2283 = vsyncadd %s2269, %s2282
          %s2284 = smul.addr %s23, 16
          %s2285 = smul.addr %s2284, 64
          %s2286 = scalar_lea.hbm %s7, %s2285
          %s2287 = sshll.u32 %s2272, 4
          %s2288 = int_to_ptr.vmem [resolvable:$true] %s2287
          %2293 = dma.vmem_to_hbm [thread:$0]  %s2288, 1024, %s2286, %s2269, 64, 64, 4
        $region52: #{backbone_with_fpn_forward.11} parent=47 // pred_fallthru
          _
        // Predicated region
        $region53: #{backbone_with_fpn_forward.11} parent=47 // pred_check
          %p2294 = pneg %p224
        $region54: #{backbone_with_fpn_forward.11} parent=47 // pred_check_branch
          %2296 = sbr.rel (%p2294) target = $region56
        $region55: #{backbone_with_fpn_forward.11} parent=47 // pred_region
          _
        $region56: #{backbone_with_fpn_forward.11} parent=47 // pred_fallthru
          _
      $region48: #{backbone_with_fpn_forward.11} parent=5 // pred_fallthru
        _
      %p2297 = scmp.le.s32.totalorder 2, %s18
      // Predicated region
      $region57: #{backbone_with_fpn_forward.11} parent=5 // pred_check
        %p2298 = pneg %p2297
      $region58: #{backbone_with_fpn_forward.11} parent=5 // pred_check_branch
        %2300 = sbr.rel (%p2298) target = $region60
      $region59: #{backbone_with_fpn_forward.11} parent=5 // pred_region
        %s2301 = ssub.s32 %s18, 2
        // Predicated region
        $region61: #{backbone_with_fpn_forward.11} parent=59 // pred_check
          %p2302 = pneg %p204
        $region62: #{backbone_with_fpn_forward.11} parent=59 // pred_check_branch
          %2304 = sbr.rel (%p2302) target = $region64
        $region63: #{backbone_with_fpn_forward.11} parent=59 // pred_region
          %s2305 = sand.u32 %s189, 1
          %s2306 = scalar_lea.sflag [#allocation4], %s2305
          %s2307 = sand.u32 %s189, 1
          %s2308 = smul.addr %s2307, 64
          %s2309 = scalar_lea.vmem [#allocation3], %s2308
          %2310 = dma.done %s2306, 1024
        $region64: #{backbone_with_fpn_forward.11} parent=59 // pred_fallthru
          _
        // Predicated region
        $region65: #{backbone_with_fpn_forward.11} parent=59 // pred_check
          %p2311 = pneg %p230
        $region66: #{backbone_with_fpn_forward.11} parent=59 // pred_check_branch
          %2313 = sbr.rel (%p2311) target = $region68
        $region67: #{backbone_with_fpn_forward.11} parent=59 // pred_region
          %p2314 = scmp.lt.s32.totalorder %s24, 1
          %s2315 = scalar_select %p2314, %s24, 1
          %s2316 = smul.addr %s2315, 8
          %s2317 = smul.addr %s2316, 8
          %s2318 = scalar_lea.vmem %s8, %s2317
        $region68: #{backbone_with_fpn_forward.11} parent=59 // pred_fallthru
          _
      $region60: #{backbone_with_fpn_forward.11} parent=5 // pred_fallthru
        _
    $region6: #{backbone_with_fpn_forward.11} parent=1 // loop_footer
      %s22 = sadd.s32 1, %s18
    $region7: #{backbone_with_fpn_forward.11} parent=1 // loop_footer_branch
      %17 = sbr.rel target = $region3
    $region8: #{backbone_with_fpn_forward.11} parent=1 // loop_exit
      _
    %2319 = vsyncpa [#allocation4], 1
    %s2320 = scalar_lea.sflag [#allocation4], 1
    %2321 = vsyncpa %s2320, 1

</llo_original>
